<compile_context>
chip_gen: v7x
topology: tpu7x:2x2x1
jax: 0.10.0
libtpu: 0.0.40
codegen_flags: <defaults>
</compile_context>

<pallas_src>
import functools
import math

import jax
import jax.numpy as jnp
from jax.experimental import pallas as pl
from jax.experimental.pallas import tpu as pltpu

LN_EPS = 1e-5

_WEIGHT_ORDER = ("ln1_g", "ln1_b", "w_qkv", "b_qkv", "w_out", "b_out",
                 "ln2_g", "ln2_b", "w_fc1", "b_fc1", "w_fc2", "b_fc2")


def _layer_norm(x, gamma, beta):
    # Single-pass LN: one sum(x) + one sum(x*x) cross-lane reduction.
    n = x.shape[-1]
    s1 = jnp.sum(x, axis=-1, keepdims=True)
    s2 = jnp.sum(x * x, axis=-1, keepdims=True)
    mean = s1 * (1.0 / n)
    var = s2 * (1.0 / n) - mean * mean
    return (x - mean) * jax.lax.rsqrt(var + LN_EPS) * gamma + beta


def _gelu(x):
    # tanh-approximate GELU in f32.
    # TODO(synk): PyTorch nn.GELU defaults to the exact erf form; the tanh
    # approximation deviates by ~1e-3.
    c = math.sqrt(2.0 / math.pi)
    return 0.5 * x * (1.0 + jnp.tanh(c * (x + 0.044715 * x * x * x)))


def _decoder_kernel(
    x_ref,
    ln1g_ref, ln1b_ref, wqkv_ref, bqkv_ref, wo_ref, bo_ref,
    ln2g_ref, ln2b_ref, w1_ref, b1_ref, w2_ref, b2_ref,
    tok_ref, mg_ref, mb_ref,
    o_ref,
    x_scr, ctx_scr,
    *, n_batch, seq, heads,
):
    layer = pl.program_id(1)
    n_layers = pl.num_programs(1)
    D = x_scr.shape[-1]
    dh = D // heads
    scale = 1.0 / math.sqrt(dh)

    # Load the residual stream once per row block; it then lives in VMEM scratch
    # across all layer iterations (no inter-layer HBM traffic).
    @pl.when(layer == 0)
    def _():
        x_scr[...] = x_ref[...]

    x = x_scr[...]                                                     # (rows, D) f32

    # ---- norm1 + fused QKV projection (one MXU pass, M = rows = B*S) ----
    xn = _layer_norm(x, ln1g_ref[0], ln1b_ref[0])
    qkv = jnp.dot(xn.astype(jnp.bfloat16), wqkv_ref[0],
                  preferred_element_type=jnp.float32) + bqkv_ref[0]    # (rows, 3D) f32

    # ---- attention: static per-(batch, head) loop over lane-aligned slices ----
    # Each head's context goes straight into its (S, dh) slice of ctx_scr
    # (no stack / concat copies).
    for b in range(n_batch):
        r0 = b * seq
        for h in range(heads):
            c0 = h * dh
            q = qkv[r0:r0 + seq, c0:c0 + dh].astype(jnp.bfloat16)
            k = qkv[r0:r0 + seq, D + c0:D + c0 + dh].astype(jnp.bfloat16)
            v = qkv[r0:r0 + seq, 2 * D + c0:2 * D + c0 + dh].astype(jnp.bfloat16)
            s = jnp.dot(q, k.T, preferred_element_type=jnp.float32) * scale   # (S, S)
            s = s - jnp.max(s, axis=-1, keepdims=True)
            p = jnp.exp(s)
            p = p * pl.reciprocal(jnp.sum(p, axis=-1, keepdims=True), approx=True)
            ctx_scr[r0:r0 + seq, c0:c0 + dh] = jnp.dot(
                p.astype(jnp.bfloat16), v, preferred_element_type=jnp.float32)

    # ---- output projection + residual 1 (DropPath = identity at inference) ----
    attn = jnp.dot(ctx_scr[...].astype(jnp.bfloat16), wo_ref[0],
                   preferred_element_type=jnp.float32) + bo_ref[0]
    x1 = x + attn

    # ---- norm2 + MLP + residual 2 ----
    x2n = _layer_norm(x1, ln2g_ref[0], ln2b_ref[0])
    hid = jnp.dot(x2n.astype(jnp.bfloat16), w1_ref[0],
                  preferred_element_type=jnp.float32) + b1_ref[0]
    hid = _gelu(hid)
    mlp = jnp.dot(hid.astype(jnp.bfloat16), w2_ref[0],
                  preferred_element_type=jnp.float32) + b2_ref[0]
    x_new = x1 + mlp
    x_scr[...] = x_new

    # ---- mask head, fused into the last layer iteration ----
    @pl.when(layer == n_layers - 1)
    def _():
        m = jnp.dot(x_new.astype(jnp.bfloat16), tok_ref[...],
                    preferred_element_type=jnp.float32)                # (rows, N)
        o_ref[...] = _layer_norm(m, mg_ref[...], mb_ref[...]).astype(o_ref.dtype)
    # TODO(synk): dropout / DropPath stochastic branches omitted (eval-mode forward).


@functools.partial(jax.jit, static_argnames=("heads", "grid_hw", "row_blocks"))
def decoder_forward(x, params, *, heads, grid_hw, row_blocks=1):
    """Decoder.forward: stacked DecoderBlocks -> tokenizer matmul -> mask LayerNorm
    -> rearrange 'b (h w) n -> b n h w'.  One fused pallas_call for everything but
    the final layout-only permute.

    row_blocks=1 folds the whole batch into the matmul rows (best MXU fill on
    single-TC v5e/v6e).  On v7x, set row_blocks=B to shard the parallel row axis
    across both TensorCores.  # TODO(synk): auto-detect TC count.
    """
    B, S, D = x.shape
    L = params["w_qkv"].shape[0]
    N = params["tokenizer"].shape[-1]
    HS = params["w_fc1"].shape[-1]
    assert D % heads == 0 and B % row_blocks == 0
    bpb = B // row_blocks          # batch elements per row block
    rows = bpb * S                 # matmul M dim per grid step

    x2d = x.reshape(B * S, D)

    weights = [params[n] for n in _WEIGHT_ORDER]
    head_w = [params["tokenizer"], params["mask_g"], params["mask_b"]]

    x_spec = pl.BlockSpec((rows, D), lambda r, l: (r, 0))
    # Layer-stacked weights: streamed per layer iteration (auto double-buffered).
    w_specs = [pl.BlockSpec((1,) + w.shape[1:], lambda r, l: (l, 0, 0)) for w in weights]
    # Mask-head weights: constant index map -> fetched once, stay resident.
    head_specs = [pl.BlockSpec(w.shape, lambda r, l: (0, 0)) for w in head_w]
    out_spec = pl.BlockSpec((rows, N), lambda r, l: (r, 0))

    # VMEM budget: in/out blocks (double-buffered) + 2x one layer's weights (pipeline)
    # + resident head weights + residual/context scratch + intermediates + headroom.
    act_block = rows * max(D, N) * 4
    layer_w_bytes = sum((w.size // L) * w.dtype.itemsize for w in weights)
    head_w_bytes = sum(w.size * w.dtype.itemsize for w in head_w)
    scratch_bytes = 2 * rows * D * 4
    interm_bytes = rows * (3 * D + HS) * 4
    need = (4 * act_block + 2 * layer_w_bytes + 2 * head_w_bytes
            + scratch_bytes + interm_bytes + (4 << 20))
    vmem_limit = int(min(max(need, 16 << 20), 32 << 20))   # safe on 64 MiB v7x too

    kernel = functools.partial(_decoder_kernel, n_batch=bpb, seq=S, heads=heads)
    masks2d = pl.pallas_call(
        kernel,
        out_shape=jax.ShapeDtypeStruct((B * S, N), jnp.float32),
        grid=(row_blocks, L),
        in_specs=[x_spec] + w_specs + head_specs,
        out_specs=out_spec,
        scratch_shapes=[pltpu.VMEM((rows, D), jnp.float32),   # residual stream
                        pltpu.VMEM((rows, D), jnp.float32)],  # attention context
        compiler_params=pltpu.CompilerParams(
            dimension_semantics=("parallel", "arbitrary"),
            vmem_limit_bytes=vmem_limit,
        ),
    )(x2d, *weights, *head_w)

    gh, gw = grid_hw
    masks = masks2d.reshape(B, S, N)
    # 'b (h w) n -> b n h w' is a pure layout permute -> done in the jitted wrapper.
    return jnp.transpose(masks, (0, 2, 1)).reshape(B, N, gh, gw)


def decoder_reference(x, params, heads, grid_hw):
    """Pure-JAX reference with the same bf16 matmul-operand casting."""
    bf = lambda a: a.astype(jnp.bfloat16)

    def ln(v, g, b):
        m = jnp.mean(v, axis=-1, keepdims=True)
        var = jnp.mean((v - m) ** 2, axis=-1, keepdims=True)
        return (v - m) * jax.lax.rsqrt(var + LN_EPS) * g + b

    B, S, D = x.shape
    dh = D // heads
    scale = 1.0 / math.sqrt(dh)
    L = params["w_qkv"].shape[0]
    for i in range(L):
        xn = ln(x, params["ln1_g"][i], params["ln1_b"][i])
        qkv = jnp.dot(bf(xn), params["w_qkv"][i],
                      preferred_element_type=jnp.float32) + params["b_qkv"][i]
        q, k, v = qkv[..., :D], qkv[..., D:2 * D], qkv[..., 2 * D:]
        q = q.reshape(B, S, heads, dh).transpose(0, 2, 1, 3)
        k = k.reshape(B, S, heads, dh).transpose(0, 2, 1, 3)
        v = v.reshape(B, S, heads, dh).transpose(0, 2, 1, 3)
        s = jnp.einsum("bhqd,bhkd->bhqk", bf(q), bf(k),
                       preferred_element_type=jnp.float32) * scale
        pr = jax.nn.softmax(s, axis=-1)
        a = jnp.einsum("bhqk,bhkd->bhqd", bf(pr), bf(v),
                       preferred_element_type=jnp.float32)
        a = a.transpose(0, 2, 1, 3).reshape(B, S, D)
        a = jnp.dot(bf(a), params["w_out"][i],
                    preferred_element_type=jnp.float32) + params["b_out"][i]
        x1 = x + a
        x2n = ln(x1, params["ln2_g"][i], params["ln2_b"][i])
        h = jnp.dot(bf(x2n), params["w_fc1"][i],
                    preferred_element_type=jnp.float32) + params["b_fc1"][i]
        h = _gelu(h)
        mlp = jnp.dot(bf(h), params["w_fc2"][i],
                      preferred_element_type=jnp.float32) + params["b_fc2"][i]
        x = x1 + mlp

    masks = jnp.einsum("bsd,dn->bsn", bf(x), params["tokenizer"],
                       preferred_element_type=jnp.float32)
    masks = ln(masks, params["mask_g"], params["mask_b"])
    gh, gw = grid_hw
    N = masks.shape[-1]
    return jnp.transpose(masks, (0, 2, 1)).reshape(B, N, gh, gw)


def init_params(key, dim, heads, h_size, num_classes, layers):
    """Per-layer weights stacked on a leading layer axis (for layer-indexed BlockSpecs)."""
    def nrm(k, shape, s=0.02, dtype=jnp.float32):
        return (s * jax.random.normal(k, shape)).astype(dtype)

    ks = jax.random.split(key, 13)
    L = layers
    return {
        "ln1_g": (1.0 + 0.1 * jax.random.normal(ks[0], (L, 1, dim))).astype(jnp.float32),
        "ln1_b": nrm(ks[1], (L, 1, dim), 0.1),
        # Fused QKV projection, pre-transposed to (in, out), bf16 for the MXU.
        "w_qkv": nrm(ks[2], (L, dim, 3 * dim), 0.02, jnp.bfloat16),
        "b_qkv": nrm(ks[3], (L, 1, 3 * dim), 0.01),
        "w_out": nrm(ks[4], (L, dim, dim), 0.02, jnp.bfloat16),
        "b_out": nrm(ks[5], (L, 1, dim), 0.01),
        "ln2_g": (1.0 + 0.1 * jax.random.normal(ks[6], (L, 1, dim))).astype(jnp.float32),
        "ln2_b": nrm(ks[7], (L, 1, dim), 0.1),
        "w_fc1": nrm(ks[8], (L, dim, h_size), 0.02, jnp.bfloat16),
        "b_fc1": jnp.zeros((L, 1, h_size), jnp.float32),
        "w_fc2": nrm(ks[9], (L, h_size, dim), 0.02, jnp.bfloat16),
        "b_fc2": jnp.zeros((L, 1, dim), jnp.float32),
        # Decoder.tokenizer: Parameter(randn(1, dim, classes)); stored as (dim, classes).
        "tokenizer": jax.random.normal(ks[10], (dim, num_classes)).astype(jnp.bfloat16),
        "mask_g": (1.0 + 0.1 * jax.random.normal(ks[11], (1, num_classes))).astype(jnp.float32),
        "mask_b": nrm(ks[12], (1, num_classes), 0.1),
    }


if __name__ == "__main__":
    # Small but lane-dense shapes: D, 3D, HS, dh, num_classes all multiples of 128.
    B = 2
    PATCH, INPUT_HW = 16, (128, 128)
    GRID_HW = (INPUT_HW[0] // PATCH, INPUT_HW[1] // PATCH)   # (8, 8)
    S = GRID_HW[0] * GRID_HW[1]                              # 64 tokens
    D, HEADS, HS = 256, 2, 512                               # head dim = 128
    N_CLS, LAYERS = 128, 2

    key = jax.random.PRNGKey(0)
    kx, kp = jax.random.split(key)
    x = jax.random.normal(kx, (B, S, D), dtype=jnp.float32)
    params = init_params(kp, D, HEADS, HS, N_CLS, LAYERS)

    out = jax.block_until_ready(
        decoder_forward(x, params, heads=HEADS, grid_hw=GRID_HW))
    ref = jax.block_until_ready(decoder_reference(x, params, HEADS, GRID_HW))

    assert out.shape == (B, N_CLS, GRID_HW[0], GRID_HW[1])
    assert jnp.allclose(out, ref, atol=2e-2, rtol=2e-2), (
        "kernel/reference mismatch: max abs diff "
        f"{float(jnp.max(jnp.abs(out - ref)))}")
    print("KERNEL_OK")
</pallas_src>

<mosaic_0001>
module attributes {stable_mosaic.version = 11 : i64} {
  func.func @_decoder_kernel(%arg0: i32, %arg1: i32, %arg2: memref<128x256xf32, #tpu.memory_space<vmem>>, %arg3: memref<1x1x256xf32, #tpu.memory_space<vmem>>, %arg4: memref<1x1x256xf32, #tpu.memory_space<vmem>>, %arg5: memref<1x256x768xbf16, #tpu.memory_space<vmem>>, %arg6: memref<1x1x768xf32, #tpu.memory_space<vmem>>, %arg7: memref<1x256x256xbf16, #tpu.memory_space<vmem>>, %arg8: memref<1x1x256xf32, #tpu.memory_space<vmem>>, %arg9: memref<1x1x256xf32, #tpu.memory_space<vmem>>, %arg10: memref<1x1x256xf32, #tpu.memory_space<vmem>>, %arg11: memref<1x256x512xbf16, #tpu.memory_space<vmem>>, %arg12: memref<1x1x512xf32, #tpu.memory_space<vmem>>, %arg13: memref<1x512x256xbf16, #tpu.memory_space<vmem>>, %arg14: memref<1x1x256xf32, #tpu.memory_space<vmem>>, %arg15: memref<256x128xbf16, #tpu.memory_space<vmem>>, %arg16: memref<1x128xf32, #tpu.memory_space<vmem>>, %arg17: memref<1x128xf32, #tpu.memory_space<vmem>>, %arg18: memref<128x128xf32, #tpu.memory_space<vmem>>, %arg19: memref<128x256xf32, #tpu.memory_space<vmem>>, %arg20: memref<128x256xf32, #tpu.memory_space<vmem>>) attributes {dimension_semantics = [#tpu.dimension_semantics<parallel>, #tpu.dimension_semantics<arbitrary>], iteration_bounds = array<i64: 1, 2>, scalar_prefetch = 0 : i64, scratch_operands = 2 : i64, tpu.core_type = #tpu.core_type<tc>, window_params = [{transform_indices = @transform_0, window_bounds = array<i64: 128, 256>}, {transform_indices = @transform_1, window_bounds = array<i64: 1, 1, 256>}, {transform_indices = @transform_2, window_bounds = array<i64: 1, 1, 256>}, {transform_indices = @transform_3, window_bounds = array<i64: 1, 256, 768>}, {transform_indices = @transform_4, window_bounds = array<i64: 1, 1, 768>}, {transform_indices = @transform_5, window_bounds = array<i64: 1, 256, 256>}, {transform_indices = @transform_6, window_bounds = array<i64: 1, 1, 256>}, {transform_indices = @transform_7, window_bounds = array<i64: 1, 1, 256>}, {transform_indices = @transform_8, window_bounds = array<i64: 1, 1, 256>}, {transform_indices = @transform_9, window_bounds = array<i64: 1, 256, 512>}, {transform_indices = @transform_10, window_bounds = array<i64: 1, 1, 512>}, {transform_indices = @transform_11, window_bounds = array<i64: 1, 512, 256>}, {transform_indices = @transform_12, window_bounds = array<i64: 1, 1, 256>}, {pipeline_mode = #tpu.pipeline_mode<synchronous>, transform_indices = @transform_13, window_bounds = array<i64: 256, 128>}, {pipeline_mode = #tpu.pipeline_mode<synchronous>, transform_indices = @transform_14, window_bounds = array<i64: 1, 128>}, {pipeline_mode = #tpu.pipeline_mode<synchronous>, transform_indices = @transform_15, window_bounds = array<i64: 1, 128>}, {transform_indices = @transform_16, window_bounds = array<i64: 128, 128>}]} {
    %c0_i32 = arith.constant 0 : i32
    %0 = arith.cmpi eq, %arg1, %c0_i32 : i32
    %1 = arith.extui %0 : i1 to i32
    %c0_i32_0 = arith.constant 0 : i32
    %2 = arith.cmpi ne, %1, %c0_i32_0 : i32
    scf.if %2 {
      %c0_86 = arith.constant 0 : index
      %c0_87 = arith.constant 0 : index
      %200 = vector.load %arg2[%c0_86, %c0_87] : memref<128x256xf32, #tpu.memory_space<vmem>>, vector<128x256xf32>
      %c0_88 = arith.constant 0 : index
      %c0_89 = arith.constant 0 : index
      %201 = vector.load %arg19[%c0_88, %c0_89] : memref<128x256xf32, #tpu.memory_space<vmem>>, vector<128x256xf32>
      tpu.vector_store %arg19[%c0_88, %c0_89], %200 {strides = array<i32>} : memref<128x256xf32, #tpu.memory_space<vmem>>, vector<128x256xf32>,
    } else {
    }
    %c0 = arith.constant 0 : index
    %c0_1 = arith.constant 0 : index
    %3 = vector.load %arg19[%c0, %c0_1] : memref<128x256xf32, #tpu.memory_space<vmem>>, vector<128x256xf32>
    %c0_2 = arith.constant 0 : index
    %c0_3 = arith.constant 0 : index
    %c0_4 = arith.constant 0 : index
    %4 = vector.load %arg3[%c0_2, %c0_3, %c0_4] : memref<1x1x256xf32, #tpu.memory_space<vmem>>, vector<1x1x256xf32>
    %5 = vector.shape_cast %4 : vector<1x1x256xf32> to vector<1x256xf32>
    %c0_5 = arith.constant 0 : index
    %c0_6 = arith.constant 0 : index
    %c0_7 = arith.constant 0 : index
    %6 = vector.load %arg4[%c0_5, %c0_6, %c0_7] : memref<1x1x256xf32, #tpu.memory_space<vmem>>, vector<1x1x256xf32>
    %7 = vector.shape_cast %6 : vector<1x1x256xf32> to vector<1x256xf32>
    %cst = arith.constant dense<0.000000e+00> : vector<128xf32>
    %8 = vector.multi_reduction <add>, %3, %cst [1] : vector<128x256xf32> to vector<128xf32>
    %9 = vector.shape_cast %8 : vector<128xf32> to vector<128x1xf32>
    %10 = arith.mulf %3, %3 : vector<128x256xf32>
    %cst_8 = arith.constant dense<0.000000e+00> : vector<128xf32>
    %11 = vector.multi_reduction <add>, %10, %cst_8 [1] : vector<128x256xf32> to vector<128xf32>
    %12 = vector.shape_cast %11 : vector<128xf32> to vector<128x1xf32>
    %cst_9 = arith.constant 3.906250e-03 : f32
    %13 = vector.broadcast %cst_9 : f32 to vector<128x1xf32>
    %14 = arith.mulf %9, %13 : vector<128x1xf32>
    %cst_10 = arith.constant 3.906250e-03 : f32
    %15 = vector.broadcast %cst_10 : f32 to vector<128x1xf32>
    %16 = arith.mulf %12, %15 : vector<128x1xf32>
    %17 = arith.mulf %14, %14 : vector<128x1xf32>
    %18 = arith.subf %16, %17 : vector<128x1xf32>
    %19 = vector.broadcast %14 : vector<128x1xf32> to vector<128x256xf32>
    %20 = arith.subf %3, %19 : vector<128x256xf32>
    %cst_11 = arith.constant 9.99999974E-6 : f32
    %21 = vector.broadcast %cst_11 : f32 to vector<128x1xf32>
    %22 = arith.addf %18, %21 : vector<128x1xf32>
    %23 = math.rsqrt %22 : vector<128x1xf32>
    %24 = vector.broadcast %23 : vector<128x1xf32> to vector<128x256xf32>
    %25 = arith.mulf %20, %24 : vector<128x256xf32>
    %26 = vector.broadcast %5 : vector<1x256xf32> to vector<128x256xf32>
    %27 = arith.mulf %25, %26 : vector<128x256xf32>
    %28 = vector.broadcast %7 : vector<1x256xf32> to vector<128x256xf32>
    %29 = arith.addf %27, %28 : vector<128x256xf32>
    %30 = arith.truncf %29 : vector<128x256xf32> to vector<128x256xbf16>
    %c0_12 = arith.constant 0 : index
    %c0_13 = arith.constant 0 : index
    %c0_14 = arith.constant 0 : index
    %31 = vector.load %arg5[%c0_12, %c0_13, %c0_14] : memref<1x256x768xbf16, #tpu.memory_space<vmem>>, vector<1x256x768xbf16>
    %32 = vector.shape_cast %31 : vector<1x256x768xbf16> to vector<256x768xbf16>
    %cst_15 = arith.constant dense<0.000000e+00> : vector<128x768xf32>
    %33 = tpu.matmul %30, %32, %cst_15 {dimension_numbers = #tpu.dot_dimension_numbers<[1], [0], [0], [1], [0, 0, 1, 1], [], []>} : vector<128x256xbf16>, vector<256x768xbf16>, vector<128x768xf32> -> vector<128x768xf32>
    %c0_16 = arith.constant 0 : index
    %c0_17 = arith.constant 0 : index
    %c0_18 = arith.constant 0 : index
    %34 = vector.load %arg6[%c0_16, %c0_17, %c0_18] : memref<1x1x768xf32, #tpu.memory_space<vmem>>, vector<1x1x768xf32>
    %35 = vector.shape_cast %34 : vector<1x1x768xf32> to vector<1x768xf32>
    %36 = vector.broadcast %35 : vector<1x768xf32> to vector<128x768xf32>
    %37 = arith.addf %33, %36 : vector<128x768xf32>
    %38 = vector.extract_strided_slice %37 {offsets = [0, 0], sizes = [64, 128], strides = [1, 1]} : vector<128x768xf32> to vector<64x128xf32>
    %39 = arith.truncf %38 : vector<64x128xf32> to vector<64x128xbf16>
    %40 = vector.extract_strided_slice %37 {offsets = [0, 256], sizes = [64, 128], strides = [1, 1]} : vector<128x768xf32> to vector<64x128xf32>
    %41 = arith.truncf %40 : vector<64x128xf32> to vector<64x128xbf16>
    %42 = vector.extract_strided_slice %37 {offsets = [0, 512], sizes = [64, 128], strides = [1, 1]} : vector<128x768xf32> to vector<64x128xf32>
    %43 = arith.truncf %42 : vector<64x128xf32> to vector<64x128xbf16>
    %44 = tpu.transpose %41, [1, 0] : vector<64x128xbf16> -> vector<128x64xbf16>
    %cst_19 = arith.constant dense<0.000000e+00> : vector<64x64xf32>
    %45 = tpu.matmul %39, %44, %cst_19 {dimension_numbers = #tpu.dot_dimension_numbers<[1], [0], [0], [1], [0, 0, 1, 1], [], []>} : vector<64x128xbf16>, vector<128x64xbf16>, vector<64x64xf32> -> vector<64x64xf32>
    %cst_20 = arith.constant 0.0883883461 : f32
    %46 = vector.broadcast %cst_20 : f32 to vector<64x64xf32>
    %47 = arith.mulf %45, %46 : vector<64x64xf32>
    %cst_21 = arith.constant dense<0xFF800000> : vector<64xf32>
    %48 = vector.multi_reduction <maximumf>, %47, %cst_21 [1] : vector<64x64xf32> to vector<64xf32>
    %49 = vector.shape_cast %48 : vector<64xf32> to vector<64x1xf32>
    %50 = vector.broadcast %49 : vector<64x1xf32> to vector<64x64xf32>
    %51 = arith.subf %47, %50 : vector<64x64xf32>
    %52 = math.exp %51 : vector<64x64xf32>
    %cst_22 = arith.constant dense<0.000000e+00> : vector<64xf32>
    %53 = vector.multi_reduction <add>, %52, %cst_22 [1] : vector<64x64xf32> to vector<64xf32>
    %54 = vector.shape_cast %53 : vector<64xf32> to vector<64x1xf32>
    %55 = tpu.reciprocal %54 {approx = true} : vector<64x1xf32> -> vector<64x1xf32>
    %56 = vector.broadcast %55 : vector<64x1xf32> to vector<64x64xf32>
    %57 = arith.mulf %52, %56 : vector<64x64xf32>
    %58 = arith.truncf %57 : vector<64x64xf32> to vector<64x64xbf16>
    %cst_23 = arith.constant dense<0.000000e+00> : vector<64x128xf32>
    %59 = tpu.matmul %58, %43, %cst_23 {dimension_numbers = #tpu.dot_dimension_numbers<[1], [0], [0], [1], [0, 0, 1, 1], [], []>} : vector<64x64xbf16>, vector<64x128xbf16>, vector<64x128xf32> -> vector<64x128xf32>
    %c0_24 = arith.constant 0 : index
    %c0_25 = arith.constant 0 : index
    %60 = vector.load %arg20[%c0_24, %c0_25] : memref<128x256xf32, #tpu.memory_space<vmem>>, vector<64x128xf32>
    tpu.vector_store %arg20[%c0_24, %c0_25], %59 {strides = array<i32>} : memref<128x256xf32, #tpu.memory_space<vmem>>, vector<64x128xf32>,
    %61 = vector.extract_strided_slice %37 {offsets = [0, 128], sizes = [64, 128], strides = [1, 1]} : vector<128x768xf32> to vector<64x128xf32>
    %62 = arith.truncf %61 : vector<64x128xf32> to vector<64x128xbf16>
    %63 = vector.extract_strided_slice %37 {offsets = [0, 384], sizes = [64, 128], strides = [1, 1]} : vector<128x768xf32> to vector<64x128xf32>
    %64 = arith.truncf %63 : vector<64x128xf32> to vector<64x128xbf16>
    %65 = vector.extract_strided_slice %37 {offsets = [0, 640], sizes = [64, 128], strides = [1, 1]} : vector<128x768xf32> to vector<64x128xf32>
    %66 = arith.truncf %65 : vector<64x128xf32> to vector<64x128xbf16>
    %67 = tpu.transpose %64, [1, 0] : vector<64x128xbf16> -> vector<128x64xbf16>
    %cst_26 = arith.constant dense<0.000000e+00> : vector<64x64xf32>
    %68 = tpu.matmul %62, %67, %cst_26 {dimension_numbers = #tpu.dot_dimension_numbers<[1], [0], [0], [1], [0, 0, 1, 1], [], []>} : vector<64x128xbf16>, vector<128x64xbf16>, vector<64x64xf32> -> vector<64x64xf32>
    %cst_27 = arith.constant 0.0883883461 : f32
    %69 = vector.broadcast %cst_27 : f32 to vector<64x64xf32>
    %70 = arith.mulf %68, %69 : vector<64x64xf32>
    %cst_28 = arith.constant dense<0xFF800000> : vector<64xf32>
    %71 = vector.multi_reduction <maximumf>, %70, %cst_28 [1] : vector<64x64xf32> to vector<64xf32>
    %72 = vector.shape_cast %71 : vector<64xf32> to vector<64x1xf32>
    %73 = vector.broadcast %72 : vector<64x1xf32> to vector<64x64xf32>
    %74 = arith.subf %70, %73 : vector<64x64xf32>
    %75 = math.exp %74 : vector<64x64xf32>
    %cst_29 = arith.constant dense<0.000000e+00> : vector<64xf32>
    %76 = vector.multi_reduction <add>, %75, %cst_29 [1] : vector<64x64xf32> to vector<64xf32>
    %77 = vector.shape_cast %76 : vector<64xf32> to vector<64x1xf32>
    %78 = tpu.reciprocal %77 {approx = true} : vector<64x1xf32> -> vector<64x1xf32>
    %79 = vector.broadcast %78 : vector<64x1xf32> to vector<64x64xf32>
    %80 = arith.mulf %75, %79 : vector<64x64xf32>
    %81 = arith.truncf %80 : vector<64x64xf32> to vector<64x64xbf16>
    %cst_30 = arith.constant dense<0.000000e+00> : vector<64x128xf32>
    %82 = tpu.matmul %81, %66, %cst_30 {dimension_numbers = #tpu.dot_dimension_numbers<[1], [0], [0], [1], [0, 0, 1, 1], [], []>} : vector<64x64xbf16>, vector<64x128xbf16>, vector<64x128xf32> -> vector<64x128xf32>
    %c0_31 = arith.constant 0 : index
    %c128 = arith.constant 128 : index
    %83 = vector.load %arg20[%c0_31, %c128] : memref<128x256xf32, #tpu.memory_space<vmem>>, vector<64x128xf32>
    tpu.vector_store %arg20[%c0_31, %c128], %82 {strides = array<i32>} : memref<128x256xf32, #tpu.memory_space<vmem>>, vector<64x128xf32>,
    %84 = vector.extract_strided_slice %37 {offsets = [64, 0], sizes = [64, 128], strides = [1, 1]} : vector<128x768xf32> to vector<64x128xf32>
    %85 = arith.truncf %84 : vector<64x128xf32> to vector<64x128xbf16>
    %86 = vector.extract_strided_slice %37 {offsets = [64, 256], sizes = [64, 128], strides = [1, 1]} : vector<128x768xf32> to vector<64x128xf32>
    %87 = arith.truncf %86 : vector<64x128xf32> to vector<64x128xbf16>
    %88 = vector.extract_strided_slice %37 {offsets = [64, 512], sizes = [64, 128], strides = [1, 1]} : vector<128x768xf32> to vector<64x128xf32>
    %89 = arith.truncf %88 : vector<64x128xf32> to vector<64x128xbf16>
    %90 = tpu.transpose %87, [1, 0] : vector<64x128xbf16> -> vector<128x64xbf16>
    %cst_32 = arith.constant dense<0.000000e+00> : vector<64x64xf32>
    %91 = tpu.matmul %85, %90, %cst_32 {dimension_numbers = #tpu.dot_dimension_numbers<[1], [0], [0], [1], [0, 0, 1, 1], [], []>} : vector<64x128xbf16>, vector<128x64xbf16>, vector<64x64xf32> -> vector<64x64xf32>
    %cst_33 = arith.constant 0.0883883461 : f32
    %92 = vector.broadcast %cst_33 : f32 to vector<64x64xf32>
    %93 = arith.mulf %91, %92 : vector<64x64xf32>
    %cst_34 = arith.constant dense<0xFF800000> : vector<64xf32>
    %94 = vector.multi_reduction <maximumf>, %93, %cst_34 [1] : vector<64x64xf32> to vector<64xf32>
    %95 = vector.shape_cast %94 : vector<64xf32> to vector<64x1xf32>
    %96 = vector.broadcast %95 : vector<64x1xf32> to vector<64x64xf32>
    %97 = arith.subf %93, %96 : vector<64x64xf32>
    %98 = math.exp %97 : vector<64x64xf32>
    %cst_35 = arith.constant dense<0.000000e+00> : vector<64xf32>
    %99 = vector.multi_reduction <add>, %98, %cst_35 [1] : vector<64x64xf32> to vector<64xf32>
    %100 = vector.shape_cast %99 : vector<64xf32> to vector<64x1xf32>
    %101 = tpu.reciprocal %100 {approx = true} : vector<64x1xf32> -> vector<64x1xf32>
    %102 = vector.broadcast %101 : vector<64x1xf32> to vector<64x64xf32>
    %103 = arith.mulf %98, %102 : vector<64x64xf32>
    %104 = arith.truncf %103 : vector<64x64xf32> to vector<64x64xbf16>
    %cst_36 = arith.constant dense<0.000000e+00> : vector<64x128xf32>
    %105 = tpu.matmul %104, %89, %cst_36 {dimension_numbers = #tpu.dot_dimension_numbers<[1], [0], [0], [1], [0, 0, 1, 1], [], []>} : vector<64x64xbf16>, vector<64x128xbf16>, vector<64x128xf32> -> vector<64x128xf32>
    %c64 = arith.constant 64 : index
    %c0_37 = arith.constant 0 : index
    %106 = vector.load %arg20[%c64, %c0_37] : memref<128x256xf32, #tpu.memory_space<vmem>>, vector<64x128xf32>
    tpu.vector_store %arg20[%c64, %c0_37], %105 {strides = array<i32>} : memref<128x256xf32, #tpu.memory_space<vmem>>, vector<64x128xf32>,
    %107 = vector.extract_strided_slice %37 {offsets = [64, 128], sizes = [64, 128], strides = [1, 1]} : vector<128x768xf32> to vector<64x128xf32>
    %108 = arith.truncf %107 : vector<64x128xf32> to vector<64x128xbf16>
    %109 = vector.extract_strided_slice %37 {offsets = [64, 384], sizes = [64, 128], strides = [1, 1]} : vector<128x768xf32> to vector<64x128xf32>
    %110 = arith.truncf %109 : vector<64x128xf32> to vector<64x128xbf16>
    %111 = vector.extract_strided_slice %37 {offsets = [64, 640], sizes = [64, 128], strides = [1, 1]} : vector<128x768xf32> to vector<64x128xf32>
    %112 = arith.truncf %111 : vector<64x128xf32> to vector<64x128xbf16>
    %113 = tpu.transpose %110, [1, 0] : vector<64x128xbf16> -> vector<128x64xbf16>
    %cst_38 = arith.constant dense<0.000000e+00> : vector<64x64xf32>
    %114 = tpu.matmul %108, %113, %cst_38 {dimension_numbers = #tpu.dot_dimension_numbers<[1], [0], [0], [1], [0, 0, 1, 1], [], []>} : vector<64x128xbf16>, vector<128x64xbf16>, vector<64x64xf32> -> vector<64x64xf32>
    %cst_39 = arith.constant 0.0883883461 : f32
    %115 = vector.broadcast %cst_39 : f32 to vector<64x64xf32>
    %116 = arith.mulf %114, %115 : vector<64x64xf32>
    %cst_40 = arith.constant dense<0xFF800000> : vector<64xf32>
    %117 = vector.multi_reduction <maximumf>, %116, %cst_40 [1] : vector<64x64xf32> to vector<64xf32>
    %118 = vector.shape_cast %117 : vector<64xf32> to vector<64x1xf32>
    %119 = vector.broadcast %118 : vector<64x1xf32> to vector<64x64xf32>
    %120 = arith.subf %116, %119 : vector<64x64xf32>
    %121 = math.exp %120 : vector<64x64xf32>
    %cst_41 = arith.constant dense<0.000000e+00> : vector<64xf32>
    %122 = vector.multi_reduction <add>, %121, %cst_41 [1] : vector<64x64xf32> to vector<64xf32>
    %123 = vector.shape_cast %122 : vector<64xf32> to vector<64x1xf32>
    %124 = tpu.reciprocal %123 {approx = true} : vector<64x1xf32> -> vector<64x1xf32>
    %125 = vector.broadcast %124 : vector<64x1xf32> to vector<64x64xf32>
    %126 = arith.mulf %121, %125 : vector<64x64xf32>
    %127 = arith.truncf %126 : vector<64x64xf32> to vector<64x64xbf16>
    %cst_42 = arith.constant dense<0.000000e+00> : vector<64x128xf32>
    %128 = tpu.matmul %127, %112, %cst_42 {dimension_numbers = #tpu.dot_dimension_numbers<[1], [0], [0], [1], [0, 0, 1, 1], [], []>} : vector<64x64xbf16>, vector<64x128xbf16>, vector<64x128xf32> -> vector<64x128xf32>
    %c64_43 = arith.constant 64 : index
    %c128_44 = arith.constant 128 : index
    %129 = vector.load %arg20[%c64_43, %c128_44] : memref<128x256xf32, #tpu.memory_space<vmem>>, vector<64x128xf32>
    tpu.vector_store %arg20[%c64_43, %c128_44], %128 {strides = array<i32>} : memref<128x256xf32, #tpu.memory_space<vmem>>, vector<64x128xf32>,
    %c0_45 = arith.constant 0 : index
    %c0_46 = arith.constant 0 : index
    %130 = vector.load %arg20[%c0_45, %c0_46] : memref<128x256xf32, #tpu.memory_space<vmem>>, vector<128x256xf32>
    %131 = arith.truncf %130 : vector<128x256xf32> to vector<128x256xbf16>
    %c0_47 = arith.constant 0 : index
    %c0_48 = arith.constant 0 : index
    %c0_49 = arith.constant 0 : index
    %132 = vector.load %arg7[%c0_47, %c0_48, %c0_49] : memref<1x256x256xbf16, #tpu.memory_space<vmem>>, vector<1x256x256xbf16>
    %133 = vector.shape_cast %132 : vector<1x256x256xbf16> to vector<256x256xbf16>
    %cst_50 = arith.constant dense<0.000000e+00> : vector<128x256xf32>
    %134 = tpu.matmul %131, %133, %cst_50 {dimension_numbers = #tpu.dot_dimension_numbers<[1], [0], [0], [1], [0, 0, 1, 1], [], []>} : vector<128x256xbf16>, vector<256x256xbf16>, vector<128x256xf32> -> vector<128x256xf32>
    %c0_51 = arith.constant 0 : index
    %c0_52 = arith.constant 0 : index
    %c0_53 = arith.constant 0 : index
    %135 = vector.load %arg8[%c0_51, %c0_52, %c0_53] : memref<1x1x256xf32, #tpu.memory_space<vmem>>, vector<1x1x256xf32>
    %136 = vector.shape_cast %135 : vector<1x1x256xf32> to vector<1x256xf32>
    %137 = vector.broadcast %136 : vector<1x256xf32> to vector<128x256xf32>
    %138 = arith.addf %134, %137 : vector<128x256xf32>
    %139 = arith.addf %3, %138 : vector<128x256xf32>
    %c0_54 = arith.constant 0 : index
    %c0_55 = arith.constant 0 : index
    %c0_56 = arith.constant 0 : index
    %140 = vector.load %arg9[%c0_54, %c0_55, %c0_56] : memref<1x1x256xf32, #tpu.memory_space<vmem>>, vector<1x1x256xf32>
    %141 = vector.shape_cast %140 : vector<1x1x256xf32> to vector<1x256xf32>
    %c0_57 = arith.constant 0 : index
    %c0_58 = arith.constant 0 : index
    %c0_59 = arith.constant 0 : index
    %142 = vector.load %arg10[%c0_57, %c0_58, %c0_59] : memref<1x1x256xf32, #tpu.memory_space<vmem>>, vector<1x1x256xf32>
    %143 = vector.shape_cast %142 : vector<1x1x256xf32> to vector<1x256xf32>
    %cst_60 = arith.constant dense<0.000000e+00> : vector<128xf32>
    %144 = vector.multi_reduction <add>, %139, %cst_60 [1] : vector<128x256xf32> to vector<128xf32>
    %145 = vector.shape_cast %144 : vector<128xf32> to vector<128x1xf32>
    %146 = arith.mulf %139, %139 : vector<128x256xf32>
    %cst_61 = arith.constant dense<0.000000e+00> : vector<128xf32>
    %147 = vector.multi_reduction <add>, %146, %cst_61 [1] : vector<128x256xf32> to vector<128xf32>
    %148 = vector.shape_cast %147 : vector<128xf32> to vector<128x1xf32>
    %cst_62 = arith.constant 3.906250e-03 : f32
    %149 = vector.broadcast %cst_62 : f32 to vector<128x1xf32>
    %150 = arith.mulf %145, %149 : vector<128x1xf32>
    %cst_63 = arith.constant 3.906250e-03 : f32
    %151 = vector.broadcast %cst_63 : f32 to vector<128x1xf32>
    %152 = arith.mulf %148, %151 : vector<128x1xf32>
    %153 = arith.mulf %150, %150 : vector<128x1xf32>
    %154 = arith.subf %152, %153 : vector<128x1xf32>
    %155 = vector.broadcast %150 : vector<128x1xf32> to vector<128x256xf32>
    %156 = arith.subf %139, %155 : vector<128x256xf32>
    %cst_64 = arith.constant 9.99999974E-6 : f32
    %157 = vector.broadcast %cst_64 : f32 to vector<128x1xf32>
    %158 = arith.addf %154, %157 : vector<128x1xf32>
    %159 = math.rsqrt %158 : vector<128x1xf32>
    %160 = vector.broadcast %159 : vector<128x1xf32> to vector<128x256xf32>
    %161 = arith.mulf %156, %160 : vector<128x256xf32>
    %162 = vector.broadcast %141 : vector<1x256xf32> to vector<128x256xf32>
    %163 = arith.mulf %161, %162 : vector<128x256xf32>
    %164 = vector.broadcast %143 : vector<1x256xf32> to vector<128x256xf32>
    %165 = arith.addf %163, %164 : vector<128x256xf32>
    %166 = arith.truncf %165 : vector<128x256xf32> to vector<128x256xbf16>
    %c0_65 = arith.constant 0 : index
    %c0_66 = arith.constant 0 : index
    %c0_67 = arith.constant 0 : index
    %167 = vector.load %arg11[%c0_65, %c0_66, %c0_67] : memref<1x256x512xbf16, #tpu.memory_space<vmem>>, vector<1x256x512xbf16>
    %168 = vector.shape_cast %167 : vector<1x256x512xbf16> to vector<256x512xbf16>
    %cst_68 = arith.constant dense<0.000000e+00> : vector<128x512xf32>
    %169 = tpu.matmul %166, %168, %cst_68 {dimension_numbers = #tpu.dot_dimension_numbers<[1], [0], [0], [1], [0, 0, 1, 1], [], []>} : vector<128x256xbf16>, vector<256x512xbf16>, vector<128x512xf32> -> vector<128x512xf32>
    %c0_69 = arith.constant 0 : index
    %c0_70 = arith.constant 0 : index
    %c0_71 = arith.constant 0 : index
    %170 = vector.load %arg12[%c0_69, %c0_70, %c0_71] : memref<1x1x512xf32, #tpu.memory_space<vmem>>, vector<1x1x512xf32>
    %171 = vector.shape_cast %170 : vector<1x1x512xf32> to vector<1x512xf32>
    %172 = vector.broadcast %171 : vector<1x512xf32> to vector<128x512xf32>
    %173 = arith.addf %169, %172 : vector<128x512xf32>
    %cst_72 = arith.constant 5.000000e-01 : f32
    %174 = vector.broadcast %cst_72 : f32 to vector<128x512xf32>
    %175 = arith.mulf %174, %173 : vector<128x512xf32>
    %cst_73 = arith.constant 4.471500e-02 : f32
    %176 = vector.broadcast %cst_73 : f32 to vector<128x512xf32>
    %177 = arith.mulf %176, %173 : vector<128x512xf32>
    %178 = arith.mulf %177, %173 : vector<128x512xf32>
    %179 = arith.mulf %178, %173 : vector<128x512xf32>
    %180 = arith.addf %173, %179 : vector<128x512xf32>
    %cst_74 = arith.constant 0.797884583 : f32
    %181 = vector.broadcast %cst_74 : f32 to vector<128x512xf32>
    %182 = arith.mulf %181, %180 : vector<128x512xf32>
    %183 = math.tanh %182 : vector<128x512xf32>
    %cst_75 = arith.constant 1.000000e+00 : f32
    %184 = vector.broadcast %cst_75 : f32 to vector<128x512xf32>
    %185 = arith.addf %184, %183 : vector<128x512xf32>
    %186 = arith.mulf %175, %185 : vector<128x512xf32>
    %187 = arith.truncf %186 : vector<128x512xf32> to vector<128x512xbf16>
    %c0_76 = arith.constant 0 : index
    %c0_77 = arith.constant 0 : index
    %c0_78 = arith.constant 0 : index
    %188 = vector.load %arg13[%c0_76, %c0_77, %c0_78] : memref<1x512x256xbf16, #tpu.memory_space<vmem>>, vector<1x512x256xbf16>
    %189 = vector.shape_cast %188 : vector<1x512x256xbf16> to vector<512x256xbf16>
    %cst_79 = arith.constant dense<0.000000e+00> : vector<128x256xf32>
    %190 = tpu.matmul %187, %189, %cst_79 {dimension_numbers = #tpu.dot_dimension_numbers<[1], [0], [0], [1], [0, 0, 1, 1], [], []>} : vector<128x512xbf16>, vector<512x256xbf16>, vector<128x256xf32> -> vector<128x256xf32>
    %c0_80 = arith.constant 0 : index
    %c0_81 = arith.constant 0 : index
    %c0_82 = arith.constant 0 : index
    %191 = vector.load %arg14[%c0_80, %c0_81, %c0_82] : memref<1x1x256xf32, #tpu.memory_space<vmem>>, vector<1x1x256xf32>
    %192 = vector.shape_cast %191 : vector<1x1x256xf32> to vector<1x256xf32>
    %193 = vector.broadcast %192 : vector<1x256xf32> to vector<128x256xf32>
    %194 = arith.addf %190, %193 : vector<128x256xf32>
    %195 = arith.addf %139, %194 : vector<128x256xf32>
    %c0_83 = arith.constant 0 : index
    %c0_84 = arith.constant 0 : index
    %196 = vector.load %arg19[%c0_83, %c0_84] : memref<128x256xf32, #tpu.memory_space<vmem>>, vector<128x256xf32>
    tpu.vector_store %arg19[%c0_83, %c0_84], %195 {strides = array<i32>} : memref<128x256xf32, #tpu.memory_space<vmem>>, vector<128x256xf32>,
    %c1_i32 = arith.constant 1 : i32
    %197 = arith.cmpi eq, %arg1, %c1_i32 : i32
    %198 = arith.extui %197 : i1 to i32
    %c0_i32_85 = arith.constant 0 : i32
    %199 = arith.cmpi ne, %198, %c0_i32_85 : i32
    scf.if %199 {
      %200 = arith.truncf %195 : vector<128x256xf32> to vector<128x256xbf16>
      %c0_86 = arith.constant 0 : index
      %c0_87 = arith.constant 0 : index
      %201 = vector.load %arg15[%c0_86, %c0_87] : memref<256x128xbf16, #tpu.memory_space<vmem>>, vector<256x128xbf16>
      %cst_88 = arith.constant dense<0.000000e+00> : vector<128x128xf32>
      %202 = tpu.matmul %200, %201, %cst_88 {dimension_numbers = #tpu.dot_dimension_numbers<[1], [0], [0], [1], [0, 0, 1, 1], [], []>} : vector<128x256xbf16>, vector<256x128xbf16>, vector<128x128xf32> -> vector<128x128xf32>
      %c0_89 = arith.constant 0 : index
      %c0_90 = arith.constant 0 : index
      %203 = vector.load %arg16[%c0_89, %c0_90] : memref<1x128xf32, #tpu.memory_space<vmem>>, vector<1x128xf32>
      %c0_91 = arith.constant 0 : index
      %c0_92 = arith.constant 0 : index
      %204 = vector.load %arg17[%c0_91, %c0_92] : memref<1x128xf32, #tpu.memory_space<vmem>>, vector<1x128xf32>
      %cst_93 = arith.constant dense<0.000000e+00> : vector<128xf32>
      %205 = vector.multi_reduction <add>, %202, %cst_93 [1] : vector<128x128xf32> to vector<128xf32>
      %206 = vector.shape_cast %205 : vector<128xf32> to vector<128x1xf32>
      %207 = arith.mulf %202, %202 : vector<128x128xf32>
      %cst_94 = arith.constant dense<0.000000e+00> : vector<128xf32>
      %208 = vector.multi_reduction <add>, %207, %cst_94 [1] : vector<128x128xf32> to vector<128xf32>
      %209 = vector.shape_cast %208 : vector<128xf32> to vector<128x1xf32>
      %cst_95 = arith.constant 7.812500e-03 : f32
      %210 = vector.broadcast %cst_95 : f32 to vector<128x1xf32>
      %211 = arith.mulf %206, %210 : vector<128x1xf32>
      %cst_96 = arith.constant 7.812500e-03 : f32
      %212 = vector.broadcast %cst_96 : f32 to vector<128x1xf32>
      %213 = arith.mulf %209, %212 : vector<128x1xf32>
      %214 = arith.mulf %211, %211 : vector<128x1xf32>
      %215 = arith.subf %213, %214 : vector<128x1xf32>
      %216 = vector.broadcast %211 : vector<128x1xf32> to vector<128x128xf32>
      %217 = arith.subf %202, %216 : vector<128x128xf32>
      %cst_97 = arith.constant 9.99999974E-6 : f32
      %218 = vector.broadcast %cst_97 : f32 to vector<128x1xf32>
      %219 = arith.addf %215, %218 : vector<128x1xf32>
      %220 = math.rsqrt %219 : vector<128x1xf32>
      %221 = vector.broadcast %220 : vector<128x1xf32> to vector<128x128xf32>
      %222 = arith.mulf %217, %221 : vector<128x128xf32>
      %223 = vector.broadcast %203 : vector<1x128xf32> to vector<128x128xf32>
      %224 = arith.mulf %222, %223 : vector<128x128xf32>
      %225 = vector.broadcast %204 : vector<1x128xf32> to vector<128x128xf32>
      %226 = arith.addf %224, %225 : vector<128x128xf32>
      %c0_98 = arith.constant 0 : index
      %c0_99 = arith.constant 0 : index
      %227 = vector.load %arg18[%c0_98, %c0_99] : memref<128x128xf32, #tpu.memory_space<vmem>>, vector<128x128xf32>
      tpu.vector_store %arg18[%c0_98, %c0_99], %226 {strides = array<i32>} : memref<128x128xf32, #tpu.memory_space<vmem>>, vector<128x128xf32>,
    } else {
    }
    return
  }
  func.func @transform_0(%arg0: i32, %arg1: i32) -> (i32, i32) {
    %c0_i32 = arith.constant 0 : i32
    %c0_i32_0 = arith.constant 0 : i32
    return %arg0, %c0_i32 : i32, i32
  }
  func.func @transform_1(%arg0: i32, %arg1: i32) -> (i32, i32, i32) {
    %c0_i32 = arith.constant 0 : i32
    %c0_i32_0 = arith.constant 0 : i32
    %c0_i32_1 = arith.constant 0 : i32
    return %arg1, %c0_i32, %c0_i32_0 : i32, i32, i32
  }
  func.func @transform_2(%arg0: i32, %arg1: i32) -> (i32, i32, i32) {
    %c0_i32 = arith.constant 0 : i32
    %c0_i32_0 = arith.constant 0 : i32
    %c0_i32_1 = arith.constant 0 : i32
    return %arg1, %c0_i32, %c0_i32_0 : i32, i32, i32
  }
  func.func @transform_3(%arg0: i32, %arg1: i32) -> (i32, i32, i32) {
    %c0_i32 = arith.constant 0 : i32
    %c0_i32_0 = arith.constant 0 : i32
    %c0_i32_1 = arith.constant 0 : i32
    return %arg1, %c0_i32, %c0_i32_0 : i32, i32, i32
  }
  func.func @transform_4(%arg0: i32, %arg1: i32) -> (i32, i32, i32) {
    %c0_i32 = arith.constant 0 : i32
    %c0_i32_0 = arith.constant 0 : i32
    %c0_i32_1 = arith.constant 0 : i32
    return %arg1, %c0_i32, %c0_i32_0 : i32, i32, i32
  }
  func.func @transform_5(%arg0: i32, %arg1: i32) -> (i32, i32, i32) {
    %c0_i32 = arith.constant 0 : i32
    %c0_i32_0 = arith.constant 0 : i32
    %c0_i32_1 = arith.constant 0 : i32
    return %arg1, %c0_i32, %c0_i32_0 : i32, i32, i32
  }
  func.func @transform_6(%arg0: i32, %arg1: i32) -> (i32, i32, i32) {
    %c0_i32 = arith.constant 0 : i32
    %c0_i32_0 = arith.constant 0 : i32
    %c0_i32_1 = arith.constant 0 : i32
    return %arg1, %c0_i32, %c0_i32_0 : i32, i32, i32
  }
  func.func @transform_7(%arg0: i32, %arg1: i32) -> (i32, i32, i32) {
    %c0_i32 = arith.constant 0 : i32
    %c0_i32_0 = arith.constant 0 : i32
    %c0_i32_1 = arith.constant 0 : i32
    return %arg1, %c0_i32, %c0_i32_0 : i32, i32, i32
  }
  func.func @transform_8(%arg0: i32, %arg1: i32) -> (i32, i32, i32) {
    %c0_i32 = arith.constant 0 : i32
    %c0_i32_0 = arith.constant 0 : i32
    %c0_i32_1 = arith.constant 0 : i32
    return %arg1, %c0_i32, %c0_i32_0 : i32, i32, i32
  }
  func.func @transform_9(%arg0: i32, %arg1: i32) -> (i32, i32, i32) {
    %c0_i32 = arith.constant 0 : i32
    %c0_i32_0 = arith.constant 0 : i32
    %c0_i32_1 = arith.constant 0 : i32
    return %arg1, %c0_i32, %c0_i32_0 : i32, i32, i32
  }
  func.func @transform_10(%arg0: i32, %arg1: i32) -> (i32, i32, i32) {
    %c0_i32 = arith.constant 0 : i32
    %c0_i32_0 = arith.constant 0 : i32
    %c0_i32_1 = arith.constant 0 : i32
    return %arg1, %c0_i32, %c0_i32_0 : i32, i32, i32
  }
  func.func @transform_11(%arg0: i32, %arg1: i32) -> (i32, i32, i32) {
    %c0_i32 = arith.constant 0 : i32
    %c0_i32_0 = arith.constant 0 : i32
    %c0_i32_1 = arith.constant 0 : i32
    return %arg1, %c0_i32, %c0_i32_0 : i32, i32, i32
  }
  func.func @transform_12(%arg0: i32, %arg1: i32) -> (i32, i32, i32) {
    %c0_i32 = arith.constant 0 : i32
    %c0_i32_0 = arith.constant 0 : i32
    %c0_i32_1 = arith.constant 0 : i32
    return %arg1, %c0_i32, %c0_i32_0 : i32, i32, i32
  }
  func.func @transform_13(%arg0: i32, %arg1: i32) -> (i32, i32) {
    %c0_i32 = arith.constant 0 : i32
    %c0_i32_0 = arith.constant 0 : i32
    %c0_i32_1 = arith.constant 0 : i32
    return %c0_i32, %c0_i32_0 : i32, i32
  }
  func.func @transform_14(%arg0: i32, %arg1: i32) -> (i32, i32) {
    %c0_i32 = arith.constant 0 : i32
    %c0_i32_0 = arith.constant 0 : i32
    %c0_i32_1 = arith.constant 0 : i32
    return %c0_i32, %c0_i32_0 : i32, i32
  }
  func.func @transform_15(%arg0: i32, %arg1: i32) -> (i32, i32) {
    %c0_i32 = arith.constant 0 : i32
    %c0_i32_0 = arith.constant 0 : i32
    %c0_i32_1 = arith.constant 0 : i32
    return %c0_i32, %c0_i32_0 : i32, i32
  }
  func.func @transform_16(%arg0: i32, %arg1: i32) -> (i32, i32) {
    %c0_i32 = arith.constant 0 : i32
    %c0_i32_0 = arith.constant 0 : i32
    return %arg0, %c0_i32 : i32, i32
  }
}

</mosaic_0001>

<llo_original>
// kernel: decoder_forward.1
$region0: #{decoder_forward.1}
  #allocation0 [shape = 'u32[]', space=smem, size = 0x4, offset = 0x4, fixed_abs, tag = 'smem constant byte address 0x4 - core index']
  #allocation1 [shape = 'u32[144,128]{1,0:T(1,128)}', space=vmem, size = 0x12000, scoped, tag = 'internal scratch']
  #allocation2 [shape = 'f32[128,256]{1,0:T(8,128)}', space=vmem, size = 0x20000, scoped, tag = 'scratch operand']
  #allocation3 [shape = 'f32[128,256]{1,0:T(8,128)}', space=vmem, size = 0x20000, scoped, tag = 'scratch operand']
  %s0 = inlined_call_operand.hbm [shape: f32[128,256], index: 0, kind: input, shape index: {}]
  %s1 = inlined_call_operand.vmem [shape: f32[2,1,256], index: 1, kind: input, shape index: {}]
  %s2 = inlined_call_operand.vmem [shape: f32[2,1,256], index: 2, kind: input, shape index: {}]
  %s3 = inlined_call_operand.hbm [shape: bf16[2,256,768], index: 3, kind: input, shape index: {}]
  %s4 = inlined_call_operand.vmem [shape: f32[2,1,768], index: 4, kind: input, shape index: {}]
  %s5 = inlined_call_operand.hbm [shape: bf16[2,256,256], index: 5, kind: input, shape index: {}]
  %s6 = inlined_call_operand.hbm [shape: f32[2,1,256], index: 6, kind: input, shape index: {}]
  %s7 = inlined_call_operand.vmem [shape: f32[2,1,256], index: 7, kind: input, shape index: {}]
  %s8 = inlined_call_operand.vmem [shape: f32[2,1,256], index: 8, kind: input, shape index: {}]
  %s9 = inlined_call_operand.hbm [shape: bf16[2,256,512], index: 9, kind: input, shape index: {}]
  %s10 = inlined_call_operand.hbm [shape: f32[2,1,512], index: 10, kind: input, shape index: {}]
  %s11 = inlined_call_operand.hbm [shape: bf16[2,512,256], index: 11, kind: input, shape index: {}]
  %s12 = inlined_call_operand.hbm [shape: f32[2,1,256], index: 12, kind: input, shape index: {}]
  %s13 = inlined_call_operand.hbm [shape: bf16[256,128], index: 13, kind: input, shape index: {}]
  %s14 = inlined_call_operand.vmem [shape: f32[1,128], index: 14, kind: input, shape index: {}]
  %s15 = inlined_call_operand.vmem [shape: f32[1,128], index: 15, kind: input, shape index: {}]
  %s16 = inlined_call_operand.hbm [shape: f32[128,128], index: 16, kind: output, shape index: {}]
  %s17 = sld [smem:[#allocation0]]
  $region141: #{decoder_forward.1} parent=0
    _
  %s19 = ssub.s32 1, %s17
  %s20 = scalar_select 0, %s19, %s17
  $region1: #{decoder_forward.1} parent=0
    #allocation4 [shape = 'u8[131072]{0}', space=vmem, size = 0x20000, scoped, tag = 'input window, operand 0, single buffered']
    #allocation5 [shape = 's32[2]{0}', space=sflag, size = 0x8, scoped, tag = 'scoped memory for decoder_forward.1']
    #allocation6 [shape = 's32[2]{0}', space=sflag, size = 0x8, scoped, tag = 'scoped memory for decoder_forward.1']
    #allocation7 [shape = 'u8[786432]{0}', space=vmem, size = 0xc0000, scoped, tag = 'input window, operand 3']
    #allocation8 [shape = 's32[2]{0}', space=sflag, size = 0x8, scoped, tag = 'scoped memory for decoder_forward.1']
    #allocation9 [shape = 'u8[262144]{0}', space=vmem, size = 0x40000, scoped, tag = 'input window, operand 5']
    #allocation10 [shape = 'u8[2048]{0}', space=vmem, size = 0x800, scoped, tag = 'input window, operand 6']
    #allocation11 [shape = 's32[2]{0}', space=sflag, size = 0x8, scoped, tag = 'scoped memory for decoder_forward.1']
    #allocation12 [shape = 'u8[524288]{0}', space=vmem, size = 0x80000, scoped, tag = 'input window, operand 9']
    #allocation13 [shape = 'u8[4096]{0}', space=vmem, size = 0x1000, scoped, tag = 'input window, operand 10']
    #allocation14 [shape = 's32[2]{0}', space=sflag, size = 0x8, scoped, tag = 'scoped memory for decoder_forward.1']
    #allocation15 [shape = 'u8[524288]{0}', space=vmem, size = 0x80000, scoped, tag = 'input window, operand 11']
    #allocation16 [shape = 'u8[2048]{0}', space=vmem, size = 0x800, scoped, tag = 'input window, operand 12']
    #allocation17 [shape = 's32[2]{0}', space=sflag, size = 0x8, scoped, tag = 'scoped memory for decoder_forward.1']
    #allocation18 [shape = 'u8[65536]{0}', space=vmem, size = 0x10000, scoped, tag = 'input window, operand 13, single buffered']
    #allocation19 [shape = 'u8[65536]{0}', space=vmem, size = 0x10000, scoped, tag = 'output window, operand 0, single buffered']
    %21 = vsyncpa [#allocation5], 0
    %22 = vsyncpa [#allocation8], 0
    %s23 = scalar_lea.sflag [#allocation8], 1
    %24 = vsyncpa %s23, 0
    %25 = vsyncpa [#allocation11], 0
    %s26 = scalar_lea.sflag [#allocation11], 1
    %27 = vsyncpa %s26, 0
    %28 = vsyncpa [#allocation14], 0
    %s29 = scalar_lea.sflag [#allocation14], 1
    %30 = vsyncpa %s29, 0
    %31 = vsyncpa [#allocation17], 0
    %s32 = scalar_lea.sflag [#allocation17], 1
    %33 = vsyncpa %s32, 0
    %34 = vsyncpa [#allocation6], 0
    loop: start=0, step=1, limit=4
    $region2: #{decoder_forward.1} parent=1 // loop_pre_header
      _
    $region3: #{decoder_forward.1} parent=1 // loop_header
      %s36 = sphi 0, %s40
      %p37 = scmp.ge.s32.totalorder %s36, 4
      %s43 = sphi 0, %s55
      %s44 = sphi 0, %s51
      %s45 = sphi 0, %s43
      %s46 = sphi 0, %s44
      %s47 = sphi 0, %s45
      %s48 = sphi 0, %s46
      %s58 = sphi 0, %s60
      %s61 = sphi 0, %s58
      %s62 = sphi 0, %s61
      %s78 = sphi 0, %s62
      %s84 = sphi 0, %s86
      %s87 = sphi 0, %s84
      %s88 = sphi 0, %s87
      %s104 = sphi 0, %s88
      %s110 = sphi 0, %s112
      %s113 = sphi 0, %s110
      %s114 = sphi 0, %s113
      %s130 = sphi 0, %s114
      %s136 = sphi 0, %s138
      %s139 = sphi 0, %s136
      %s140 = sphi 0, %s139
      %s156 = sphi 0, %s140
      %s162 = sphi 0, %s164
      %s165 = sphi 0, %s162
      %s166 = sphi 0, %s165
      %s182 = sphi 0, %s166
      %s188 = sphi 0, %s190
      %s191 = sphi 0, %s188
      %s192 = sphi 0, %s191
      %s208 = sphi 0, %s192
      %s214 = sphi 0, %s216
      %s217 = sphi 0, %s214
      %s218 = sphi 0, %s217
      %s234 = sphi 0, %s218
      %s240 = sphi 0, %s242
      %s243 = sphi 0, %s240
      %s244 = sphi 0, %s243
      %s260 = sphi 0, %s244
      %s266 = sphi 0, %s268
      %s269 = sphi 0, %s266
      %s270 = sphi 0, %s269
      %s286 = sphi 0, %s270
      %s292 = sphi 0, %s294
      %s295 = sphi 0, %s292
      %s296 = sphi 0, %s295
      %s312 = sphi 0, %s296
      %s318 = sphi 0, %s320
      %s321 = sphi 0, %s318
      %s322 = sphi 0, %s321
      %s338 = sphi 0, %s322
      %s344 = sphi 0, %s346
      %s347 = sphi 0, %s344
      %s348 = sphi 0, %s347
      %s364 = sphi 0, %s348
      %s370 = sphi 0, %s372
      %s373 = sphi 0, %s370
      %s374 = sphi 0, %s373
      %s390 = sphi 0, %s374
      %s394 = sphi 0, %s394
      %s396 = sphi 0, %s394
      %s397 = sphi 0, %s396
      %s411 = sphi 0, %s397
      %s415 = sphi 0, %s415
      %s417 = sphi 0, %s415
      %s418 = sphi 0, %s417
      %s432 = sphi 0, %s418
      %s436 = sphi 0, %s436
      %s438 = sphi 0, %s436
      %s439 = sphi 0, %s438
      %s453 = sphi 0, %s439
      %s459 = sphi 0, %s461
      %s462 = sphi 0, %s459
      %s463 = sphi 0, %s462
      %s479 = sphi 0, %s463
    $region4: #{decoder_forward.1} parent=1 // loop_header_branch
      %39 = sbr.rel (%p37) target = $region8
    $region5: #{decoder_forward.1} parent=1 // loop_body
      %s41 = ssub.s32 %s36, 1
      %s42 = ssub.s32 %s36, 2
      %s49 = sadd.s32 1, %s44
      %p50 = scmp.ge.s32.totalorder %s49, 2
      %s51 = scalar_select %p50, 0, %s49
      %s52 = sadd.s32 1, %s43
      %s53 = scalar_select %p50, %s52, %s43
      %p54 = scmp.ge.s32.totalorder %s53, 1
      %s55 = scalar_select %p54, 0, %s53
      %s56 = ssub.s32 %s43, %s55
      %p57 = scmp.eq.s32.totalorder %s56, 0
      %s59 = sadd.s32 %s58, 1
      %s60 = scalar_select %p57, %s58, %s59
      %p63 = pneg %p57
      %p64 = scmp.eq.s32.totalorder %s36, 1
      %p65 = por %p63, %p64
      %p66 = scmp.ne.s32.totalorder %s58, %s61
      %p67 = scmp.eq.s32.totalorder %s36, 0
      %p68 = por %p66, %p67
      %p69 = scmp.ne.s32.totalorder %s58, %s61
      %p70 = scmp.eq.s32.totalorder %s41, 1
      %p71 = por %p69, %p70
      %p72 = scmp.ne.s32.totalorder %s61, %s62
      %p73 = scmp.eq.s32.totalorder %s41, 0
      %p74 = por %p72, %p73
      %p75 = scmp.ne.s32.totalorder %s61, %s62
      %p76 = scmp.eq.s32.totalorder %s42, 1
      %p77 = por %p75, %p76
      %p79 = scmp.ne.s32.totalorder %s62, %s78
      %p80 = scmp.eq.s32.totalorder %s42, 0
      %p81 = por %p79, %p80
      %s82 = ssub.s32 %s44, %s51
      %p83 = scmp.eq.s32.totalorder %s82, 0
      %s85 = sadd.s32 %s84, 1
      %s86 = scalar_select %p83, %s84, %s85
      %p89 = pneg %p83
      %p90 = scmp.eq.s32.totalorder %s36, 1
      %p91 = por %p89, %p90
      %p92 = scmp.ne.s32.totalorder %s84, %s87
      %p93 = scmp.eq.s32.totalorder %s36, 0
      %p94 = por %p92, %p93
      %p95 = scmp.ne.s32.totalorder %s84, %s87
      %p96 = scmp.eq.s32.totalorder %s41, 1
      %p97 = por %p95, %p96
      %p98 = scmp.ne.s32.totalorder %s87, %s88
      %p99 = scmp.eq.s32.totalorder %s41, 0
      %p100 = por %p98, %p99
      %p101 = scmp.ne.s32.totalorder %s87, %s88
      %p102 = scmp.eq.s32.totalorder %s42, 1
      %p103 = por %p101, %p102
      %p105 = scmp.ne.s32.totalorder %s88, %s104
      %p106 = scmp.eq.s32.totalorder %s42, 0
      %p107 = por %p105, %p106
      %s108 = ssub.s32 %s44, %s51
      %p109 = scmp.eq.s32.totalorder %s108, 0
      %s111 = sadd.s32 %s110, 1
      %s112 = scalar_select %p109, %s110, %s111
      %p115 = pneg %p109
      %p116 = scmp.eq.s32.totalorder %s36, 1
      %p117 = por %p115, %p116
      %p118 = scmp.ne.s32.totalorder %s110, %s113
      %p119 = scmp.eq.s32.totalorder %s36, 0
      %p120 = por %p118, %p119
      %p121 = scmp.ne.s32.totalorder %s110, %s113
      %p122 = scmp.eq.s32.totalorder %s41, 1
      %p123 = por %p121, %p122
      %p124 = scmp.ne.s32.totalorder %s113, %s114
      %p125 = scmp.eq.s32.totalorder %s41, 0
      %p126 = por %p124, %p125
      %p127 = scmp.ne.s32.totalorder %s113, %s114
      %p128 = scmp.eq.s32.totalorder %s42, 1
      %p129 = por %p127, %p128
      %p131 = scmp.ne.s32.totalorder %s114, %s130
      %p132 = scmp.eq.s32.totalorder %s42, 0
      %p133 = por %p131, %p132
      %s134 = ssub.s32 %s44, %s51
      %p135 = scmp.eq.s32.totalorder %s134, 0
      %s137 = sadd.s32 %s136, 1
      %s138 = scalar_select %p135, %s136, %s137
      %p141 = pneg %p135
      %p142 = scmp.eq.s32.totalorder %s36, 1
      %p143 = por %p141, %p142
      %p144 = scmp.ne.s32.totalorder %s136, %s139
      %p145 = scmp.eq.s32.totalorder %s36, 0
      %p146 = por %p144, %p145
      %p147 = scmp.ne.s32.totalorder %s136, %s139
      %p148 = scmp.eq.s32.totalorder %s41, 1
      %p149 = por %p147, %p148
      %p150 = scmp.ne.s32.totalorder %s139, %s140
      %p151 = scmp.eq.s32.totalorder %s41, 0
      %p152 = por %p150, %p151
      %p153 = scmp.ne.s32.totalorder %s139, %s140
      %p154 = scmp.eq.s32.totalorder %s42, 1
      %p155 = por %p153, %p154
      %p157 = scmp.ne.s32.totalorder %s140, %s156
      %p158 = scmp.eq.s32.totalorder %s42, 0
      %p159 = por %p157, %p158
      %s160 = ssub.s32 %s44, %s51
      %p161 = scmp.eq.s32.totalorder %s160, 0
      %s163 = sadd.s32 %s162, 1
      %s164 = scalar_select %p161, %s162, %s163
      %p167 = pneg %p161
      %p168 = scmp.eq.s32.totalorder %s36, 1
      %p169 = por %p167, %p168
      %p170 = scmp.ne.s32.totalorder %s162, %s165
      %p171 = scmp.eq.s32.totalorder %s36, 0
      %p172 = por %p170, %p171
      %p173 = scmp.ne.s32.totalorder %s162, %s165
      %p174 = scmp.eq.s32.totalorder %s41, 1
      %p175 = por %p173, %p174
      %p176 = scmp.ne.s32.totalorder %s165, %s166
      %p177 = scmp.eq.s32.totalorder %s41, 0
      %p178 = por %p176, %p177
      %p179 = scmp.ne.s32.totalorder %s165, %s166
      %p180 = scmp.eq.s32.totalorder %s42, 1
      %p181 = por %p179, %p180
      %p183 = scmp.ne.s32.totalorder %s166, %s182
      %p184 = scmp.eq.s32.totalorder %s42, 0
      %p185 = por %p183, %p184
      %s186 = ssub.s32 %s44, %s51
      %p187 = scmp.eq.s32.totalorder %s186, 0
      %s189 = sadd.s32 %s188, 1
      %s190 = scalar_select %p187, %s188, %s189
      %p193 = pneg %p187
      %p194 = scmp.eq.s32.totalorder %s36, 1
      %p195 = por %p193, %p194
      %p196 = scmp.ne.s32.totalorder %s188, %s191
      %p197 = scmp.eq.s32.totalorder %s36, 0
      %p198 = por %p196, %p197
      %p199 = scmp.ne.s32.totalorder %s188, %s191
      %p200 = scmp.eq.s32.totalorder %s41, 1
      %p201 = por %p199, %p200
      %p202 = scmp.ne.s32.totalorder %s191, %s192
      %p203 = scmp.eq.s32.totalorder %s41, 0
      %p204 = por %p202, %p203
      %p205 = scmp.ne.s32.totalorder %s191, %s192
      %p206 = scmp.eq.s32.totalorder %s42, 1
      %p207 = por %p205, %p206
      %p209 = scmp.ne.s32.totalorder %s192, %s208
      %p210 = scmp.eq.s32.totalorder %s42, 0
      %p211 = por %p209, %p210
      %s212 = ssub.s32 %s44, %s51
      %p213 = scmp.eq.s32.totalorder %s212, 0
      %s215 = sadd.s32 %s214, 1
      %s216 = scalar_select %p213, %s214, %s215
      %p219 = pneg %p213
      %p220 = scmp.eq.s32.totalorder %s36, 1
      %p221 = por %p219, %p220
      %p222 = scmp.ne.s32.totalorder %s214, %s217
      %p223 = scmp.eq.s32.totalorder %s36, 0
      %p224 = por %p222, %p223
      %p225 = scmp.ne.s32.totalorder %s214, %s217
      %p226 = scmp.eq.s32.totalorder %s41, 1
      %p227 = por %p225, %p226
      %p228 = scmp.ne.s32.totalorder %s217, %s218
      %p229 = scmp.eq.s32.totalorder %s41, 0
      %p230 = por %p228, %p229
      %p231 = scmp.ne.s32.totalorder %s217, %s218
      %p232 = scmp.eq.s32.totalorder %s42, 1
      %p233 = por %p231, %p232
      %p235 = scmp.ne.s32.totalorder %s218, %s234
      %p236 = scmp.eq.s32.totalorder %s42, 0
      %p237 = por %p235, %p236
      %s238 = ssub.s32 %s44, %s51
      %p239 = scmp.eq.s32.totalorder %s238, 0
      %s241 = sadd.s32 %s240, 1
      %s242 = scalar_select %p239, %s240, %s241
      %p245 = pneg %p239
      %p246 = scmp.eq.s32.totalorder %s36, 1
      %p247 = por %p245, %p246
      %p248 = scmp.ne.s32.totalorder %s240, %s243
      %p249 = scmp.eq.s32.totalorder %s36, 0
      %p250 = por %p248, %p249
      %p251 = scmp.ne.s32.totalorder %s240, %s243
      %p252 = scmp.eq.s32.totalorder %s41, 1
      %p253 = por %p251, %p252
      %p254 = scmp.ne.s32.totalorder %s243, %s244
      %p255 = scmp.eq.s32.totalorder %s41, 0
      %p256 = por %p254, %p255
      %p257 = scmp.ne.s32.totalorder %s243, %s244
      %p258 = scmp.eq.s32.totalorder %s42, 1
      %p259 = por %p257, %p258
      %p261 = scmp.ne.s32.totalorder %s244, %s260
      %p262 = scmp.eq.s32.totalorder %s42, 0
      %p263 = por %p261, %p262
      %s264 = ssub.s32 %s44, %s51
      %p265 = scmp.eq.s32.totalorder %s264, 0
      %s267 = sadd.s32 %s266, 1
      %s268 = scalar_select %p265, %s266, %s267
      %p271 = pneg %p265
      %p272 = scmp.eq.s32.totalorder %s36, 1
      %p273 = por %p271, %p272
      %p274 = scmp.ne.s32.totalorder %s266, %s269
      %p275 = scmp.eq.s32.totalorder %s36, 0
      %p276 = por %p274, %p275
      %p277 = scmp.ne.s32.totalorder %s266, %s269
      %p278 = scmp.eq.s32.totalorder %s41, 1
      %p279 = por %p277, %p278
      %p280 = scmp.ne.s32.totalorder %s269, %s270
      %p281 = scmp.eq.s32.totalorder %s41, 0
      %p282 = por %p280, %p281
      %p283 = scmp.ne.s32.totalorder %s269, %s270
      %p284 = scmp.eq.s32.totalorder %s42, 1
      %p285 = por %p283, %p284
      %p287 = scmp.ne.s32.totalorder %s270, %s286
      %p288 = scmp.eq.s32.totalorder %s42, 0
      %p289 = por %p287, %p288
      %s290 = ssub.s32 %s44, %s51
      %p291 = scmp.eq.s32.totalorder %s290, 0
      %s293 = sadd.s32 %s292, 1
      %s294 = scalar_select %p291, %s292, %s293
      %p297 = pneg %p291
      %p298 = scmp.eq.s32.totalorder %s36, 1
      %p299 = por %p297, %p298
      %p300 = scmp.ne.s32.totalorder %s292, %s295
      %p301 = scmp.eq.s32.totalorder %s36, 0
      %p302 = por %p300, %p301
      %p303 = scmp.ne.s32.totalorder %s292, %s295
      %p304 = scmp.eq.s32.totalorder %s41, 1
      %p305 = por %p303, %p304
      %p306 = scmp.ne.s32.totalorder %s295, %s296
      %p307 = scmp.eq.s32.totalorder %s41, 0
      %p308 = por %p306, %p307
      %p309 = scmp.ne.s32.totalorder %s295, %s296
      %p310 = scmp.eq.s32.totalorder %s42, 1
      %p311 = por %p309, %p310
      %p313 = scmp.ne.s32.totalorder %s296, %s312
      %p314 = scmp.eq.s32.totalorder %s42, 0
      %p315 = por %p313, %p314
      %s316 = ssub.s32 %s44, %s51
      %p317 = scmp.eq.s32.totalorder %s316, 0
      %s319 = sadd.s32 %s318, 1
      %s320 = scalar_select %p317, %s318, %s319
      %p323 = pneg %p317
      %p324 = scmp.eq.s32.totalorder %s36, 1
      %p325 = por %p323, %p324
      %p326 = scmp.ne.s32.totalorder %s318, %s321
      %p327 = scmp.eq.s32.totalorder %s36, 0
      %p328 = por %p326, %p327
      %p329 = scmp.ne.s32.totalorder %s318, %s321
      %p330 = scmp.eq.s32.totalorder %s41, 1
      %p331 = por %p329, %p330
      %p332 = scmp.ne.s32.totalorder %s321, %s322
      %p333 = scmp.eq.s32.totalorder %s41, 0
      %p334 = por %p332, %p333
      %p335 = scmp.ne.s32.totalorder %s321, %s322
      %p336 = scmp.eq.s32.totalorder %s42, 1
      %p337 = por %p335, %p336
      %p339 = scmp.ne.s32.totalorder %s322, %s338
      %p340 = scmp.eq.s32.totalorder %s42, 0
      %p341 = por %p339, %p340
      %s342 = ssub.s32 %s44, %s51
      %p343 = scmp.eq.s32.totalorder %s342, 0
      %s345 = sadd.s32 %s344, 1
      %s346 = scalar_select %p343, %s344, %s345
      %p349 = pneg %p343
      %p350 = scmp.eq.s32.totalorder %s36, 1
      %p351 = por %p349, %p350
      %p352 = scmp.ne.s32.totalorder %s344, %s347
      %p353 = scmp.eq.s32.totalorder %s36, 0
      %p354 = por %p352, %p353
      %p355 = scmp.ne.s32.totalorder %s344, %s347
      %p356 = scmp.eq.s32.totalorder %s41, 1
      %p357 = por %p355, %p356
      %p358 = scmp.ne.s32.totalorder %s347, %s348
      %p359 = scmp.eq.s32.totalorder %s41, 0
      %p360 = por %p358, %p359
      %p361 = scmp.ne.s32.totalorder %s347, %s348
      %p362 = scmp.eq.s32.totalorder %s42, 1
      %p363 = por %p361, %p362
      %p365 = scmp.ne.s32.totalorder %s348, %s364
      %p366 = scmp.eq.s32.totalorder %s42, 0
      %p367 = por %p365, %p366
      %s368 = ssub.s32 %s44, %s51
      %p369 = scmp.eq.s32.totalorder %s368, 0
      %s371 = sadd.s32 %s370, 1
      %s372 = scalar_select %p369, %s370, %s371
      %p375 = pneg %p369
      %p376 = scmp.eq.s32.totalorder %s36, 1
      %p377 = por %p375, %p376
      %p378 = scmp.ne.s32.totalorder %s370, %s373
      %p379 = scmp.eq.s32.totalorder %s36, 0
      %p380 = por %p378, %p379
      %p381 = scmp.ne.s32.totalorder %s370, %s373
      %p382 = scmp.eq.s32.totalorder %s41, 1
      %p383 = por %p381, %p382
      %p384 = scmp.ne.s32.totalorder %s373, %s374
      %p385 = scmp.eq.s32.totalorder %s41, 0
      %p386 = por %p384, %p385
      %p387 = scmp.ne.s32.totalorder %s373, %s374
      %p388 = scmp.eq.s32.totalorder %s42, 1
      %p389 = por %p387, %p388
      %p391 = scmp.ne.s32.totalorder %s374, %s390
      %p392 = scmp.eq.s32.totalorder %s42, 0
      %p393 = por %p391, %p392
      %s395 = sadd.s32 %s394, 1
      %p398 = scmp.eq.s32.totalorder %s36, 1
      %p399 = scmp.ne.s32.totalorder %s394, %s396
      %p400 = scmp.eq.s32.totalorder %s36, 0
      %p401 = por %p399, %p400
      %p402 = scmp.ne.s32.totalorder %s394, %s396
      %p403 = scmp.eq.s32.totalorder %s41, 1
      %p404 = por %p402, %p403
      %p405 = scmp.ne.s32.totalorder %s396, %s397
      %p406 = scmp.eq.s32.totalorder %s41, 0
      %p407 = por %p405, %p406
      %p408 = scmp.ne.s32.totalorder %s396, %s397
      %p409 = scmp.eq.s32.totalorder %s42, 1
      %p410 = por %p408, %p409
      %p412 = scmp.ne.s32.totalorder %s397, %s411
      %p413 = scmp.eq.s32.totalorder %s42, 0
      %p414 = por %p412, %p413
      %s416 = sadd.s32 %s415, 1
      %p419 = scmp.eq.s32.totalorder %s36, 1
      %p420 = scmp.ne.s32.totalorder %s415, %s417
      %p421 = scmp.eq.s32.totalorder %s36, 0
      %p422 = por %p420, %p421
      %p423 = scmp.ne.s32.totalorder %s415, %s417
      %p424 = scmp.eq.s32.totalorder %s41, 1
      %p425 = por %p423, %p424
      %p426 = scmp.ne.s32.totalorder %s417, %s418
      %p427 = scmp.eq.s32.totalorder %s41, 0
      %p428 = por %p426, %p427
      %p429 = scmp.ne.s32.totalorder %s417, %s418
      %p430 = scmp.eq.s32.totalorder %s42, 1
      %p431 = por %p429, %p430
      %p433 = scmp.ne.s32.totalorder %s418, %s432
      %p434 = scmp.eq.s32.totalorder %s42, 0
      %p435 = por %p433, %p434
      %s437 = sadd.s32 %s436, 1
      %p440 = scmp.eq.s32.totalorder %s36, 1
      %p441 = scmp.ne.s32.totalorder %s436, %s438
      %p442 = scmp.eq.s32.totalorder %s36, 0
      %p443 = por %p441, %p442
      %p444 = scmp.ne.s32.totalorder %s436, %s438
      %p445 = scmp.eq.s32.totalorder %s41, 1
      %p446 = por %p444, %p445
      %p447 = scmp.ne.s32.totalorder %s438, %s439
      %p448 = scmp.eq.s32.totalorder %s41, 0
      %p449 = por %p447, %p448
      %p450 = scmp.ne.s32.totalorder %s438, %s439
      %p451 = scmp.eq.s32.totalorder %s42, 1
      %p452 = por %p450, %p451
      %p454 = scmp.ne.s32.totalorder %s439, %s453
      %p455 = scmp.eq.s32.totalorder %s42, 0
      %p456 = por %p454, %p455
      %s457 = ssub.s32 %s43, %s55
      %p458 = scmp.eq.s32.totalorder %s457, 0
      %s460 = sadd.s32 %s459, 1
      %s461 = scalar_select %p458, %s459, %s460
      %p464 = pneg %p458
      %p465 = scmp.eq.s32.totalorder %s36, 1
      %p466 = por %p464, %p465
      %p467 = scmp.ne.s32.totalorder %s459, %s462
      %p468 = scmp.eq.s32.totalorder %s36, 0
      %p469 = por %p467, %p468
      %p470 = scmp.ne.s32.totalorder %s459, %s462
      %p471 = scmp.eq.s32.totalorder %s41, 1
      %p472 = por %p470, %p471
      %p473 = scmp.ne.s32.totalorder %s462, %s463
      %p474 = scmp.eq.s32.totalorder %s41, 0
      %p475 = por %p473, %p474
      %p476 = scmp.ne.s32.totalorder %s462, %s463
      %p477 = scmp.eq.s32.totalorder %s42, 1
      %p478 = por %p476, %p477
      %p480 = scmp.ne.s32.totalorder %s463, %s479
      %p481 = scmp.eq.s32.totalorder %s42, 0
      %p482 = por %p480, %p481
      %p483 = scmp.le.s32.totalorder 1, %s36
      %p484 = scmp.lt.s32.totalorder %s36, 3
      %p485 = pnand %p483, %p484
      %p486 = pneg %p485
      // Predicated region
      $region9: #{decoder_forward.1} parent=5 // pred_check
        _
      $region10: #{decoder_forward.1} parent=5 // pred_check_branch
        %488 = sbr.rel (%p485) target = $region12
      $region11: #{decoder_forward.1} parent=5 // pred_region
        %s489 = ssub.s32 %s36, 1
        // Predicated region
        $region13: #{decoder_forward.1} parent=11 // pred_check
          %p490 = pneg %p74
        $region14: #{decoder_forward.1} parent=11 // pred_check_branch
          %492 = sbr.rel (%p490) target = $region16
        $region15: #{decoder_forward.1} parent=11 // pred_region
          %s493 = smul.u32 16, %s45
          %s495 = ssub.s32 4096, 4096
          %496 = vsyncadd [#allocation5], %s495
          %s497 = smul.addr %s493, 2
          %s498 = smul.addr %s497, 128
          %s499 = scalar_lea.hbm %s0, %s498
          %s500 = sshll.u32 [#allocation4], 4
          %s501 = int_to_ptr.vmem [resolvable:$true] %s500
          %506 = dma.hbm_to_vmem [thread:$0]  %s499, 4096, %s501, [#allocation5], 256, 256, 16
        $region16: #{decoder_forward.1} parent=11 // pred_fallthru
          _
        // Predicated region
        $region17: #{decoder_forward.1} parent=11 // pred_check
          %p507 = pneg %p407
        $region18: #{decoder_forward.1} parent=11 // pred_check_branch
          %509 = sbr.rel (%p507) target = $region20
        $region19: #{decoder_forward.1} parent=11 // pred_region
          %s511 = ssub.s32 2048, 2048
          %512 = vsyncadd [#allocation17], %s511
          %s513 = sshll.u32 [#allocation18], 4
          %s514 = int_to_ptr.vmem [resolvable:$true] %s513
          %519 = dma.hbm_to_vmem [thread:$0]  %s13, 2048, %s514, [#allocation17], 64, 64, 4
        $region20: #{decoder_forward.1} parent=11 // pred_fallthru
          _
        // Predicated region
        $region21: #{decoder_forward.1} parent=11 // pred_check
          %p520 = pneg %p428
        $region22: #{decoder_forward.1} parent=11 // pred_check_branch
          %522 = sbr.rel (%p520) target = $region24
        $region23: #{decoder_forward.1} parent=11 // pred_region
          _
        $region24: #{decoder_forward.1} parent=11 // pred_fallthru
          _
        // Predicated region
        $region25: #{decoder_forward.1} parent=11 // pred_check
          %p523 = pneg %p449
        $region26: #{decoder_forward.1} parent=11 // pred_check_branch
          %525 = sbr.rel (%p523) target = $region28
        $region27: #{decoder_forward.1} parent=11 // pred_region
          _
        $region28: #{decoder_forward.1} parent=11 // pred_fallthru
          _
      $region12: #{decoder_forward.1} parent=5 // pred_fallthru
        _
      %p526 = scmp.lt.s32.totalorder %s36, 2
      // Predicated region
      $region29: #{decoder_forward.1} parent=5 // pred_check
        %p527 = pneg %p526
      $region30: #{decoder_forward.1} parent=5 // pred_check_branch
        %529 = sbr.rel (%p527) target = $region32
      $region31: #{decoder_forward.1} parent=5 // pred_region
        // Predicated region
        $region33: #{decoder_forward.1} parent=31 // pred_check
          %p530 = pneg %p94
        $region34: #{decoder_forward.1} parent=31 // pred_check_branch
          %532 = sbr.rel (%p530) target = $region36
        $region35: #{decoder_forward.1} parent=31 // pred_region
          %p533 = scmp.lt.s32.totalorder %s44, 1
          %s534 = scalar_select %p533, %s44, 1
          %s535 = smul.addr %s534, 2
          %s536 = scalar_lea.vmem %s1, %s535
        $region36: #{decoder_forward.1} parent=31 // pred_fallthru
          _
        // Predicated region
        $region37: #{decoder_forward.1} parent=31 // pred_check
          %p537 = pneg %p120
        $region38: #{decoder_forward.1} parent=31 // pred_check_branch
          %539 = sbr.rel (%p537) target = $region40
        $region39: #{decoder_forward.1} parent=31 // pred_region
          %p540 = scmp.lt.s32.totalorder %s44, 1
          %s541 = scalar_select %p540, %s44, 1
          %s542 = smul.addr %s541, 2
          %s543 = scalar_lea.vmem %s2, %s542
        $region40: #{decoder_forward.1} parent=31 // pred_fallthru
          _
        // Predicated region
        $region41: #{decoder_forward.1} parent=31 // pred_check
          %p544 = pneg %p146
        $region42: #{decoder_forward.1} parent=31 // pred_check_branch
          %546 = sbr.rel (%p544) target = $region44
        $region43: #{decoder_forward.1} parent=31 // pred_region
          %s547 = sand.u32 %s36, 1
          %s548 = scalar_lea.sflag [#allocation8], %s547
          %s549 = sand.u32 %s136, 1
          %s550 = smul.addr %s549, 768
          %s551 = scalar_lea.vmem [#allocation7], %s550
          %s553 = ssub.s32 12288, 12288
          %554 = vsyncadd %s548, %s553
          %s555 = smul.addr %s44, 192
          %s556 = smul.addr %s555, 64
          %s557 = scalar_lea.hbm %s3, %s556
          %s558 = sshll.u32 %s551, 4
          %s559 = int_to_ptr.vmem [resolvable:$true] %s558
          %564 = dma.hbm_to_vmem [thread:$0]  %s557, 12288, %s559, %s548, 384, 384, 24
        $region44: #{decoder_forward.1} parent=31 // pred_fallthru
          _
        // Predicated region
        $region45: #{decoder_forward.1} parent=31 // pred_check
          %p565 = pneg %p172
        $region46: #{decoder_forward.1} parent=31 // pred_check_branch
          %567 = sbr.rel (%p565) target = $region48
        $region47: #{decoder_forward.1} parent=31 // pred_region
          %p568 = scmp.lt.s32.totalorder %s44, 1
          %s569 = scalar_select %p568, %s44, 1
          %s570 = smul.addr %s569, 6
          %s571 = scalar_lea.vmem %s4, %s570
        $region48: #{decoder_forward.1} parent=31 // pred_fallthru
          _
        // Predicated region
        $region49: #{decoder_forward.1} parent=31 // pred_check
          %p572 = pneg %p198
        $region50: #{decoder_forward.1} parent=31 // pred_check_branch
          %574 = sbr.rel (%p572) target = $region52
        $region51: #{decoder_forward.1} parent=31 // pred_region
          %s575 = sand.u32 %s36, 1
          %s576 = scalar_lea.sflag [#allocation8], %s575
          %s577 = sand.u32 %s188, 1
          %s578 = smul.addr %s577, 256
          %s579 = scalar_lea.vmem [#allocation9], %s578
          %s581 = ssub.s32 4096, 4096
          %582 = vsyncadd %s576, %s581
          %s583 = smul.addr %s44, 64
          %s584 = smul.addr %s583, 64
          %s585 = scalar_lea.hbm %s5, %s584
          %s586 = sshll.u32 %s579, 4
          %s587 = int_to_ptr.vmem [resolvable:$true] %s586
          %592 = dma.hbm_to_vmem [thread:$0]  %s585, 4096, %s587, %s576, 128, 128, 8
        $region52: #{decoder_forward.1} parent=31 // pred_fallthru
          _
        // Predicated region
        $region53: #{decoder_forward.1} parent=31 // pred_check
          %p593 = pneg %p224
        $region54: #{decoder_forward.1} parent=31 // pred_check_branch
          %595 = sbr.rel (%p593) target = $region56
        $region55: #{decoder_forward.1} parent=31 // pred_region
          %s596 = sand.u32 %s36, 1
          %s597 = scalar_lea.sflag [#allocation11], %s596
          %s598 = sand.u32 %s214, 1
          %s599 = smul.addr %s598, 2
          %s600 = scalar_lea.vmem [#allocation10], %s599
          %s602 = ssub.s32 32, 32
          %603 = vsyncadd %s597, %s602
          %s604 = smul.addr %s44, 2
          %s605 = smul.addr %s604, 16
          %s606 = scalar_lea.hbm %s6, %s605
          %s608 = sshll.u32 %s600, 4
          %s609 = int_to_ptr.vmem [resolvable:$true] %s608
          %611 = dma.hbm_to_vmem [thread:$0]  %s606, 32, %s609, %s597
        $region56: #{decoder_forward.1} parent=31 // pred_fallthru
          _
        // Predicated region
        $region57: #{decoder_forward.1} parent=31 // pred_check
          %p612 = pneg %p250
        $region58: #{decoder_forward.1} parent=31 // pred_check_branch
          %614 = sbr.rel (%p612) target = $region60
        $region59: #{decoder_forward.1} parent=31 // pred_region
          %p615 = scmp.lt.s32.totalorder %s44, 1
          %s616 = scalar_select %p615, %s44, 1
          %s617 = smul.addr %s616, 2
          %s618 = scalar_lea.vmem %s7, %s617
        $region60: #{decoder_forward.1} parent=31 // pred_fallthru
          _
        // Predicated region
        $region61: #{decoder_forward.1} parent=31 // pred_check
          %p619 = pneg %p276
        $region62: #{decoder_forward.1} parent=31 // pred_check_branch
          %621 = sbr.rel (%p619) target = $region64
        $region63: #{decoder_forward.1} parent=31 // pred_region
          %p622 = scmp.lt.s32.totalorder %s44, 1
          %s623 = scalar_select %p622, %s44, 1
          %s624 = smul.addr %s623, 2
          %s625 = scalar_lea.vmem %s8, %s624
        $region64: #{decoder_forward.1} parent=31 // pred_fallthru
          _
        // Predicated region
        $region65: #{decoder_forward.1} parent=31 // pred_check
          %p626 = pneg %p302
        $region66: #{decoder_forward.1} parent=31 // pred_check_branch
          %628 = sbr.rel (%p626) target = $region68
        $region67: #{decoder_forward.1} parent=31 // pred_region
          %s629 = sand.u32 %s36, 1
          %s630 = scalar_lea.sflag [#allocation11], %s629
          %s631 = sand.u32 %s292, 1
          %s632 = smul.addr %s631, 512
          %s633 = scalar_lea.vmem [#allocation12], %s632
          %s635 = ssub.s32 8192, 8192
          %636 = vsyncadd %s630, %s635
          %s637 = smul.addr %s44, 128
          %s638 = smul.addr %s637, 64
          %s639 = scalar_lea.hbm %s9, %s638
          %s640 = sshll.u32 %s633, 4
          %s641 = int_to_ptr.vmem [resolvable:$true] %s640
          %646 = dma.hbm_to_vmem [thread:$0]  %s639, 8192, %s641, %s630, 256, 256, 16
        $region68: #{decoder_forward.1} parent=31 // pred_fallthru
          _
        // Predicated region
        $region69: #{decoder_forward.1} parent=31 // pred_check
          %p647 = pneg %p328
        $region70: #{decoder_forward.1} parent=31 // pred_check_branch
          %649 = sbr.rel (%p647) target = $region72
        $region71: #{decoder_forward.1} parent=31 // pred_region
          %s650 = sand.u32 %s36, 1
          %s651 = scalar_lea.sflag [#allocation14], %s650
          %s652 = sand.u32 %s318, 1
          %s653 = smul.addr %s652, 4
          %s654 = scalar_lea.vmem [#allocation13], %s653
          %s656 = ssub.s32 64, 64
          %657 = vsyncadd %s651, %s656
          %s658 = smul.addr %s44, 4
          %s659 = smul.addr %s658, 16
          %s660 = scalar_lea.hbm %s10, %s659
          %s662 = sshll.u32 %s654, 4
          %s663 = int_to_ptr.vmem [resolvable:$true] %s662
          %665 = dma.hbm_to_vmem [thread:$0]  %s660, 64, %s663, %s651
        $region72: #{decoder_forward.1} parent=31 // pred_fallthru
          _
        // Predicated region
        $region73: #{decoder_forward.1} parent=31 // pred_check
          %p666 = pneg %p354
        $region74: #{decoder_forward.1} parent=31 // pred_check_branch
          %668 = sbr.rel (%p666) target = $region76
        $region75: #{decoder_forward.1} parent=31 // pred_region
          %s669 = sand.u32 %s36, 1
          %s670 = scalar_lea.sflag [#allocation14], %s669
          %s671 = sand.u32 %s344, 1
          %s672 = smul.addr %s671, 512
          %s673 = scalar_lea.vmem [#allocation15], %s672
          %s675 = ssub.s32 8192, 8192
          %676 = vsyncadd %s670, %s675
          %s677 = smul.addr %s44, 128
          %s678 = smul.addr %s677, 64
          %s679 = scalar_lea.hbm %s11, %s678
          %s680 = sshll.u32 %s673, 4
          %s681 = int_to_ptr.vmem [resolvable:$true] %s680
          %686 = dma.hbm_to_vmem [thread:$0]  %s679, 8192, %s681, %s670, 128, 128, 8
        $region76: #{decoder_forward.1} parent=31 // pred_fallthru
          _
        // Predicated region
        $region77: #{decoder_forward.1} parent=31 // pred_check
          %p687 = pneg %p380
        $region78: #{decoder_forward.1} parent=31 // pred_check_branch
          %689 = sbr.rel (%p687) target = $region80
        $region79: #{decoder_forward.1} parent=31 // pred_region
          %s690 = sand.u32 %s36, 1
          %s691 = scalar_lea.sflag [#allocation17], %s690
          %s692 = sand.u32 %s370, 1
          %s693 = smul.addr %s692, 2
          %s694 = scalar_lea.vmem [#allocation16], %s693
          %s696 = ssub.s32 32, 32
          %697 = vsyncadd %s691, %s696
          %s698 = smul.addr %s44, 2
          %s699 = smul.addr %s698, 16
          %s700 = scalar_lea.hbm %s12, %s699
          %s702 = sshll.u32 %s694, 4
          %s703 = int_to_ptr.vmem [resolvable:$true] %s702
          %705 = dma.hbm_to_vmem [thread:$0]  %s700, 32, %s703, %s691
        $region80: #{decoder_forward.1} parent=31 // pred_fallthru
          _
      $region32: #{decoder_forward.1} parent=5 // pred_fallthru
        _
      %p706 = scmp.le.s32.totalorder 1, %s36
      %p707 = scmp.lt.s32.totalorder %s36, 3
      %p708 = pnand %p706, %p707
      %p709 = pneg %p708
      // Predicated region
      $region81: #{decoder_forward.1} parent=5 // pred_check
        _
      $region82: #{decoder_forward.1} parent=5 // pred_check_branch
        %711 = sbr.rel (%p708) target = $region84
      $region83: #{decoder_forward.1} parent=5 // pred_region
        %s712 = ssub.s32 %s36, 1
        // Predicated region
        $region85: #{decoder_forward.1} parent=83 // pred_check
          %p713 = pneg %p74
        $region86: #{decoder_forward.1} parent=83 // pred_check_branch
          %715 = sbr.rel (%p713) target = $region88
        $region87: #{decoder_forward.1} parent=83 // pred_region
          %716 = dma.done [#allocation5], 4096
        $region88: #{decoder_forward.1} parent=83 // pred_fallthru
          _
        %s717 = sand.u32 %s41, 1
        %s718 = scalar_lea.sflag [#allocation8], %s717
        %s719 = sand.u32 %s139, 1
        %s720 = smul.addr %s719, 768
        %s721 = scalar_lea.vmem [#allocation7], %s720
        // Predicated region
        $region89: #{decoder_forward.1} parent=83 // pred_check
          %p722 = pneg %p152
        $region90: #{decoder_forward.1} parent=83 // pred_check_branch
          %724 = sbr.rel (%p722) target = $region92
        $region91: #{decoder_forward.1} parent=83 // pred_region
          %725 = dma.done %s718, 12288
        $region92: #{decoder_forward.1} parent=83 // pred_fallthru
          _
        %s726 = sand.u32 %s41, 1
        %s727 = scalar_lea.sflag [#allocation8], %s726
        %s728 = sand.u32 %s191, 1
        %s729 = smul.addr %s728, 256
        %s730 = scalar_lea.vmem [#allocation9], %s729
        // Predicated region
        $region93: #{decoder_forward.1} parent=83 // pred_check
          %p731 = pneg %p204
        $region94: #{decoder_forward.1} parent=83 // pred_check_branch
          %733 = sbr.rel (%p731) target = $region96
        $region95: #{decoder_forward.1} parent=83 // pred_region
          %734 = dma.done %s727, 4096
        $region96: #{decoder_forward.1} parent=83 // pred_fallthru
          _
        %s735 = sand.u32 %s41, 1
        %s736 = scalar_lea.sflag [#allocation11], %s735
        %s737 = sand.u32 %s217, 1
        %s738 = smul.addr %s737, 2
        %s739 = scalar_lea.vmem [#allocation10], %s738
        // Predicated region
        $region97: #{decoder_forward.1} parent=83 // pred_check
          %p740 = pneg %p230
        $region98: #{decoder_forward.1} parent=83 // pred_check_branch
          %742 = sbr.rel (%p740) target = $region100
        $region99: #{decoder_forward.1} parent=83 // pred_region
          %743 = dma.done %s736, 32
        $region100: #{decoder_forward.1} parent=83 // pred_fallthru
          _
        %s744 = sand.u32 %s41, 1
        %s745 = scalar_lea.sflag [#allocation11], %s744
        %s746 = sand.u32 %s295, 1
        %s747 = smul.addr %s746, 512
        %s748 = scalar_lea.vmem [#allocation12], %s747
        // Predicated region
        $region101: #{decoder_forward.1} parent=83 // pred_check
          %p749 = pneg %p308
        $region102: #{decoder_forward.1} parent=83 // pred_check_branch
          %751 = sbr.rel (%p749) target = $region104
        $region103: #{decoder_forward.1} parent=83 // pred_region
          %752 = dma.done %s745, 8192
        $region104: #{decoder_forward.1} parent=83 // pred_fallthru
          _
        %s753 = sand.u32 %s41, 1
        %s754 = scalar_lea.sflag [#allocation14], %s753
        %s755 = sand.u32 %s321, 1
        %s756 = smul.addr %s755, 4
        %s757 = scalar_lea.vmem [#allocation13], %s756
        // Predicated region
        $region105: #{decoder_forward.1} parent=83 // pred_check
          %p758 = pneg %p334
        $region106: #{decoder_forward.1} parent=83 // pred_check_branch
          %760 = sbr.rel (%p758) target = $region108
        $region107: #{decoder_forward.1} parent=83 // pred_region
          %761 = dma.done %s754, 64
        $region108: #{decoder_forward.1} parent=83 // pred_fallthru
          _
        %s762 = sand.u32 %s41, 1
        %s763 = scalar_lea.sflag [#allocation14], %s762
        %s764 = sand.u32 %s347, 1
        %s765 = smul.addr %s764, 512
        %s766 = scalar_lea.vmem [#allocation15], %s765
        // Predicated region
        $region109: #{decoder_forward.1} parent=83 // pred_check
          %p767 = pneg %p360
        $region110: #{decoder_forward.1} parent=83 // pred_check_branch
          %769 = sbr.rel (%p767) target = $region112
        $region111: #{decoder_forward.1} parent=83 // pred_region
          %770 = dma.done %s763, 8192
        $region112: #{decoder_forward.1} parent=83 // pred_fallthru
          _
        %s771 = sand.u32 %s41, 1
        %s772 = scalar_lea.sflag [#allocation17], %s771
        %s773 = sand.u32 %s373, 1
        %s774 = smul.addr %s773, 2
        %s775 = scalar_lea.vmem [#allocation16], %s774
        // Predicated region
        $region113: #{decoder_forward.1} parent=83 // pred_check
          %p776 = pneg %p386
        $region114: #{decoder_forward.1} parent=83 // pred_check_branch
          %778 = sbr.rel (%p776) target = $region116
        $region115: #{decoder_forward.1} parent=83 // pred_region
          %779 = dma.done %s772, 32
        $region116: #{decoder_forward.1} parent=83 // pred_fallthru
          _
        // Predicated region
        $region117: #{decoder_forward.1} parent=83 // pred_check
          %p780 = pneg %p407
        $region118: #{decoder_forward.1} parent=83 // pred_check_branch
          %782 = sbr.rel (%p780) target = $region120
        $region119: #{decoder_forward.1} parent=83 // pred_region
          %783 = dma.done [#allocation17], 2048
        $region120: #{decoder_forward.1} parent=83 // pred_fallthru
          _
        %p784 = pneg %p74
        %p785 = pneg %p71
        %p786 = scmp.lt.s32.totalorder %s46, 1
        %s787 = scalar_select %p786, %s46, 1
        %s788 = smul.addr %s787, 2
        %s789 = scalar_lea.vmem %s1, %s788
        %p790 = pneg %p100
        %p791 = pneg %p97
        %p792 = scmp.lt.s32.totalorder %s46, 1
        %s793 = scalar_select %p792, %s46, 1
        %s794 = smul.addr %s793, 2
        %s795 = scalar_lea.vmem %s2, %s794
        %p796 = pneg %p126
        %p797 = pneg %p123
        %s798 = sand.u32 %s41, 1
        %s799 = scalar_lea.sflag [#allocation8], %s798
        %s800 = sand.u32 %s139, 1
        %s801 = smul.addr %s800, 768
        %s802 = scalar_lea.vmem [#allocation7], %s801
        %p803 = pneg %p152
        %p804 = pneg %p149
        %p805 = scmp.lt.s32.totalorder %s46, 1
        %s806 = scalar_select %p805, %s46, 1
        %s807 = smul.addr %s806, 6
        %s808 = scalar_lea.vmem %s4, %s807
        %p809 = pneg %p178
        %p810 = pneg %p175
        %s811 = sand.u32 %s41, 1
        %s812 = scalar_lea.sflag [#allocation8], %s811
        %s813 = sand.u32 %s191, 1
        %s814 = smul.addr %s813, 256
        %s815 = scalar_lea.vmem [#allocation9], %s814
        %p816 = pneg %p204
        %p817 = pneg %p201
        %s818 = sand.u32 %s41, 1
        %s819 = scalar_lea.sflag [#allocation11], %s818
        %s820 = sand.u32 %s217, 1
        %s821 = smul.addr %s820, 2
        %s822 = scalar_lea.vmem [#allocation10], %s821
        %p823 = pneg %p230
        %p824 = pneg %p227
        %p825 = scmp.lt.s32.totalorder %s46, 1
        %s826 = scalar_select %p825, %s46, 1
        %s827 = smul.addr %s826, 2
        %s828 = scalar_lea.vmem %s7, %s827
        %p829 = pneg %p256
        %p830 = pneg %p253
        %p831 = scmp.lt.s32.totalorder %s46, 1
        %s832 = scalar_select %p831, %s46, 1
        %s833 = smul.addr %s832, 2
        %s834 = scalar_lea.vmem %s8, %s833
        %p835 = pneg %p282
        %p836 = pneg %p279
        %s837 = sand.u32 %s41, 1
        %s838 = scalar_lea.sflag [#allocation11], %s837
        %s839 = sand.u32 %s295, 1
        %s840 = smul.addr %s839, 512
        %s841 = scalar_lea.vmem [#allocation12], %s840
        %p842 = pneg %p308
        %p843 = pneg %p305
        %s844 = sand.u32 %s41, 1
        %s845 = scalar_lea.sflag [#allocation14], %s844
        %s846 = sand.u32 %s321, 1
        %s847 = smul.addr %s846, 4
        %s848 = scalar_lea.vmem [#allocation13], %s847
        %p849 = pneg %p334
        %p850 = pneg %p331
        %s851 = sand.u32 %s41, 1
        %s852 = scalar_lea.sflag [#allocation14], %s851
        %s853 = sand.u32 %s347, 1
        %s854 = smul.addr %s853, 512
        %s855 = scalar_lea.vmem [#allocation15], %s854
        %p856 = pneg %p360
        %p857 = pneg %p357
        %s858 = sand.u32 %s41, 1
        %s859 = scalar_lea.sflag [#allocation17], %s858
        %s860 = sand.u32 %s373, 1
        %s861 = smul.addr %s860, 2
        %s862 = scalar_lea.vmem [#allocation16], %s861
        %p863 = pneg %p386
        %p864 = pneg %p383
        %p865 = pneg %p407
        %p866 = pneg %p404
        %p867 = pneg %p428
        %p868 = pneg %p425
        %p869 = pneg %p449
        %p870 = pneg %p446
        %p871 = pneg %p475
        %p872 = pneg %p472
        %s873 = smul.u32 16, %s45
        %p874 = scmp.lt.s32.totalorder %s46, 1
        %s875 = scalar_select %p874, %s46, 1
        %s876 = smul.addr %s875, 2
        %s877 = scalar_lea.vmem %s1, %s876
        %p878 = scmp.lt.s32.totalorder %s46, 1
        %s879 = scalar_select %p878, %s46, 1
        %s880 = smul.addr %s879, 2
        %s881 = scalar_lea.vmem %s2, %s880
        %p882 = scmp.lt.s32.totalorder %s46, 1
        %s883 = scalar_select %p882, %s46, 1
        %s884 = smul.addr %s883, 6
        %s885 = scalar_lea.vmem %s4, %s884
        %p886 = scmp.lt.s32.totalorder %s46, 1
        %s887 = scalar_select %p886, %s46, 1
        %s888 = smul.addr %s887, 2
        %s889 = scalar_lea.vmem %s7, %s888
        %p890 = scmp.lt.s32.totalorder %s46, 1
        %s891 = scalar_select %p890, %s46, 1
        %s892 = smul.addr %s891, 2
        %s893 = scalar_lea.vmem %s8, %s892
        %s894 = smul.u32 16, %s45
        %p896 = scmp.eq.s32.totalorder %s46, 0
        // Predicated region
        $region121: #{decoder_forward.1} parent=83 // pred_check
          %p897 = pneg %p896
        $region122: #{decoder_forward.1} parent=83 // pred_check_branch
          %899 = sbr.rel (%p897) target = $region124
        $region123: #{decoder_forward.1} parent=83 // pred_region
          %v900 = vld [vmem:[#allocation4] sm:$0xff]
          %v901 = vld [vmem:[#allocation4 + $0x8] sm:$0xff]
          %v902 = vld [vmem:[#allocation4 + $0x10] sm:$0xff]
          %v903 = vld [vmem:[#allocation4 + $0x18] sm:$0xff]
          %v904 = vld [vmem:[#allocation4 + $0x20] sm:$0xff]
          %v905 = vld [vmem:[#allocation4 + $0x28] sm:$0xff]
          %v906 = vld [vmem:[#allocation4 + $0x30] sm:$0xff]
          %v907 = vld [vmem:[#allocation4 + $0x38] sm:$0xff]
          %v908 = vld [vmem:[#allocation4 + $0x40] sm:$0xff]
          %v909 = vld [vmem:[#allocation4 + $0x48] sm:$0xff]
          %v910 = vld [vmem:[#allocation4 + $0x50] sm:$0xff]
          %v911 = vld [vmem:[#allocation4 + $0x58] sm:$0xff]
          %v912 = vld [vmem:[#allocation4 + $0x60] sm:$0xff]
          %v913 = vld [vmem:[#allocation4 + $0x68] sm:$0xff]
          %v914 = vld [vmem:[#allocation4 + $0x70] sm:$0xff]
          %v915 = vld [vmem:[#allocation4 + $0x78] sm:$0xff]
          %v916 = vld [vmem:[#allocation4 + $0x80] sm:$0xff]
          %v917 = vld [vmem:[#allocation4 + $0x88] sm:$0xff]
          %v918 = vld [vmem:[#allocation4 + $0x90] sm:$0xff]
          %v919 = vld [vmem:[#allocation4 + $0x98] sm:$0xff]
          %v920 = vld [vmem:[#allocation4 + $0xa0] sm:$0xff]
          %v921 = vld [vmem:[#allocation4 + $0xa8] sm:$0xff]
          %v922 = vld [vmem:[#allocation4 + $0xb0] sm:$0xff]
          %v923 = vld [vmem:[#allocation4 + $0xb8] sm:$0xff]
          %v924 = vld [vmem:[#allocation4 + $0xc0] sm:$0xff]
          %v925 = vld [vmem:[#allocation4 + $0xc8] sm:$0xff]
          %v926 = vld [vmem:[#allocation4 + $0xd0] sm:$0xff]
          %v927 = vld [vmem:[#allocation4 + $0xd8] sm:$0xff]
          %v928 = vld [vmem:[#allocation4 + $0xe0] sm:$0xff]
          %v929 = vld [vmem:[#allocation4 + $0xe8] sm:$0xff]
          %v930 = vld [vmem:[#allocation4 + $0xf0] sm:$0xff]
          %v931 = vld [vmem:[#allocation4 + $0xf8] sm:$0xff]
          %932 = vst [vmem:[#allocation2] sm:$0xff] %v900
          %933 = vst [vmem:[#allocation2 + $0x8] sm:$0xff] %v901
          %934 = vst [vmem:[#allocation2 + $0x10] sm:$0xff] %v902
          %935 = vst [vmem:[#allocation2 + $0x18] sm:$0xff] %v903
          %936 = vst [vmem:[#allocation2 + $0x20] sm:$0xff] %v904
          %937 = vst [vmem:[#allocation2 + $0x28] sm:$0xff] %v905
          %938 = vst [vmem:[#allocation2 + $0x30] sm:$0xff] %v906
          %939 = vst [vmem:[#allocation2 + $0x38] sm:$0xff] %v907
          %940 = vst [vmem:[#allocation2 + $0x40] sm:$0xff] %v908
          %941 = vst [vmem:[#allocation2 + $0x48] sm:$0xff] %v909
          %942 = vst [vmem:[#allocation2 + $0x50] sm:$0xff] %v910
          %943 = vst [vmem:[#allocation2 + $0x58] sm:$0xff] %v911
          %944 = vst [vmem:[#allocation2 + $0x60] sm:$0xff] %v912
          %945 = vst [vmem:[#allocation2 + $0x68] sm:$0xff] %v913
          %946 = vst [vmem:[#allocation2 + $0x70] sm:$0xff] %v914
          %947 = vst [vmem:[#allocation2 + $0x78] sm:$0xff] %v915
          %948 = vst [vmem:[#allocation2 + $0x80] sm:$0xff] %v916
          %949 = vst [vmem:[#allocation2 + $0x88] sm:$0xff] %v917
          %950 = vst [vmem:[#allocation2 + $0x90] sm:$0xff] %v918
          %951 = vst [vmem:[#allocation2 + $0x98] sm:$0xff] %v919
          %952 = vst [vmem:[#allocation2 + $0xa0] sm:$0xff] %v920
          %953 = vst [vmem:[#allocation2 + $0xa8] sm:$0xff] %v921
          %954 = vst [vmem:[#allocation2 + $0xb0] sm:$0xff] %v922
          %955 = vst [vmem:[#allocation2 + $0xb8] sm:$0xff] %v923
          %956 = vst [vmem:[#allocation2 + $0xc0] sm:$0xff] %v924
          %957 = vst [vmem:[#allocation2 + $0xc8] sm:$0xff] %v925
          %958 = vst [vmem:[#allocation2 + $0xd0] sm:$0xff] %v926
          %959 = vst [vmem:[#allocation2 + $0xd8] sm:$0xff] %v927
          %960 = vst [vmem:[#allocation2 + $0xe0] sm:$0xff] %v928
          %961 = vst [vmem:[#allocation2 + $0xe8] sm:$0xff] %v929
          %962 = vst [vmem:[#allocation2 + $0xf0] sm:$0xff] %v930
          %963 = vst [vmem:[#allocation2 + $0xf8] sm:$0xff] %v931
        $region124: #{decoder_forward.1} parent=83 // pred_fallthru
          _
        %v964 = vld [vmem:[#allocation2] sm:$0xff]
        %v965 = vld [vmem:[#allocation2 + $0x8] sm:$0xff]
        %v966 = vld [vmem:[#allocation2 + $0x10] sm:$0xff]
        %v967 = vld [vmem:[#allocation2 + $0x18] sm:$0xff]
        %v968 = vld [vmem:[#allocation2 + $0x20] sm:$0xff]
        %v969 = vld [vmem:[#allocation2 + $0x28] sm:$0xff]
        %v970 = vld [vmem:[#allocation2 + $0x30] sm:$0xff]
        %v971 = vld [vmem:[#allocation2 + $0x38] sm:$0xff]
        %v972 = vld [vmem:[#allocation2 + $0x40] sm:$0xff]
        %v973 = vld [vmem:[#allocation2 + $0x48] sm:$0xff]
        %v974 = vld [vmem:[#allocation2 + $0x50] sm:$0xff]
        %v975 = vld [vmem:[#allocation2 + $0x58] sm:$0xff]
        %v976 = vld [vmem:[#allocation2 + $0x60] sm:$0xff]
        %v977 = vld [vmem:[#allocation2 + $0x68] sm:$0xff]
        %v978 = vld [vmem:[#allocation2 + $0x70] sm:$0xff]
        %v979 = vld [vmem:[#allocation2 + $0x78] sm:$0xff]
        %v980 = vld [vmem:[#allocation2 + $0x80] sm:$0xff]
        %v981 = vld [vmem:[#allocation2 + $0x88] sm:$0xff]
        %v982 = vld [vmem:[#allocation2 + $0x90] sm:$0xff]
        %v983 = vld [vmem:[#allocation2 + $0x98] sm:$0xff]
        %v984 = vld [vmem:[#allocation2 + $0xa0] sm:$0xff]
        %v985 = vld [vmem:[#allocation2 + $0xa8] sm:$0xff]
        %v986 = vld [vmem:[#allocation2 + $0xb0] sm:$0xff]
        %v987 = vld [vmem:[#allocation2 + $0xb8] sm:$0xff]
        %v988 = vld [vmem:[#allocation2 + $0xc0] sm:$0xff]
        %v989 = vld [vmem:[#allocation2 + $0xc8] sm:$0xff]
        %v990 = vld [vmem:[#allocation2 + $0xd0] sm:$0xff]
        %v991 = vld [vmem:[#allocation2 + $0xd8] sm:$0xff]
        %v992 = vld [vmem:[#allocation2 + $0xe0] sm:$0xff]
        %v993 = vld [vmem:[#allocation2 + $0xe8] sm:$0xff]
        %v994 = vld [vmem:[#allocation2 + $0xf0] sm:$0xff]
        %v995 = vld [vmem:[#allocation2 + $0xf8] sm:$0xff]
        %v996 = vld [vmem:[%s877] sm:$0x3]
        %v997 = vld [vmem:[%s881] sm:$0x3]
        %v998 = vadd.f32 %v964, %v965
        %999 = vadd.xlane.f32.xlu0 %v998
        %v1000 = vpop.xlane.xlu0 %999
        %v1001 = vadd.f32 %v966, %v967
        %1002 = vadd.xlane.f32.xlu0 %v1001
        %v1003 = vpop.xlane.xlu0 %1002
        %v1004 = vadd.f32 %v968, %v969
        %1005 = vadd.xlane.f32.xlu0 %v1004
        %v1006 = vpop.xlane.xlu0 %1005
        %v1007 = vadd.f32 %v970, %v971
        %1008 = vadd.xlane.f32.xlu0 %v1007
        %v1009 = vpop.xlane.xlu0 %1008
        %v1010 = vadd.f32 %v972, %v973
        %1011 = vadd.xlane.f32.xlu0 %v1010
        %v1012 = vpop.xlane.xlu0 %1011
        %v1013 = vadd.f32 %v974, %v975
        %1014 = vadd.xlane.f32.xlu0 %v1013
        %v1015 = vpop.xlane.xlu0 %1014
        %v1016 = vadd.f32 %v976, %v977
        %1017 = vadd.xlane.f32.xlu0 %v1016
        %v1018 = vpop.xlane.xlu0 %1017
        %v1019 = vadd.f32 %v978, %v979
        %1020 = vadd.xlane.f32.xlu0 %v1019
        %v1021 = vpop.xlane.xlu0 %1020
        %v1022 = vadd.f32 %v980, %v981
        %1023 = vadd.xlane.f32.xlu0 %v1022
        %v1024 = vpop.xlane.xlu0 %1023
        %v1025 = vadd.f32 %v982, %v983
        %1026 = vadd.xlane.f32.xlu0 %v1025
        %v1027 = vpop.xlane.xlu0 %1026
        %v1028 = vadd.f32 %v984, %v985
        %1029 = vadd.xlane.f32.xlu0 %v1028
        %v1030 = vpop.xlane.xlu0 %1029
        %v1031 = vadd.f32 %v986, %v987
        %1032 = vadd.xlane.f32.xlu0 %v1031
        %v1033 = vpop.xlane.xlu0 %1032
        %v1034 = vadd.f32 %v988, %v989
        %1035 = vadd.xlane.f32.xlu0 %v1034
        %v1036 = vpop.xlane.xlu0 %1035
        %v1037 = vadd.f32 %v990, %v991
        %1038 = vadd.xlane.f32.xlu0 %v1037
        %v1039 = vpop.xlane.xlu0 %1038
        %v1040 = vadd.f32 %v992, %v993
        %1041 = vadd.xlane.f32.xlu0 %v1040
        %v1042 = vpop.xlane.xlu0 %1041
        %v1043 = vadd.f32 %v994, %v995
        %1044 = vadd.xlane.f32.xlu0 %v1043
        %v1045 = vpop.xlane.xlu0 %1044
        %v1046 = vmul.f32 %v964, %v964
        %v1047 = vmul.f32 %v965, %v965
        %v1048 = vmul.f32 %v966, %v966
        %v1049 = vmul.f32 %v967, %v967
        %v1050 = vmul.f32 %v968, %v968
        %v1051 = vmul.f32 %v969, %v969
        %v1052 = vmul.f32 %v970, %v970
        %v1053 = vmul.f32 %v971, %v971
        %v1054 = vmul.f32 %v972, %v972
        %v1055 = vmul.f32 %v973, %v973
        %v1056 = vmul.f32 %v974, %v974
        %v1057 = vmul.f32 %v975, %v975
        %v1058 = vmul.f32 %v976, %v976
        %v1059 = vmul.f32 %v977, %v977
        %v1060 = vmul.f32 %v978, %v978
        %v1061 = vmul.f32 %v979, %v979
        %v1062 = vmul.f32 %v980, %v980
        %v1063 = vmul.f32 %v981, %v981
        %v1064 = vmul.f32 %v982, %v982
        %v1065 = vmul.f32 %v983, %v983
        %v1066 = vmul.f32 %v984, %v984
        %v1067 = vmul.f32 %v985, %v985
        %v1068 = vmul.f32 %v986, %v986
        %v1069 = vmul.f32 %v987, %v987
        %v1070 = vmul.f32 %v988, %v988
        %v1071 = vmul.f32 %v989, %v989
        %v1072 = vmul.f32 %v990, %v990
        %v1073 = vmul.f32 %v991, %v991
        %v1074 = vmul.f32 %v992, %v992
        %v1075 = vmul.f32 %v993, %v993
        %v1076 = vmul.f32 %v994, %v994
        %v1077 = vmul.f32 %v995, %v995
        %v1078 = vadd.f32 %v1046, %v1047
        %1079 = vadd.xlane.f32.xlu0 %v1078
        %v1080 = vpop.xlane.xlu0 %1079
        %v1081 = vadd.f32 %v1048, %v1049
        %1082 = vadd.xlane.f32.xlu0 %v1081
        %v1083 = vpop.xlane.xlu0 %1082
        %v1084 = vadd.f32 %v1050, %v1051
        %1085 = vadd.xlane.f32.xlu0 %v1084
        %v1086 = vpop.xlane.xlu0 %1085
        %v1087 = vadd.f32 %v1052, %v1053
        %1088 = vadd.xlane.f32.xlu0 %v1087
        %v1089 = vpop.xlane.xlu0 %1088
        %v1090 = vadd.f32 %v1054, %v1055
        %1091 = vadd.xlane.f32.xlu0 %v1090
        %v1092 = vpop.xlane.xlu0 %1091
        %v1093 = vadd.f32 %v1056, %v1057
        %1094 = vadd.xlane.f32.xlu0 %v1093
        %v1095 = vpop.xlane.xlu0 %1094
        %v1096 = vadd.f32 %v1058, %v1059
        %1097 = vadd.xlane.f32.xlu0 %v1096
        %v1098 = vpop.xlane.xlu0 %1097
        %v1099 = vadd.f32 %v1060, %v1061
        %1100 = vadd.xlane.f32.xlu0 %v1099
        %v1101 = vpop.xlane.xlu0 %1100
        %v1102 = vadd.f32 %v1062, %v1063
        %1103 = vadd.xlane.f32.xlu0 %v1102
        %v1104 = vpop.xlane.xlu0 %1103
        %v1105 = vadd.f32 %v1064, %v1065
        %1106 = vadd.xlane.f32.xlu0 %v1105
        %v1107 = vpop.xlane.xlu0 %1106
        %v1108 = vadd.f32 %v1066, %v1067
        %1109 = vadd.xlane.f32.xlu0 %v1108
        %v1110 = vpop.xlane.xlu0 %1109
        %v1111 = vadd.f32 %v1068, %v1069
        %1112 = vadd.xlane.f32.xlu0 %v1111
        %v1113 = vpop.xlane.xlu0 %1112
        %v1114 = vadd.f32 %v1070, %v1071
        %1115 = vadd.xlane.f32.xlu0 %v1114
        %v1116 = vpop.xlane.xlu0 %1115
        %v1117 = vadd.f32 %v1072, %v1073
        %1118 = vadd.xlane.f32.xlu0 %v1117
        %v1119 = vpop.xlane.xlu0 %1118
        %v1120 = vadd.f32 %v1074, %v1075
        %1121 = vadd.xlane.f32.xlu0 %v1120
        %v1122 = vpop.xlane.xlu0 %1121
        %v1123 = vadd.f32 %v1076, %v1077
        %1124 = vadd.xlane.f32.xlu0 %v1123
        %v1125 = vpop.xlane.xlu0 %1124
        %v1126 = vmul.f32 %v1000, 0.00390625
        %v1127 = vmul.f32 %v1003, 0.00390625
        %v1128 = vmul.f32 %v1006, 0.00390625
        %v1129 = vmul.f32 %v1009, 0.00390625
        %v1130 = vmul.f32 %v1012, 0.00390625
        %v1131 = vmul.f32 %v1015, 0.00390625
        %v1132 = vmul.f32 %v1018, 0.00390625
        %v1133 = vmul.f32 %v1021, 0.00390625
        %v1134 = vmul.f32 %v1024, 0.00390625
        %v1135 = vmul.f32 %v1027, 0.00390625
        %v1136 = vmul.f32 %v1030, 0.00390625
        %v1137 = vmul.f32 %v1033, 0.00390625
        %v1138 = vmul.f32 %v1036, 0.00390625
        %v1139 = vmul.f32 %v1039, 0.00390625
        %v1140 = vmul.f32 %v1042, 0.00390625
        %v1141 = vmul.f32 %v1045, 0.00390625
        %v1142 = vmul.f32 %v1080, 0.00390625
        %v1143 = vmul.f32 %v1083, 0.00390625
        %v1144 = vmul.f32 %v1086, 0.00390625
        %v1145 = vmul.f32 %v1089, 0.00390625
        %v1146 = vmul.f32 %v1092, 0.00390625
        %v1147 = vmul.f32 %v1095, 0.00390625
        %v1148 = vmul.f32 %v1098, 0.00390625
        %v1149 = vmul.f32 %v1101, 0.00390625
        %v1150 = vmul.f32 %v1104, 0.00390625
        %v1151 = vmul.f32 %v1107, 0.00390625
        %v1152 = vmul.f32 %v1110, 0.00390625
        %v1153 = vmul.f32 %v1113, 0.00390625
        %v1154 = vmul.f32 %v1116, 0.00390625
        %v1155 = vmul.f32 %v1119, 0.00390625
        %v1156 = vmul.f32 %v1122, 0.00390625
        %v1157 = vmul.f32 %v1125, 0.00390625
        %v1158 = vmul.f32 %v1126, %v1126
        %v1159 = vmul.f32 %v1127, %v1127
        %v1160 = vmul.f32 %v1128, %v1128
        %v1161 = vmul.f32 %v1129, %v1129
        %v1162 = vmul.f32 %v1130, %v1130
        %v1163 = vmul.f32 %v1131, %v1131
        %v1164 = vmul.f32 %v1132, %v1132
        %v1165 = vmul.f32 %v1133, %v1133
        %v1166 = vmul.f32 %v1134, %v1134
        %v1167 = vmul.f32 %v1135, %v1135
        %v1168 = vmul.f32 %v1136, %v1136
        %v1169 = vmul.f32 %v1137, %v1137
        %v1170 = vmul.f32 %v1138, %v1138
        %v1171 = vmul.f32 %v1139, %v1139
        %v1172 = vmul.f32 %v1140, %v1140
        %v1173 = vmul.f32 %v1141, %v1141
        %v1174 = vsub.f32 %v1142, %v1158
        %v1175 = vsub.f32 %v1143, %v1159
        %v1176 = vsub.f32 %v1144, %v1160
        %v1177 = vsub.f32 %v1145, %v1161
        %v1178 = vsub.f32 %v1146, %v1162
        %v1179 = vsub.f32 %v1147, %v1163
        %v1180 = vsub.f32 %v1148, %v1164
        %v1181 = vsub.f32 %v1149, %v1165
        %v1182 = vsub.f32 %v1150, %v1166
        %v1183 = vsub.f32 %v1151, %v1167
        %v1184 = vsub.f32 %v1152, %v1168
        %v1185 = vsub.f32 %v1153, %v1169
        %v1186 = vsub.f32 %v1154, %v1170
        %v1187 = vsub.f32 %v1155, %v1171
        %v1188 = vsub.f32 %v1156, %v1172
        %v1189 = vsub.f32 %v1157, %v1173
        %v1190 = vsub.f32 %v964, %v1126
        %v1191 = vsub.f32 %v965, %v1126
        %v1192 = vsub.f32 %v966, %v1127
        %v1193 = vsub.f32 %v967, %v1127
        %v1194 = vsub.f32 %v968, %v1128
        %v1195 = vsub.f32 %v969, %v1128
        %v1196 = vsub.f32 %v970, %v1129
        %v1197 = vsub.f32 %v971, %v1129
        %v1198 = vsub.f32 %v972, %v1130
        %v1199 = vsub.f32 %v973, %v1130
        %v1200 = vsub.f32 %v974, %v1131
        %v1201 = vsub.f32 %v975, %v1131
        %v1202 = vsub.f32 %v976, %v1132
        %v1203 = vsub.f32 %v977, %v1132
        %v1204 = vsub.f32 %v978, %v1133
        %v1205 = vsub.f32 %v979, %v1133
        %v1206 = vsub.f32 %v980, %v1134
        %v1207 = vsub.f32 %v981, %v1134
        %v1208 = vsub.f32 %v982, %v1135
        %v1209 = vsub.f32 %v983, %v1135
        %v1210 = vsub.f32 %v984, %v1136
        %v1211 = vsub.f32 %v985, %v1136
        %v1212 = vsub.f32 %v986, %v1137
        %v1213 = vsub.f32 %v987, %v1137
        %v1214 = vsub.f32 %v988, %v1138
        %v1215 = vsub.f32 %v989, %v1138
        %v1216 = vsub.f32 %v990, %v1139
        %v1217 = vsub.f32 %v991, %v1139
        %v1218 = vsub.f32 %v992, %v1140
        %v1219 = vsub.f32 %v993, %v1140
        %v1220 = vsub.f32 %v994, %v1141
        %v1221 = vsub.f32 %v995, %v1141
        %v1222 = vadd.f32 %v1174, 1e-05
        %v1223 = vadd.f32 %v1175, 1e-05
        %v1224 = vadd.f32 %v1176, 1e-05
        %v1225 = vadd.f32 %v1177, 1e-05
        %v1226 = vadd.f32 %v1178, 1e-05
        %v1227 = vadd.f32 %v1179, 1e-05
        %v1228 = vadd.f32 %v1180, 1e-05
        %v1229 = vadd.f32 %v1181, 1e-05
        %v1230 = vadd.f32 %v1182, 1e-05
        %v1231 = vadd.f32 %v1183, 1e-05
        %v1232 = vadd.f32 %v1184, 1e-05
        %v1233 = vadd.f32 %v1185, 1e-05
        %v1234 = vadd.f32 %v1186, 1e-05
        %v1235 = vadd.f32 %v1187, 1e-05
        %v1236 = vadd.f32 %v1188, 1e-05
        %v1237 = vadd.f32 %v1189, 1e-05
        %v1238 = vrsqrt.pop %v1222
        %v1239 = vrsqrt.pop %v1223
        %v1240 = vrsqrt.pop %v1224
        %v1241 = vrsqrt.pop %v1225
        %v1242 = vrsqrt.pop %v1226
        %v1243 = vrsqrt.pop %v1227
        %v1244 = vrsqrt.pop %v1228
        %v1245 = vrsqrt.pop %v1229
        %v1246 = vrsqrt.pop %v1230
        %v1247 = vrsqrt.pop %v1231
        %v1248 = vrsqrt.pop %v1232
        %v1249 = vrsqrt.pop %v1233
        %v1250 = vrsqrt.pop %v1234
        %v1251 = vrsqrt.pop %v1235
        %v1252 = vrsqrt.pop %v1236
        %v1253 = vrsqrt.pop %v1237
        %v1254 = vmul.f32 %v1190, %v1238
        %v1255 = vmul.f32 %v1191, %v1238
        %v1256 = vmul.f32 %v1192, %v1239
        %v1257 = vmul.f32 %v1193, %v1239
        %v1258 = vmul.f32 %v1194, %v1240
        %v1259 = vmul.f32 %v1195, %v1240
        %v1260 = vmul.f32 %v1196, %v1241
        %v1261 = vmul.f32 %v1197, %v1241
        %v1262 = vmul.f32 %v1198, %v1242
        %v1263 = vmul.f32 %v1199, %v1242
        %v1264 = vmul.f32 %v1200, %v1243
        %v1265 = vmul.f32 %v1201, %v1243
        %v1266 = vmul.f32 %v1202, %v1244
        %v1267 = vmul.f32 %v1203, %v1244
        %v1268 = vmul.f32 %v1204, %v1245
        %v1269 = vmul.f32 %v1205, %v1245
        %v1270 = vmul.f32 %v1206, %v1246
        %v1271 = vmul.f32 %v1207, %v1246
        %v1272 = vmul.f32 %v1208, %v1247
        %v1273 = vmul.f32 %v1209, %v1247
        %v1274 = vmul.f32 %v1210, %v1248
        %v1275 = vmul.f32 %v1211, %v1248
        %v1276 = vmul.f32 %v1212, %v1249
        %v1277 = vmul.f32 %v1213, %v1249
        %v1278 = vmul.f32 %v1214, %v1250
        %v1279 = vmul.f32 %v1215, %v1250
        %v1280 = vmul.f32 %v1216, %v1251
        %v1281 = vmul.f32 %v1217, %v1251
        %v1282 = vmul.f32 %v1218, %v1252
        %v1283 = vmul.f32 %v1219, %v1252
        %v1284 = vmul.f32 %v1220, %v1253
        %v1285 = vmul.f32 %v1221, %v1253
        %v1287 = vlaneseq
        %v1288 = vshrl.u32 %v1287, 7
        %v1289 = vsub.s32 0, %v1288
        %v1290 = vrot.slane %v996, %v1289
        %v1291 = vlaneseq
        %v1292 = vshrl.u32 %v1291, 7
        %v1293 = vsub.s32 1, %v1292
        %v1294 = vrot.slane %v996, %v1293
        %v1297 = vmul.f32 %v1254, %v1290
        %v1298 = vmul.f32 %v1255, %v1294
        %v1299 = vmul.f32 %v1256, %v1290
        %v1300 = vmul.f32 %v1257, %v1294
        %v1301 = vmul.f32 %v1258, %v1290
        %v1302 = vmul.f32 %v1259, %v1294
        %v1303 = vmul.f32 %v1260, %v1290
        %v1304 = vmul.f32 %v1261, %v1294
        %v1305 = vmul.f32 %v1262, %v1290
        %v1306 = vmul.f32 %v1263, %v1294
        %v1307 = vmul.f32 %v1264, %v1290
        %v1308 = vmul.f32 %v1265, %v1294
        %v1309 = vmul.f32 %v1266, %v1290
        %v1310 = vmul.f32 %v1267, %v1294
        %v1311 = vmul.f32 %v1268, %v1290
        %v1312 = vmul.f32 %v1269, %v1294
        %v1313 = vmul.f32 %v1270, %v1290
        %v1314 = vmul.f32 %v1271, %v1294
        %v1315 = vmul.f32 %v1272, %v1290
        %v1316 = vmul.f32 %v1273, %v1294
        %v1317 = vmul.f32 %v1274, %v1290
        %v1318 = vmul.f32 %v1275, %v1294
        %v1319 = vmul.f32 %v1276, %v1290
        %v1320 = vmul.f32 %v1277, %v1294
        %v1321 = vmul.f32 %v1278, %v1290
        %v1322 = vmul.f32 %v1279, %v1294
        %v1323 = vmul.f32 %v1280, %v1290
        %v1324 = vmul.f32 %v1281, %v1294
        %v1325 = vmul.f32 %v1282, %v1290
        %v1326 = vmul.f32 %v1283, %v1294
        %v1327 = vmul.f32 %v1284, %v1290
        %v1328 = vmul.f32 %v1285, %v1294
        %v1330 = vlaneseq
        %v1331 = vshrl.u32 %v1330, 7
        %v1332 = vsub.s32 0, %v1331
        %v1333 = vrot.slane %v997, %v1332
        %v1334 = vlaneseq
        %v1335 = vshrl.u32 %v1334, 7
        %v1336 = vsub.s32 1, %v1335
        %v1337 = vrot.slane %v997, %v1336
        %v1340 = vadd.f32 %v1297, %v1333
        %v1341 = vadd.f32 %v1298, %v1337
        %v1342 = vadd.f32 %v1299, %v1333
        %v1343 = vadd.f32 %v1300, %v1337
        %v1344 = vadd.f32 %v1301, %v1333
        %v1345 = vadd.f32 %v1302, %v1337
        %v1346 = vadd.f32 %v1303, %v1333
        %v1347 = vadd.f32 %v1304, %v1337
        %v1348 = vadd.f32 %v1305, %v1333
        %v1349 = vadd.f32 %v1306, %v1337
        %v1350 = vadd.f32 %v1307, %v1333
        %v1351 = vadd.f32 %v1308, %v1337
        %v1352 = vadd.f32 %v1309, %v1333
        %v1353 = vadd.f32 %v1310, %v1337
        %v1354 = vadd.f32 %v1311, %v1333
        %v1355 = vadd.f32 %v1312, %v1337
        %v1356 = vadd.f32 %v1313, %v1333
        %v1357 = vadd.f32 %v1314, %v1337
        %v1358 = vadd.f32 %v1315, %v1333
        %v1359 = vadd.f32 %v1316, %v1337
        %v1360 = vadd.f32 %v1317, %v1333
        %v1361 = vadd.f32 %v1318, %v1337
        %v1362 = vadd.f32 %v1319, %v1333
        %v1363 = vadd.f32 %v1320, %v1337
        %v1364 = vadd.f32 %v1321, %v1333
        %v1365 = vadd.f32 %v1322, %v1337
        %v1366 = vadd.f32 %v1323, %v1333
        %v1367 = vadd.f32 %v1324, %v1337
        %v1368 = vadd.f32 %v1325, %v1333
        %v1369 = vadd.f32 %v1326, %v1337
        %v1370 = vadd.f32 %v1327, %v1333
        %v1371 = vadd.f32 %v1328, %v1337
        %v1372 = vpack.c.bf16 %v1342, %v1340
        %v1373 = vpack.c.bf16 %v1343, %v1341
        %v1374 = vpack.c.bf16 %v1346, %v1344
        %v1375 = vpack.c.bf16 %v1347, %v1345
        %v1376 = vpack.c.bf16 %v1350, %v1348
        %v1377 = vpack.c.bf16 %v1351, %v1349
        %v1378 = vpack.c.bf16 %v1354, %v1352
        %v1379 = vpack.c.bf16 %v1355, %v1353
        %v1380 = vpack.c.bf16 %v1358, %v1356
        %v1381 = vpack.c.bf16 %v1359, %v1357
        %v1382 = vpack.c.bf16 %v1362, %v1360
        %v1383 = vpack.c.bf16 %v1363, %v1361
        %v1384 = vpack.c.bf16 %v1366, %v1364
        %v1385 = vpack.c.bf16 %v1367, %v1365
        %v1386 = vpack.c.bf16 %v1370, %v1368
        %v1387 = vpack.c.bf16 %v1371, %v1369
        %v1388 = vld [vmem:[%s721] sm:$0xff]
        %v1389 = vld [vmem:[%s721 + $0x8] sm:$0xff]
        %v1390 = vld [vmem:[%s721 + $0x10] sm:$0xff]
        %v1391 = vld [vmem:[%s721 + $0x18] sm:$0xff]
        %v1392 = vld [vmem:[%s721 + $0x20] sm:$0xff]
        %v1393 = vld [vmem:[%s721 + $0x28] sm:$0xff]
        %v1394 = vld [vmem:[%s721 + $0x30] sm:$0xff]
        %v1395 = vld [vmem:[%s721 + $0x38] sm:$0xff]
        %v1396 = vld [vmem:[%s721 + $0x40] sm:$0xff]
        %v1397 = vld [vmem:[%s721 + $0x48] sm:$0xff]
        %v1398 = vld [vmem:[%s721 + $0x50] sm:$0xff]
        %v1399 = vld [vmem:[%s721 + $0x58] sm:$0xff]
        %v1400 = vld [vmem:[%s721 + $0x60] sm:$0xff]
        %v1401 = vld [vmem:[%s721 + $0x68] sm:$0xff]
        %v1402 = vld [vmem:[%s721 + $0x70] sm:$0xff]
        %v1403 = vld [vmem:[%s721 + $0x78] sm:$0xff]
        %v1404 = vld [vmem:[%s721 + $0x80] sm:$0xff]
        %v1405 = vld [vmem:[%s721 + $0x88] sm:$0xff]
        %v1406 = vld [vmem:[%s721 + $0x90] sm:$0xff]
        %v1407 = vld [vmem:[%s721 + $0x98] sm:$0xff]
        %v1408 = vld [vmem:[%s721 + $0xa0] sm:$0xff]
        %v1409 = vld [vmem:[%s721 + $0xa8] sm:$0xff]
        %v1410 = vld [vmem:[%s721 + $0xb0] sm:$0xff]
        %v1411 = vld [vmem:[%s721 + $0xb8] sm:$0xff]
        %v1412 = vld [vmem:[%s721 + $0xc0] sm:$0xff]
        %v1413 = vld [vmem:[%s721 + $0xc8] sm:$0xff]
        %v1414 = vld [vmem:[%s721 + $0xd0] sm:$0xff]
        %v1415 = vld [vmem:[%s721 + $0xd8] sm:$0xff]
        %v1416 = vld [vmem:[%s721 + $0xe0] sm:$0xff]
        %v1417 = vld [vmem:[%s721 + $0xe8] sm:$0xff]
        %v1418 = vld [vmem:[%s721 + $0xf0] sm:$0xff]
        %v1419 = vld [vmem:[%s721 + $0xf8] sm:$0xff]
        %v1420 = vld [vmem:[%s721 + $0x100] sm:$0xff]
        %v1421 = vld [vmem:[%s721 + $0x108] sm:$0xff]
        %v1422 = vld [vmem:[%s721 + $0x110] sm:$0xff]
        %v1423 = vld [vmem:[%s721 + $0x118] sm:$0xff]
        %v1424 = vld [vmem:[%s721 + $0x120] sm:$0xff]
        %v1425 = vld [vmem:[%s721 + $0x128] sm:$0xff]
        %v1426 = vld [vmem:[%s721 + $0x130] sm:$0xff]
        %v1427 = vld [vmem:[%s721 + $0x138] sm:$0xff]
        %v1428 = vld [vmem:[%s721 + $0x140] sm:$0xff]
        %v1429 = vld [vmem:[%s721 + $0x148] sm:$0xff]
        %v1430 = vld [vmem:[%s721 + $0x150] sm:$0xff]
        %v1431 = vld [vmem:[%s721 + $0x158] sm:$0xff]
        %v1432 = vld [vmem:[%s721 + $0x160] sm:$0xff]
        %v1433 = vld [vmem:[%s721 + $0x168] sm:$0xff]
        %v1434 = vld [vmem:[%s721 + $0x170] sm:$0xff]
        %v1435 = vld [vmem:[%s721 + $0x178] sm:$0xff]
        %v1436 = vld [vmem:[%s721 + $0x180] sm:$0xff]
        %v1437 = vld [vmem:[%s721 + $0x188] sm:$0xff]
        %v1438 = vld [vmem:[%s721 + $0x190] sm:$0xff]
        %v1439 = vld [vmem:[%s721 + $0x198] sm:$0xff]
        %v1440 = vld [vmem:[%s721 + $0x1a0] sm:$0xff]
        %v1441 = vld [vmem:[%s721 + $0x1a8] sm:$0xff]
        %v1442 = vld [vmem:[%s721 + $0x1b0] sm:$0xff]
        %v1443 = vld [vmem:[%s721 + $0x1b8] sm:$0xff]
        %v1444 = vld [vmem:[%s721 + $0x1c0] sm:$0xff]
        %v1445 = vld [vmem:[%s721 + $0x1c8] sm:$0xff]
        %v1446 = vld [vmem:[%s721 + $0x1d0] sm:$0xff]
        %v1447 = vld [vmem:[%s721 + $0x1d8] sm:$0xff]
        %v1448 = vld [vmem:[%s721 + $0x1e0] sm:$0xff]
        %v1449 = vld [vmem:[%s721 + $0x1e8] sm:$0xff]
        %v1450 = vld [vmem:[%s721 + $0x1f0] sm:$0xff]
        %v1451 = vld [vmem:[%s721 + $0x1f8] sm:$0xff]
        %v1452 = vld [vmem:[%s721 + $0x200] sm:$0xff]
        %v1453 = vld [vmem:[%s721 + $0x208] sm:$0xff]
        %v1454 = vld [vmem:[%s721 + $0x210] sm:$0xff]
        %v1455 = vld [vmem:[%s721 + $0x218] sm:$0xff]
        %v1456 = vld [vmem:[%s721 + $0x220] sm:$0xff]
        %v1457 = vld [vmem:[%s721 + $0x228] sm:$0xff]
        %v1458 = vld [vmem:[%s721 + $0x230] sm:$0xff]
        %v1459 = vld [vmem:[%s721 + $0x238] sm:$0xff]
        %v1460 = vld [vmem:[%s721 + $0x240] sm:$0xff]
        %v1461 = vld [vmem:[%s721 + $0x248] sm:$0xff]
        %v1462 = vld [vmem:[%s721 + $0x250] sm:$0xff]
        %v1463 = vld [vmem:[%s721 + $0x258] sm:$0xff]
        %v1464 = vld [vmem:[%s721 + $0x260] sm:$0xff]
        %v1465 = vld [vmem:[%s721 + $0x268] sm:$0xff]
        %v1466 = vld [vmem:[%s721 + $0x270] sm:$0xff]
        %v1467 = vld [vmem:[%s721 + $0x278] sm:$0xff]
        %v1468 = vld [vmem:[%s721 + $0x280] sm:$0xff]
        %v1469 = vld [vmem:[%s721 + $0x288] sm:$0xff]
        %v1470 = vld [vmem:[%s721 + $0x290] sm:$0xff]
        %v1471 = vld [vmem:[%s721 + $0x298] sm:$0xff]
        %v1472 = vld [vmem:[%s721 + $0x2a0] sm:$0xff]
        %v1473 = vld [vmem:[%s721 + $0x2a8] sm:$0xff]
        %v1474 = vld [vmem:[%s721 + $0x2b0] sm:$0xff]
        %v1475 = vld [vmem:[%s721 + $0x2b8] sm:$0xff]
        %v1476 = vld [vmem:[%s721 + $0x2c0] sm:$0xff]
        %v1477 = vld [vmem:[%s721 + $0x2c8] sm:$0xff]
        %v1478 = vld [vmem:[%s721 + $0x2d0] sm:$0xff]
        %v1479 = vld [vmem:[%s721 + $0x2d8] sm:$0xff]
        %v1480 = vld [vmem:[%s721 + $0x2e0] sm:$0xff]
        %v1481 = vld [vmem:[%s721 + $0x2e8] sm:$0xff]
        %v1482 = vld [vmem:[%s721 + $0x2f0] sm:$0xff]
        %v1483 = vld [vmem:[%s721 + $0x2f8] sm:$0xff]
        %v1484 = vld [vmem:[%s885] sm:$0x3f]
        %v1486 = vlaneseq
        %v1487 = vshrl.u32 %v1486, 7
        %v1488 = vsub.s32 0, %v1487
        %v1489 = vrot.slane %v1484, %v1488
        %v1490 = vlaneseq
        %v1491 = vshrl.u32 %v1490, 7
        %v1492 = vsub.s32 1, %v1491
        %v1493 = vrot.slane %v1484, %v1492
        %v1494 = vlaneseq
        %v1495 = vshrl.u32 %v1494, 7
        %v1496 = vsub.s32 2, %v1495
        %v1497 = vrot.slane %v1484, %v1496
        %v1498 = vlaneseq
        %v1499 = vshrl.u32 %v1498, 7
        %v1500 = vsub.s32 3, %v1499
        %v1501 = vrot.slane %v1484, %v1500
        %v1502 = vlaneseq
        %v1503 = vshrl.u32 %v1502, 7
        %v1504 = vsub.s32 4, %v1503
        %v1505 = vrot.slane %v1484, %v1504
        %v1506 = vlaneseq
        %v1507 = vshrl.u32 %v1506, 7
        %v1508 = vsub.s32 5, %v1507
        %v1509 = vrot.slane %v1484, %v1508
        %v1612 = vunpack.c.l.b16 %v1388
        %v1613 = vunpack.c.h.b16 %v1388
        %v1614 = vunpack.c.l.b16 %v1389
        %v1615 = vunpack.c.h.b16 %v1389
        %v1616 = vunpack.c.l.b16 %v1390
        %v1617 = vunpack.c.h.b16 %v1390
        %v1618 = vunpack.c.l.b16 %v1391
        %v1619 = vunpack.c.h.b16 %v1391
        %v1620 = vunpack.c.l.b16 %v1392
        %v1621 = vunpack.c.h.b16 %v1392
        %v1622 = vunpack.c.l.b16 %v1393
        %v1623 = vunpack.c.h.b16 %v1393
        %v1624 = vunpack.c.l.b16 %v1394
        %v1625 = vunpack.c.h.b16 %v1394
        %v1626 = vunpack.c.l.b16 %v1395
        %v1627 = vunpack.c.h.b16 %v1395
        %v1628 = vunpack.c.l.b16 %v1396
        %v1629 = vunpack.c.h.b16 %v1396
        %v1630 = vunpack.c.l.b16 %v1397
        %v1631 = vunpack.c.h.b16 %v1397
        %v1632 = vunpack.c.l.b16 %v1398
        %v1633 = vunpack.c.h.b16 %v1398
        %v1634 = vunpack.c.l.b16 %v1399
        %v1635 = vunpack.c.h.b16 %v1399
        %v1636 = vunpack.c.l.b16 %v1400
        %v1637 = vunpack.c.h.b16 %v1400
        %v1638 = vunpack.c.l.b16 %v1401
        %v1639 = vunpack.c.h.b16 %v1401
        %v1640 = vunpack.c.l.b16 %v1402
        %v1641 = vunpack.c.h.b16 %v1402
        %v1642 = vunpack.c.l.b16 %v1403
        %v1643 = vunpack.c.h.b16 %v1403
        %v1644 = vunpack.c.l.b16 %v1404
        %v1645 = vunpack.c.h.b16 %v1404
        %v1646 = vunpack.c.l.b16 %v1405
        %v1647 = vunpack.c.h.b16 %v1405
        %v1648 = vunpack.c.l.b16 %v1406
        %v1649 = vunpack.c.h.b16 %v1406
        %v1650 = vunpack.c.l.b16 %v1407
        %v1651 = vunpack.c.h.b16 %v1407
        %v1652 = vunpack.c.l.b16 %v1408
        %v1653 = vunpack.c.h.b16 %v1408
        %v1654 = vunpack.c.l.b16 %v1409
        %v1655 = vunpack.c.h.b16 %v1409
        %v1656 = vunpack.c.l.b16 %v1410
        %v1657 = vunpack.c.h.b16 %v1410
        %v1658 = vunpack.c.l.b16 %v1411
        %v1659 = vunpack.c.h.b16 %v1411
        %v1660 = vunpack.c.l.b16 %v1412
        %v1661 = vunpack.c.h.b16 %v1412
        %v1662 = vunpack.c.l.b16 %v1413
        %v1663 = vunpack.c.h.b16 %v1413
        %v1664 = vunpack.c.l.b16 %v1414
        %v1665 = vunpack.c.h.b16 %v1414
        %v1666 = vunpack.c.l.b16 %v1415
        %v1667 = vunpack.c.h.b16 %v1415
        %v1668 = vunpack.c.l.b16 %v1416
        %v1669 = vunpack.c.h.b16 %v1416
        %v1670 = vunpack.c.l.b16 %v1417
        %v1671 = vunpack.c.h.b16 %v1417
        %v1672 = vunpack.c.l.b16 %v1418
        %v1673 = vunpack.c.h.b16 %v1418
        %v1674 = vunpack.c.l.b16 %v1419
        %v1675 = vunpack.c.h.b16 %v1419
        %v1676 = vunpack.c.l.b16 %v1420
        %v1677 = vunpack.c.h.b16 %v1420
        %v1678 = vunpack.c.l.b16 %v1421
        %v1679 = vunpack.c.h.b16 %v1421
        %v1680 = vunpack.c.l.b16 %v1422
        %v1681 = vunpack.c.h.b16 %v1422
        %v1682 = vunpack.c.l.b16 %v1423
        %v1683 = vunpack.c.h.b16 %v1423
        %v1684 = vunpack.c.l.b16 %v1424
        %v1685 = vunpack.c.h.b16 %v1424
        %v1686 = vunpack.c.l.b16 %v1425
        %v1687 = vunpack.c.h.b16 %v1425
        %v1688 = vunpack.c.l.b16 %v1426
        %v1689 = vunpack.c.h.b16 %v1426
        %v1690 = vunpack.c.l.b16 %v1427
        %v1691 = vunpack.c.h.b16 %v1427
        %v1692 = vunpack.c.l.b16 %v1428
        %v1693 = vunpack.c.h.b16 %v1428
        %v1694 = vunpack.c.l.b16 %v1429
        %v1695 = vunpack.c.h.b16 %v1429
        %v1696 = vunpack.c.l.b16 %v1430
        %v1697 = vunpack.c.h.b16 %v1430
        %v1698 = vunpack.c.l.b16 %v1431
        %v1699 = vunpack.c.h.b16 %v1431
        %v1700 = vunpack.c.l.b16 %v1432
        %v1701 = vunpack.c.h.b16 %v1432
        %v1702 = vunpack.c.l.b16 %v1433
        %v1703 = vunpack.c.h.b16 %v1433
        %v1704 = vunpack.c.l.b16 %v1434
        %v1705 = vunpack.c.h.b16 %v1434
        %v1706 = vunpack.c.l.b16 %v1435
        %v1707 = vunpack.c.h.b16 %v1435
        %v1708 = vunpack.c.l.b16 %v1436
        %v1709 = vunpack.c.h.b16 %v1436
        %v1710 = vunpack.c.l.b16 %v1437
        %v1711 = vunpack.c.h.b16 %v1437
        %v1712 = vunpack.c.l.b16 %v1438
        %v1713 = vunpack.c.h.b16 %v1438
        %v1714 = vunpack.c.l.b16 %v1439
        %v1715 = vunpack.c.h.b16 %v1439
        %v1716 = vunpack.c.l.b16 %v1440
        %v1717 = vunpack.c.h.b16 %v1440
        %v1718 = vunpack.c.l.b16 %v1441
        %v1719 = vunpack.c.h.b16 %v1441
        %v1720 = vunpack.c.l.b16 %v1442
        %v1721 = vunpack.c.h.b16 %v1442
        %v1722 = vunpack.c.l.b16 %v1443
        %v1723 = vunpack.c.h.b16 %v1443
        %v1724 = vunpack.c.l.b16 %v1444
        %v1725 = vunpack.c.h.b16 %v1444
        %v1726 = vunpack.c.l.b16 %v1445
        %v1727 = vunpack.c.h.b16 %v1445
        %v1728 = vunpack.c.l.b16 %v1446
        %v1729 = vunpack.c.h.b16 %v1446
        %v1730 = vunpack.c.l.b16 %v1447
        %v1731 = vunpack.c.h.b16 %v1447
        %v1732 = vunpack.c.l.b16 %v1448
        %v1733 = vunpack.c.h.b16 %v1448
        %v1734 = vunpack.c.l.b16 %v1449
        %v1735 = vunpack.c.h.b16 %v1449
        %v1736 = vunpack.c.l.b16 %v1450
        %v1737 = vunpack.c.h.b16 %v1450
        %v1738 = vunpack.c.l.b16 %v1451
        %v1739 = vunpack.c.h.b16 %v1451
        %v1740 = vunpack.c.l.b16 %v1452
        %v1741 = vunpack.c.h.b16 %v1452
        %v1742 = vunpack.c.l.b16 %v1453
        %v1743 = vunpack.c.h.b16 %v1453
        %v1744 = vunpack.c.l.b16 %v1454
        %v1745 = vunpack.c.h.b16 %v1454
        %v1746 = vunpack.c.l.b16 %v1455
        %v1747 = vunpack.c.h.b16 %v1455
        %v1748 = vunpack.c.l.b16 %v1456
        %v1749 = vunpack.c.h.b16 %v1456
        %v1750 = vunpack.c.l.b16 %v1457
        %v1751 = vunpack.c.h.b16 %v1457
        %v1752 = vunpack.c.l.b16 %v1458
        %v1753 = vunpack.c.h.b16 %v1458
        %v1754 = vunpack.c.l.b16 %v1459
        %v1755 = vunpack.c.h.b16 %v1459
        %v1756 = vunpack.c.l.b16 %v1460
        %v1757 = vunpack.c.h.b16 %v1460
        %v1758 = vunpack.c.l.b16 %v1461
        %v1759 = vunpack.c.h.b16 %v1461
        %v1760 = vunpack.c.l.b16 %v1462
        %v1761 = vunpack.c.h.b16 %v1462
        %v1762 = vunpack.c.l.b16 %v1463
        %v1763 = vunpack.c.h.b16 %v1463
        %v1764 = vunpack.c.l.b16 %v1464
        %v1765 = vunpack.c.h.b16 %v1464
        %v1766 = vunpack.c.l.b16 %v1465
        %v1767 = vunpack.c.h.b16 %v1465
        %v1768 = vunpack.c.l.b16 %v1466
        %v1769 = vunpack.c.h.b16 %v1466
        %v1770 = vunpack.c.l.b16 %v1467
        %v1771 = vunpack.c.h.b16 %v1467
        %v1772 = vunpack.c.l.b16 %v1468
        %v1773 = vunpack.c.h.b16 %v1468
        %v1774 = vunpack.c.l.b16 %v1469
        %v1775 = vunpack.c.h.b16 %v1469
        %v1776 = vunpack.c.l.b16 %v1470
        %v1777 = vunpack.c.h.b16 %v1470
        %v1778 = vunpack.c.l.b16 %v1471
        %v1779 = vunpack.c.h.b16 %v1471
        %v1780 = vunpack.c.l.b16 %v1472
        %v1781 = vunpack.c.h.b16 %v1472
        %v1782 = vunpack.c.l.b16 %v1473
        %v1783 = vunpack.c.h.b16 %v1473
        %v1784 = vunpack.c.l.b16 %v1474
        %v1785 = vunpack.c.h.b16 %v1474
        %v1786 = vunpack.c.l.b16 %v1475
        %v1787 = vunpack.c.h.b16 %v1475
        %v1788 = vunpack.c.l.b16 %v1476
        %v1789 = vunpack.c.h.b16 %v1476
        %v1790 = vunpack.c.l.b16 %v1477
        %v1791 = vunpack.c.h.b16 %v1477
        %v1792 = vunpack.c.l.b16 %v1478
        %v1793 = vunpack.c.h.b16 %v1478
        %v1794 = vunpack.c.l.b16 %v1479
        %v1795 = vunpack.c.h.b16 %v1479
        %v1796 = vunpack.c.l.b16 %v1480
        %v1797 = vunpack.c.h.b16 %v1480
        %v1798 = vunpack.c.l.b16 %v1481
        %v1799 = vunpack.c.h.b16 %v1481
        %v1800 = vunpack.c.l.b16 %v1482
        %v1801 = vunpack.c.h.b16 %v1482
        %v1802 = vunpack.c.l.b16 %v1483
        %v1803 = vunpack.c.h.b16 %v1483
        %v1804 = vpack.c.b16 %v1618, %v1612
        %v1805 = vpack.c.b16 %v1619, %v1613
        %v1806 = vpack.c.b16 %v1620, %v1614
        %v1807 = vpack.c.b16 %v1621, %v1615
        %v1808 = vpack.c.b16 %v1622, %v1616
        %v1809 = vpack.c.b16 %v1623, %v1617
        %v1810 = vpack.c.b16 %v1630, %v1624
        %v1811 = vpack.c.b16 %v1631, %v1625
        %v1812 = vpack.c.b16 %v1632, %v1626
        %v1813 = vpack.c.b16 %v1633, %v1627
        %v1814 = vpack.c.b16 %v1634, %v1628
        %v1815 = vpack.c.b16 %v1635, %v1629
        %v1816 = vpack.c.b16 %v1642, %v1636
        %v1817 = vpack.c.b16 %v1643, %v1637
        %v1818 = vpack.c.b16 %v1644, %v1638
        %v1819 = vpack.c.b16 %v1645, %v1639
        %v1820 = vpack.c.b16 %v1646, %v1640
        %v1821 = vpack.c.b16 %v1647, %v1641
        %v1822 = vpack.c.b16 %v1654, %v1648
        %v1823 = vpack.c.b16 %v1655, %v1649
        %v1824 = vpack.c.b16 %v1656, %v1650
        %v1825 = vpack.c.b16 %v1657, %v1651
        %v1826 = vpack.c.b16 %v1658, %v1652
        %v1827 = vpack.c.b16 %v1659, %v1653
        %v1828 = vpack.c.b16 %v1666, %v1660
        %v1829 = vpack.c.b16 %v1667, %v1661
        %v1830 = vpack.c.b16 %v1668, %v1662
        %v1831 = vpack.c.b16 %v1669, %v1663
        %v1832 = vpack.c.b16 %v1670, %v1664
        %v1833 = vpack.c.b16 %v1671, %v1665
        %v1834 = vpack.c.b16 %v1678, %v1672
        %v1835 = vpack.c.b16 %v1679, %v1673
        %v1836 = vpack.c.b16 %v1680, %v1674
        %v1837 = vpack.c.b16 %v1681, %v1675
        %v1838 = vpack.c.b16 %v1682, %v1676
        %v1839 = vpack.c.b16 %v1683, %v1677
        %v1840 = vpack.c.b16 %v1690, %v1684
        %v1841 = vpack.c.b16 %v1691, %v1685
        %v1842 = vpack.c.b16 %v1692, %v1686
        %v1843 = vpack.c.b16 %v1693, %v1687
        %v1844 = vpack.c.b16 %v1694, %v1688
        %v1845 = vpack.c.b16 %v1695, %v1689
        %v1846 = vpack.c.b16 %v1702, %v1696
        %v1847 = vpack.c.b16 %v1703, %v1697
        %v1848 = vpack.c.b16 %v1704, %v1698
        %v1849 = vpack.c.b16 %v1705, %v1699
        %v1850 = vpack.c.b16 %v1706, %v1700
        %v1851 = vpack.c.b16 %v1707, %v1701
        %v1852 = vpack.c.b16 %v1714, %v1708
        %v1853 = vpack.c.b16 %v1715, %v1709
        %v1854 = vpack.c.b16 %v1716, %v1710
        %v1855 = vpack.c.b16 %v1717, %v1711
        %v1856 = vpack.c.b16 %v1718, %v1712
        %v1857 = vpack.c.b16 %v1719, %v1713
        %v1858 = vpack.c.b16 %v1726, %v1720
        %v1859 = vpack.c.b16 %v1727, %v1721
        %v1860 = vpack.c.b16 %v1728, %v1722
        %v1861 = vpack.c.b16 %v1729, %v1723
        %v1862 = vpack.c.b16 %v1730, %v1724
        %v1863 = vpack.c.b16 %v1731, %v1725
        %v1864 = vpack.c.b16 %v1738, %v1732
        %v1865 = vpack.c.b16 %v1739, %v1733
        %v1866 = vpack.c.b16 %v1740, %v1734
        %v1867 = vpack.c.b16 %v1741, %v1735
        %v1868 = vpack.c.b16 %v1742, %v1736
        %v1869 = vpack.c.b16 %v1743, %v1737
        %v1870 = vpack.c.b16 %v1750, %v1744
        %v1871 = vpack.c.b16 %v1751, %v1745
        %v1872 = vpack.c.b16 %v1752, %v1746
        %v1873 = vpack.c.b16 %v1753, %v1747
        %v1874 = vpack.c.b16 %v1754, %v1748
        %v1875 = vpack.c.b16 %v1755, %v1749
        %v1876 = vpack.c.b16 %v1762, %v1756
        %v1877 = vpack.c.b16 %v1763, %v1757
        %v1878 = vpack.c.b16 %v1764, %v1758
        %v1879 = vpack.c.b16 %v1765, %v1759
        %v1880 = vpack.c.b16 %v1766, %v1760
        %v1881 = vpack.c.b16 %v1767, %v1761
        %v1882 = vpack.c.b16 %v1774, %v1768
        %v1883 = vpack.c.b16 %v1775, %v1769
        %v1884 = vpack.c.b16 %v1776, %v1770
        %v1885 = vpack.c.b16 %v1777, %v1771
        %v1886 = vpack.c.b16 %v1778, %v1772
        %v1887 = vpack.c.b16 %v1779, %v1773
        %v1888 = vpack.c.b16 %v1786, %v1780
        %v1889 = vpack.c.b16 %v1787, %v1781
        %v1890 = vpack.c.b16 %v1788, %v1782
        %v1891 = vpack.c.b16 %v1789, %v1783
        %v1892 = vpack.c.b16 %v1790, %v1784
        %v1893 = vpack.c.b16 %v1791, %v1785
        %v1894 = vpack.c.b16 %v1798, %v1792
        %v1895 = vpack.c.b16 %v1799, %v1793
        %v1896 = vpack.c.b16 %v1800, %v1794
        %v1897 = vpack.c.b16 %v1801, %v1795
        %v1898 = vpack.c.b16 %v1802, %v1796
        %v1899 = vpack.c.b16 %v1803, %v1797
        %1996 = vmatprep.subr.bf16.mxu0 %v1805
        %1997 = vmatpush1.bf16.msra.mxu0 %v1804
        %1998 = vmatprep.subr.bf16.mxu0 %v1811
        %1999 = vmatpush1.bf16.msra.mxu0 %v1810
        %2000 = vmatprep.subr.bf16.mxu0 %v1817
        %2001 = vmatpush1.bf16.msra.mxu0 %v1816
        %2002 = vmatprep.subr.bf16.mxu0 %v1823
        %2003 = vmatpush1.bf16.msra.mxu0 %v1822
        %2004 = vmatprep.subr.bf16.mxu0 %v1829
        %2005 = vmatpush1.bf16.msra.mxu0 %v1828
        %2006 = vmatprep.subr.bf16.mxu0 %v1835
        %2007 = vmatpush1.bf16.msra.mxu0 %v1834
        %2008 = vmatprep.subr.bf16.mxu0 %v1841
        %2009 = vmatpush1.bf16.msra.mxu0 %v1840
        %2010 = vmatprep.subr.bf16.mxu0 %v1847
        %2011 = vmatpush1.bf16.msra.mxu0 %v1846
        %2012 = vmatprep.subr.bf16.mxu0 %v1853
        %2013 = vmatpush1.bf16.msra.mxu0 %v1852
        %2014 = vmatprep.subr.bf16.mxu0 %v1859
        %2015 = vmatpush1.bf16.msra.mxu0 %v1858
        %2016 = vmatprep.subr.bf16.mxu0 %v1865
        %2017 = vmatpush1.bf16.msra.mxu0 %v1864
        %2018 = vmatprep.subr.bf16.mxu0 %v1871
        %2019 = vmatpush1.bf16.msra.mxu0 %v1870
        %2020 = vmatprep.subr.bf16.mxu0 %v1877
        %2021 = vmatpush1.bf16.msra.mxu0 %v1876
        %2022 = vmatprep.subr.bf16.mxu0 %v1883
        %2023 = vmatpush1.bf16.msra.mxu0 %v1882
        %2024 = vmatprep.subr.bf16.mxu0 %v1889
        %2025 = vmatpush1.bf16.msra.mxu0 %v1888
        %2026 = vmatprep.subr.bf16.mxu0 %v1895
        %2027 = vmatpush1.bf16.msra.mxu0 %v1894
        %2028 = vmatprep.mubr.bf16.mxu0 %v1373
        %2029 = vmatmul.mubr.bf16.gmra.mrb[0].mxu0 %v1372
        %v2030 = vpop.f32.mrb[0].mxu0
        %v2031 = vadd.f32 %v1489, %v2030
        %v2032 = vpop.f32.mrb[0].mxu0
        %v2033 = vadd.f32 %v1493, %v2032
        %v2034 = vpop.f32.mrb[0].mxu0
        %v2035 = vadd.f32 %v1489, %v2034
        %v2036 = vpop.f32.mrb[0].mxu0
        %v2037 = vadd.f32 %v1493, %v2036
        %2038 = vmatprep.mubr.bf16.mxu0 %v1375
        %2039 = vmatmul.mubr.bf16.gmra.mrb[0].mxu0 %v1374
        %v2040 = vpop.f32.mrb[0].mxu0
        %v2041 = vadd.f32 %v1489, %v2040
        %v2042 = vpop.f32.mrb[0].mxu0
        %v2043 = vadd.f32 %v1493, %v2042
        %v2044 = vpop.f32.mrb[0].mxu0
        %v2045 = vadd.f32 %v1489, %v2044
        %v2046 = vpop.f32.mrb[0].mxu0
        %v2047 = vadd.f32 %v1493, %v2046
        %2048 = vmatprep.mubr.bf16.mxu0 %v1377
        %2049 = vmatmul.mubr.bf16.gmra.mrb[0].mxu0 %v1376
        %v2050 = vpop.f32.mrb[0].mxu0
        %v2051 = vadd.f32 %v1489, %v2050
        %v2052 = vpop.f32.mrb[0].mxu0
        %v2053 = vadd.f32 %v1493, %v2052
        %v2054 = vpop.f32.mrb[0].mxu0
        %v2055 = vadd.f32 %v1489, %v2054
        %v2056 = vpop.f32.mrb[0].mxu0
        %v2057 = vadd.f32 %v1493, %v2056
        %2058 = vmatprep.mubr.bf16.mxu0 %v1379
        %2059 = vmatmul.mubr.bf16.gmra.mrb[0].mxu0 %v1378
        %v2060 = vpop.f32.mrb[0].mxu0
        %v2061 = vadd.f32 %v1489, %v2060
        %v2062 = vpop.f32.mrb[0].mxu0
        %v2063 = vadd.f32 %v1493, %v2062
        %v2064 = vpop.f32.mrb[0].mxu0
        %v2065 = vadd.f32 %v1489, %v2064
        %v2066 = vpop.f32.mrb[0].mxu0
        %v2067 = vadd.f32 %v1493, %v2066
        %2068 = vmatprep.mubr.bf16.mxu0 %v1381
        %2069 = vmatmul.mubr.bf16.gmra.mrb[0].mxu0 %v1380
        %v2070 = vpop.f32.mrb[0].mxu0
        %v2071 = vadd.f32 %v1489, %v2070
        %v2072 = vpop.f32.mrb[0].mxu0
        %v2073 = vadd.f32 %v1493, %v2072
        %v2074 = vpop.f32.mrb[0].mxu0
        %v2075 = vadd.f32 %v1489, %v2074
        %v2076 = vpop.f32.mrb[0].mxu0
        %v2077 = vadd.f32 %v1493, %v2076
        %2078 = vmatprep.mubr.bf16.mxu0 %v1383
        %2079 = vmatmul.mubr.bf16.gmra.mrb[0].mxu0 %v1382
        %v2080 = vpop.f32.mrb[0].mxu0
        %v2081 = vadd.f32 %v1489, %v2080
        %v2082 = vpop.f32.mrb[0].mxu0
        %v2083 = vadd.f32 %v1493, %v2082
        %v2084 = vpop.f32.mrb[0].mxu0
        %v2085 = vadd.f32 %v1489, %v2084
        %v2086 = vpop.f32.mrb[0].mxu0
        %v2087 = vadd.f32 %v1493, %v2086
        %2088 = vmatprep.mubr.bf16.mxu0 %v1385
        %2089 = vmatmul.mubr.bf16.gmra.mrb[0].mxu0 %v1384
        %v2090 = vpop.f32.mrb[0].mxu0
        %v2091 = vadd.f32 %v1489, %v2090
        %v2092 = vpop.f32.mrb[0].mxu0
        %v2093 = vadd.f32 %v1493, %v2092
        %v2094 = vpop.f32.mrb[0].mxu0
        %v2095 = vadd.f32 %v1489, %v2094
        %v2096 = vpop.f32.mrb[0].mxu0
        %v2097 = vadd.f32 %v1493, %v2096
        %2098 = vmatprep.mubr.bf16.mxu0 %v1387
        %2099 = vmatmul.mubr.bf16.gmra.mrb[0].mxu0 %v1386
        %v2100 = vpop.f32.mrb[0].mxu0
        %v2101 = vadd.f32 %v1489, %v2100
        %v2102 = vpop.f32.mrb[0].mxu0
        %v2103 = vadd.f32 %v1493, %v2102
        %v2104 = vpop.f32.mrb[0].mxu0
        %v2105 = vadd.f32 %v1489, %v2104
        %v2106 = vpop.f32.mrb[0].mxu0
        %v2107 = vadd.f32 %v1493, %v2106
        %2108 = vdwg.mxu0
        %2109 = vmatprep.subr.bf16.mxu0 %v1807
        %2110 = vmatpush1.bf16.msra.mxu0 %v1806
        %2111 = vmatprep.subr.bf16.mxu0 %v1813
        %2112 = vmatpush1.bf16.msra.mxu0 %v1812
        %2113 = vmatprep.subr.bf16.mxu0 %v1819
        %2114 = vmatpush1.bf16.msra.mxu0 %v1818
        %2115 = vmatprep.subr.bf16.mxu0 %v1825
        %2116 = vmatpush1.bf16.msra.mxu0 %v1824
        %2117 = vmatprep.subr.bf16.mxu0 %v1831
        %2118 = vmatpush1.bf16.msra.mxu0 %v1830
        %2119 = vmatprep.subr.bf16.mxu0 %v1837
        %2120 = vmatpush1.bf16.msra.mxu0 %v1836
        %2121 = vmatprep.subr.bf16.mxu0 %v1843
        %2122 = vmatpush1.bf16.msra.mxu0 %v1842
        %2123 = vmatprep.subr.bf16.mxu0 %v1849
        %2124 = vmatpush1.bf16.msra.mxu0 %v1848
        %2125 = vmatprep.subr.bf16.mxu0 %v1855
        %2126 = vmatpush1.bf16.msra.mxu0 %v1854
        %2127 = vmatprep.subr.bf16.mxu0 %v1861
        %2128 = vmatpush1.bf16.msra.mxu0 %v1860
        %2129 = vmatprep.subr.bf16.mxu0 %v1867
        %2130 = vmatpush1.bf16.msra.mxu0 %v1866
        %2131 = vmatprep.subr.bf16.mxu0 %v1873
        %2132 = vmatpush1.bf16.msra.mxu0 %v1872
        %2133 = vmatprep.subr.bf16.mxu0 %v1879
        %2134 = vmatpush1.bf16.msra.mxu0 %v1878
        %2135 = vmatprep.subr.bf16.mxu0 %v1885
        %2136 = vmatpush1.bf16.msra.mxu0 %v1884
        %2137 = vmatprep.subr.bf16.mxu0 %v1891
        %2138 = vmatpush1.bf16.msra.mxu0 %v1890
        %2139 = vmatprep.subr.bf16.mxu0 %v1897
        %2140 = vmatpush1.bf16.msra.mxu0 %v1896
        %2141 = vmatprep.mubr.bf16.mxu0 %v1373
        %2142 = vmatmul.mubr.bf16.gmra.mrb[0].mxu0 %v1372
        %v2143 = vpop.f32.mrb[0].mxu0
        %v2144 = vadd.f32 %v1497, %v2143
        %v2145 = vpop.f32.mrb[0].mxu0
        %v2146 = vadd.f32 %v1501, %v2145
        %v2147 = vpop.f32.mrb[0].mxu0
        %v2148 = vadd.f32 %v1497, %v2147
        %v2149 = vpop.f32.mrb[0].mxu0
        %v2150 = vadd.f32 %v1501, %v2149
        %2151 = vmatprep.mubr.bf16.mxu0 %v1375
        %2152 = vmatmul.mubr.bf16.gmra.mrb[0].mxu0 %v1374
        %v2153 = vpop.f32.mrb[0].mxu0
        %v2154 = vadd.f32 %v1497, %v2153
        %v2155 = vpop.f32.mrb[0].mxu0
        %v2156 = vadd.f32 %v1501, %v2155
        %v2157 = vpop.f32.mrb[0].mxu0
        %v2158 = vadd.f32 %v1497, %v2157
        %v2159 = vpop.f32.mrb[0].mxu0
        %v2160 = vadd.f32 %v1501, %v2159
        %2161 = vmatprep.mubr.bf16.mxu0 %v1377
        %2162 = vmatmul.mubr.bf16.gmra.mrb[0].mxu0 %v1376
        %v2163 = vpop.f32.mrb[0].mxu0
        %v2164 = vadd.f32 %v1497, %v2163
        %v2165 = vpop.f32.mrb[0].mxu0
        %v2166 = vadd.f32 %v1501, %v2165
        %v2167 = vpop.f32.mrb[0].mxu0
        %v2168 = vadd.f32 %v1497, %v2167
        %v2169 = vpop.f32.mrb[0].mxu0
        %v2170 = vadd.f32 %v1501, %v2169
        %2171 = vmatprep.mubr.bf16.mxu0 %v1379
        %2172 = vmatmul.mubr.bf16.gmra.mrb[0].mxu0 %v1378
        %v2173 = vpop.f32.mrb[0].mxu0
        %v2174 = vadd.f32 %v1497, %v2173
        %v2175 = vpop.f32.mrb[0].mxu0
        %v2176 = vadd.f32 %v1501, %v2175
        %v2177 = vpop.f32.mrb[0].mxu0
        %v2178 = vadd.f32 %v1497, %v2177
        %v2179 = vpop.f32.mrb[0].mxu0
        %v2180 = vadd.f32 %v1501, %v2179
        %2181 = vmatprep.mubr.bf16.mxu0 %v1381
        %2182 = vmatmul.mubr.bf16.gmra.mrb[0].mxu0 %v1380
        %v2183 = vpop.f32.mrb[0].mxu0
        %v2184 = vadd.f32 %v1497, %v2183
        %v2185 = vpop.f32.mrb[0].mxu0
        %v2186 = vadd.f32 %v1501, %v2185
        %v2187 = vpop.f32.mrb[0].mxu0
        %v2188 = vadd.f32 %v1497, %v2187
        %v2189 = vpop.f32.mrb[0].mxu0
        %v2190 = vadd.f32 %v1501, %v2189
        %2191 = vmatprep.mubr.bf16.mxu0 %v1383
        %2192 = vmatmul.mubr.bf16.gmra.mrb[0].mxu0 %v1382
        %v2193 = vpop.f32.mrb[0].mxu0
        %v2194 = vadd.f32 %v1497, %v2193
        %v2195 = vpop.f32.mrb[0].mxu0
        %v2196 = vadd.f32 %v1501, %v2195
        %v2197 = vpop.f32.mrb[0].mxu0
        %v2198 = vadd.f32 %v1497, %v2197
        %v2199 = vpop.f32.mrb[0].mxu0
        %v2200 = vadd.f32 %v1501, %v2199
        %2201 = vmatprep.mubr.bf16.mxu0 %v1385
        %2202 = vmatmul.mubr.bf16.gmra.mrb[0].mxu0 %v1384
        %v2203 = vpop.f32.mrb[0].mxu0
        %v2204 = vadd.f32 %v1497, %v2203
        %v2205 = vpop.f32.mrb[0].mxu0
        %v2206 = vadd.f32 %v1501, %v2205
        %v2207 = vpop.f32.mrb[0].mxu0
        %v2208 = vadd.f32 %v1497, %v2207
        %v2209 = vpop.f32.mrb[0].mxu0
        %v2210 = vadd.f32 %v1501, %v2209
        %2211 = vmatprep.mubr.bf16.mxu0 %v1387
        %2212 = vmatmul.mubr.bf16.gmra.mrb[0].mxu0 %v1386
        %v2213 = vpop.f32.mrb[0].mxu0
        %v2214 = vadd.f32 %v1497, %v2213
        %v2215 = vpop.f32.mrb[0].mxu0
        %v2216 = vadd.f32 %v1501, %v2215
        %v2217 = vpop.f32.mrb[0].mxu0
        %v2218 = vadd.f32 %v1497, %v2217
        %v2219 = vpop.f32.mrb[0].mxu0
        %v2220 = vadd.f32 %v1501, %v2219
        %2221 = vdwg.mxu0
        %2222 = vmatprep.subr.bf16.mxu0 %v1809
        %2223 = vmatpush1.bf16.msra.mxu0 %v1808
        %2224 = vmatprep.subr.bf16.mxu0 %v1815
        %2225 = vmatpush1.bf16.msra.mxu0 %v1814
        %2226 = vmatprep.subr.bf16.mxu0 %v1821
        %2227 = vmatpush1.bf16.msra.mxu0 %v1820
        %2228 = vmatprep.subr.bf16.mxu0 %v1827
        %2229 = vmatpush1.bf16.msra.mxu0 %v1826
        %2230 = vmatprep.subr.bf16.mxu0 %v1833
        %2231 = vmatpush1.bf16.msra.mxu0 %v1832
        %2232 = vmatprep.subr.bf16.mxu0 %v1839
        %2233 = vmatpush1.bf16.msra.mxu0 %v1838
        %2234 = vmatprep.subr.bf16.mxu0 %v1845
        %2235 = vmatpush1.bf16.msra.mxu0 %v1844
        %2236 = vmatprep.subr.bf16.mxu0 %v1851
        %2237 = vmatpush1.bf16.msra.mxu0 %v1850
        %2238 = vmatprep.subr.bf16.mxu0 %v1857
        %2239 = vmatpush1.bf16.msra.mxu0 %v1856
        %2240 = vmatprep.subr.bf16.mxu0 %v1863
        %2241 = vmatpush1.bf16.msra.mxu0 %v1862
        %2242 = vmatprep.subr.bf16.mxu0 %v1869
        %2243 = vmatpush1.bf16.msra.mxu0 %v1868
        %2244 = vmatprep.subr.bf16.mxu0 %v1875
        %2245 = vmatpush1.bf16.msra.mxu0 %v1874
        %2246 = vmatprep.subr.bf16.mxu0 %v1881
        %2247 = vmatpush1.bf16.msra.mxu0 %v1880
        %2248 = vmatprep.subr.bf16.mxu0 %v1887
        %2249 = vmatpush1.bf16.msra.mxu0 %v1886
        %2250 = vmatprep.subr.bf16.mxu0 %v1893
        %2251 = vmatpush1.bf16.msra.mxu0 %v1892
        %2252 = vmatprep.subr.bf16.mxu0 %v1899
        %2253 = vmatpush1.bf16.msra.mxu0 %v1898
        %2254 = vmatprep.mubr.bf16.mxu0 %v1373
        %2255 = vmatmul.mubr.bf16.gmra.mrb[0].mxu0 %v1372
        %v2256 = vpop.f32.mrb[0].mxu0
        %v2257 = vadd.f32 %v1505, %v2256
        %v2258 = vpop.f32.mrb[0].mxu0
        %v2259 = vadd.f32 %v1509, %v2258
        %v2260 = vpop.f32.mrb[0].mxu0
        %v2261 = vadd.f32 %v1505, %v2260
        %v2262 = vpop.f32.mrb[0].mxu0
        %v2263 = vadd.f32 %v1509, %v2262
        %2264 = vmatprep.mubr.bf16.mxu0 %v1375
        %2265 = vmatmul.mubr.bf16.gmra.mrb[0].mxu0 %v1374
        %v2266 = vpop.f32.mrb[0].mxu0
        %v2267 = vadd.f32 %v1505, %v2266
        %v2268 = vpop.f32.mrb[0].mxu0
        %v2269 = vadd.f32 %v1509, %v2268
        %v2270 = vpop.f32.mrb[0].mxu0
        %v2271 = vadd.f32 %v1505, %v2270
        %v2272 = vpop.f32.mrb[0].mxu0
        %v2273 = vadd.f32 %v1509, %v2272
        %2274 = vmatprep.mubr.bf16.mxu0 %v1377
        %2275 = vmatmul.mubr.bf16.gmra.mrb[0].mxu0 %v1376
        %v2276 = vpop.f32.mrb[0].mxu0
        %v2277 = vadd.f32 %v1505, %v2276
        %v2278 = vpop.f32.mrb[0].mxu0
        %v2279 = vadd.f32 %v1509, %v2278
        %v2280 = vpop.f32.mrb[0].mxu0
        %v2281 = vadd.f32 %v1505, %v2280
        %v2282 = vpop.f32.mrb[0].mxu0
        %v2283 = vadd.f32 %v1509, %v2282
        %2284 = vmatprep.mubr.bf16.mxu0 %v1379
        %2285 = vmatmul.mubr.bf16.gmra.mrb[0].mxu0 %v1378
        %v2286 = vpop.f32.mrb[0].mxu0
        %v2287 = vadd.f32 %v1505, %v2286
        %v2288 = vpop.f32.mrb[0].mxu0
        %v2289 = vadd.f32 %v1509, %v2288
        %v2290 = vpop.f32.mrb[0].mxu0
        %v2291 = vadd.f32 %v1505, %v2290
        %v2292 = vpop.f32.mrb[0].mxu0
        %v2293 = vadd.f32 %v1509, %v2292
        %2294 = vmatprep.mubr.bf16.mxu0 %v1381
        %2295 = vmatmul.mubr.bf16.gmra.mrb[0].mxu0 %v1380
        %v2296 = vpop.f32.mrb[0].mxu0
        %v2297 = vadd.f32 %v1505, %v2296
        %v2298 = vpop.f32.mrb[0].mxu0
        %v2299 = vadd.f32 %v1509, %v2298
        %v2300 = vpop.f32.mrb[0].mxu0
        %v2301 = vadd.f32 %v1505, %v2300
        %v2302 = vpop.f32.mrb[0].mxu0
        %v2303 = vadd.f32 %v1509, %v2302
        %2304 = vmatprep.mubr.bf16.mxu0 %v1383
        %2305 = vmatmul.mubr.bf16.gmra.mrb[0].mxu0 %v1382
        %v2306 = vpop.f32.mrb[0].mxu0
        %v2307 = vadd.f32 %v1505, %v2306
        %v2308 = vpop.f32.mrb[0].mxu0
        %v2309 = vadd.f32 %v1509, %v2308
        %v2310 = vpop.f32.mrb[0].mxu0
        %v2311 = vadd.f32 %v1505, %v2310
        %v2312 = vpop.f32.mrb[0].mxu0
        %v2313 = vadd.f32 %v1509, %v2312
        %2314 = vmatprep.mubr.bf16.mxu0 %v1385
        %2315 = vmatmul.mubr.bf16.gmra.mrb[0].mxu0 %v1384
        %v2316 = vpop.f32.mrb[0].mxu0
        %v2317 = vadd.f32 %v1505, %v2316
        %v2318 = vpop.f32.mrb[0].mxu0
        %v2319 = vadd.f32 %v1509, %v2318
        %v2320 = vpop.f32.mrb[0].mxu0
        %v2321 = vadd.f32 %v1505, %v2320
        %v2322 = vpop.f32.mrb[0].mxu0
        %v2323 = vadd.f32 %v1509, %v2322
        %2324 = vmatprep.mubr.bf16.mxu0 %v1387
        %2325 = vmatmul.mubr.bf16.gmra.mrb[0].mxu0 %v1386
        %v2326 = vpop.f32.mrb[0].mxu0
        %v2327 = vadd.f32 %v1505, %v2326
        %v2328 = vpop.f32.mrb[0].mxu0
        %v2329 = vadd.f32 %v1509, %v2328
        %v2330 = vpop.f32.mrb[0].mxu0
        %v2331 = vadd.f32 %v1505, %v2330
        %v2332 = vpop.f32.mrb[0].mxu0
        %v2333 = vadd.f32 %v1509, %v2332
        %2334 = vdwg.mxu0
        %v2335 = vpack.c.bf16 %v2035, %v2031
        %v2336 = vpack.c.bf16 %v2045, %v2041
        %v2337 = vpack.c.bf16 %v2055, %v2051
        %v2338 = vpack.c.bf16 %v2065, %v2061
        %v2339 = vpack.c.bf16 %v2148, %v2144
        %v2340 = vpack.c.bf16 %v2158, %v2154
        %v2341 = vpack.c.bf16 %v2168, %v2164
        %v2342 = vpack.c.bf16 %v2178, %v2174
        %v2343 = vpack.c.bf16 %v2261, %v2257
        %v2344 = vpack.c.bf16 %v2271, %v2267
        %v2345 = vpack.c.bf16 %v2281, %v2277
        %v2346 = vpack.c.bf16 %v2291, %v2287
        %2347 = vmatprep.subr.bf16.mxu0 0
        %2348 = vmatpush1.bf16.xpose.msra.mxu0 %v2339
        %2349 = vmatprep.subr.bf16.mxu0 0
        %2350 = vmatpush1.bf16.xpose.msra.mxu0 %v2340
        %2351 = vmatprep.subr.bf16.mxu0 0
        %2352 = vmatpush1.bf16.xpose.msra.mxu0 %v2341
        %2353 = vmatprep.subr.bf16.mxu0 0
        %2354 = vmatpush1.bf16.xpose.msra.mxu0 %v2342
        %2355 = vmatprep.subr.bf16.mxu0 0
        %2356 = vmatpush1.bf16.xpose.msra.mxu0 0
        %2357 = vmatprep.subr.bf16.mxu0 0
        %2358 = vmatpush1.bf16.xpose.msra.mxu0 0
        %2359 = vmatprep.subr.bf16.mxu0 0
        %2360 = vmatpush1.bf16.xpose.msra.mxu0 0
        %2361 = vmatprep.subr.bf16.mxu0 0
        %2362 = vmatpush1.bf16.xpose.msra.mxu0 0
        %2363 = vmatprep.subr.bf16.mxu0 0
        %2364 = vmatpush1.bf16.xpose.msra.mxu0 0
        %2365 = vmatprep.subr.bf16.mxu0 0
        %2366 = vmatpush1.bf16.xpose.msra.mxu0 0
        %2367 = vmatprep.subr.bf16.mxu0 0
        %2368 = vmatpush1.bf16.xpose.msra.mxu0 0
        %2369 = vmatprep.subr.bf16.mxu0 0
        %2370 = vmatpush1.bf16.xpose.msra.mxu0 0
        %2371 = vmatprep.subr.bf16.mxu0 0
        %2372 = vmatpush1.bf16.xpose.msra.mxu0 0
        %2373 = vmatprep.subr.bf16.mxu0 0
        %2374 = vmatpush1.bf16.xpose.msra.mxu0 0
        %2375 = vmatprep.subr.bf16.mxu0 0
        %2376 = vmatpush1.bf16.xpose.msra.mxu0 0
        %2377 = vmatprep.subr.bf16.mxu0 0
        %2378 = vmatpush1.bf16.xpose.msra.mxu0 0
        %2379 = vmatprep.mubr.bf16.mxu0 0
        %2380 = vmatmul.mubr.bf16.gmra.mrb[0].mxu0 %v2335
        %v2381 = vpop.f32.mrb[0].mxu0
        %v2382 = vadd.f32 0.0, %v2381
        %v2383 = vpop.f32.mrb[0].mxu0
        %v2384 = vpop.f32.mrb[0].mxu0
        %v2385 = vadd.f32 0.0, %v2384
        %v2386 = vpop.f32.mrb[0].mxu0
        %2387 = vmatprep.mubr.bf16.mxu0 0
        %2388 = vmatmul.mubr.bf16.gmra.mrb[0].mxu0 %v2336
        %v2389 = vpop.f32.mrb[0].mxu0
        %v2390 = vadd.f32 0.0, %v2389
        %v2391 = vpop.f32.mrb[0].mxu0
        %v2392 = vpop.f32.mrb[0].mxu0
        %v2393 = vadd.f32 0.0, %v2392
        %v2394 = vpop.f32.mrb[0].mxu0
        %2395 = vmatprep.mubr.bf16.mxu0 0
        %2396 = vmatmul.mubr.bf16.gmra.mrb[0].mxu0 %v2337
        %v2397 = vpop.f32.mrb[0].mxu0
        %v2398 = vadd.f32 0.0, %v2397
        %v2399 = vpop.f32.mrb[0].mxu0
        %v2400 = vpop.f32.mrb[0].mxu0
        %v2401 = vadd.f32 0.0, %v2400
        %v2402 = vpop.f32.mrb[0].mxu0
        %2403 = vmatprep.mubr.bf16.mxu0 0
        %2404 = vmatmul.mubr.bf16.gmra.mrb[0].mxu0 %v2338
        %v2405 = vpop.f32.mrb[0].mxu0
        %v2406 = vadd.f32 0.0, %v2405
        %v2407 = vpop.f32.mrb[0].mxu0
        %v2408 = vpop.f32.mrb[0].mxu0
        %v2409 = vadd.f32 0.0, %v2408
        %v2410 = vpop.f32.mrb[0].mxu0
        %2411 = vdwg.mxu0
        %v2412 = vmul.f32 %v2382, 0.088388346
        %v2413 = vmul.f32 %v2385, 0.088388346
        %v2414 = vmul.f32 %v2390, 0.088388346
        %v2415 = vmul.f32 %v2393, 0.088388346
        %v2416 = vmul.f32 %v2398, 0.088388346
        %v2417 = vmul.f32 %v2401, 0.088388346
        %v2418 = vmul.f32 %v2406, 0.088388346
        %v2419 = vmul.f32 %v2409, 0.088388346
        %vm2420 = vcmask 523264
        %v2421 = vsel %vm2420, %v2412, -inf
        %2422 = vmax.xlane.f32.xlu0 %v2421
        %v2423 = vpop.xlane.xlu0 %2422
        %v2424 = vsel %vm2420, %v2413, -inf
        %2425 = vmax.xlane.f32.xlu0 %v2424
        %v2426 = vpop.xlane.xlu0 %2425
        %v2427 = vsel %vm2420, %v2414, -inf
        %2428 = vmax.xlane.f32.xlu0 %v2427
        %v2429 = vpop.xlane.xlu0 %2428
        %v2430 = vsel %vm2420, %v2415, -inf
        %2431 = vmax.xlane.f32.xlu0 %v2430
        %v2432 = vpop.xlane.xlu0 %2431
        %v2433 = vsel %vm2420, %v2416, -inf
        %2434 = vmax.xlane.f32.xlu0 %v2433
        %v2435 = vpop.xlane.xlu0 %2434
        %v2436 = vsel %vm2420, %v2417, -inf
        %2437 = vmax.xlane.f32.xlu0 %v2436
        %v2438 = vpop.xlane.xlu0 %2437
        %v2439 = vsel %vm2420, %v2418, -inf
        %2440 = vmax.xlane.f32.xlu0 %v2439
        %v2441 = vpop.xlane.xlu0 %2440
        %v2442 = vsel %vm2420, %v2419, -inf
        %2443 = vmax.xlane.f32.xlu0 %v2442
        %v2444 = vpop.xlane.xlu0 %2443
        %v2445 = vsub.f32 %v2412, %v2423
        %v2446 = vsub.f32 %v2413, %v2426
        %v2447 = vsub.f32 %v2414, %v2429
        %v2448 = vsub.f32 %v2415, %v2432
        %v2449 = vsub.f32 %v2416, %v2435
        %v2450 = vsub.f32 %v2417, %v2438
        %v2451 = vsub.f32 %v2418, %v2441
        %v2452 = vsub.f32 %v2419, %v2444
        %v2453 = vmul.f32 %v2445, 1.442695
        %v2454 = vpow.pop %v2453
        %v2455 = vmul.f32 %v2446, 1.442695
        %v2456 = vpow.pop %v2455
        %v2457 = vmul.f32 %v2447, 1.442695
        %v2458 = vpow.pop %v2457
        %v2459 = vmul.f32 %v2448, 1.442695
        %v2460 = vpow.pop %v2459
        %v2461 = vmul.f32 %v2449, 1.442695
        %v2462 = vpow.pop %v2461
        %v2463 = vmul.f32 %v2450, 1.442695
        %v2464 = vpow.pop %v2463
        %v2465 = vmul.f32 %v2451, 1.442695
        %v2466 = vpow.pop %v2465
        %v2467 = vmul.f32 %v2452, 1.442695
        %v2468 = vpow.pop %v2467
        %v2469 = vsel %vm2420, %v2454, 0.0
        %2470 = vadd.xlane.f32.xlu0 %v2469
        %v2471 = vpop.xlane.xlu0 %2470
        %v2472 = vsel %vm2420, %v2456, 0.0
        %2473 = vadd.xlane.f32.xlu0 %v2472
        %v2474 = vpop.xlane.xlu0 %2473
        %v2475 = vsel %vm2420, %v2458, 0.0
        %2476 = vadd.xlane.f32.xlu0 %v2475
        %v2477 = vpop.xlane.xlu0 %2476
        %v2478 = vsel %vm2420, %v2460, 0.0
        %2479 = vadd.xlane.f32.xlu0 %v2478
        %v2480 = vpop.xlane.xlu0 %2479
        %v2481 = vsel %vm2420, %v2462, 0.0
        %2482 = vadd.xlane.f32.xlu0 %v2481
        %v2483 = vpop.xlane.xlu0 %2482
        %v2484 = vsel %vm2420, %v2464, 0.0
        %2485 = vadd.xlane.f32.xlu0 %v2484
        %v2486 = vpop.xlane.xlu0 %2485
        %v2487 = vsel %vm2420, %v2466, 0.0
        %2488 = vadd.xlane.f32.xlu0 %v2487
        %v2489 = vpop.xlane.xlu0 %2488
        %v2490 = vsel %vm2420, %v2468, 0.0
        %2491 = vadd.xlane.f32.xlu0 %v2490
        %v2492 = vpop.xlane.xlu0 %2491
        %v2493 = vrcp.pop %v2471
        %v2494 = vrcp.pop %v2474
        %v2495 = vrcp.pop %v2477
        %v2496 = vrcp.pop %v2480
        %v2497 = vrcp.pop %v2483
        %v2498 = vrcp.pop %v2486
        %v2499 = vrcp.pop %v2489
        %v2500 = vrcp.pop %v2492
        %v2501 = vmul.f32 %v2454, %v2493
        %v2502 = vmul.f32 %v2456, %v2494
        %v2503 = vmul.f32 %v2458, %v2495
        %v2504 = vmul.f32 %v2460, %v2496
        %v2505 = vmul.f32 %v2462, %v2497
        %v2506 = vmul.f32 %v2464, %v2498
        %v2507 = vmul.f32 %v2466, %v2499
        %v2508 = vmul.f32 %v2468, %v2500
        %v2509 = vpack.c.bf16 %v2502, %v2501
        %v2510 = vpack.c.bf16 %v2504, %v2503
        %v2511 = vpack.c.bf16 %v2506, %v2505
        %v2512 = vpack.c.bf16 %v2508, %v2507
        %v2514 = vsel %vm2420, %v2509, 0
        %v2517 = vsel %vm2420, %v2510, 0
        %v2520 = vsel %vm2420, %v2511, 0
        %v2523 = vsel %vm2420, %v2512, 0
        %2525 = vmatprep.subr.bf16.mxu0 0
        %2526 = vmatpush1.bf16.msra.mxu0 %v2343
        %2527 = vmatprep.subr.bf16.mxu0 0
        %2528 = vmatpush1.bf16.msra.mxu0 %v2344
        %2529 = vmatprep.subr.bf16.mxu0 0
        %2530 = vmatpush1.bf16.msra.mxu0 %v2345
        %2531 = vmatprep.subr.bf16.mxu0 0
        %2532 = vmatpush1.bf16.msra.mxu0 %v2346
        %2533 = vmatprep.subr.bf16.mxu0 0
        %2534 = vmatpush1.bf16.msra.mxu0 0
        %2535 = vmatprep.subr.bf16.mxu0 0
        %2536 = vmatpush1.bf16.msra.mxu0 0
        %2537 = vmatprep.subr.bf16.mxu0 0
        %2538 = vmatpush1.bf16.msra.mxu0 0
        %2539 = vmatprep.subr.bf16.mxu0 0
        %2540 = vmatpush1.bf16.msra.mxu0 0
        %2541 = vmatprep.subr.bf16.mxu0 0
        %2542 = vmatpush1.bf16.msra.mxu0 0
        %2543 = vmatprep.subr.bf16.mxu0 0
        %2544 = vmatpush1.bf16.msra.mxu0 0
        %2545 = vmatprep.subr.bf16.mxu0 0
        %2546 = vmatpush1.bf16.msra.mxu0 0
        %2547 = vmatprep.subr.bf16.mxu0 0
        %2548 = vmatpush1.bf16.msra.mxu0 0
        %2549 = vmatprep.subr.bf16.mxu0 0
        %2550 = vmatpush1.bf16.msra.mxu0 0
        %2551 = vmatprep.subr.bf16.mxu0 0
        %2552 = vmatpush1.bf16.msra.mxu0 0
        %2553 = vmatprep.subr.bf16.mxu0 0
        %2554 = vmatpush1.bf16.msra.mxu0 0
        %2555 = vmatprep.subr.bf16.mxu0 0
        %2556 = vmatpush1.bf16.msra.mxu0 0
        %2557 = vmatprep.mubr.bf16.mxu0 0
        %2558 = vmatmul.mubr.bf16.gmra.mrb[0].mxu0 %v2514
        %v2559 = vpop.f32.mrb[0].mxu0
        %v2560 = vadd.f32 0.0, %v2559
        %v2561 = vpop.f32.mrb[0].mxu0
        %v2562 = vpop.f32.mrb[0].mxu0
        %v2563 = vadd.f32 0.0, %v2562
        %v2564 = vpop.f32.mrb[0].mxu0
        %2565 = vmatprep.mubr.bf16.mxu0 0
        %2566 = vmatmul.mubr.bf16.gmra.mrb[0].mxu0 %v2517
        %v2567 = vpop.f32.mrb[0].mxu0
        %v2568 = vadd.f32 0.0, %v2567
        %v2569 = vpop.f32.mrb[0].mxu0
        %v2570 = vpop.f32.mrb[0].mxu0
        %v2571 = vadd.f32 0.0, %v2570
        %v2572 = vpop.f32.mrb[0].mxu0
        %2573 = vmatprep.mubr.bf16.mxu0 0
        %2574 = vmatmul.mubr.bf16.gmra.mrb[0].mxu0 %v2520
        %v2575 = vpop.f32.mrb[0].mxu0
        %v2576 = vadd.f32 0.0, %v2575
        %v2577 = vpop.f32.mrb[0].mxu0
        %v2578 = vpop.f32.mrb[0].mxu0
        %v2579 = vadd.f32 0.0, %v2578
        %v2580 = vpop.f32.mrb[0].mxu0
        %2581 = vmatprep.mubr.bf16.mxu0 0
        %2582 = vmatmul.mubr.bf16.gmra.mrb[0].mxu0 %v2523
        %v2583 = vpop.f32.mrb[0].mxu0
        %v2584 = vadd.f32 0.0, %v2583
        %v2585 = vpop.f32.mrb[0].mxu0
        %v2586 = vpop.f32.mrb[0].mxu0
        %v2587 = vadd.f32 0.0, %v2586
        %v2588 = vpop.f32.mrb[0].mxu0
        %2589 = vdwg.mxu0
        %2590 = vst [vmem:[#allocation3] sm:$0xff] %v2560
        %2591 = vst [vmem:[#allocation3 + $0x10] sm:$0xff] %v2563
        %2592 = vst [vmem:[#allocation3 + $0x20] sm:$0xff] %v2568
        %2593 = vst [vmem:[#allocation3 + $0x30] sm:$0xff] %v2571
        %2594 = vst [vmem:[#allocation3 + $0x40] sm:$0xff] %v2576
        %2595 = vst [vmem:[#allocation3 + $0x50] sm:$0xff] %v2579
        %2596 = vst [vmem:[#allocation3 + $0x60] sm:$0xff] %v2584
        %2597 = vst [vmem:[#allocation3 + $0x70] sm:$0xff] %v2587
        %v2598 = vpack.c.bf16 %v2037, %v2033
        %v2599 = vpack.c.bf16 %v2047, %v2043
        %v2600 = vpack.c.bf16 %v2057, %v2053
        %v2601 = vpack.c.bf16 %v2067, %v2063
        %v2602 = vpack.c.bf16 %v2150, %v2146
        %v2603 = vpack.c.bf16 %v2160, %v2156
        %v2604 = vpack.c.bf16 %v2170, %v2166
        %v2605 = vpack.c.bf16 %v2180, %v2176
        %v2606 = vpack.c.bf16 %v2263, %v2259
        %v2607 = vpack.c.bf16 %v2273, %v2269
        %v2608 = vpack.c.bf16 %v2283, %v2279
        %v2609 = vpack.c.bf16 %v2293, %v2289
        %2610 = vmatprep.subr.bf16.mxu0 0
        %2611 = vmatpush1.bf16.xpose.msra.mxu0 %v2602
        %2612 = vmatprep.subr.bf16.mxu0 0
        %2613 = vmatpush1.bf16.xpose.msra.mxu0 %v2603
        %2614 = vmatprep.subr.bf16.mxu0 0
        %2615 = vmatpush1.bf16.xpose.msra.mxu0 %v2604
        %2616 = vmatprep.subr.bf16.mxu0 0
        %2617 = vmatpush1.bf16.xpose.msra.mxu0 %v2605
        %2618 = vmatprep.subr.bf16.mxu0 0
        %2619 = vmatpush1.bf16.xpose.msra.mxu0 0
        %2620 = vmatprep.subr.bf16.mxu0 0
        %2621 = vmatpush1.bf16.xpose.msra.mxu0 0
        %2622 = vmatprep.subr.bf16.mxu0 0
        %2623 = vmatpush1.bf16.xpose.msra.mxu0 0
        %2624 = vmatprep.subr.bf16.mxu0 0
        %2625 = vmatpush1.bf16.xpose.msra.mxu0 0
        %2626 = vmatprep.subr.bf16.mxu0 0
        %2627 = vmatpush1.bf16.xpose.msra.mxu0 0
        %2628 = vmatprep.subr.bf16.mxu0 0
        %2629 = vmatpush1.bf16.xpose.msra.mxu0 0
        %2630 = vmatprep.subr.bf16.mxu0 0
        %2631 = vmatpush1.bf16.xpose.msra.mxu0 0
        %2632 = vmatprep.subr.bf16.mxu0 0
        %2633 = vmatpush1.bf16.xpose.msra.mxu0 0
        %2634 = vmatprep.subr.bf16.mxu0 0
        %2635 = vmatpush1.bf16.xpose.msra.mxu0 0
        %2636 = vmatprep.subr.bf16.mxu0 0
        %2637 = vmatpush1.bf16.xpose.msra.mxu0 0
        %2638 = vmatprep.subr.bf16.mxu0 0
        %2639 = vmatpush1.bf16.xpose.msra.mxu0 0
        %2640 = vmatprep.subr.bf16.mxu0 0
        %2641 = vmatpush1.bf16.xpose.msra.mxu0 0
        %2642 = vmatprep.mubr.bf16.mxu0 0
        %2643 = vmatmul.mubr.bf16.gmra.mrb[0].mxu0 %v2598
        %v2644 = vpop.f32.mrb[0].mxu0
        %v2645 = vadd.f32 0.0, %v2644
        %v2646 = vpop.f32.mrb[0].mxu0
        %v2647 = vpop.f32.mrb[0].mxu0
        %v2648 = vadd.f32 0.0, %v2647
        %v2649 = vpop.f32.mrb[0].mxu0
        %2650 = vmatprep.mubr.bf16.mxu0 0
        %2651 = vmatmul.mubr.bf16.gmra.mrb[0].mxu0 %v2599
        %v2652 = vpop.f32.mrb[0].mxu0
        %v2653 = vadd.f32 0.0, %v2652
        %v2654 = vpop.f32.mrb[0].mxu0
        %v2655 = vpop.f32.mrb[0].mxu0
        %v2656 = vadd.f32 0.0, %v2655
        %v2657 = vpop.f32.mrb[0].mxu0
        %2658 = vmatprep.mubr.bf16.mxu0 0
        %2659 = vmatmul.mubr.bf16.gmra.mrb[0].mxu0 %v2600
        %v2660 = vpop.f32.mrb[0].mxu0
        %v2661 = vadd.f32 0.0, %v2660
        %v2662 = vpop.f32.mrb[0].mxu0
        %v2663 = vpop.f32.mrb[0].mxu0
        %v2664 = vadd.f32 0.0, %v2663
        %v2665 = vpop.f32.mrb[0].mxu0
        %2666 = vmatprep.mubr.bf16.mxu0 0
        %2667 = vmatmul.mubr.bf16.gmra.mrb[0].mxu0 %v2601
        %v2668 = vpop.f32.mrb[0].mxu0
        %v2669 = vadd.f32 0.0, %v2668
        %v2670 = vpop.f32.mrb[0].mxu0
        %v2671 = vpop.f32.mrb[0].mxu0
        %v2672 = vadd.f32 0.0, %v2671
        %v2673 = vpop.f32.mrb[0].mxu0
        %2674 = vdwg.mxu0
        %v2675 = vmul.f32 %v2645, 0.088388346
        %v2676 = vmul.f32 %v2648, 0.088388346
        %v2677 = vmul.f32 %v2653, 0.088388346
        %v2678 = vmul.f32 %v2656, 0.088388346
        %v2679 = vmul.f32 %v2661, 0.088388346
        %v2680 = vmul.f32 %v2664, 0.088388346
        %v2681 = vmul.f32 %v2669, 0.088388346
        %v2682 = vmul.f32 %v2672, 0.088388346
        %v2683 = vsel %vm2420, %v2675, -inf
        %2684 = vmax.xlane.f32.xlu0 %v2683
        %v2685 = vpop.xlane.xlu0 %2684
        %v2686 = vsel %vm2420, %v2676, -inf
        %2687 = vmax.xlane.f32.xlu0 %v2686
        %v2688 = vpop.xlane.xlu0 %2687
        %v2689 = vsel %vm2420, %v2677, -inf
        %2690 = vmax.xlane.f32.xlu0 %v2689
        %v2691 = vpop.xlane.xlu0 %2690
        %v2692 = vsel %vm2420, %v2678, -inf
        %2693 = vmax.xlane.f32.xlu0 %v2692
        %v2694 = vpop.xlane.xlu0 %2693
        %v2695 = vsel %vm2420, %v2679, -inf
        %2696 = vmax.xlane.f32.xlu0 %v2695
        %v2697 = vpop.xlane.xlu0 %2696
        %v2698 = vsel %vm2420, %v2680, -inf
        %2699 = vmax.xlane.f32.xlu0 %v2698
        %v2700 = vpop.xlane.xlu0 %2699
        %v2701 = vsel %vm2420, %v2681, -inf
        %2702 = vmax.xlane.f32.xlu0 %v2701
        %v2703 = vpop.xlane.xlu0 %2702
        %v2704 = vsel %vm2420, %v2682, -inf
        %2705 = vmax.xlane.f32.xlu0 %v2704
        %v2706 = vpop.xlane.xlu0 %2705
        %v2707 = vsub.f32 %v2675, %v2685
        %v2708 = vsub.f32 %v2676, %v2688
        %v2709 = vsub.f32 %v2677, %v2691
        %v2710 = vsub.f32 %v2678, %v2694
        %v2711 = vsub.f32 %v2679, %v2697
        %v2712 = vsub.f32 %v2680, %v2700
        %v2713 = vsub.f32 %v2681, %v2703
        %v2714 = vsub.f32 %v2682, %v2706
        %v2715 = vmul.f32 %v2707, 1.442695
        %v2716 = vpow.pop %v2715
        %v2717 = vmul.f32 %v2708, 1.442695
        %v2718 = vpow.pop %v2717
        %v2719 = vmul.f32 %v2709, 1.442695
        %v2720 = vpow.pop %v2719
        %v2721 = vmul.f32 %v2710, 1.442695
        %v2722 = vpow.pop %v2721
        %v2723 = vmul.f32 %v2711, 1.442695
        %v2724 = vpow.pop %v2723
        %v2725 = vmul.f32 %v2712, 1.442695
        %v2726 = vpow.pop %v2725
        %v2727 = vmul.f32 %v2713, 1.442695
        %v2728 = vpow.pop %v2727
        %v2729 = vmul.f32 %v2714, 1.442695
        %v2730 = vpow.pop %v2729
        %v2731 = vsel %vm2420, %v2716, 0.0
        %2732 = vadd.xlane.f32.xlu0 %v2731
        %v2733 = vpop.xlane.xlu0 %2732
        %v2734 = vsel %vm2420, %v2718, 0.0
        %2735 = vadd.xlane.f32.xlu0 %v2734
        %v2736 = vpop.xlane.xlu0 %2735
        %v2737 = vsel %vm2420, %v2720, 0.0
        %2738 = vadd.xlane.f32.xlu0 %v2737
        %v2739 = vpop.xlane.xlu0 %2738
        %v2740 = vsel %vm2420, %v2722, 0.0
        %2741 = vadd.xlane.f32.xlu0 %v2740
        %v2742 = vpop.xlane.xlu0 %2741
        %v2743 = vsel %vm2420, %v2724, 0.0
        %2744 = vadd.xlane.f32.xlu0 %v2743
        %v2745 = vpop.xlane.xlu0 %2744
        %v2746 = vsel %vm2420, %v2726, 0.0
        %2747 = vadd.xlane.f32.xlu0 %v2746
        %v2748 = vpop.xlane.xlu0 %2747
        %v2749 = vsel %vm2420, %v2728, 0.0
        %2750 = vadd.xlane.f32.xlu0 %v2749
        %v2751 = vpop.xlane.xlu0 %2750
        %v2752 = vsel %vm2420, %v2730, 0.0
        %2753 = vadd.xlane.f32.xlu0 %v2752
        %v2754 = vpop.xlane.xlu0 %2753
        %v2755 = vrcp.pop %v2733
        %v2756 = vrcp.pop %v2736
        %v2757 = vrcp.pop %v2739
        %v2758 = vrcp.pop %v2742
        %v2759 = vrcp.pop %v2745
        %v2760 = vrcp.pop %v2748
        %v2761 = vrcp.pop %v2751
        %v2762 = vrcp.pop %v2754
        %v2763 = vmul.f32 %v2716, %v2755
        %v2764 = vmul.f32 %v2718, %v2756
        %v2765 = vmul.f32 %v2720, %v2757
        %v2766 = vmul.f32 %v2722, %v2758
        %v2767 = vmul.f32 %v2724, %v2759
        %v2768 = vmul.f32 %v2726, %v2760
        %v2769 = vmul.f32 %v2728, %v2761
        %v2770 = vmul.f32 %v2730, %v2762
        %v2771 = vpack.c.bf16 %v2764, %v2763
        %v2772 = vpack.c.bf16 %v2766, %v2765
        %v2773 = vpack.c.bf16 %v2768, %v2767
        %v2774 = vpack.c.bf16 %v2770, %v2769
        %v2776 = vsel %vm2420, %v2771, 0
        %v2779 = vsel %vm2420, %v2772, 0
        %v2782 = vsel %vm2420, %v2773, 0
        %v2785 = vsel %vm2420, %v2774, 0
        %2787 = vmatprep.subr.bf16.mxu0 0
        %2788 = vmatpush1.bf16.msra.mxu0 %v2606
        %2789 = vmatprep.subr.bf16.mxu0 0
        %2790 = vmatpush1.bf16.msra.mxu0 %v2607
        %2791 = vmatprep.subr.bf16.mxu0 0
        %2792 = vmatpush1.bf16.msra.mxu0 %v2608
        %2793 = vmatprep.subr.bf16.mxu0 0
        %2794 = vmatpush1.bf16.msra.mxu0 %v2609
        %2795 = vmatprep.subr.bf16.mxu0 0
        %2796 = vmatpush1.bf16.msra.mxu0 0
        %2797 = vmatprep.subr.bf16.mxu0 0
        %2798 = vmatpush1.bf16.msra.mxu0 0
        %2799 = vmatprep.subr.bf16.mxu0 0
        %2800 = vmatpush1.bf16.msra.mxu0 0
        %2801 = vmatprep.subr.bf16.mxu0 0
        %2802 = vmatpush1.bf16.msra.mxu0 0
        %2803 = vmatprep.subr.bf16.mxu0 0
        %2804 = vmatpush1.bf16.msra.mxu0 0
        %2805 = vmatprep.subr.bf16.mxu0 0
        %2806 = vmatpush1.bf16.msra.mxu0 0
        %2807 = vmatprep.subr.bf16.mxu0 0
        %2808 = vmatpush1.bf16.msra.mxu0 0
        %2809 = vmatprep.subr.bf16.mxu0 0
        %2810 = vmatpush1.bf16.msra.mxu0 0
        %2811 = vmatprep.subr.bf16.mxu0 0
        %2812 = vmatpush1.bf16.msra.mxu0 0
        %2813 = vmatprep.subr.bf16.mxu0 0
        %2814 = vmatpush1.bf16.msra.mxu0 0
        %2815 = vmatprep.subr.bf16.mxu0 0
        %2816 = vmatpush1.bf16.msra.mxu0 0
        %2817 = vmatprep.subr.bf16.mxu0 0
        %2818 = vmatpush1.bf16.msra.mxu0 0
        %2819 = vmatprep.mubr.bf16.mxu0 0
        %2820 = vmatmul.mubr.bf16.gmra.mrb[0].mxu0 %v2776
        %v2821 = vpop.f32.mrb[0].mxu0
        %v2822 = vadd.f32 0.0, %v2821
        %v2823 = vpop.f32.mrb[0].mxu0
        %v2824 = vpop.f32.mrb[0].mxu0
        %v2825 = vadd.f32 0.0, %v2824
        %v2826 = vpop.f32.mrb[0].mxu0
        %2827 = vmatprep.mubr.bf16.mxu0 0
        %2828 = vmatmul.mubr.bf16.gmra.mrb[0].mxu0 %v2779
        %v2829 = vpop.f32.mrb[0].mxu0
        %v2830 = vadd.f32 0.0, %v2829
        %v2831 = vpop.f32.mrb[0].mxu0
        %v2832 = vpop.f32.mrb[0].mxu0
        %v2833 = vadd.f32 0.0, %v2832
        %v2834 = vpop.f32.mrb[0].mxu0
        %2835 = vmatprep.mubr.bf16.mxu0 0
        %2836 = vmatmul.mubr.bf16.gmra.mrb[0].mxu0 %v2782
        %v2837 = vpop.f32.mrb[0].mxu0
        %v2838 = vadd.f32 0.0, %v2837
        %v2839 = vpop.f32.mrb[0].mxu0
        %v2840 = vpop.f32.mrb[0].mxu0
        %v2841 = vadd.f32 0.0, %v2840
        %v2842 = vpop.f32.mrb[0].mxu0
        %2843 = vmatprep.mubr.bf16.mxu0 0
        %2844 = vmatmul.mubr.bf16.gmra.mrb[0].mxu0 %v2785
        %v2845 = vpop.f32.mrb[0].mxu0
        %v2846 = vadd.f32 0.0, %v2845
        %v2847 = vpop.f32.mrb[0].mxu0
        %v2848 = vpop.f32.mrb[0].mxu0
        %v2849 = vadd.f32 0.0, %v2848
        %v2850 = vpop.f32.mrb[0].mxu0
        %2851 = vdwg.mxu0
        %2852 = vst [vmem:[#allocation3 + $0x8] sm:$0xff] %v2822
        %2853 = vst [vmem:[#allocation3 + $0x18] sm:$0xff] %v2825
        %2854 = vst [vmem:[#allocation3 + $0x28] sm:$0xff] %v2830
        %2855 = vst [vmem:[#allocation3 + $0x38] sm:$0xff] %v2833
        %2856 = vst [vmem:[#allocation3 + $0x48] sm:$0xff] %v2838
        %2857 = vst [vmem:[#allocation3 + $0x58] sm:$0xff] %v2841
        %2858 = vst [vmem:[#allocation3 + $0x68] sm:$0xff] %v2846
        %2859 = vst [vmem:[#allocation3 + $0x78] sm:$0xff] %v2849
        %v2860 = vpack.c.bf16 %v2075, %v2071
        %v2861 = vpack.c.bf16 %v2085, %v2081
        %v2862 = vpack.c.bf16 %v2095, %v2091
        %v2863 = vpack.c.bf16 %v2105, %v2101
        %v2864 = vpack.c.bf16 %v2188, %v2184
        %v2865 = vpack.c.bf16 %v2198, %v2194
        %v2866 = vpack.c.bf16 %v2208, %v2204
        %v2867 = vpack.c.bf16 %v2218, %v2214
        %v2868 = vpack.c.bf16 %v2301, %v2297
        %v2869 = vpack.c.bf16 %v2311, %v2307
        %v2870 = vpack.c.bf16 %v2321, %v2317
        %v2871 = vpack.c.bf16 %v2331, %v2327
        %2872 = vmatprep.subr.bf16.mxu0 0
        %2873 = vmatpush1.bf16.xpose.msra.mxu0 %v2864
        %2874 = vmatprep.subr.bf16.mxu0 0
        %2875 = vmatpush1.bf16.xpose.msra.mxu0 %v2865
        %2876 = vmatprep.subr.bf16.mxu0 0
        %2877 = vmatpush1.bf16.xpose.msra.mxu0 %v2866
        %2878 = vmatprep.subr.bf16.mxu0 0
        %2879 = vmatpush1.bf16.xpose.msra.mxu0 %v2867
        %2880 = vmatprep.subr.bf16.mxu0 0
        %2881 = vmatpush1.bf16.xpose.msra.mxu0 0
        %2882 = vmatprep.subr.bf16.mxu0 0
        %2883 = vmatpush1.bf16.xpose.msra.mxu0 0
        %2884 = vmatprep.subr.bf16.mxu0 0
        %2885 = vmatpush1.bf16.xpose.msra.mxu0 0
        %2886 = vmatprep.subr.bf16.mxu0 0
        %2887 = vmatpush1.bf16.xpose.msra.mxu0 0
        %2888 = vmatprep.subr.bf16.mxu0 0
        %2889 = vmatpush1.bf16.xpose.msra.mxu0 0
        %2890 = vmatprep.subr.bf16.mxu0 0
        %2891 = vmatpush1.bf16.xpose.msra.mxu0 0
        %2892 = vmatprep.subr.bf16.mxu0 0
        %2893 = vmatpush1.bf16.xpose.msra.mxu0 0
        %2894 = vmatprep.subr.bf16.mxu0 0
        %2895 = vmatpush1.bf16.xpose.msra.mxu0 0
        %2896 = vmatprep.subr.bf16.mxu0 0
        %2897 = vmatpush1.bf16.xpose.msra.mxu0 0
        %2898 = vmatprep.subr.bf16.mxu0 0
        %2899 = vmatpush1.bf16.xpose.msra.mxu0 0
        %2900 = vmatprep.subr.bf16.mxu0 0
        %2901 = vmatpush1.bf16.xpose.msra.mxu0 0
        %2902 = vmatprep.subr.bf16.mxu0 0
        %2903 = vmatpush1.bf16.xpose.msra.mxu0 0
        %2904 = vmatprep.mubr.bf16.mxu0 0
        %2905 = vmatmul.mubr.bf16.gmra.mrb[0].mxu0 %v2860
        %v2906 = vpop.f32.mrb[0].mxu0
        %v2907 = vadd.f32 0.0, %v2906
        %v2908 = vpop.f32.mrb[0].mxu0
        %v2909 = vpop.f32.mrb[0].mxu0
        %v2910 = vadd.f32 0.0, %v2909
        %v2911 = vpop.f32.mrb[0].mxu0
        %2912 = vmatprep.mubr.bf16.mxu0 0
        %2913 = vmatmul.mubr.bf16.gmra.mrb[0].mxu0 %v2861
        %v2914 = vpop.f32.mrb[0].mxu0
        %v2915 = vadd.f32 0.0, %v2914
        %v2916 = vpop.f32.mrb[0].mxu0
        %v2917 = vpop.f32.mrb[0].mxu0
        %v2918 = vadd.f32 0.0, %v2917
        %v2919 = vpop.f32.mrb[0].mxu0
        %2920 = vmatprep.mubr.bf16.mxu0 0
        %2921 = vmatmul.mubr.bf16.gmra.mrb[0].mxu0 %v2862
        %v2922 = vpop.f32.mrb[0].mxu0
        %v2923 = vadd.f32 0.0, %v2922
        %v2924 = vpop.f32.mrb[0].mxu0
        %v2925 = vpop.f32.mrb[0].mxu0
        %v2926 = vadd.f32 0.0, %v2925
        %v2927 = vpop.f32.mrb[0].mxu0
        %2928 = vmatprep.mubr.bf16.mxu0 0
        %2929 = vmatmul.mubr.bf16.gmra.mrb[0].mxu0 %v2863
        %v2930 = vpop.f32.mrb[0].mxu0
        %v2931 = vadd.f32 0.0, %v2930
        %v2932 = vpop.f32.mrb[0].mxu0
        %v2933 = vpop.f32.mrb[0].mxu0
        %v2934 = vadd.f32 0.0, %v2933
        %v2935 = vpop.f32.mrb[0].mxu0
        %2936 = vdwg.mxu0
        %v2937 = vmul.f32 %v2907, 0.088388346
        %v2938 = vmul.f32 %v2910, 0.088388346
        %v2939 = vmul.f32 %v2915, 0.088388346
        %v2940 = vmul.f32 %v2918, 0.088388346
        %v2941 = vmul.f32 %v2923, 0.088388346
        %v2942 = vmul.f32 %v2926, 0.088388346
        %v2943 = vmul.f32 %v2931, 0.088388346
        %v2944 = vmul.f32 %v2934, 0.088388346
        %v2945 = vsel %vm2420, %v2937, -inf
        %2946 = vmax.xlane.f32.xlu0 %v2945
        %v2947 = vpop.xlane.xlu0 %2946
        %v2948 = vsel %vm2420, %v2938, -inf
        %2949 = vmax.xlane.f32.xlu0 %v2948
        %v2950 = vpop.xlane.xlu0 %2949
        %v2951 = vsel %vm2420, %v2939, -inf
        %2952 = vmax.xlane.f32.xlu0 %v2951
        %v2953 = vpop.xlane.xlu0 %2952
        %v2954 = vsel %vm2420, %v2940, -inf
        %2955 = vmax.xlane.f32.xlu0 %v2954
        %v2956 = vpop.xlane.xlu0 %2955
        %v2957 = vsel %vm2420, %v2941, -inf
        %2958 = vmax.xlane.f32.xlu0 %v2957
        %v2959 = vpop.xlane.xlu0 %2958
        %v2960 = vsel %vm2420, %v2942, -inf
        %2961 = vmax.xlane.f32.xlu0 %v2960
        %v2962 = vpop.xlane.xlu0 %2961
        %v2963 = vsel %vm2420, %v2943, -inf
        %2964 = vmax.xlane.f32.xlu0 %v2963
        %v2965 = vpop.xlane.xlu0 %2964
        %v2966 = vsel %vm2420, %v2944, -inf
        %2967 = vmax.xlane.f32.xlu0 %v2966
        %v2968 = vpop.xlane.xlu0 %2967
        %v2969 = vsub.f32 %v2937, %v2947
        %v2970 = vsub.f32 %v2938, %v2950
        %v2971 = vsub.f32 %v2939, %v2953
        %v2972 = vsub.f32 %v2940, %v2956
        %v2973 = vsub.f32 %v2941, %v2959
        %v2974 = vsub.f32 %v2942, %v2962
        %v2975 = vsub.f32 %v2943, %v2965
        %v2976 = vsub.f32 %v2944, %v2968
        %v2977 = vmul.f32 %v2969, 1.442695
        %v2978 = vpow.pop %v2977
        %v2979 = vmul.f32 %v2970, 1.442695
        %v2980 = vpow.pop %v2979
        %v2981 = vmul.f32 %v2971, 1.442695
        %v2982 = vpow.pop %v2981
        %v2983 = vmul.f32 %v2972, 1.442695
        %v2984 = vpow.pop %v2983
        %v2985 = vmul.f32 %v2973, 1.442695
        %v2986 = vpow.pop %v2985
        %v2987 = vmul.f32 %v2974, 1.442695
        %v2988 = vpow.pop %v2987
        %v2989 = vmul.f32 %v2975, 1.442695
        %v2990 = vpow.pop %v2989
        %v2991 = vmul.f32 %v2976, 1.442695
        %v2992 = vpow.pop %v2991
        %v2993 = vsel %vm2420, %v2978, 0.0
        %2994 = vadd.xlane.f32.xlu0 %v2993
        %v2995 = vpop.xlane.xlu0 %2994
        %v2996 = vsel %vm2420, %v2980, 0.0
        %2997 = vadd.xlane.f32.xlu0 %v2996
        %v2998 = vpop.xlane.xlu0 %2997
        %v2999 = vsel %vm2420, %v2982, 0.0
        %3000 = vadd.xlane.f32.xlu0 %v2999
        %v3001 = vpop.xlane.xlu0 %3000
        %v3002 = vsel %vm2420, %v2984, 0.0
        %3003 = vadd.xlane.f32.xlu0 %v3002
        %v3004 = vpop.xlane.xlu0 %3003
        %v3005 = vsel %vm2420, %v2986, 0.0
        %3006 = vadd.xlane.f32.xlu0 %v3005
        %v3007 = vpop.xlane.xlu0 %3006
        %v3008 = vsel %vm2420, %v2988, 0.0
        %3009 = vadd.xlane.f32.xlu0 %v3008
        %v3010 = vpop.xlane.xlu0 %3009
        %v3011 = vsel %vm2420, %v2990, 0.0
        %3012 = vadd.xlane.f32.xlu0 %v3011
        %v3013 = vpop.xlane.xlu0 %3012
        %v3014 = vsel %vm2420, %v2992, 0.0
        %3015 = vadd.xlane.f32.xlu0 %v3014
        %v3016 = vpop.xlane.xlu0 %3015
        %v3017 = vrcp.pop %v2995
        %v3018 = vrcp.pop %v2998
        %v3019 = vrcp.pop %v3001
        %v3020 = vrcp.pop %v3004
        %v3021 = vrcp.pop %v3007
        %v3022 = vrcp.pop %v3010
        %v3023 = vrcp.pop %v3013
        %v3024 = vrcp.pop %v3016
        %v3025 = vmul.f32 %v2978, %v3017
        %v3026 = vmul.f32 %v2980, %v3018
        %v3027 = vmul.f32 %v2982, %v3019
        %v3028 = vmul.f32 %v2984, %v3020
        %v3029 = vmul.f32 %v2986, %v3021
        %v3030 = vmul.f32 %v2988, %v3022
        %v3031 = vmul.f32 %v2990, %v3023
        %v3032 = vmul.f32 %v2992, %v3024
        %v3033 = vpack.c.bf16 %v3026, %v3025
        %v3034 = vpack.c.bf16 %v3028, %v3027
        %v3035 = vpack.c.bf16 %v3030, %v3029
        %v3036 = vpack.c.bf16 %v3032, %v3031
        %v3038 = vsel %vm2420, %v3033, 0
        %v3041 = vsel %vm2420, %v3034, 0
        %v3044 = vsel %vm2420, %v3035, 0
        %v3047 = vsel %vm2420, %v3036, 0
        %3049 = vmatprep.subr.bf16.mxu0 0
        %3050 = vmatpush1.bf16.msra.mxu0 %v2868
        %3051 = vmatprep.subr.bf16.mxu0 0
        %3052 = vmatpush1.bf16.msra.mxu0 %v2869
        %3053 = vmatprep.subr.bf16.mxu0 0
        %3054 = vmatpush1.bf16.msra.mxu0 %v2870
        %3055 = vmatprep.subr.bf16.mxu0 0
        %3056 = vmatpush1.bf16.msra.mxu0 %v2871
        %3057 = vmatprep.subr.bf16.mxu0 0
        %3058 = vmatpush1.bf16.msra.mxu0 0
        %3059 = vmatprep.subr.bf16.mxu0 0
        %3060 = vmatpush1.bf16.msra.mxu0 0
        %3061 = vmatprep.subr.bf16.mxu0 0
        %3062 = vmatpush1.bf16.msra.mxu0 0
        %3063 = vmatprep.subr.bf16.mxu0 0
        %3064 = vmatpush1.bf16.msra.mxu0 0
        %3065 = vmatprep.subr.bf16.mxu0 0
        %3066 = vmatpush1.bf16.msra.mxu0 0
        %3067 = vmatprep.subr.bf16.mxu0 0
        %3068 = vmatpush1.bf16.msra.mxu0 0
        %3069 = vmatprep.subr.bf16.mxu0 0
        %3070 = vmatpush1.bf16.msra.mxu0 0
        %3071 = vmatprep.subr.bf16.mxu0 0
        %3072 = vmatpush1.bf16.msra.mxu0 0
        %3073 = vmatprep.subr.bf16.mxu0 0
        %3074 = vmatpush1.bf16.msra.mxu0 0
        %3075 = vmatprep.subr.bf16.mxu0 0
        %3076 = vmatpush1.bf16.msra.mxu0 0
        %3077 = vmatprep.subr.bf16.mxu0 0
        %3078 = vmatpush1.bf16.msra.mxu0 0
        %3079 = vmatprep.subr.bf16.mxu0 0
        %3080 = vmatpush1.bf16.msra.mxu0 0
        %3081 = vmatprep.mubr.bf16.mxu0 0
        %3082 = vmatmul.mubr.bf16.gmra.mrb[0].mxu0 %v3038
        %v3083 = vpop.f32.mrb[0].mxu0
        %v3084 = vadd.f32 0.0, %v3083
        %v3085 = vpop.f32.mrb[0].mxu0
        %v3086 = vpop.f32.mrb[0].mxu0
        %v3087 = vadd.f32 0.0, %v3086
        %v3088 = vpop.f32.mrb[0].mxu0
        %3089 = vmatprep.mubr.bf16.mxu0 0
        %3090 = vmatmul.mubr.bf16.gmra.mrb[0].mxu0 %v3041
        %v3091 = vpop.f32.mrb[0].mxu0
        %v3092 = vadd.f32 0.0, %v3091
        %v3093 = vpop.f32.mrb[0].mxu0
        %v3094 = vpop.f32.mrb[0].mxu0
        %v3095 = vadd.f32 0.0, %v3094
        %v3096 = vpop.f32.mrb[0].mxu0
        %3097 = vmatprep.mubr.bf16.mxu0 0
        %3098 = vmatmul.mubr.bf16.gmra.mrb[0].mxu0 %v3044
        %v3099 = vpop.f32.mrb[0].mxu0
        %v3100 = vadd.f32 0.0, %v3099
        %v3101 = vpop.f32.mrb[0].mxu0
        %v3102 = vpop.f32.mrb[0].mxu0
        %v3103 = vadd.f32 0.0, %v3102
        %v3104 = vpop.f32.mrb[0].mxu0
        %3105 = vmatprep.mubr.bf16.mxu0 0
        %3106 = vmatmul.mubr.bf16.gmra.mrb[0].mxu0 %v3047
        %v3107 = vpop.f32.mrb[0].mxu0
        %v3108 = vadd.f32 0.0, %v3107
        %v3109 = vpop.f32.mrb[0].mxu0
        %v3110 = vpop.f32.mrb[0].mxu0
        %v3111 = vadd.f32 0.0, %v3110
        %v3112 = vpop.f32.mrb[0].mxu0
        %3113 = vdwg.mxu0
        %3114 = vst [vmem:[#allocation3 + $0x80] sm:$0xff] %v3084
        %3115 = vst [vmem:[#allocation3 + $0x90] sm:$0xff] %v3087
        %3116 = vst [vmem:[#allocation3 + $0xa0] sm:$0xff] %v3092
        %3117 = vst [vmem:[#allocation3 + $0xb0] sm:$0xff] %v3095
        %3118 = vst [vmem:[#allocation3 + $0xc0] sm:$0xff] %v3100
        %3119 = vst [vmem:[#allocation3 + $0xd0] sm:$0xff] %v3103
        %3120 = vst [vmem:[#allocation3 + $0xe0] sm:$0xff] %v3108
        %3121 = vst [vmem:[#allocation3 + $0xf0] sm:$0xff] %v3111
        %v3122 = vpack.c.bf16 %v2077, %v2073
        %v3123 = vpack.c.bf16 %v2087, %v2083
        %v3124 = vpack.c.bf16 %v2097, %v2093
        %v3125 = vpack.c.bf16 %v2107, %v2103
        %v3126 = vpack.c.bf16 %v2190, %v2186
        %v3127 = vpack.c.bf16 %v2200, %v2196
        %v3128 = vpack.c.bf16 %v2210, %v2206
        %v3129 = vpack.c.bf16 %v2220, %v2216
        %v3130 = vpack.c.bf16 %v2303, %v2299
        %v3131 = vpack.c.bf16 %v2313, %v2309
        %v3132 = vpack.c.bf16 %v2323, %v2319
        %v3133 = vpack.c.bf16 %v2333, %v2329
        %3134 = vmatprep.subr.bf16.mxu0 0
        %3135 = vmatpush1.bf16.xpose.msra.mxu0 %v3126
        %3136 = vmatprep.subr.bf16.mxu0 0
        %3137 = vmatpush1.bf16.xpose.msra.mxu0 %v3127
        %3138 = vmatprep.subr.bf16.mxu0 0
        %3139 = vmatpush1.bf16.xpose.msra.mxu0 %v3128
        %3140 = vmatprep.subr.bf16.mxu0 0
        %3141 = vmatpush1.bf16.xpose.msra.mxu0 %v3129
        %3142 = vmatprep.subr.bf16.mxu0 0
        %3143 = vmatpush1.bf16.xpose.msra.mxu0 0
        %3144 = vmatprep.subr.bf16.mxu0 0
        %3145 = vmatpush1.bf16.xpose.msra.mxu0 0
        %3146 = vmatprep.subr.bf16.mxu0 0
        %3147 = vmatpush1.bf16.xpose.msra.mxu0 0
        %3148 = vmatprep.subr.bf16.mxu0 0
        %3149 = vmatpush1.bf16.xpose.msra.mxu0 0
        %3150 = vmatprep.subr.bf16.mxu0 0
        %3151 = vmatpush1.bf16.xpose.msra.mxu0 0
        %3152 = vmatprep.subr.bf16.mxu0 0
        %3153 = vmatpush1.bf16.xpose.msra.mxu0 0
        %3154 = vmatprep.subr.bf16.mxu0 0
        %3155 = vmatpush1.bf16.xpose.msra.mxu0 0
        %3156 = vmatprep.subr.bf16.mxu0 0
        %3157 = vmatpush1.bf16.xpose.msra.mxu0 0
        %3158 = vmatprep.subr.bf16.mxu0 0
        %3159 = vmatpush1.bf16.xpose.msra.mxu0 0
        %3160 = vmatprep.subr.bf16.mxu0 0
        %3161 = vmatpush1.bf16.xpose.msra.mxu0 0
        %3162 = vmatprep.subr.bf16.mxu0 0
        %3163 = vmatpush1.bf16.xpose.msra.mxu0 0
        %3164 = vmatprep.subr.bf16.mxu0 0
        %3165 = vmatpush1.bf16.xpose.msra.mxu0 0
        %3166 = vmatprep.mubr.bf16.mxu0 0
        %3167 = vmatmul.mubr.bf16.gmra.mrb[0].mxu0 %v3122
        %v3168 = vpop.f32.mrb[0].mxu0
        %v3169 = vadd.f32 0.0, %v3168
        %v3170 = vpop.f32.mrb[0].mxu0
        %v3171 = vpop.f32.mrb[0].mxu0
        %v3172 = vadd.f32 0.0, %v3171
        %v3173 = vpop.f32.mrb[0].mxu0
        %3174 = vmatprep.mubr.bf16.mxu0 0
        %3175 = vmatmul.mubr.bf16.gmra.mrb[0].mxu0 %v3123
        %v3176 = vpop.f32.mrb[0].mxu0
        %v3177 = vadd.f32 0.0, %v3176
        %v3178 = vpop.f32.mrb[0].mxu0
        %v3179 = vpop.f32.mrb[0].mxu0
        %v3180 = vadd.f32 0.0, %v3179
        %v3181 = vpop.f32.mrb[0].mxu0
        %3182 = vmatprep.mubr.bf16.mxu0 0
        %3183 = vmatmul.mubr.bf16.gmra.mrb[0].mxu0 %v3124
        %v3184 = vpop.f32.mrb[0].mxu0
        %v3185 = vadd.f32 0.0, %v3184
        %v3186 = vpop.f32.mrb[0].mxu0
        %v3187 = vpop.f32.mrb[0].mxu0
        %v3188 = vadd.f32 0.0, %v3187
        %v3189 = vpop.f32.mrb[0].mxu0
        %3190 = vmatprep.mubr.bf16.mxu0 0
        %3191 = vmatmul.mubr.bf16.gmra.mrb[0].mxu0 %v3125
        %v3192 = vpop.f32.mrb[0].mxu0
        %v3193 = vadd.f32 0.0, %v3192
        %v3194 = vpop.f32.mrb[0].mxu0
        %v3195 = vpop.f32.mrb[0].mxu0
        %v3196 = vadd.f32 0.0, %v3195
        %v3197 = vpop.f32.mrb[0].mxu0
        %3198 = vdwg.mxu0
        %v3199 = vmul.f32 %v3169, 0.088388346
        %v3200 = vmul.f32 %v3172, 0.088388346
        %v3201 = vmul.f32 %v3177, 0.088388346
        %v3202 = vmul.f32 %v3180, 0.088388346
        %v3203 = vmul.f32 %v3185, 0.088388346
        %v3204 = vmul.f32 %v3188, 0.088388346
        %v3205 = vmul.f32 %v3193, 0.088388346
        %v3206 = vmul.f32 %v3196, 0.088388346
        %v3207 = vsel %vm2420, %v3199, -inf
        %3208 = vmax.xlane.f32.xlu0 %v3207
        %v3209 = vpop.xlane.xlu0 %3208
        %v3210 = vsel %vm2420, %v3200, -inf
        %3211 = vmax.xlane.f32.xlu0 %v3210
        %v3212 = vpop.xlane.xlu0 %3211
        %v3213 = vsel %vm2420, %v3201, -inf
        %3214 = vmax.xlane.f32.xlu0 %v3213
        %v3215 = vpop.xlane.xlu0 %3214
        %v3216 = vsel %vm2420, %v3202, -inf
        %3217 = vmax.xlane.f32.xlu0 %v3216
        %v3218 = vpop.xlane.xlu0 %3217
        %v3219 = vsel %vm2420, %v3203, -inf
        %3220 = vmax.xlane.f32.xlu0 %v3219
        %v3221 = vpop.xlane.xlu0 %3220
        %v3222 = vsel %vm2420, %v3204, -inf
        %3223 = vmax.xlane.f32.xlu0 %v3222
        %v3224 = vpop.xlane.xlu0 %3223
        %v3225 = vsel %vm2420, %v3205, -inf
        %3226 = vmax.xlane.f32.xlu0 %v3225
        %v3227 = vpop.xlane.xlu0 %3226
        %v3228 = vsel %vm2420, %v3206, -inf
        %3229 = vmax.xlane.f32.xlu0 %v3228
        %v3230 = vpop.xlane.xlu0 %3229
        %v3231 = vsub.f32 %v3199, %v3209
        %v3232 = vsub.f32 %v3200, %v3212
        %v3233 = vsub.f32 %v3201, %v3215
        %v3234 = vsub.f32 %v3202, %v3218
        %v3235 = vsub.f32 %v3203, %v3221
        %v3236 = vsub.f32 %v3204, %v3224
        %v3237 = vsub.f32 %v3205, %v3227
        %v3238 = vsub.f32 %v3206, %v3230
        %v3239 = vmul.f32 %v3231, 1.442695
        %v3240 = vpow.pop %v3239
        %v3241 = vmul.f32 %v3232, 1.442695
        %v3242 = vpow.pop %v3241
        %v3243 = vmul.f32 %v3233, 1.442695
        %v3244 = vpow.pop %v3243
        %v3245 = vmul.f32 %v3234, 1.442695
        %v3246 = vpow.pop %v3245
        %v3247 = vmul.f32 %v3235, 1.442695
        %v3248 = vpow.pop %v3247
        %v3249 = vmul.f32 %v3236, 1.442695
        %v3250 = vpow.pop %v3249
        %v3251 = vmul.f32 %v3237, 1.442695
        %v3252 = vpow.pop %v3251
        %v3253 = vmul.f32 %v3238, 1.442695
        %v3254 = vpow.pop %v3253
        %v3255 = vsel %vm2420, %v3240, 0.0
        %3256 = vadd.xlane.f32.xlu0 %v3255
        %v3257 = vpop.xlane.xlu0 %3256
        %v3258 = vsel %vm2420, %v3242, 0.0
        %3259 = vadd.xlane.f32.xlu0 %v3258
        %v3260 = vpop.xlane.xlu0 %3259
        %v3261 = vsel %vm2420, %v3244, 0.0
        %3262 = vadd.xlane.f32.xlu0 %v3261
        %v3263 = vpop.xlane.xlu0 %3262
        %v3264 = vsel %vm2420, %v3246, 0.0
        %3265 = vadd.xlane.f32.xlu0 %v3264
        %v3266 = vpop.xlane.xlu0 %3265
        %v3267 = vsel %vm2420, %v3248, 0.0
        %3268 = vadd.xlane.f32.xlu0 %v3267
        %v3269 = vpop.xlane.xlu0 %3268
        %v3270 = vsel %vm2420, %v3250, 0.0
        %3271 = vadd.xlane.f32.xlu0 %v3270
        %v3272 = vpop.xlane.xlu0 %3271
        %v3273 = vsel %vm2420, %v3252, 0.0
        %3274 = vadd.xlane.f32.xlu0 %v3273
        %v3275 = vpop.xlane.xlu0 %3274
        %v3276 = vsel %vm2420, %v3254, 0.0
        %3277 = vadd.xlane.f32.xlu0 %v3276
        %v3278 = vpop.xlane.xlu0 %3277
        %v3279 = vrcp.pop %v3257
        %v3280 = vrcp.pop %v3260
        %v3281 = vrcp.pop %v3263
        %v3282 = vrcp.pop %v3266
        %v3283 = vrcp.pop %v3269
        %v3284 = vrcp.pop %v3272
        %v3285 = vrcp.pop %v3275
        %v3286 = vrcp.pop %v3278
        %v3287 = vmul.f32 %v3240, %v3279
        %v3288 = vmul.f32 %v3242, %v3280
        %v3289 = vmul.f32 %v3244, %v3281
        %v3290 = vmul.f32 %v3246, %v3282
        %v3291 = vmul.f32 %v3248, %v3283
        %v3292 = vmul.f32 %v3250, %v3284
        %v3293 = vmul.f32 %v3252, %v3285
        %v3294 = vmul.f32 %v3254, %v3286
        %v3295 = vpack.c.bf16 %v3288, %v3287
        %v3296 = vpack.c.bf16 %v3290, %v3289
        %v3297 = vpack.c.bf16 %v3292, %v3291
        %v3298 = vpack.c.bf16 %v3294, %v3293
        %v3300 = vsel %vm2420, %v3295, 0
        %v3303 = vsel %vm2420, %v3296, 0
        %v3306 = vsel %vm2420, %v3297, 0
        %v3309 = vsel %vm2420, %v3298, 0
        %3311 = vmatprep.subr.bf16.mxu0 0
        %3312 = vmatpush1.bf16.msra.mxu0 %v3130
        %3313 = vmatprep.subr.bf16.mxu0 0
        %3314 = vmatpush1.bf16.msra.mxu0 %v3131
        %3315 = vmatprep.subr.bf16.mxu0 0
        %3316 = vmatpush1.bf16.msra.mxu0 %v3132
        %3317 = vmatprep.subr.bf16.mxu0 0
        %3318 = vmatpush1.bf16.msra.mxu0 %v3133
        %3319 = vmatprep.subr.bf16.mxu0 0
        %3320 = vmatpush1.bf16.msra.mxu0 0
        %3321 = vmatprep.subr.bf16.mxu0 0
        %3322 = vmatpush1.bf16.msra.mxu0 0
        %3323 = vmatprep.subr.bf16.mxu0 0
        %3324 = vmatpush1.bf16.msra.mxu0 0
        %3325 = vmatprep.subr.bf16.mxu0 0
        %3326 = vmatpush1.bf16.msra.mxu0 0
        %3327 = vmatprep.subr.bf16.mxu0 0
        %3328 = vmatpush1.bf16.msra.mxu0 0
        %3329 = vmatprep.subr.bf16.mxu0 0
        %3330 = vmatpush1.bf16.msra.mxu0 0
        %3331 = vmatprep.subr.bf16.mxu0 0
        %3332 = vmatpush1.bf16.msra.mxu0 0
        %3333 = vmatprep.subr.bf16.mxu0 0
        %3334 = vmatpush1.bf16.msra.mxu0 0
        %3335 = vmatprep.subr.bf16.mxu0 0
        %3336 = vmatpush1.bf16.msra.mxu0 0
        %3337 = vmatprep.subr.bf16.mxu0 0
        %3338 = vmatpush1.bf16.msra.mxu0 0
        %3339 = vmatprep.subr.bf16.mxu0 0
        %3340 = vmatpush1.bf16.msra.mxu0 0
        %3341 = vmatprep.subr.bf16.mxu0 0
        %3342 = vmatpush1.bf16.msra.mxu0 0
        %3343 = vmatprep.mubr.bf16.mxu0 0
        %3344 = vmatmul.mubr.bf16.gmra.mrb[0].mxu0 %v3300
        %v3345 = vpop.f32.mrb[0].mxu0
        %v3346 = vadd.f32 0.0, %v3345
        %v3347 = vpop.f32.mrb[0].mxu0
        %v3348 = vpop.f32.mrb[0].mxu0
        %v3349 = vadd.f32 0.0, %v3348
        %v3350 = vpop.f32.mrb[0].mxu0
        %3351 = vmatprep.mubr.bf16.mxu0 0
        %3352 = vmatmul.mubr.bf16.gmra.mrb[0].mxu0 %v3303
        %v3353 = vpop.f32.mrb[0].mxu0
        %v3354 = vadd.f32 0.0, %v3353
        %v3355 = vpop.f32.mrb[0].mxu0
        %v3356 = vpop.f32.mrb[0].mxu0
        %v3357 = vadd.f32 0.0, %v3356
        %v3358 = vpop.f32.mrb[0].mxu0
        %3359 = vmatprep.mubr.bf16.mxu0 0
        %3360 = vmatmul.mubr.bf16.gmra.mrb[0].mxu0 %v3306
        %v3361 = vpop.f32.mrb[0].mxu0
        %v3362 = vadd.f32 0.0, %v3361
        %v3363 = vpop.f32.mrb[0].mxu0
        %v3364 = vpop.f32.mrb[0].mxu0
        %v3365 = vadd.f32 0.0, %v3364
        %v3366 = vpop.f32.mrb[0].mxu0
        %3367 = vmatprep.mubr.bf16.mxu0 0
        %3368 = vmatmul.mubr.bf16.gmra.mrb[0].mxu0 %v3309
        %v3369 = vpop.f32.mrb[0].mxu0
        %v3370 = vadd.f32 0.0, %v3369
        %v3371 = vpop.f32.mrb[0].mxu0
        %v3372 = vpop.f32.mrb[0].mxu0
        %v3373 = vadd.f32 0.0, %v3372
        %v3374 = vpop.f32.mrb[0].mxu0
        %3375 = vdwg.mxu0
        %3376 = vst [vmem:[#allocation3 + $0x88] sm:$0xff] %v3346
        %3377 = vst [vmem:[#allocation3 + $0x98] sm:$0xff] %v3349
        %3378 = vst [vmem:[#allocation3 + $0xa8] sm:$0xff] %v3354
        %3379 = vst [vmem:[#allocation3 + $0xb8] sm:$0xff] %v3357
        %3380 = vst [vmem:[#allocation3 + $0xc8] sm:$0xff] %v3362
        %3381 = vst [vmem:[#allocation3 + $0xd8] sm:$0xff] %v3365
        %3382 = vst [vmem:[#allocation3 + $0xe8] sm:$0xff] %v3370
        %3383 = vst [vmem:[#allocation3 + $0xf8] sm:$0xff] %v3373
        %v3384 = vld [vmem:[#allocation3] sm:$0xff]
        %v3385 = vld [vmem:[#allocation3 + $0x8] sm:$0xff]
        %v3386 = vld [vmem:[#allocation3 + $0x10] sm:$0xff]
        %v3387 = vld [vmem:[#allocation3 + $0x18] sm:$0xff]
        %v3388 = vld [vmem:[#allocation3 + $0x20] sm:$0xff]
        %v3389 = vld [vmem:[#allocation3 + $0x28] sm:$0xff]
        %v3390 = vld [vmem:[#allocation3 + $0x30] sm:$0xff]
        %v3391 = vld [vmem:[#allocation3 + $0x38] sm:$0xff]
        %v3392 = vld [vmem:[#allocation3 + $0x40] sm:$0xff]
        %v3393 = vld [vmem:[#allocation3 + $0x48] sm:$0xff]
        %v3394 = vld [vmem:[#allocation3 + $0x50] sm:$0xff]
        %v3395 = vld [vmem:[#allocation3 + $0x58] sm:$0xff]
        %v3396 = vld [vmem:[#allocation3 + $0x60] sm:$0xff]
        %v3397 = vld [vmem:[#allocation3 + $0x68] sm:$0xff]
        %v3398 = vld [vmem:[#allocation3 + $0x70] sm:$0xff]
        %v3399 = vld [vmem:[#allocation3 + $0x78] sm:$0xff]
        %v3400 = vld [vmem:[#allocation3 + $0x80] sm:$0xff]
        %v3401 = vld [vmem:[#allocation3 + $0x88] sm:$0xff]
        %v3402 = vld [vmem:[#allocation3 + $0x90] sm:$0xff]
        %v3403 = vld [vmem:[#allocation3 + $0x98] sm:$0xff]
        %v3404 = vld [vmem:[#allocation3 + $0xa0] sm:$0xff]
        %v3405 = vld [vmem:[#allocation3 + $0xa8] sm:$0xff]
        %v3406 = vld [vmem:[#allocation3 + $0xb0] sm:$0xff]
        %v3407 = vld [vmem:[#allocation3 + $0xb8] sm:$0xff]
        %v3408 = vld [vmem:[#allocation3 + $0xc0] sm:$0xff]
        %v3409 = vld [vmem:[#allocation3 + $0xc8] sm:$0xff]
        %v3410 = vld [vmem:[#allocation3 + $0xd0] sm:$0xff]
        %v3411 = vld [vmem:[#allocation3 + $0xd8] sm:$0xff]
        %v3412 = vld [vmem:[#allocation3 + $0xe0] sm:$0xff]
        %v3413 = vld [vmem:[#allocation3 + $0xe8] sm:$0xff]
        %v3414 = vld [vmem:[#allocation3 + $0xf0] sm:$0xff]
        %v3415 = vld [vmem:[#allocation3 + $0xf8] sm:$0xff]
        %v3416 = vpack.c.bf16 %v3386, %v3384
        %v3417 = vpack.c.bf16 %v3387, %v3385
        %v3418 = vpack.c.bf16 %v3390, %v3388
        %v3419 = vpack.c.bf16 %v3391, %v3389
        %v3420 = vpack.c.bf16 %v3394, %v3392
        %v3421 = vpack.c.bf16 %v3395, %v3393
        %v3422 = vpack.c.bf16 %v3398, %v3396
        %v3423 = vpack.c.bf16 %v3399, %v3397
        %v3424 = vpack.c.bf16 %v3402, %v3400
        %v3425 = vpack.c.bf16 %v3403, %v3401
        %v3426 = vpack.c.bf16 %v3406, %v3404
        %v3427 = vpack.c.bf16 %v3407, %v3405
        %v3428 = vpack.c.bf16 %v3410, %v3408
        %v3429 = vpack.c.bf16 %v3411, %v3409
        %v3430 = vpack.c.bf16 %v3414, %v3412
        %v3431 = vpack.c.bf16 %v3415, %v3413
        %v3432 = vld [vmem:[%s730] sm:$0xff]
        %v3433 = vld [vmem:[%s730 + $0x8] sm:$0xff]
        %v3434 = vld [vmem:[%s730 + $0x10] sm:$0xff]
        %v3435 = vld [vmem:[%s730 + $0x18] sm:$0xff]
        %v3436 = vld [vmem:[%s730 + $0x20] sm:$0xff]
        %v3437 = vld [vmem:[%s730 + $0x28] sm:$0xff]
        %v3438 = vld [vmem:[%s730 + $0x30] sm:$0xff]
        %v3439 = vld [vmem:[%s730 + $0x38] sm:$0xff]
        %v3440 = vld [vmem:[%s730 + $0x40] sm:$0xff]
        %v3441 = vld [vmem:[%s730 + $0x48] sm:$0xff]
        %v3442 = vld [vmem:[%s730 + $0x50] sm:$0xff]
        %v3443 = vld [vmem:[%s730 + $0x58] sm:$0xff]
        %v3444 = vld [vmem:[%s730 + $0x60] sm:$0xff]
        %v3445 = vld [vmem:[%s730 + $0x68] sm:$0xff]
        %v3446 = vld [vmem:[%s730 + $0x70] sm:$0xff]
        %v3447 = vld [vmem:[%s730 + $0x78] sm:$0xff]
        %v3448 = vld [vmem:[%s730 + $0x80] sm:$0xff]
        %v3449 = vld [vmem:[%s730 + $0x88] sm:$0xff]
        %v3450 = vld [vmem:[%s730 + $0x90] sm:$0xff]
        %v3451 = vld [vmem:[%s730 + $0x98] sm:$0xff]
        %v3452 = vld [vmem:[%s730 + $0xa0] sm:$0xff]
        %v3453 = vld [vmem:[%s730 + $0xa8] sm:$0xff]
        %v3454 = vld [vmem:[%s730 + $0xb0] sm:$0xff]
        %v3455 = vld [vmem:[%s730 + $0xb8] sm:$0xff]
        %v3456 = vld [vmem:[%s730 + $0xc0] sm:$0xff]
        %v3457 = vld [vmem:[%s730 + $0xc8] sm:$0xff]
        %v3458 = vld [vmem:[%s730 + $0xd0] sm:$0xff]
        %v3459 = vld [vmem:[%s730 + $0xd8] sm:$0xff]
        %v3460 = vld [vmem:[%s730 + $0xe0] sm:$0xff]
        %v3461 = vld [vmem:[%s730 + $0xe8] sm:$0xff]
        %v3462 = vld [vmem:[%s730 + $0xf0] sm:$0xff]
        %v3463 = vld [vmem:[%s730 + $0xf8] sm:$0xff]
        %v3464 = vld [vmem:[%s739] sm:$0x3]
        %v3466 = vlaneseq
        %v3467 = vshrl.u32 %v3466, 7
        %v3468 = vsub.s32 0, %v3467
        %v3469 = vrot.slane %v3464, %v3468
        %v3470 = vlaneseq
        %v3471 = vshrl.u32 %v3470, 7
        %v3472 = vsub.s32 1, %v3471
        %v3473 = vrot.slane %v3464, %v3472
        %v3508 = vunpack.c.l.b16 %v3432
        %v3509 = vunpack.c.h.b16 %v3432
        %v3510 = vunpack.c.l.b16 %v3433
        %v3511 = vunpack.c.h.b16 %v3433
        %v3512 = vunpack.c.l.b16 %v3434
        %v3513 = vunpack.c.h.b16 %v3434
        %v3514 = vunpack.c.l.b16 %v3435
        %v3515 = vunpack.c.h.b16 %v3435
        %v3516 = vunpack.c.l.b16 %v3436
        %v3517 = vunpack.c.h.b16 %v3436
        %v3518 = vunpack.c.l.b16 %v3437
        %v3519 = vunpack.c.h.b16 %v3437
        %v3520 = vunpack.c.l.b16 %v3438
        %v3521 = vunpack.c.h.b16 %v3438
        %v3522 = vunpack.c.l.b16 %v3439
        %v3523 = vunpack.c.h.b16 %v3439
        %v3524 = vunpack.c.l.b16 %v3440
        %v3525 = vunpack.c.h.b16 %v3440
        %v3526 = vunpack.c.l.b16 %v3441
        %v3527 = vunpack.c.h.b16 %v3441
        %v3528 = vunpack.c.l.b16 %v3442
        %v3529 = vunpack.c.h.b16 %v3442
        %v3530 = vunpack.c.l.b16 %v3443
        %v3531 = vunpack.c.h.b16 %v3443
        %v3532 = vunpack.c.l.b16 %v3444
        %v3533 = vunpack.c.h.b16 %v3444
        %v3534 = vunpack.c.l.b16 %v3445
        %v3535 = vunpack.c.h.b16 %v3445
        %v3536 = vunpack.c.l.b16 %v3446
        %v3537 = vunpack.c.h.b16 %v3446
        %v3538 = vunpack.c.l.b16 %v3447
        %v3539 = vunpack.c.h.b16 %v3447
        %v3540 = vunpack.c.l.b16 %v3448
        %v3541 = vunpack.c.h.b16 %v3448
        %v3542 = vunpack.c.l.b16 %v3449
        %v3543 = vunpack.c.h.b16 %v3449
        %v3544 = vunpack.c.l.b16 %v3450
        %v3545 = vunpack.c.h.b16 %v3450
        %v3546 = vunpack.c.l.b16 %v3451
        %v3547 = vunpack.c.h.b16 %v3451
        %v3548 = vunpack.c.l.b16 %v3452
        %v3549 = vunpack.c.h.b16 %v3452
        %v3550 = vunpack.c.l.b16 %v3453
        %v3551 = vunpack.c.h.b16 %v3453
        %v3552 = vunpack.c.l.b16 %v3454
        %v3553 = vunpack.c.h.b16 %v3454
        %v3554 = vunpack.c.l.b16 %v3455
        %v3555 = vunpack.c.h.b16 %v3455
        %v3556 = vunpack.c.l.b16 %v3456
        %v3557 = vunpack.c.h.b16 %v3456
        %v3558 = vunpack.c.l.b16 %v3457
        %v3559 = vunpack.c.h.b16 %v3457
        %v3560 = vunpack.c.l.b16 %v3458
        %v3561 = vunpack.c.h.b16 %v3458
        %v3562 = vunpack.c.l.b16 %v3459
        %v3563 = vunpack.c.h.b16 %v3459
        %v3564 = vunpack.c.l.b16 %v3460
        %v3565 = vunpack.c.h.b16 %v3460
        %v3566 = vunpack.c.l.b16 %v3461
        %v3567 = vunpack.c.h.b16 %v3461
        %v3568 = vunpack.c.l.b16 %v3462
        %v3569 = vunpack.c.h.b16 %v3462
        %v3570 = vunpack.c.l.b16 %v3463
        %v3571 = vunpack.c.h.b16 %v3463
        %v3572 = vpack.c.b16 %v3510, %v3508
        %v3573 = vpack.c.b16 %v3511, %v3509
        %v3574 = vpack.c.b16 %v3514, %v3512
        %v3575 = vpack.c.b16 %v3515, %v3513
        %v3576 = vpack.c.b16 %v3518, %v3516
        %v3577 = vpack.c.b16 %v3519, %v3517
        %v3578 = vpack.c.b16 %v3522, %v3520
        %v3579 = vpack.c.b16 %v3523, %v3521
        %v3580 = vpack.c.b16 %v3526, %v3524
        %v3581 = vpack.c.b16 %v3527, %v3525
        %v3582 = vpack.c.b16 %v3530, %v3528
        %v3583 = vpack.c.b16 %v3531, %v3529
        %v3584 = vpack.c.b16 %v3534, %v3532
        %v3585 = vpack.c.b16 %v3535, %v3533
        %v3586 = vpack.c.b16 %v3538, %v3536
        %v3587 = vpack.c.b16 %v3539, %v3537
        %v3588 = vpack.c.b16 %v3542, %v3540
        %v3589 = vpack.c.b16 %v3543, %v3541
        %v3590 = vpack.c.b16 %v3546, %v3544
        %v3591 = vpack.c.b16 %v3547, %v3545
        %v3592 = vpack.c.b16 %v3550, %v3548
        %v3593 = vpack.c.b16 %v3551, %v3549
        %v3594 = vpack.c.b16 %v3554, %v3552
        %v3595 = vpack.c.b16 %v3555, %v3553
        %v3596 = vpack.c.b16 %v3558, %v3556
        %v3597 = vpack.c.b16 %v3559, %v3557
        %v3598 = vpack.c.b16 %v3562, %v3560
        %v3599 = vpack.c.b16 %v3563, %v3561
        %v3600 = vpack.c.b16 %v3566, %v3564
        %v3601 = vpack.c.b16 %v3567, %v3565
        %v3602 = vpack.c.b16 %v3570, %v3568
        %v3603 = vpack.c.b16 %v3571, %v3569
        %3636 = vmatprep.subr.bf16.mxu0 %v3573
        %3637 = vmatpush1.bf16.msra.mxu0 %v3572
        %3638 = vmatprep.subr.bf16.mxu0 %v3575
        %3639 = vmatpush1.bf16.msra.mxu0 %v3574
        %3640 = vmatprep.subr.bf16.mxu0 %v3577
        %3641 = vmatpush1.bf16.msra.mxu0 %v3576
        %3642 = vmatprep.subr.bf16.mxu0 %v3579
        %3643 = vmatpush1.bf16.msra.mxu0 %v3578
        %3644 = vmatprep.subr.bf16.mxu0 %v3581
        %3645 = vmatpush1.bf16.msra.mxu0 %v3580
        %3646 = vmatprep.subr.bf16.mxu0 %v3583
        %3647 = vmatpush1.bf16.msra.mxu0 %v3582
        %3648 = vmatprep.subr.bf16.mxu0 %v3585
        %3649 = vmatpush1.bf16.msra.mxu0 %v3584
        %3650 = vmatprep.subr.bf16.mxu0 %v3587
        %3651 = vmatpush1.bf16.msra.mxu0 %v3586
        %3652 = vmatprep.subr.bf16.mxu0 %v3589
        %3653 = vmatpush1.bf16.msra.mxu0 %v3588
        %3654 = vmatprep.subr.bf16.mxu0 %v3591
        %3655 = vmatpush1.bf16.msra.mxu0 %v3590
        %3656 = vmatprep.subr.bf16.mxu0 %v3593
        %3657 = vmatpush1.bf16.msra.mxu0 %v3592
        %3658 = vmatprep.subr.bf16.mxu0 %v3595
        %3659 = vmatpush1.bf16.msra.mxu0 %v3594
        %3660 = vmatprep.subr.bf16.mxu0 %v3597
        %3661 = vmatpush1.bf16.msra.mxu0 %v3596
        %3662 = vmatprep.subr.bf16.mxu0 %v3599
        %3663 = vmatpush1.bf16.msra.mxu0 %v3598
        %3664 = vmatprep.subr.bf16.mxu0 %v3601
        %3665 = vmatpush1.bf16.msra.mxu0 %v3600
        %3666 = vmatprep.subr.bf16.mxu0 %v3603
        %3667 = vmatpush1.bf16.msra.mxu0 %v3602
        %3668 = vmatprep.mubr.bf16.mxu0 %v3417
        %3669 = vmatmul.mubr.bf16.gmra.mrb[0].mxu0 %v3416
        %v3670 = vpop.f32.mrb[0].mxu0
        %v3671 = vadd.f32 %v3469, %v3670
        %v3672 = vpop.f32.mrb[0].mxu0
        %v3673 = vadd.f32 %v3473, %v3672
        %v3674 = vpop.f32.mrb[0].mxu0
        %v3675 = vadd.f32 %v3469, %v3674
        %v3676 = vpop.f32.mrb[0].mxu0
        %v3677 = vadd.f32 %v3473, %v3676
        %3678 = vmatprep.mubr.bf16.mxu0 %v3419
        %3679 = vmatmul.mubr.bf16.gmra.mrb[0].mxu0 %v3418
        %v3680 = vpop.f32.mrb[0].mxu0
        %v3681 = vadd.f32 %v3469, %v3680
        %v3682 = vpop.f32.mrb[0].mxu0
        %v3683 = vadd.f32 %v3473, %v3682
        %v3684 = vpop.f32.mrb[0].mxu0
        %v3685 = vadd.f32 %v3469, %v3684
        %v3686 = vpop.f32.mrb[0].mxu0
        %v3687 = vadd.f32 %v3473, %v3686
        %3688 = vmatprep.mubr.bf16.mxu0 %v3421
        %3689 = vmatmul.mubr.bf16.gmra.mrb[0].mxu0 %v3420
        %v3690 = vpop.f32.mrb[0].mxu0
        %v3691 = vadd.f32 %v3469, %v3690
        %v3692 = vpop.f32.mrb[0].mxu0
        %v3693 = vadd.f32 %v3473, %v3692
        %v3694 = vpop.f32.mrb[0].mxu0
        %v3695 = vadd.f32 %v3469, %v3694
        %v3696 = vpop.f32.mrb[0].mxu0
        %v3697 = vadd.f32 %v3473, %v3696
        %3698 = vmatprep.mubr.bf16.mxu0 %v3423
        %3699 = vmatmul.mubr.bf16.gmra.mrb[0].mxu0 %v3422
        %v3700 = vpop.f32.mrb[0].mxu0
        %v3701 = vadd.f32 %v3469, %v3700
        %v3702 = vpop.f32.mrb[0].mxu0
        %v3703 = vadd.f32 %v3473, %v3702
        %v3704 = vpop.f32.mrb[0].mxu0
        %v3705 = vadd.f32 %v3469, %v3704
        %v3706 = vpop.f32.mrb[0].mxu0
        %v3707 = vadd.f32 %v3473, %v3706
        %3708 = vmatprep.mubr.bf16.mxu0 %v3425
        %3709 = vmatmul.mubr.bf16.gmra.mrb[0].mxu0 %v3424
        %v3710 = vpop.f32.mrb[0].mxu0
        %v3711 = vadd.f32 %v3469, %v3710
        %v3712 = vpop.f32.mrb[0].mxu0
        %v3713 = vadd.f32 %v3473, %v3712
        %v3714 = vpop.f32.mrb[0].mxu0
        %v3715 = vadd.f32 %v3469, %v3714
        %v3716 = vpop.f32.mrb[0].mxu0
        %v3717 = vadd.f32 %v3473, %v3716
        %3718 = vmatprep.mubr.bf16.mxu0 %v3427
        %3719 = vmatmul.mubr.bf16.gmra.mrb[0].mxu0 %v3426
        %v3720 = vpop.f32.mrb[0].mxu0
        %v3721 = vadd.f32 %v3469, %v3720
        %v3722 = vpop.f32.mrb[0].mxu0
        %v3723 = vadd.f32 %v3473, %v3722
        %v3724 = vpop.f32.mrb[0].mxu0
        %v3725 = vadd.f32 %v3469, %v3724
        %v3726 = vpop.f32.mrb[0].mxu0
        %v3727 = vadd.f32 %v3473, %v3726
        %3728 = vmatprep.mubr.bf16.mxu0 %v3429
        %3729 = vmatmul.mubr.bf16.gmra.mrb[0].mxu0 %v3428
        %v3730 = vpop.f32.mrb[0].mxu0
        %v3731 = vadd.f32 %v3469, %v3730
        %v3732 = vpop.f32.mrb[0].mxu0
        %v3733 = vadd.f32 %v3473, %v3732
        %v3734 = vpop.f32.mrb[0].mxu0
        %v3735 = vadd.f32 %v3469, %v3734
        %v3736 = vpop.f32.mrb[0].mxu0
        %v3737 = vadd.f32 %v3473, %v3736
        %3738 = vmatprep.mubr.bf16.mxu0 %v3431
        %3739 = vmatmul.mubr.bf16.gmra.mrb[0].mxu0 %v3430
        %v3740 = vpop.f32.mrb[0].mxu0
        %v3741 = vadd.f32 %v3469, %v3740
        %v3742 = vpop.f32.mrb[0].mxu0
        %v3743 = vadd.f32 %v3473, %v3742
        %v3744 = vpop.f32.mrb[0].mxu0
        %v3745 = vadd.f32 %v3469, %v3744
        %v3746 = vpop.f32.mrb[0].mxu0
        %v3747 = vadd.f32 %v3473, %v3746
        %3748 = vdwg.mxu0
        %v3749 = vadd.f32 %v964, %v3671
        %v3750 = vadd.f32 %v965, %v3673
        %v3751 = vadd.f32 %v966, %v3675
        %v3752 = vadd.f32 %v967, %v3677
        %v3753 = vadd.f32 %v968, %v3681
        %v3754 = vadd.f32 %v969, %v3683
        %v3755 = vadd.f32 %v970, %v3685
        %v3756 = vadd.f32 %v971, %v3687
        %v3757 = vadd.f32 %v972, %v3691
        %v3758 = vadd.f32 %v973, %v3693
        %v3759 = vadd.f32 %v974, %v3695
        %v3760 = vadd.f32 %v975, %v3697
        %v3761 = vadd.f32 %v976, %v3701
        %v3762 = vadd.f32 %v977, %v3703
        %v3763 = vadd.f32 %v978, %v3705
        %v3764 = vadd.f32 %v979, %v3707
        %v3765 = vadd.f32 %v980, %v3711
        %v3766 = vadd.f32 %v981, %v3713
        %v3767 = vadd.f32 %v982, %v3715
        %v3768 = vadd.f32 %v983, %v3717
        %v3769 = vadd.f32 %v984, %v3721
        %v3770 = vadd.f32 %v985, %v3723
        %v3771 = vadd.f32 %v986, %v3725
        %v3772 = vadd.f32 %v987, %v3727
        %v3773 = vadd.f32 %v988, %v3731
        %v3774 = vadd.f32 %v989, %v3733
        %v3775 = vadd.f32 %v990, %v3735
        %v3776 = vadd.f32 %v991, %v3737
        %v3777 = vadd.f32 %v992, %v3741
        %v3778 = vadd.f32 %v993, %v3743
        %v3779 = vadd.f32 %v994, %v3745
        %v3780 = vadd.f32 %v995, %v3747
        %v3781 = vld [vmem:[%s889] sm:$0x3]
        %v3782 = vld [vmem:[%s893] sm:$0x3]
        %v3783 = vadd.f32 %v3749, %v3750
        %3784 = vadd.xlane.f32.xlu0 %v3783
        %v3785 = vpop.xlane.xlu0 %3784
        %v3786 = vadd.f32 %v3751, %v3752
        %3787 = vadd.xlane.f32.xlu0 %v3786
        %v3788 = vpop.xlane.xlu0 %3787
        %v3789 = vadd.f32 %v3753, %v3754
        %3790 = vadd.xlane.f32.xlu0 %v3789
        %v3791 = vpop.xlane.xlu0 %3790
        %v3792 = vadd.f32 %v3755, %v3756
        %3793 = vadd.xlane.f32.xlu0 %v3792
        %v3794 = vpop.xlane.xlu0 %3793
        %v3795 = vadd.f32 %v3757, %v3758
        %3796 = vadd.xlane.f32.xlu0 %v3795
        %v3797 = vpop.xlane.xlu0 %3796
        %v3798 = vadd.f32 %v3759, %v3760
        %3799 = vadd.xlane.f32.xlu0 %v3798
        %v3800 = vpop.xlane.xlu0 %3799
        %v3801 = vadd.f32 %v3761, %v3762
        %3802 = vadd.xlane.f32.xlu0 %v3801
        %v3803 = vpop.xlane.xlu0 %3802
        %v3804 = vadd.f32 %v3763, %v3764
        %3805 = vadd.xlane.f32.xlu0 %v3804
        %v3806 = vpop.xlane.xlu0 %3805
        %v3807 = vadd.f32 %v3765, %v3766
        %3808 = vadd.xlane.f32.xlu0 %v3807
        %v3809 = vpop.xlane.xlu0 %3808
        %v3810 = vadd.f32 %v3767, %v3768
        %3811 = vadd.xlane.f32.xlu0 %v3810
        %v3812 = vpop.xlane.xlu0 %3811
        %v3813 = vadd.f32 %v3769, %v3770
        %3814 = vadd.xlane.f32.xlu0 %v3813
        %v3815 = vpop.xlane.xlu0 %3814
        %v3816 = vadd.f32 %v3771, %v3772
        %3817 = vadd.xlane.f32.xlu0 %v3816
        %v3818 = vpop.xlane.xlu0 %3817
        %v3819 = vadd.f32 %v3773, %v3774
        %3820 = vadd.xlane.f32.xlu0 %v3819
        %v3821 = vpop.xlane.xlu0 %3820
        %v3822 = vadd.f32 %v3775, %v3776
        %3823 = vadd.xlane.f32.xlu0 %v3822
        %v3824 = vpop.xlane.xlu0 %3823
        %v3825 = vadd.f32 %v3777, %v3778
        %3826 = vadd.xlane.f32.xlu0 %v3825
        %v3827 = vpop.xlane.xlu0 %3826
        %v3828 = vadd.f32 %v3779, %v3780
        %3829 = vadd.xlane.f32.xlu0 %v3828
        %v3830 = vpop.xlane.xlu0 %3829
        %v3831 = vmul.f32 %v3749, %v3749
        %v3832 = vmul.f32 %v3750, %v3750
        %v3833 = vmul.f32 %v3751, %v3751
        %v3834 = vmul.f32 %v3752, %v3752
        %v3835 = vmul.f32 %v3753, %v3753
        %v3836 = vmul.f32 %v3754, %v3754
        %v3837 = vmul.f32 %v3755, %v3755
        %v3838 = vmul.f32 %v3756, %v3756
        %v3839 = vmul.f32 %v3757, %v3757
        %v3840 = vmul.f32 %v3758, %v3758
        %v3841 = vmul.f32 %v3759, %v3759
        %v3842 = vmul.f32 %v3760, %v3760
        %v3843 = vmul.f32 %v3761, %v3761
        %v3844 = vmul.f32 %v3762, %v3762
        %v3845 = vmul.f32 %v3763, %v3763
        %v3846 = vmul.f32 %v3764, %v3764
        %v3847 = vmul.f32 %v3765, %v3765
        %v3848 = vmul.f32 %v3766, %v3766
        %v3849 = vmul.f32 %v3767, %v3767
        %v3850 = vmul.f32 %v3768, %v3768
        %v3851 = vmul.f32 %v3769, %v3769
        %v3852 = vmul.f32 %v3770, %v3770
        %v3853 = vmul.f32 %v3771, %v3771
        %v3854 = vmul.f32 %v3772, %v3772
        %v3855 = vmul.f32 %v3773, %v3773
        %v3856 = vmul.f32 %v3774, %v3774
        %v3857 = vmul.f32 %v3775, %v3775
        %v3858 = vmul.f32 %v3776, %v3776
        %v3859 = vmul.f32 %v3777, %v3777
        %v3860 = vmul.f32 %v3778, %v3778
        %v3861 = vmul.f32 %v3779, %v3779
        %v3862 = vmul.f32 %v3780, %v3780
        %v3863 = vadd.f32 %v3831, %v3832
        %3864 = vadd.xlane.f32.xlu0 %v3863
        %v3865 = vpop.xlane.xlu0 %3864
        %v3866 = vadd.f32 %v3833, %v3834
        %3867 = vadd.xlane.f32.xlu0 %v3866
        %v3868 = vpop.xlane.xlu0 %3867
        %v3869 = vadd.f32 %v3835, %v3836
        %3870 = vadd.xlane.f32.xlu0 %v3869
        %v3871 = vpop.xlane.xlu0 %3870
        %v3872 = vadd.f32 %v3837, %v3838
        %3873 = vadd.xlane.f32.xlu0 %v3872
        %v3874 = vpop.xlane.xlu0 %3873
        %v3875 = vadd.f32 %v3839, %v3840
        %3876 = vadd.xlane.f32.xlu0 %v3875
        %v3877 = vpop.xlane.xlu0 %3876
        %v3878 = vadd.f32 %v3841, %v3842
        %3879 = vadd.xlane.f32.xlu0 %v3878
        %v3880 = vpop.xlane.xlu0 %3879
        %v3881 = vadd.f32 %v3843, %v3844
        %3882 = vadd.xlane.f32.xlu0 %v3881
        %v3883 = vpop.xlane.xlu0 %3882
        %v3884 = vadd.f32 %v3845, %v3846
        %3885 = vadd.xlane.f32.xlu0 %v3884
        %v3886 = vpop.xlane.xlu0 %3885
        %v3887 = vadd.f32 %v3847, %v3848
        %3888 = vadd.xlane.f32.xlu0 %v3887
        %v3889 = vpop.xlane.xlu0 %3888
        %v3890 = vadd.f32 %v3849, %v3850
        %3891 = vadd.xlane.f32.xlu0 %v3890
        %v3892 = vpop.xlane.xlu0 %3891
        %v3893 = vadd.f32 %v3851, %v3852
        %3894 = vadd.xlane.f32.xlu0 %v3893
        %v3895 = vpop.xlane.xlu0 %3894
        %v3896 = vadd.f32 %v3853, %v3854
        %3897 = vadd.xlane.f32.xlu0 %v3896
        %v3898 = vpop.xlane.xlu0 %3897
        %v3899 = vadd.f32 %v3855, %v3856
        %3900 = vadd.xlane.f32.xlu0 %v3899
        %v3901 = vpop.xlane.xlu0 %3900
        %v3902 = vadd.f32 %v3857, %v3858
        %3903 = vadd.xlane.f32.xlu0 %v3902
        %v3904 = vpop.xlane.xlu0 %3903
        %v3905 = vadd.f32 %v3859, %v3860
        %3906 = vadd.xlane.f32.xlu0 %v3905
        %v3907 = vpop.xlane.xlu0 %3906
        %v3908 = vadd.f32 %v3861, %v3862
        %3909 = vadd.xlane.f32.xlu0 %v3908
        %v3910 = vpop.xlane.xlu0 %3909
        %v3911 = vmul.f32 %v3785, 0.00390625
        %v3912 = vmul.f32 %v3788, 0.00390625
        %v3913 = vmul.f32 %v3791, 0.00390625
        %v3914 = vmul.f32 %v3794, 0.00390625
        %v3915 = vmul.f32 %v3797, 0.00390625
        %v3916 = vmul.f32 %v3800, 0.00390625
        %v3917 = vmul.f32 %v3803, 0.00390625
        %v3918 = vmul.f32 %v3806, 0.00390625
        %v3919 = vmul.f32 %v3809, 0.00390625
        %v3920 = vmul.f32 %v3812, 0.00390625
        %v3921 = vmul.f32 %v3815, 0.00390625
        %v3922 = vmul.f32 %v3818, 0.00390625
        %v3923 = vmul.f32 %v3821, 0.00390625
        %v3924 = vmul.f32 %v3824, 0.00390625
        %v3925 = vmul.f32 %v3827, 0.00390625
        %v3926 = vmul.f32 %v3830, 0.00390625
        %v3927 = vmul.f32 %v3865, 0.00390625
        %v3928 = vmul.f32 %v3868, 0.00390625
        %v3929 = vmul.f32 %v3871, 0.00390625
        %v3930 = vmul.f32 %v3874, 0.00390625
        %v3931 = vmul.f32 %v3877, 0.00390625
        %v3932 = vmul.f32 %v3880, 0.00390625
        %v3933 = vmul.f32 %v3883, 0.00390625
        %v3934 = vmul.f32 %v3886, 0.00390625
        %v3935 = vmul.f32 %v3889, 0.00390625
        %v3936 = vmul.f32 %v3892, 0.00390625
        %v3937 = vmul.f32 %v3895, 0.00390625
        %v3938 = vmul.f32 %v3898, 0.00390625
        %v3939 = vmul.f32 %v3901, 0.00390625
        %v3940 = vmul.f32 %v3904, 0.00390625
        %v3941 = vmul.f32 %v3907, 0.00390625
        %v3942 = vmul.f32 %v3910, 0.00390625
        %v3943 = vmul.f32 %v3911, %v3911
        %v3944 = vmul.f32 %v3912, %v3912
        %v3945 = vmul.f32 %v3913, %v3913
        %v3946 = vmul.f32 %v3914, %v3914
        %v3947 = vmul.f32 %v3915, %v3915
        %v3948 = vmul.f32 %v3916, %v3916
        %v3949 = vmul.f32 %v3917, %v3917
        %v3950 = vmul.f32 %v3918, %v3918
        %v3951 = vmul.f32 %v3919, %v3919
        %v3952 = vmul.f32 %v3920, %v3920
        %v3953 = vmul.f32 %v3921, %v3921
        %v3954 = vmul.f32 %v3922, %v3922
        %v3955 = vmul.f32 %v3923, %v3923
        %v3956 = vmul.f32 %v3924, %v3924
        %v3957 = vmul.f32 %v3925, %v3925
        %v3958 = vmul.f32 %v3926, %v3926
        %v3959 = vsub.f32 %v3927, %v3943
        %v3960 = vsub.f32 %v3928, %v3944
        %v3961 = vsub.f32 %v3929, %v3945
        %v3962 = vsub.f32 %v3930, %v3946
        %v3963 = vsub.f32 %v3931, %v3947
        %v3964 = vsub.f32 %v3932, %v3948
        %v3965 = vsub.f32 %v3933, %v3949
        %v3966 = vsub.f32 %v3934, %v3950
        %v3967 = vsub.f32 %v3935, %v3951
        %v3968 = vsub.f32 %v3936, %v3952
        %v3969 = vsub.f32 %v3937, %v3953
        %v3970 = vsub.f32 %v3938, %v3954
        %v3971 = vsub.f32 %v3939, %v3955
        %v3972 = vsub.f32 %v3940, %v3956
        %v3973 = vsub.f32 %v3941, %v3957
        %v3974 = vsub.f32 %v3942, %v3958
        %v3975 = vsub.f32 %v3749, %v3911
        %v3976 = vsub.f32 %v3750, %v3911
        %v3977 = vsub.f32 %v3751, %v3912
        %v3978 = vsub.f32 %v3752, %v3912
        %v3979 = vsub.f32 %v3753, %v3913
        %v3980 = vsub.f32 %v3754, %v3913
        %v3981 = vsub.f32 %v3755, %v3914
        %v3982 = vsub.f32 %v3756, %v3914
        %v3983 = vsub.f32 %v3757, %v3915
        %v3984 = vsub.f32 %v3758, %v3915
        %v3985 = vsub.f32 %v3759, %v3916
        %v3986 = vsub.f32 %v3760, %v3916
        %v3987 = vsub.f32 %v3761, %v3917
        %v3988 = vsub.f32 %v3762, %v3917
        %v3989 = vsub.f32 %v3763, %v3918
        %v3990 = vsub.f32 %v3764, %v3918
        %v3991 = vsub.f32 %v3765, %v3919
        %v3992 = vsub.f32 %v3766, %v3919
        %v3993 = vsub.f32 %v3767, %v3920
        %v3994 = vsub.f32 %v3768, %v3920
        %v3995 = vsub.f32 %v3769, %v3921
        %v3996 = vsub.f32 %v3770, %v3921
        %v3997 = vsub.f32 %v3771, %v3922
        %v3998 = vsub.f32 %v3772, %v3922
        %v3999 = vsub.f32 %v3773, %v3923
        %v4000 = vsub.f32 %v3774, %v3923
        %v4001 = vsub.f32 %v3775, %v3924
        %v4002 = vsub.f32 %v3776, %v3924
        %v4003 = vsub.f32 %v3777, %v3925
        %v4004 = vsub.f32 %v3778, %v3925
        %v4005 = vsub.f32 %v3779, %v3926
        %v4006 = vsub.f32 %v3780, %v3926
        %v4007 = vadd.f32 %v3959, 1e-05
        %v4008 = vadd.f32 %v3960, 1e-05
        %v4009 = vadd.f32 %v3961, 1e-05
        %v4010 = vadd.f32 %v3962, 1e-05
        %v4011 = vadd.f32 %v3963, 1e-05
        %v4012 = vadd.f32 %v3964, 1e-05
        %v4013 = vadd.f32 %v3965, 1e-05
        %v4014 = vadd.f32 %v3966, 1e-05
        %v4015 = vadd.f32 %v3967, 1e-05
        %v4016 = vadd.f32 %v3968, 1e-05
        %v4017 = vadd.f32 %v3969, 1e-05
        %v4018 = vadd.f32 %v3970, 1e-05
        %v4019 = vadd.f32 %v3971, 1e-05
        %v4020 = vadd.f32 %v3972, 1e-05
        %v4021 = vadd.f32 %v3973, 1e-05
        %v4022 = vadd.f32 %v3974, 1e-05
        %v4023 = vrsqrt.pop %v4007
        %v4024 = vrsqrt.pop %v4008
        %v4025 = vrsqrt.pop %v4009
        %v4026 = vrsqrt.pop %v4010
        %v4027 = vrsqrt.pop %v4011
        %v4028 = vrsqrt.pop %v4012
        %v4029 = vrsqrt.pop %v4013
        %v4030 = vrsqrt.pop %v4014
        %v4031 = vrsqrt.pop %v4015
        %v4032 = vrsqrt.pop %v4016
        %v4033 = vrsqrt.pop %v4017
        %v4034 = vrsqrt.pop %v4018
        %v4035 = vrsqrt.pop %v4019
        %v4036 = vrsqrt.pop %v4020
        %v4037 = vrsqrt.pop %v4021
        %v4038 = vrsqrt.pop %v4022
        %v4039 = vmul.f32 %v3975, %v4023
        %v4040 = vmul.f32 %v3976, %v4023
        %v4041 = vmul.f32 %v3977, %v4024
        %v4042 = vmul.f32 %v3978, %v4024
        %v4043 = vmul.f32 %v3979, %v4025
        %v4044 = vmul.f32 %v3980, %v4025
        %v4045 = vmul.f32 %v3981, %v4026
        %v4046 = vmul.f32 %v3982, %v4026
        %v4047 = vmul.f32 %v3983, %v4027
        %v4048 = vmul.f32 %v3984, %v4027
        %v4049 = vmul.f32 %v3985, %v4028
        %v4050 = vmul.f32 %v3986, %v4028
        %v4051 = vmul.f32 %v3987, %v4029
        %v4052 = vmul.f32 %v3988, %v4029
        %v4053 = vmul.f32 %v3989, %v4030
        %v4054 = vmul.f32 %v3990, %v4030
        %v4055 = vmul.f32 %v3991, %v4031
        %v4056 = vmul.f32 %v3992, %v4031
        %v4057 = vmul.f32 %v3993, %v4032
        %v4058 = vmul.f32 %v3994, %v4032
        %v4059 = vmul.f32 %v3995, %v4033
        %v4060 = vmul.f32 %v3996, %v4033
        %v4061 = vmul.f32 %v3997, %v4034
        %v4062 = vmul.f32 %v3998, %v4034
        %v4063 = vmul.f32 %v3999, %v4035
        %v4064 = vmul.f32 %v4000, %v4035
        %v4065 = vmul.f32 %v4001, %v4036
        %v4066 = vmul.f32 %v4002, %v4036
        %v4067 = vmul.f32 %v4003, %v4037
        %v4068 = vmul.f32 %v4004, %v4037
        %v4069 = vmul.f32 %v4005, %v4038
        %v4070 = vmul.f32 %v4006, %v4038
        %v4072 = vlaneseq
        %v4073 = vshrl.u32 %v4072, 7
        %v4074 = vsub.s32 0, %v4073
        %v4075 = vrot.slane %v3781, %v4074
        %v4076 = vlaneseq
        %v4077 = vshrl.u32 %v4076, 7
        %v4078 = vsub.s32 1, %v4077
        %v4079 = vrot.slane %v3781, %v4078
        %v4082 = vmul.f32 %v4039, %v4075
        %v4083 = vmul.f32 %v4040, %v4079
        %v4084 = vmul.f32 %v4041, %v4075
        %v4085 = vmul.f32 %v4042, %v4079
        %v4086 = vmul.f32 %v4043, %v4075
        %v4087 = vmul.f32 %v4044, %v4079
        %v4088 = vmul.f32 %v4045, %v4075
        %v4089 = vmul.f32 %v4046, %v4079
        %v4090 = vmul.f32 %v4047, %v4075
        %v4091 = vmul.f32 %v4048, %v4079
        %v4092 = vmul.f32 %v4049, %v4075
        %v4093 = vmul.f32 %v4050, %v4079
        %v4094 = vmul.f32 %v4051, %v4075
        %v4095 = vmul.f32 %v4052, %v4079
        %v4096 = vmul.f32 %v4053, %v4075
        %v4097 = vmul.f32 %v4054, %v4079
        %v4098 = vmul.f32 %v4055, %v4075
        %v4099 = vmul.f32 %v4056, %v4079
        %v4100 = vmul.f32 %v4057, %v4075
        %v4101 = vmul.f32 %v4058, %v4079
        %v4102 = vmul.f32 %v4059, %v4075
        %v4103 = vmul.f32 %v4060, %v4079
        %v4104 = vmul.f32 %v4061, %v4075
        %v4105 = vmul.f32 %v4062, %v4079
        %v4106 = vmul.f32 %v4063, %v4075
        %v4107 = vmul.f32 %v4064, %v4079
        %v4108 = vmul.f32 %v4065, %v4075
        %v4109 = vmul.f32 %v4066, %v4079
        %v4110 = vmul.f32 %v4067, %v4075
        %v4111 = vmul.f32 %v4068, %v4079
        %v4112 = vmul.f32 %v4069, %v4075
        %v4113 = vmul.f32 %v4070, %v4079
        %v4115 = vlaneseq
        %v4116 = vshrl.u32 %v4115, 7
        %v4117 = vsub.s32 0, %v4116
        %v4118 = vrot.slane %v3782, %v4117
        %v4119 = vlaneseq
        %v4120 = vshrl.u32 %v4119, 7
        %v4121 = vsub.s32 1, %v4120
        %v4122 = vrot.slane %v3782, %v4121
        %v4125 = vadd.f32 %v4082, %v4118
        %v4126 = vadd.f32 %v4083, %v4122
        %v4127 = vadd.f32 %v4084, %v4118
        %v4128 = vadd.f32 %v4085, %v4122
        %v4129 = vadd.f32 %v4086, %v4118
        %v4130 = vadd.f32 %v4087, %v4122
        %v4131 = vadd.f32 %v4088, %v4118
        %v4132 = vadd.f32 %v4089, %v4122
        %v4133 = vadd.f32 %v4090, %v4118
        %v4134 = vadd.f32 %v4091, %v4122
        %v4135 = vadd.f32 %v4092, %v4118
        %v4136 = vadd.f32 %v4093, %v4122
        %v4137 = vadd.f32 %v4094, %v4118
        %v4138 = vadd.f32 %v4095, %v4122
        %v4139 = vadd.f32 %v4096, %v4118
        %v4140 = vadd.f32 %v4097, %v4122
        %v4141 = vadd.f32 %v4098, %v4118
        %v4142 = vadd.f32 %v4099, %v4122
        %v4143 = vadd.f32 %v4100, %v4118
        %v4144 = vadd.f32 %v4101, %v4122
        %v4145 = vadd.f32 %v4102, %v4118
        %v4146 = vadd.f32 %v4103, %v4122
        %v4147 = vadd.f32 %v4104, %v4118
        %v4148 = vadd.f32 %v4105, %v4122
        %v4149 = vadd.f32 %v4106, %v4118
        %v4150 = vadd.f32 %v4107, %v4122
        %v4151 = vadd.f32 %v4108, %v4118
        %v4152 = vadd.f32 %v4109, %v4122
        %v4153 = vadd.f32 %v4110, %v4118
        %v4154 = vadd.f32 %v4111, %v4122
        %v4155 = vadd.f32 %v4112, %v4118
        %v4156 = vadd.f32 %v4113, %v4122
        %v4157 = vpack.c.bf16 %v4127, %v4125
        %v4158 = vpack.c.bf16 %v4128, %v4126
        %v4159 = vpack.c.bf16 %v4131, %v4129
        %v4160 = vpack.c.bf16 %v4132, %v4130
        %v4161 = vpack.c.bf16 %v4135, %v4133
        %v4162 = vpack.c.bf16 %v4136, %v4134
        %v4163 = vpack.c.bf16 %v4139, %v4137
        %v4164 = vpack.c.bf16 %v4140, %v4138
        %v4165 = vpack.c.bf16 %v4143, %v4141
        %v4166 = vpack.c.bf16 %v4144, %v4142
        %v4167 = vpack.c.bf16 %v4147, %v4145
        %v4168 = vpack.c.bf16 %v4148, %v4146
        %v4169 = vpack.c.bf16 %v4151, %v4149
        %v4170 = vpack.c.bf16 %v4152, %v4150
        %v4171 = vpack.c.bf16 %v4155, %v4153
        %v4172 = vpack.c.bf16 %v4156, %v4154
        %v4173 = vld [vmem:[%s748] sm:$0xff]
        %v4174 = vld [vmem:[%s748 + $0x8] sm:$0xff]
        %v4175 = vld [vmem:[%s748 + $0x10] sm:$0xff]
        %v4176 = vld [vmem:[%s748 + $0x18] sm:$0xff]
        %v4177 = vld [vmem:[%s748 + $0x20] sm:$0xff]
        %v4178 = vld [vmem:[%s748 + $0x28] sm:$0xff]
        %v4179 = vld [vmem:[%s748 + $0x30] sm:$0xff]
        %v4180 = vld [vmem:[%s748 + $0x38] sm:$0xff]
        %v4181 = vld [vmem:[%s748 + $0x40] sm:$0xff]
        %v4182 = vld [vmem:[%s748 + $0x48] sm:$0xff]
        %v4183 = vld [vmem:[%s748 + $0x50] sm:$0xff]
        %v4184 = vld [vmem:[%s748 + $0x58] sm:$0xff]
        %v4185 = vld [vmem:[%s748 + $0x60] sm:$0xff]
        %v4186 = vld [vmem:[%s748 + $0x68] sm:$0xff]
        %v4187 = vld [vmem:[%s748 + $0x70] sm:$0xff]
        %v4188 = vld [vmem:[%s748 + $0x78] sm:$0xff]
        %v4189 = vld [vmem:[%s748 + $0x80] sm:$0xff]
        %v4190 = vld [vmem:[%s748 + $0x88] sm:$0xff]
        %v4191 = vld [vmem:[%s748 + $0x90] sm:$0xff]
        %v4192 = vld [vmem:[%s748 + $0x98] sm:$0xff]
        %v4193 = vld [vmem:[%s748 + $0xa0] sm:$0xff]
        %v4194 = vld [vmem:[%s748 + $0xa8] sm:$0xff]
        %v4195 = vld [vmem:[%s748 + $0xb0] sm:$0xff]
        %v4196 = vld [vmem:[%s748 + $0xb8] sm:$0xff]
        %v4197 = vld [vmem:[%s748 + $0xc0] sm:$0xff]
        %v4198 = vld [vmem:[%s748 + $0xc8] sm:$0xff]
        %v4199 = vld [vmem:[%s748 + $0xd0] sm:$0xff]
        %v4200 = vld [vmem:[%s748 + $0xd8] sm:$0xff]
        %v4201 = vld [vmem:[%s748 + $0xe0] sm:$0xff]
        %v4202 = vld [vmem:[%s748 + $0xe8] sm:$0xff]
        %v4203 = vld [vmem:[%s748 + $0xf0] sm:$0xff]
        %v4204 = vld [vmem:[%s748 + $0xf8] sm:$0xff]
        %v4205 = vld [vmem:[%s748 + $0x100] sm:$0xff]
        %v4206 = vld [vmem:[%s748 + $0x108] sm:$0xff]
        %v4207 = vld [vmem:[%s748 + $0x110] sm:$0xff]
        %v4208 = vld [vmem:[%s748 + $0x118] sm:$0xff]
        %v4209 = vld [vmem:[%s748 + $0x120] sm:$0xff]
        %v4210 = vld [vmem:[%s748 + $0x128] sm:$0xff]
        %v4211 = vld [vmem:[%s748 + $0x130] sm:$0xff]
        %v4212 = vld [vmem:[%s748 + $0x138] sm:$0xff]
        %v4213 = vld [vmem:[%s748 + $0x140] sm:$0xff]
        %v4214 = vld [vmem:[%s748 + $0x148] sm:$0xff]
        %v4215 = vld [vmem:[%s748 + $0x150] sm:$0xff]
        %v4216 = vld [vmem:[%s748 + $0x158] sm:$0xff]
        %v4217 = vld [vmem:[%s748 + $0x160] sm:$0xff]
        %v4218 = vld [vmem:[%s748 + $0x168] sm:$0xff]
        %v4219 = vld [vmem:[%s748 + $0x170] sm:$0xff]
        %v4220 = vld [vmem:[%s748 + $0x178] sm:$0xff]
        %v4221 = vld [vmem:[%s748 + $0x180] sm:$0xff]
        %v4222 = vld [vmem:[%s748 + $0x188] sm:$0xff]
        %v4223 = vld [vmem:[%s748 + $0x190] sm:$0xff]
        %v4224 = vld [vmem:[%s748 + $0x198] sm:$0xff]
        %v4225 = vld [vmem:[%s748 + $0x1a0] sm:$0xff]
        %v4226 = vld [vmem:[%s748 + $0x1a8] sm:$0xff]
        %v4227 = vld [vmem:[%s748 + $0x1b0] sm:$0xff]
        %v4228 = vld [vmem:[%s748 + $0x1b8] sm:$0xff]
        %v4229 = vld [vmem:[%s748 + $0x1c0] sm:$0xff]
        %v4230 = vld [vmem:[%s748 + $0x1c8] sm:$0xff]
        %v4231 = vld [vmem:[%s748 + $0x1d0] sm:$0xff]
        %v4232 = vld [vmem:[%s748 + $0x1d8] sm:$0xff]
        %v4233 = vld [vmem:[%s748 + $0x1e0] sm:$0xff]
        %v4234 = vld [vmem:[%s748 + $0x1e8] sm:$0xff]
        %v4235 = vld [vmem:[%s748 + $0x1f0] sm:$0xff]
        %v4236 = vld [vmem:[%s748 + $0x1f8] sm:$0xff]
        %v4237 = vld [vmem:[%s757] sm:$0xf]
        %v4239 = vlaneseq
        %v4240 = vshrl.u32 %v4239, 7
        %v4241 = vsub.s32 0, %v4240
        %v4242 = vrot.slane %v4237, %v4241
        %v4243 = vlaneseq
        %v4244 = vshrl.u32 %v4243, 7
        %v4245 = vsub.s32 1, %v4244
        %v4246 = vrot.slane %v4237, %v4245
        %v4247 = vlaneseq
        %v4248 = vshrl.u32 %v4247, 7
        %v4249 = vsub.s32 2, %v4248
        %v4250 = vrot.slane %v4237, %v4249
        %v4251 = vlaneseq
        %v4252 = vshrl.u32 %v4251, 7
        %v4253 = vsub.s32 3, %v4252
        %v4254 = vrot.slane %v4237, %v4253
        %v4323 = vunpack.c.l.b16 %v4173
        %v4324 = vunpack.c.h.b16 %v4173
        %v4325 = vunpack.c.l.b16 %v4174
        %v4326 = vunpack.c.h.b16 %v4174
        %v4327 = vunpack.c.l.b16 %v4175
        %v4328 = vunpack.c.h.b16 %v4175
        %v4329 = vunpack.c.l.b16 %v4176
        %v4330 = vunpack.c.h.b16 %v4176
        %v4331 = vunpack.c.l.b16 %v4177
        %v4332 = vunpack.c.h.b16 %v4177
        %v4333 = vunpack.c.l.b16 %v4178
        %v4334 = vunpack.c.h.b16 %v4178
        %v4335 = vunpack.c.l.b16 %v4179
        %v4336 = vunpack.c.h.b16 %v4179
        %v4337 = vunpack.c.l.b16 %v4180
        %v4338 = vunpack.c.h.b16 %v4180
        %v4339 = vunpack.c.l.b16 %v4181
        %v4340 = vunpack.c.h.b16 %v4181
        %v4341 = vunpack.c.l.b16 %v4182
        %v4342 = vunpack.c.h.b16 %v4182
        %v4343 = vunpack.c.l.b16 %v4183
        %v4344 = vunpack.c.h.b16 %v4183
        %v4345 = vunpack.c.l.b16 %v4184
        %v4346 = vunpack.c.h.b16 %v4184
        %v4347 = vunpack.c.l.b16 %v4185
        %v4348 = vunpack.c.h.b16 %v4185
        %v4349 = vunpack.c.l.b16 %v4186
        %v4350 = vunpack.c.h.b16 %v4186
        %v4351 = vunpack.c.l.b16 %v4187
        %v4352 = vunpack.c.h.b16 %v4187
        %v4353 = vunpack.c.l.b16 %v4188
        %v4354 = vunpack.c.h.b16 %v4188
        %v4355 = vunpack.c.l.b16 %v4189
        %v4356 = vunpack.c.h.b16 %v4189
        %v4357 = vunpack.c.l.b16 %v4190
        %v4358 = vunpack.c.h.b16 %v4190
        %v4359 = vunpack.c.l.b16 %v4191
        %v4360 = vunpack.c.h.b16 %v4191
        %v4361 = vunpack.c.l.b16 %v4192
        %v4362 = vunpack.c.h.b16 %v4192
        %v4363 = vunpack.c.l.b16 %v4193
        %v4364 = vunpack.c.h.b16 %v4193
        %v4365 = vunpack.c.l.b16 %v4194
        %v4366 = vunpack.c.h.b16 %v4194
        %v4367 = vunpack.c.l.b16 %v4195
        %v4368 = vunpack.c.h.b16 %v4195
        %v4369 = vunpack.c.l.b16 %v4196
        %v4370 = vunpack.c.h.b16 %v4196
        %v4371 = vunpack.c.l.b16 %v4197
        %v4372 = vunpack.c.h.b16 %v4197
        %v4373 = vunpack.c.l.b16 %v4198
        %v4374 = vunpack.c.h.b16 %v4198
        %v4375 = vunpack.c.l.b16 %v4199
        %v4376 = vunpack.c.h.b16 %v4199
        %v4377 = vunpack.c.l.b16 %v4200
        %v4378 = vunpack.c.h.b16 %v4200
        %v4379 = vunpack.c.l.b16 %v4201
        %v4380 = vunpack.c.h.b16 %v4201
        %v4381 = vunpack.c.l.b16 %v4202
        %v4382 = vunpack.c.h.b16 %v4202
        %v4383 = vunpack.c.l.b16 %v4203
        %v4384 = vunpack.c.h.b16 %v4203
        %v4385 = vunpack.c.l.b16 %v4204
        %v4386 = vunpack.c.h.b16 %v4204
        %v4387 = vunpack.c.l.b16 %v4205
        %v4388 = vunpack.c.h.b16 %v4205
        %v4389 = vunpack.c.l.b16 %v4206
        %v4390 = vunpack.c.h.b16 %v4206
        %v4391 = vunpack.c.l.b16 %v4207
        %v4392 = vunpack.c.h.b16 %v4207
        %v4393 = vunpack.c.l.b16 %v4208
        %v4394 = vunpack.c.h.b16 %v4208
        %v4395 = vunpack.c.l.b16 %v4209
        %v4396 = vunpack.c.h.b16 %v4209
        %v4397 = vunpack.c.l.b16 %v4210
        %v4398 = vunpack.c.h.b16 %v4210
        %v4399 = vunpack.c.l.b16 %v4211
        %v4400 = vunpack.c.h.b16 %v4211
        %v4401 = vunpack.c.l.b16 %v4212
        %v4402 = vunpack.c.h.b16 %v4212
        %v4403 = vunpack.c.l.b16 %v4213
        %v4404 = vunpack.c.h.b16 %v4213
        %v4405 = vunpack.c.l.b16 %v4214
        %v4406 = vunpack.c.h.b16 %v4214
        %v4407 = vunpack.c.l.b16 %v4215
        %v4408 = vunpack.c.h.b16 %v4215
        %v4409 = vunpack.c.l.b16 %v4216
        %v4410 = vunpack.c.h.b16 %v4216
        %v4411 = vunpack.c.l.b16 %v4217
        %v4412 = vunpack.c.h.b16 %v4217
        %v4413 = vunpack.c.l.b16 %v4218
        %v4414 = vunpack.c.h.b16 %v4218
        %v4415 = vunpack.c.l.b16 %v4219
        %v4416 = vunpack.c.h.b16 %v4219
        %v4417 = vunpack.c.l.b16 %v4220
        %v4418 = vunpack.c.h.b16 %v4220
        %v4419 = vunpack.c.l.b16 %v4221
        %v4420 = vunpack.c.h.b16 %v4221
        %v4421 = vunpack.c.l.b16 %v4222
        %v4422 = vunpack.c.h.b16 %v4222
        %v4423 = vunpack.c.l.b16 %v4223
        %v4424 = vunpack.c.h.b16 %v4223
        %v4425 = vunpack.c.l.b16 %v4224
        %v4426 = vunpack.c.h.b16 %v4224
        %v4427 = vunpack.c.l.b16 %v4225
        %v4428 = vunpack.c.h.b16 %v4225
        %v4429 = vunpack.c.l.b16 %v4226
        %v4430 = vunpack.c.h.b16 %v4226
        %v4431 = vunpack.c.l.b16 %v4227
        %v4432 = vunpack.c.h.b16 %v4227
        %v4433 = vunpack.c.l.b16 %v4228
        %v4434 = vunpack.c.h.b16 %v4228
        %v4435 = vunpack.c.l.b16 %v4229
        %v4436 = vunpack.c.h.b16 %v4229
        %v4437 = vunpack.c.l.b16 %v4230
        %v4438 = vunpack.c.h.b16 %v4230
        %v4439 = vunpack.c.l.b16 %v4231
        %v4440 = vunpack.c.h.b16 %v4231
        %v4441 = vunpack.c.l.b16 %v4232
        %v4442 = vunpack.c.h.b16 %v4232
        %v4443 = vunpack.c.l.b16 %v4233
        %v4444 = vunpack.c.h.b16 %v4233
        %v4445 = vunpack.c.l.b16 %v4234
        %v4446 = vunpack.c.h.b16 %v4234
        %v4447 = vunpack.c.l.b16 %v4235
        %v4448 = vunpack.c.h.b16 %v4235
        %v4449 = vunpack.c.l.b16 %v4236
        %v4450 = vunpack.c.h.b16 %v4236
        %v4451 = vpack.c.b16 %v4327, %v4323
        %v4452 = vpack.c.b16 %v4328, %v4324
        %v4453 = vpack.c.b16 %v4329, %v4325
        %v4454 = vpack.c.b16 %v4330, %v4326
        %v4455 = vpack.c.b16 %v4335, %v4331
        %v4456 = vpack.c.b16 %v4336, %v4332
        %v4457 = vpack.c.b16 %v4337, %v4333
        %v4458 = vpack.c.b16 %v4338, %v4334
        %v4459 = vpack.c.b16 %v4343, %v4339
        %v4460 = vpack.c.b16 %v4344, %v4340
        %v4461 = vpack.c.b16 %v4345, %v4341
        %v4462 = vpack.c.b16 %v4346, %v4342
        %v4463 = vpack.c.b16 %v4351, %v4347
        %v4464 = vpack.c.b16 %v4352, %v4348
        %v4465 = vpack.c.b16 %v4353, %v4349
        %v4466 = vpack.c.b16 %v4354, %v4350
        %v4467 = vpack.c.b16 %v4359, %v4355
        %v4468 = vpack.c.b16 %v4360, %v4356
        %v4469 = vpack.c.b16 %v4361, %v4357
        %v4470 = vpack.c.b16 %v4362, %v4358
        %v4471 = vpack.c.b16 %v4367, %v4363
        %v4472 = vpack.c.b16 %v4368, %v4364
        %v4473 = vpack.c.b16 %v4369, %v4365
        %v4474 = vpack.c.b16 %v4370, %v4366
        %v4475 = vpack.c.b16 %v4375, %v4371
        %v4476 = vpack.c.b16 %v4376, %v4372
        %v4477 = vpack.c.b16 %v4377, %v4373
        %v4478 = vpack.c.b16 %v4378, %v4374
        %v4479 = vpack.c.b16 %v4383, %v4379
        %v4480 = vpack.c.b16 %v4384, %v4380
        %v4481 = vpack.c.b16 %v4385, %v4381
        %v4482 = vpack.c.b16 %v4386, %v4382
        %v4483 = vpack.c.b16 %v4391, %v4387
        %v4484 = vpack.c.b16 %v4392, %v4388
        %v4485 = vpack.c.b16 %v4393, %v4389
        %v4486 = vpack.c.b16 %v4394, %v4390
        %v4487 = vpack.c.b16 %v4399, %v4395
        %v4488 = vpack.c.b16 %v4400, %v4396
        %v4489 = vpack.c.b16 %v4401, %v4397
        %v4490 = vpack.c.b16 %v4402, %v4398
        %v4491 = vpack.c.b16 %v4407, %v4403
        %v4492 = vpack.c.b16 %v4408, %v4404
        %v4493 = vpack.c.b16 %v4409, %v4405
        %v4494 = vpack.c.b16 %v4410, %v4406
        %v4495 = vpack.c.b16 %v4415, %v4411
        %v4496 = vpack.c.b16 %v4416, %v4412
        %v4497 = vpack.c.b16 %v4417, %v4413
        %v4498 = vpack.c.b16 %v4418, %v4414
        %v4499 = vpack.c.b16 %v4423, %v4419
        %v4500 = vpack.c.b16 %v4424, %v4420
        %v4501 = vpack.c.b16 %v4425, %v4421
        %v4502 = vpack.c.b16 %v4426, %v4422
        %v4503 = vpack.c.b16 %v4431, %v4427
        %v4504 = vpack.c.b16 %v4432, %v4428
        %v4505 = vpack.c.b16 %v4433, %v4429
        %v4506 = vpack.c.b16 %v4434, %v4430
        %v4507 = vpack.c.b16 %v4439, %v4435
        %v4508 = vpack.c.b16 %v4440, %v4436
        %v4509 = vpack.c.b16 %v4441, %v4437
        %v4510 = vpack.c.b16 %v4442, %v4438
        %v4511 = vpack.c.b16 %v4447, %v4443
        %v4512 = vpack.c.b16 %v4448, %v4444
        %v4513 = vpack.c.b16 %v4449, %v4445
        %v4514 = vpack.c.b16 %v4450, %v4446
        %4579 = vmatprep.subr.bf16.mxu0 %v4452
        %4580 = vmatpush1.bf16.msra.mxu0 %v4451
        %4581 = vmatprep.subr.bf16.mxu0 %v4456
        %4582 = vmatpush1.bf16.msra.mxu0 %v4455
        %4583 = vmatprep.subr.bf16.mxu0 %v4460
        %4584 = vmatpush1.bf16.msra.mxu0 %v4459
        %4585 = vmatprep.subr.bf16.mxu0 %v4464
        %4586 = vmatpush1.bf16.msra.mxu0 %v4463
        %4587 = vmatprep.subr.bf16.mxu0 %v4468
        %4588 = vmatpush1.bf16.msra.mxu0 %v4467
        %4589 = vmatprep.subr.bf16.mxu0 %v4472
        %4590 = vmatpush1.bf16.msra.mxu0 %v4471
        %4591 = vmatprep.subr.bf16.mxu0 %v4476
        %4592 = vmatpush1.bf16.msra.mxu0 %v4475
        %4593 = vmatprep.subr.bf16.mxu0 %v4480
        %4594 = vmatpush1.bf16.msra.mxu0 %v4479
        %4595 = vmatprep.subr.bf16.mxu0 %v4484
        %4596 = vmatpush1.bf16.msra.mxu0 %v4483
        %4597 = vmatprep.subr.bf16.mxu0 %v4488
        %4598 = vmatpush1.bf16.msra.mxu0 %v4487
        %4599 = vmatprep.subr.bf16.mxu0 %v4492
        %4600 = vmatpush1.bf16.msra.mxu0 %v4491
        %4601 = vmatprep.subr.bf16.mxu0 %v4496
        %4602 = vmatpush1.bf16.msra.mxu0 %v4495
        %4603 = vmatprep.subr.bf16.mxu0 %v4500
        %4604 = vmatpush1.bf16.msra.mxu0 %v4499
        %4605 = vmatprep.subr.bf16.mxu0 %v4504
        %4606 = vmatpush1.bf16.msra.mxu0 %v4503
        %4607 = vmatprep.subr.bf16.mxu0 %v4508
        %4608 = vmatpush1.bf16.msra.mxu0 %v4507
        %4609 = vmatprep.subr.bf16.mxu0 %v4512
        %4610 = vmatpush1.bf16.msra.mxu0 %v4511
        %4611 = vmatprep.mubr.bf16.mxu0 %v4158
        %4612 = vmatmul.mubr.bf16.gmra.mrb[0].mxu0 %v4157
        %v4613 = vpop.f32.mrb[0].mxu0
        %v4614 = vadd.f32 %v4242, %v4613
        %v4615 = vpop.f32.mrb[0].mxu0
        %v4616 = vadd.f32 %v4246, %v4615
        %v4617 = vpop.f32.mrb[0].mxu0
        %v4618 = vadd.f32 %v4242, %v4617
        %v4619 = vpop.f32.mrb[0].mxu0
        %v4620 = vadd.f32 %v4246, %v4619
        %4621 = vmatprep.mubr.bf16.mxu0 %v4160
        %4622 = vmatmul.mubr.bf16.gmra.mrb[0].mxu0 %v4159
        %v4623 = vpop.f32.mrb[0].mxu0
        %v4624 = vadd.f32 %v4242, %v4623
        %v4625 = vpop.f32.mrb[0].mxu0
        %v4626 = vadd.f32 %v4246, %v4625
        %v4627 = vpop.f32.mrb[0].mxu0
        %v4628 = vadd.f32 %v4242, %v4627
        %v4629 = vpop.f32.mrb[0].mxu0
        %v4630 = vadd.f32 %v4246, %v4629
        %4631 = vmatprep.mubr.bf16.mxu0 %v4162
        %4632 = vmatmul.mubr.bf16.gmra.mrb[0].mxu0 %v4161
        %v4633 = vpop.f32.mrb[0].mxu0
        %v4634 = vadd.f32 %v4242, %v4633
        %v4635 = vpop.f32.mrb[0].mxu0
        %v4636 = vadd.f32 %v4246, %v4635
        %v4637 = vpop.f32.mrb[0].mxu0
        %v4638 = vadd.f32 %v4242, %v4637
        %v4639 = vpop.f32.mrb[0].mxu0
        %v4640 = vadd.f32 %v4246, %v4639
        %4641 = vmatprep.mubr.bf16.mxu0 %v4164
        %4642 = vmatmul.mubr.bf16.gmra.mrb[0].mxu0 %v4163
        %v4643 = vpop.f32.mrb[0].mxu0
        %v4644 = vadd.f32 %v4242, %v4643
        %v4645 = vpop.f32.mrb[0].mxu0
        %v4646 = vadd.f32 %v4246, %v4645
        %v4647 = vpop.f32.mrb[0].mxu0
        %v4648 = vadd.f32 %v4242, %v4647
        %v4649 = vpop.f32.mrb[0].mxu0
        %v4650 = vadd.f32 %v4246, %v4649
        %4651 = vmatprep.mubr.bf16.mxu0 %v4166
        %4652 = vmatmul.mubr.bf16.gmra.mrb[0].mxu0 %v4165
        %v4653 = vpop.f32.mrb[0].mxu0
        %v4654 = vadd.f32 %v4242, %v4653
        %v4655 = vpop.f32.mrb[0].mxu0
        %v4656 = vadd.f32 %v4246, %v4655
        %v4657 = vpop.f32.mrb[0].mxu0
        %v4658 = vadd.f32 %v4242, %v4657
        %v4659 = vpop.f32.mrb[0].mxu0
        %v4660 = vadd.f32 %v4246, %v4659
        %4661 = vmatprep.mubr.bf16.mxu0 %v4168
        %4662 = vmatmul.mubr.bf16.gmra.mrb[0].mxu0 %v4167
        %v4663 = vpop.f32.mrb[0].mxu0
        %v4664 = vadd.f32 %v4242, %v4663
        %v4665 = vpop.f32.mrb[0].mxu0
        %v4666 = vadd.f32 %v4246, %v4665
        %v4667 = vpop.f32.mrb[0].mxu0
        %v4668 = vadd.f32 %v4242, %v4667
        %v4669 = vpop.f32.mrb[0].mxu0
        %v4670 = vadd.f32 %v4246, %v4669
        %4671 = vmatprep.mubr.bf16.mxu0 %v4170
        %4672 = vmatmul.mubr.bf16.gmra.mrb[0].mxu0 %v4169
        %v4673 = vpop.f32.mrb[0].mxu0
        %v4674 = vadd.f32 %v4242, %v4673
        %v4675 = vpop.f32.mrb[0].mxu0
        %v4676 = vadd.f32 %v4246, %v4675
        %v4677 = vpop.f32.mrb[0].mxu0
        %v4678 = vadd.f32 %v4242, %v4677
        %v4679 = vpop.f32.mrb[0].mxu0
        %v4680 = vadd.f32 %v4246, %v4679
        %4681 = vmatprep.mubr.bf16.mxu0 %v4172
        %4682 = vmatmul.mubr.bf16.gmra.mrb[0].mxu0 %v4171
        %v4683 = vpop.f32.mrb[0].mxu0
        %v4684 = vadd.f32 %v4242, %v4683
        %v4685 = vpop.f32.mrb[0].mxu0
        %v4686 = vadd.f32 %v4246, %v4685
        %v4687 = vpop.f32.mrb[0].mxu0
        %v4688 = vadd.f32 %v4242, %v4687
        %v4689 = vpop.f32.mrb[0].mxu0
        %v4690 = vadd.f32 %v4246, %v4689
        %4691 = vdwg.mxu0
        %4692 = vmatprep.subr.bf16.mxu0 %v4454
        %4693 = vmatpush1.bf16.msra.mxu0 %v4453
        %4694 = vmatprep.subr.bf16.mxu0 %v4458
        %4695 = vmatpush1.bf16.msra.mxu0 %v4457
        %4696 = vmatprep.subr.bf16.mxu0 %v4462
        %4697 = vmatpush1.bf16.msra.mxu0 %v4461
        %4698 = vmatprep.subr.bf16.mxu0 %v4466
        %4699 = vmatpush1.bf16.msra.mxu0 %v4465
        %4700 = vmatprep.subr.bf16.mxu0 %v4470
        %4701 = vmatpush1.bf16.msra.mxu0 %v4469
        %4702 = vmatprep.subr.bf16.mxu0 %v4474
        %4703 = vmatpush1.bf16.msra.mxu0 %v4473
        %4704 = vmatprep.subr.bf16.mxu0 %v4478
        %4705 = vmatpush1.bf16.msra.mxu0 %v4477
        %4706 = vmatprep.subr.bf16.mxu0 %v4482
        %4707 = vmatpush1.bf16.msra.mxu0 %v4481
        %4708 = vmatprep.subr.bf16.mxu0 %v4486
        %4709 = vmatpush1.bf16.msra.mxu0 %v4485
        %4710 = vmatprep.subr.bf16.mxu0 %v4490
        %4711 = vmatpush1.bf16.msra.mxu0 %v4489
        %4712 = vmatprep.subr.bf16.mxu0 %v4494
        %4713 = vmatpush1.bf16.msra.mxu0 %v4493
        %4714 = vmatprep.subr.bf16.mxu0 %v4498
        %4715 = vmatpush1.bf16.msra.mxu0 %v4497
        %4716 = vmatprep.subr.bf16.mxu0 %v4502
        %4717 = vmatpush1.bf16.msra.mxu0 %v4501
        %4718 = vmatprep.subr.bf16.mxu0 %v4506
        %4719 = vmatpush1.bf16.msra.mxu0 %v4505
        %4720 = vmatprep.subr.bf16.mxu0 %v4510
        %4721 = vmatpush1.bf16.msra.mxu0 %v4509
        %4722 = vmatprep.subr.bf16.mxu0 %v4514
        %4723 = vmatpush1.bf16.msra.mxu0 %v4513
        %4724 = vmatprep.mubr.bf16.mxu0 %v4158
        %4725 = vmatmul.mubr.bf16.gmra.mrb[0].mxu0 %v4157
        %v4726 = vpop.f32.mrb[0].mxu0
        %v4727 = vadd.f32 %v4250, %v4726
        %v4728 = vpop.f32.mrb[0].mxu0
        %v4729 = vadd.f32 %v4254, %v4728
        %v4730 = vpop.f32.mrb[0].mxu0
        %v4731 = vadd.f32 %v4250, %v4730
        %v4732 = vpop.f32.mrb[0].mxu0
        %v4733 = vadd.f32 %v4254, %v4732
        %4734 = vmatprep.mubr.bf16.mxu0 %v4160
        %4735 = vmatmul.mubr.bf16.gmra.mrb[0].mxu0 %v4159
        %v4736 = vpop.f32.mrb[0].mxu0
        %v4737 = vadd.f32 %v4250, %v4736
        %v4738 = vpop.f32.mrb[0].mxu0
        %v4739 = vadd.f32 %v4254, %v4738
        %v4740 = vpop.f32.mrb[0].mxu0
        %v4741 = vadd.f32 %v4250, %v4740
        %v4742 = vpop.f32.mrb[0].mxu0
        %v4743 = vadd.f32 %v4254, %v4742
        %4744 = vmatprep.mubr.bf16.mxu0 %v4162
        %4745 = vmatmul.mubr.bf16.gmra.mrb[0].mxu0 %v4161
        %v4746 = vpop.f32.mrb[0].mxu0
        %v4747 = vadd.f32 %v4250, %v4746
        %v4748 = vpop.f32.mrb[0].mxu0
        %v4749 = vadd.f32 %v4254, %v4748
        %v4750 = vpop.f32.mrb[0].mxu0
        %v4751 = vadd.f32 %v4250, %v4750
        %v4752 = vpop.f32.mrb[0].mxu0
        %v4753 = vadd.f32 %v4254, %v4752
        %4754 = vmatprep.mubr.bf16.mxu0 %v4164
        %4755 = vmatmul.mubr.bf16.gmra.mrb[0].mxu0 %v4163
        %v4756 = vpop.f32.mrb[0].mxu0
        %v4757 = vadd.f32 %v4250, %v4756
        %v4758 = vpop.f32.mrb[0].mxu0
        %v4759 = vadd.f32 %v4254, %v4758
        %v4760 = vpop.f32.mrb[0].mxu0
        %v4761 = vadd.f32 %v4250, %v4760
        %v4762 = vpop.f32.mrb[0].mxu0
        %v4763 = vadd.f32 %v4254, %v4762
        %4764 = vmatprep.mubr.bf16.mxu0 %v4166
        %4765 = vmatmul.mubr.bf16.gmra.mrb[0].mxu0 %v4165
        %v4766 = vpop.f32.mrb[0].mxu0
        %v4767 = vadd.f32 %v4250, %v4766
        %v4768 = vpop.f32.mrb[0].mxu0
        %v4769 = vadd.f32 %v4254, %v4768
        %v4770 = vpop.f32.mrb[0].mxu0
        %v4771 = vadd.f32 %v4250, %v4770
        %v4772 = vpop.f32.mrb[0].mxu0
        %v4773 = vadd.f32 %v4254, %v4772
        %4774 = vmatprep.mubr.bf16.mxu0 %v4168
        %4775 = vmatmul.mubr.bf16.gmra.mrb[0].mxu0 %v4167
        %v4776 = vpop.f32.mrb[0].mxu0
        %v4777 = vadd.f32 %v4250, %v4776
        %v4778 = vpop.f32.mrb[0].mxu0
        %v4779 = vadd.f32 %v4254, %v4778
        %v4780 = vpop.f32.mrb[0].mxu0
        %v4781 = vadd.f32 %v4250, %v4780
        %v4782 = vpop.f32.mrb[0].mxu0
        %v4783 = vadd.f32 %v4254, %v4782
        %4784 = vmatprep.mubr.bf16.mxu0 %v4170
        %4785 = vmatmul.mubr.bf16.gmra.mrb[0].mxu0 %v4169
        %v4786 = vpop.f32.mrb[0].mxu0
        %v4787 = vadd.f32 %v4250, %v4786
        %v4788 = vpop.f32.mrb[0].mxu0
        %v4789 = vadd.f32 %v4254, %v4788
        %v4790 = vpop.f32.mrb[0].mxu0
        %v4791 = vadd.f32 %v4250, %v4790
        %v4792 = vpop.f32.mrb[0].mxu0
        %v4793 = vadd.f32 %v4254, %v4792
        %4794 = vmatprep.mubr.bf16.mxu0 %v4172
        %4795 = vmatmul.mubr.bf16.gmra.mrb[0].mxu0 %v4171
        %v4796 = vpop.f32.mrb[0].mxu0
        %v4797 = vadd.f32 %v4250, %v4796
        %v4798 = vpop.f32.mrb[0].mxu0
        %v4799 = vadd.f32 %v4254, %v4798
        %v4800 = vpop.f32.mrb[0].mxu0
        %v4801 = vadd.f32 %v4250, %v4800
        %v4802 = vpop.f32.mrb[0].mxu0
        %v4803 = vadd.f32 %v4254, %v4802
        %4804 = vdwg.mxu0
        %v4805 = vmul.f32 %v4614, 0.5
        %v4806 = vmul.f32 %v4616, 0.5
        %v4807 = vmul.f32 %v4727, 0.5
        %v4808 = vmul.f32 %v4729, 0.5
        %v4809 = vmul.f32 %v4618, 0.5
        %v4810 = vmul.f32 %v4620, 0.5
        %v4811 = vmul.f32 %v4731, 0.5
        %v4812 = vmul.f32 %v4733, 0.5
        %v4813 = vmul.f32 %v4624, 0.5
        %v4814 = vmul.f32 %v4626, 0.5
        %v4815 = vmul.f32 %v4737, 0.5
        %v4816 = vmul.f32 %v4739, 0.5
        %v4817 = vmul.f32 %v4628, 0.5
        %v4818 = vmul.f32 %v4630, 0.5
        %v4819 = vmul.f32 %v4741, 0.5
        %v4820 = vmul.f32 %v4743, 0.5
        %v4821 = vmul.f32 %v4634, 0.5
        %v4822 = vmul.f32 %v4636, 0.5
        %v4823 = vmul.f32 %v4747, 0.5
        %v4824 = vmul.f32 %v4749, 0.5
        %v4825 = vmul.f32 %v4638, 0.5
        %v4826 = vmul.f32 %v4640, 0.5
        %v4827 = vmul.f32 %v4751, 0.5
        %v4828 = vmul.f32 %v4753, 0.5
        %v4829 = vmul.f32 %v4644, 0.5
        %v4830 = vmul.f32 %v4646, 0.5
        %v4831 = vmul.f32 %v4757, 0.5
        %v4832 = vmul.f32 %v4759, 0.5
        %v4833 = vmul.f32 %v4648, 0.5
        %v4834 = vmul.f32 %v4650, 0.5
        %v4835 = vmul.f32 %v4761, 0.5
        %v4836 = vmul.f32 %v4763, 0.5
        %v4837 = vmul.f32 %v4654, 0.5
        %v4838 = vmul.f32 %v4656, 0.5
        %v4839 = vmul.f32 %v4767, 0.5
        %v4840 = vmul.f32 %v4769, 0.5
        %v4841 = vmul.f32 %v4658, 0.5
        %v4842 = vmul.f32 %v4660, 0.5
        %v4843 = vmul.f32 %v4771, 0.5
        %v4844 = vmul.f32 %v4773, 0.5
        %v4845 = vmul.f32 %v4664, 0.5
        %v4846 = vmul.f32 %v4666, 0.5
        %v4847 = vmul.f32 %v4777, 0.5
        %v4848 = vmul.f32 %v4779, 0.5
        %v4849 = vmul.f32 %v4668, 0.5
        %v4850 = vmul.f32 %v4670, 0.5
        %v4851 = vmul.f32 %v4781, 0.5
        %v4852 = vmul.f32 %v4783, 0.5
        %v4853 = vmul.f32 %v4674, 0.5
        %v4854 = vmul.f32 %v4676, 0.5
        %v4855 = vmul.f32 %v4787, 0.5
        %v4856 = vmul.f32 %v4789, 0.5
        %v4857 = vmul.f32 %v4678, 0.5
        %v4858 = vmul.f32 %v4680, 0.5
        %v4859 = vmul.f32 %v4791, 0.5
        %v4860 = vmul.f32 %v4793, 0.5
        %v4861 = vmul.f32 %v4684, 0.5
        %v4862 = vmul.f32 %v4686, 0.5
        %v4863 = vmul.f32 %v4797, 0.5
        %v4864 = vmul.f32 %v4799, 0.5
        %v4865 = vmul.f32 %v4688, 0.5
        %v4866 = vmul.f32 %v4690, 0.5
        %v4867 = vmul.f32 %v4801, 0.5
        %v4868 = vmul.f32 %v4803, 0.5
        %v4869 = vmul.f32 %v4614, 0.044715
        %v4870 = vmul.f32 %v4616, 0.044715
        %v4871 = vmul.f32 %v4727, 0.044715
        %v4872 = vmul.f32 %v4729, 0.044715
        %v4873 = vmul.f32 %v4618, 0.044715
        %v4874 = vmul.f32 %v4620, 0.044715
        %v4875 = vmul.f32 %v4731, 0.044715
        %v4876 = vmul.f32 %v4733, 0.044715
        %v4877 = vmul.f32 %v4624, 0.044715
        %v4878 = vmul.f32 %v4626, 0.044715
        %v4879 = vmul.f32 %v4737, 0.044715
        %v4880 = vmul.f32 %v4739, 0.044715
        %v4881 = vmul.f32 %v4628, 0.044715
        %v4882 = vmul.f32 %v4630, 0.044715
        %v4883 = vmul.f32 %v4741, 0.044715
        %v4884 = vmul.f32 %v4743, 0.044715
        %v4885 = vmul.f32 %v4634, 0.044715
        %v4886 = vmul.f32 %v4636, 0.044715
        %v4887 = vmul.f32 %v4747, 0.044715
        %v4888 = vmul.f32 %v4749, 0.044715
        %v4889 = vmul.f32 %v4638, 0.044715
        %v4890 = vmul.f32 %v4640, 0.044715
        %v4891 = vmul.f32 %v4751, 0.044715
        %v4892 = vmul.f32 %v4753, 0.044715
        %v4893 = vmul.f32 %v4644, 0.044715
        %v4894 = vmul.f32 %v4646, 0.044715
        %v4895 = vmul.f32 %v4757, 0.044715
        %v4896 = vmul.f32 %v4759, 0.044715
        %v4897 = vmul.f32 %v4648, 0.044715
        %v4898 = vmul.f32 %v4650, 0.044715
        %v4899 = vmul.f32 %v4761, 0.044715
        %v4900 = vmul.f32 %v4763, 0.044715
        %v4901 = vmul.f32 %v4654, 0.044715
        %v4902 = vmul.f32 %v4656, 0.044715
        %v4903 = vmul.f32 %v4767, 0.044715
        %v4904 = vmul.f32 %v4769, 0.044715
        %v4905 = vmul.f32 %v4658, 0.044715
        %v4906 = vmul.f32 %v4660, 0.044715
        %v4907 = vmul.f32 %v4771, 0.044715
        %v4908 = vmul.f32 %v4773, 0.044715
        %v4909 = vmul.f32 %v4664, 0.044715
        %v4910 = vmul.f32 %v4666, 0.044715
        %v4911 = vmul.f32 %v4777, 0.044715
        %v4912 = vmul.f32 %v4779, 0.044715
        %v4913 = vmul.f32 %v4668, 0.044715
        %v4914 = vmul.f32 %v4670, 0.044715
        %v4915 = vmul.f32 %v4781, 0.044715
        %v4916 = vmul.f32 %v4783, 0.044715
        %v4917 = vmul.f32 %v4674, 0.044715
        %v4918 = vmul.f32 %v4676, 0.044715
        %v4919 = vmul.f32 %v4787, 0.044715
        %v4920 = vmul.f32 %v4789, 0.044715
        %v4921 = vmul.f32 %v4678, 0.044715
        %v4922 = vmul.f32 %v4680, 0.044715
        %v4923 = vmul.f32 %v4791, 0.044715
        %v4924 = vmul.f32 %v4793, 0.044715
        %v4925 = vmul.f32 %v4684, 0.044715
        %v4926 = vmul.f32 %v4686, 0.044715
        %v4927 = vmul.f32 %v4797, 0.044715
        %v4928 = vmul.f32 %v4799, 0.044715
        %v4929 = vmul.f32 %v4688, 0.044715
        %v4930 = vmul.f32 %v4690, 0.044715
        %v4931 = vmul.f32 %v4801, 0.044715
        %v4932 = vmul.f32 %v4803, 0.044715
        %v4933 = vmul.f32 %v4869, %v4614
        %v4934 = vmul.f32 %v4870, %v4616
        %v4935 = vmul.f32 %v4871, %v4727
        %v4936 = vmul.f32 %v4872, %v4729
        %v4937 = vmul.f32 %v4873, %v4618
        %v4938 = vmul.f32 %v4874, %v4620
        %v4939 = vmul.f32 %v4875, %v4731
        %v4940 = vmul.f32 %v4876, %v4733
        %v4941 = vmul.f32 %v4877, %v4624
        %v4942 = vmul.f32 %v4878, %v4626
        %v4943 = vmul.f32 %v4879, %v4737
        %v4944 = vmul.f32 %v4880, %v4739
        %v4945 = vmul.f32 %v4881, %v4628
        %v4946 = vmul.f32 %v4882, %v4630
        %v4947 = vmul.f32 %v4883, %v4741
        %v4948 = vmul.f32 %v4884, %v4743
        %v4949 = vmul.f32 %v4885, %v4634
        %v4950 = vmul.f32 %v4886, %v4636
        %v4951 = vmul.f32 %v4887, %v4747
        %v4952 = vmul.f32 %v4888, %v4749
        %v4953 = vmul.f32 %v4889, %v4638
        %v4954 = vmul.f32 %v4890, %v4640
        %v4955 = vmul.f32 %v4891, %v4751
        %v4956 = vmul.f32 %v4892, %v4753
        %v4957 = vmul.f32 %v4893, %v4644
        %v4958 = vmul.f32 %v4894, %v4646
        %v4959 = vmul.f32 %v4895, %v4757
        %v4960 = vmul.f32 %v4896, %v4759
        %v4961 = vmul.f32 %v4897, %v4648
        %v4962 = vmul.f32 %v4898, %v4650
        %v4963 = vmul.f32 %v4899, %v4761
        %v4964 = vmul.f32 %v4900, %v4763
        %v4965 = vmul.f32 %v4901, %v4654
        %v4966 = vmul.f32 %v4902, %v4656
        %v4967 = vmul.f32 %v4903, %v4767
        %v4968 = vmul.f32 %v4904, %v4769
        %v4969 = vmul.f32 %v4905, %v4658
        %v4970 = vmul.f32 %v4906, %v4660
        %v4971 = vmul.f32 %v4907, %v4771
        %v4972 = vmul.f32 %v4908, %v4773
        %v4973 = vmul.f32 %v4909, %v4664
        %v4974 = vmul.f32 %v4910, %v4666
        %v4975 = vmul.f32 %v4911, %v4777
        %v4976 = vmul.f32 %v4912, %v4779
        %v4977 = vmul.f32 %v4913, %v4668
        %v4978 = vmul.f32 %v4914, %v4670
        %v4979 = vmul.f32 %v4915, %v4781
        %v4980 = vmul.f32 %v4916, %v4783
        %v4981 = vmul.f32 %v4917, %v4674
        %v4982 = vmul.f32 %v4918, %v4676
        %v4983 = vmul.f32 %v4919, %v4787
        %v4984 = vmul.f32 %v4920, %v4789
        %v4985 = vmul.f32 %v4921, %v4678
        %v4986 = vmul.f32 %v4922, %v4680
        %v4987 = vmul.f32 %v4923, %v4791
        %v4988 = vmul.f32 %v4924, %v4793
        %v4989 = vmul.f32 %v4925, %v4684
        %v4990 = vmul.f32 %v4926, %v4686
        %v4991 = vmul.f32 %v4927, %v4797
        %v4992 = vmul.f32 %v4928, %v4799
        %v4993 = vmul.f32 %v4929, %v4688
        %v4994 = vmul.f32 %v4930, %v4690
        %v4995 = vmul.f32 %v4931, %v4801
        %v4996 = vmul.f32 %v4932, %v4803
        %v4997 = vmul.f32 %v4933, %v4614
        %v4998 = vmul.f32 %v4934, %v4616
        %v4999 = vmul.f32 %v4935, %v4727
        %v5000 = vmul.f32 %v4936, %v4729
        %v5001 = vmul.f32 %v4937, %v4618
        %v5002 = vmul.f32 %v4938, %v4620
        %v5003 = vmul.f32 %v4939, %v4731
        %v5004 = vmul.f32 %v4940, %v4733
        %v5005 = vmul.f32 %v4941, %v4624
        %v5006 = vmul.f32 %v4942, %v4626
        %v5007 = vmul.f32 %v4943, %v4737
        %v5008 = vmul.f32 %v4944, %v4739
        %v5009 = vmul.f32 %v4945, %v4628
        %v5010 = vmul.f32 %v4946, %v4630
        %v5011 = vmul.f32 %v4947, %v4741
        %v5012 = vmul.f32 %v4948, %v4743
        %v5013 = vmul.f32 %v4949, %v4634
        %v5014 = vmul.f32 %v4950, %v4636
        %v5015 = vmul.f32 %v4951, %v4747
        %v5016 = vmul.f32 %v4952, %v4749
        %v5017 = vmul.f32 %v4953, %v4638
        %v5018 = vmul.f32 %v4954, %v4640
        %v5019 = vmul.f32 %v4955, %v4751
        %v5020 = vmul.f32 %v4956, %v4753
        %v5021 = vmul.f32 %v4957, %v4644
        %v5022 = vmul.f32 %v4958, %v4646
        %v5023 = vmul.f32 %v4959, %v4757
        %v5024 = vmul.f32 %v4960, %v4759
        %v5025 = vmul.f32 %v4961, %v4648
        %v5026 = vmul.f32 %v4962, %v4650
        %v5027 = vmul.f32 %v4963, %v4761
        %v5028 = vmul.f32 %v4964, %v4763
        %v5029 = vmul.f32 %v4965, %v4654
        %v5030 = vmul.f32 %v4966, %v4656
        %v5031 = vmul.f32 %v4967, %v4767
        %v5032 = vmul.f32 %v4968, %v4769
        %v5033 = vmul.f32 %v4969, %v4658
        %v5034 = vmul.f32 %v4970, %v4660
        %v5035 = vmul.f32 %v4971, %v4771
        %v5036 = vmul.f32 %v4972, %v4773
        %v5037 = vmul.f32 %v4973, %v4664
        %v5038 = vmul.f32 %v4974, %v4666
        %v5039 = vmul.f32 %v4975, %v4777
        %v5040 = vmul.f32 %v4976, %v4779
        %v5041 = vmul.f32 %v4977, %v4668
        %v5042 = vmul.f32 %v4978, %v4670
        %v5043 = vmul.f32 %v4979, %v4781
        %v5044 = vmul.f32 %v4980, %v4783
        %v5045 = vmul.f32 %v4981, %v4674
        %v5046 = vmul.f32 %v4982, %v4676
        %v5047 = vmul.f32 %v4983, %v4787
        %v5048 = vmul.f32 %v4984, %v4789
        %v5049 = vmul.f32 %v4985, %v4678
        %v5050 = vmul.f32 %v4986, %v4680
        %v5051 = vmul.f32 %v4987, %v4791
        %v5052 = vmul.f32 %v4988, %v4793
        %v5053 = vmul.f32 %v4989, %v4684
        %v5054 = vmul.f32 %v4990, %v4686
        %v5055 = vmul.f32 %v4991, %v4797
        %v5056 = vmul.f32 %v4992, %v4799
        %v5057 = vmul.f32 %v4993, %v4688
        %v5058 = vmul.f32 %v4994, %v4690
        %v5059 = vmul.f32 %v4995, %v4801
        %v5060 = vmul.f32 %v4996, %v4803
        %v5061 = vadd.f32 %v4614, %v4997
        %v5062 = vadd.f32 %v4616, %v4998
        %v5063 = vadd.f32 %v4727, %v4999
        %v5064 = vadd.f32 %v4729, %v5000
        %v5065 = vadd.f32 %v4618, %v5001
        %v5066 = vadd.f32 %v4620, %v5002
        %v5067 = vadd.f32 %v4731, %v5003
        %v5068 = vadd.f32 %v4733, %v5004
        %v5069 = vadd.f32 %v4624, %v5005
        %v5070 = vadd.f32 %v4626, %v5006
        %v5071 = vadd.f32 %v4737, %v5007
        %v5072 = vadd.f32 %v4739, %v5008
        %v5073 = vadd.f32 %v4628, %v5009
        %v5074 = vadd.f32 %v4630, %v5010
        %v5075 = vadd.f32 %v4741, %v5011
        %v5076 = vadd.f32 %v4743, %v5012
        %v5077 = vadd.f32 %v4634, %v5013
        %v5078 = vadd.f32 %v4636, %v5014
        %v5079 = vadd.f32 %v4747, %v5015
        %v5080 = vadd.f32 %v4749, %v5016
        %v5081 = vadd.f32 %v4638, %v5017
        %v5082 = vadd.f32 %v4640, %v5018
        %v5083 = vadd.f32 %v4751, %v5019
        %v5084 = vadd.f32 %v4753, %v5020
        %v5085 = vadd.f32 %v4644, %v5021
        %v5086 = vadd.f32 %v4646, %v5022
        %v5087 = vadd.f32 %v4757, %v5023
        %v5088 = vadd.f32 %v4759, %v5024
        %v5089 = vadd.f32 %v4648, %v5025
        %v5090 = vadd.f32 %v4650, %v5026
        %v5091 = vadd.f32 %v4761, %v5027
        %v5092 = vadd.f32 %v4763, %v5028
        %v5093 = vadd.f32 %v4654, %v5029
        %v5094 = vadd.f32 %v4656, %v5030
        %v5095 = vadd.f32 %v4767, %v5031
        %v5096 = vadd.f32 %v4769, %v5032
        %v5097 = vadd.f32 %v4658, %v5033
        %v5098 = vadd.f32 %v4660, %v5034
        %v5099 = vadd.f32 %v4771, %v5035
        %v5100 = vadd.f32 %v4773, %v5036
        %v5101 = vadd.f32 %v4664, %v5037
        %v5102 = vadd.f32 %v4666, %v5038
        %v5103 = vadd.f32 %v4777, %v5039
        %v5104 = vadd.f32 %v4779, %v5040
        %v5105 = vadd.f32 %v4668, %v5041
        %v5106 = vadd.f32 %v4670, %v5042
        %v5107 = vadd.f32 %v4781, %v5043
        %v5108 = vadd.f32 %v4783, %v5044
        %v5109 = vadd.f32 %v4674, %v5045
        %v5110 = vadd.f32 %v4676, %v5046
        %v5111 = vadd.f32 %v4787, %v5047
        %v5112 = vadd.f32 %v4789, %v5048
        %v5113 = vadd.f32 %v4678, %v5049
        %v5114 = vadd.f32 %v4680, %v5050
        %v5115 = vadd.f32 %v4791, %v5051
        %v5116 = vadd.f32 %v4793, %v5052
        %v5117 = vadd.f32 %v4684, %v5053
        %v5118 = vadd.f32 %v4686, %v5054
        %v5119 = vadd.f32 %v4797, %v5055
        %v5120 = vadd.f32 %v4799, %v5056
        %v5121 = vadd.f32 %v4688, %v5057
        %v5122 = vadd.f32 %v4690, %v5058
        %v5123 = vadd.f32 %v4801, %v5059
        %v5124 = vadd.f32 %v4803, %v5060
        %v5125 = vmul.f32 %v5061, 0.7978846
        %v5126 = vmul.f32 %v5062, 0.7978846
        %v5127 = vmul.f32 %v5063, 0.7978846
        %v5128 = vmul.f32 %v5064, 0.7978846
        %v5129 = vmul.f32 %v5065, 0.7978846
        %v5130 = vmul.f32 %v5066, 0.7978846
        %v5131 = vmul.f32 %v5067, 0.7978846
        %v5132 = vmul.f32 %v5068, 0.7978846
        %v5133 = vmul.f32 %v5069, 0.7978846
        %v5134 = vmul.f32 %v5070, 0.7978846
        %v5135 = vmul.f32 %v5071, 0.7978846
        %v5136 = vmul.f32 %v5072, 0.7978846
        %v5137 = vmul.f32 %v5073, 0.7978846
        %v5138 = vmul.f32 %v5074, 0.7978846
        %v5139 = vmul.f32 %v5075, 0.7978846
        %v5140 = vmul.f32 %v5076, 0.7978846
        %v5141 = vmul.f32 %v5077, 0.7978846
        %v5142 = vmul.f32 %v5078, 0.7978846
        %v5143 = vmul.f32 %v5079, 0.7978846
        %v5144 = vmul.f32 %v5080, 0.7978846
        %v5145 = vmul.f32 %v5081, 0.7978846
        %v5146 = vmul.f32 %v5082, 0.7978846
        %v5147 = vmul.f32 %v5083, 0.7978846
        %v5148 = vmul.f32 %v5084, 0.7978846
        %v5149 = vmul.f32 %v5085, 0.7978846
        %v5150 = vmul.f32 %v5086, 0.7978846
        %v5151 = vmul.f32 %v5087, 0.7978846
        %v5152 = vmul.f32 %v5088, 0.7978846
        %v5153 = vmul.f32 %v5089, 0.7978846
        %v5154 = vmul.f32 %v5090, 0.7978846
        %v5155 = vmul.f32 %v5091, 0.7978846
        %v5156 = vmul.f32 %v5092, 0.7978846
        %v5157 = vmul.f32 %v5093, 0.7978846
        %v5158 = vmul.f32 %v5094, 0.7978846
        %v5159 = vmul.f32 %v5095, 0.7978846
        %v5160 = vmul.f32 %v5096, 0.7978846
        %v5161 = vmul.f32 %v5097, 0.7978846
        %v5162 = vmul.f32 %v5098, 0.7978846
        %v5163 = vmul.f32 %v5099, 0.7978846
        %v5164 = vmul.f32 %v5100, 0.7978846
        %v5165 = vmul.f32 %v5101, 0.7978846
        %v5166 = vmul.f32 %v5102, 0.7978846
        %v5167 = vmul.f32 %v5103, 0.7978846
        %v5168 = vmul.f32 %v5104, 0.7978846
        %v5169 = vmul.f32 %v5105, 0.7978846
        %v5170 = vmul.f32 %v5106, 0.7978846
        %v5171 = vmul.f32 %v5107, 0.7978846
        %v5172 = vmul.f32 %v5108, 0.7978846
        %v5173 = vmul.f32 %v5109, 0.7978846
        %v5174 = vmul.f32 %v5110, 0.7978846
        %v5175 = vmul.f32 %v5111, 0.7978846
        %v5176 = vmul.f32 %v5112, 0.7978846
        %v5177 = vmul.f32 %v5113, 0.7978846
        %v5178 = vmul.f32 %v5114, 0.7978846
        %v5179 = vmul.f32 %v5115, 0.7978846
        %v5180 = vmul.f32 %v5116, 0.7978846
        %v5181 = vmul.f32 %v5117, 0.7978846
        %v5182 = vmul.f32 %v5118, 0.7978846
        %v5183 = vmul.f32 %v5119, 0.7978846
        %v5184 = vmul.f32 %v5120, 0.7978846
        %v5185 = vmul.f32 %v5121, 0.7978846
        %v5186 = vmul.f32 %v5122, 0.7978846
        %v5187 = vmul.f32 %v5123, 0.7978846
        %v5188 = vmul.f32 %v5124, 0.7978846
        %v5189 = vtanh.pop %v5125
        %v5190 = vtanh.pop %v5126
        %v5191 = vtanh.pop %v5127
        %v5192 = vtanh.pop %v5128
        %v5193 = vtanh.pop %v5129
        %v5194 = vtanh.pop %v5130
        %v5195 = vtanh.pop %v5131
        %v5196 = vtanh.pop %v5132
        %v5197 = vtanh.pop %v5133
        %v5198 = vtanh.pop %v5134
        %v5199 = vtanh.pop %v5135
        %v5200 = vtanh.pop %v5136
        %v5201 = vtanh.pop %v5137
        %v5202 = vtanh.pop %v5138
        %v5203 = vtanh.pop %v5139
        %v5204 = vtanh.pop %v5140
        %v5205 = vtanh.pop %v5141
        %v5206 = vtanh.pop %v5142
        %v5207 = vtanh.pop %v5143
        %v5208 = vtanh.pop %v5144
        %v5209 = vtanh.pop %v5145
        %v5210 = vtanh.pop %v5146
        %v5211 = vtanh.pop %v5147
        %v5212 = vtanh.pop %v5148
        %v5213 = vtanh.pop %v5149
        %v5214 = vtanh.pop %v5150
        %v5215 = vtanh.pop %v5151
        %v5216 = vtanh.pop %v5152
        %v5217 = vtanh.pop %v5153
        %v5218 = vtanh.pop %v5154
        %v5219 = vtanh.pop %v5155
        %v5220 = vtanh.pop %v5156
        %v5221 = vtanh.pop %v5157
        %v5222 = vtanh.pop %v5158
        %v5223 = vtanh.pop %v5159
        %v5224 = vtanh.pop %v5160
        %v5225 = vtanh.pop %v5161
        %v5226 = vtanh.pop %v5162
        %v5227 = vtanh.pop %v5163
        %v5228 = vtanh.pop %v5164
        %v5229 = vtanh.pop %v5165
        %v5230 = vtanh.pop %v5166
        %v5231 = vtanh.pop %v5167
        %v5232 = vtanh.pop %v5168
        %v5233 = vtanh.pop %v5169
        %v5234 = vtanh.pop %v5170
        %v5235 = vtanh.pop %v5171
        %v5236 = vtanh.pop %v5172
        %v5237 = vtanh.pop %v5173
        %v5238 = vtanh.pop %v5174
        %v5239 = vtanh.pop %v5175
        %v5240 = vtanh.pop %v5176
        %v5241 = vtanh.pop %v5177
        %v5242 = vtanh.pop %v5178
        %v5243 = vtanh.pop %v5179
        %v5244 = vtanh.pop %v5180
        %v5245 = vtanh.pop %v5181
        %v5246 = vtanh.pop %v5182
        %v5247 = vtanh.pop %v5183
        %v5248 = vtanh.pop %v5184
        %v5249 = vtanh.pop %v5185
        %v5250 = vtanh.pop %v5186
        %v5251 = vtanh.pop %v5187
        %v5252 = vtanh.pop %v5188
        %v5253 = vadd.f32 %v5189, 1.0
        %v5254 = vadd.f32 %v5190, 1.0
        %v5255 = vadd.f32 %v5191, 1.0
        %v5256 = vadd.f32 %v5192, 1.0
        %v5257 = vadd.f32 %v5193, 1.0
        %v5258 = vadd.f32 %v5194, 1.0
        %v5259 = vadd.f32 %v5195, 1.0
        %v5260 = vadd.f32 %v5196, 1.0
        %v5261 = vadd.f32 %v5197, 1.0
        %v5262 = vadd.f32 %v5198, 1.0
        %v5263 = vadd.f32 %v5199, 1.0
        %v5264 = vadd.f32 %v5200, 1.0
        %v5265 = vadd.f32 %v5201, 1.0
        %v5266 = vadd.f32 %v5202, 1.0
        %v5267 = vadd.f32 %v5203, 1.0
        %v5268 = vadd.f32 %v5204, 1.0
        %v5269 = vadd.f32 %v5205, 1.0
        %v5270 = vadd.f32 %v5206, 1.0
        %v5271 = vadd.f32 %v5207, 1.0
        %v5272 = vadd.f32 %v5208, 1.0
        %v5273 = vadd.f32 %v5209, 1.0
        %v5274 = vadd.f32 %v5210, 1.0
        %v5275 = vadd.f32 %v5211, 1.0
        %v5276 = vadd.f32 %v5212, 1.0
        %v5277 = vadd.f32 %v5213, 1.0
        %v5278 = vadd.f32 %v5214, 1.0
        %v5279 = vadd.f32 %v5215, 1.0
        %v5280 = vadd.f32 %v5216, 1.0
        %v5281 = vadd.f32 %v5217, 1.0
        %v5282 = vadd.f32 %v5218, 1.0
        %v5283 = vadd.f32 %v5219, 1.0
        %v5284 = vadd.f32 %v5220, 1.0
        %v5285 = vadd.f32 %v5221, 1.0
        %v5286 = vadd.f32 %v5222, 1.0
        %v5287 = vadd.f32 %v5223, 1.0
        %v5288 = vadd.f32 %v5224, 1.0
        %v5289 = vadd.f32 %v5225, 1.0
        %v5290 = vadd.f32 %v5226, 1.0
        %v5291 = vadd.f32 %v5227, 1.0
        %v5292 = vadd.f32 %v5228, 1.0
        %v5293 = vadd.f32 %v5229, 1.0
        %v5294 = vadd.f32 %v5230, 1.0
        %v5295 = vadd.f32 %v5231, 1.0
        %v5296 = vadd.f32 %v5232, 1.0
        %v5297 = vadd.f32 %v5233, 1.0
        %v5298 = vadd.f32 %v5234, 1.0
        %v5299 = vadd.f32 %v5235, 1.0
        %v5300 = vadd.f32 %v5236, 1.0
        %v5301 = vadd.f32 %v5237, 1.0
        %v5302 = vadd.f32 %v5238, 1.0
        %v5303 = vadd.f32 %v5239, 1.0
        %v5304 = vadd.f32 %v5240, 1.0
        %v5305 = vadd.f32 %v5241, 1.0
        %v5306 = vadd.f32 %v5242, 1.0
        %v5307 = vadd.f32 %v5243, 1.0
        %v5308 = vadd.f32 %v5244, 1.0
        %v5309 = vadd.f32 %v5245, 1.0
        %v5310 = vadd.f32 %v5246, 1.0
        %v5311 = vadd.f32 %v5247, 1.0
        %v5312 = vadd.f32 %v5248, 1.0
        %v5313 = vadd.f32 %v5249, 1.0
        %v5314 = vadd.f32 %v5250, 1.0
        %v5315 = vadd.f32 %v5251, 1.0
        %v5316 = vadd.f32 %v5252, 1.0
        %v5317 = vmul.f32 %v4805, %v5253
        %v5318 = vmul.f32 %v4806, %v5254
        %v5319 = vmul.f32 %v4807, %v5255
        %v5320 = vmul.f32 %v4808, %v5256
        %v5321 = vmul.f32 %v4809, %v5257
        %v5322 = vmul.f32 %v4810, %v5258
        %v5323 = vmul.f32 %v4811, %v5259
        %v5324 = vmul.f32 %v4812, %v5260
        %v5325 = vmul.f32 %v4813, %v5261
        %v5326 = vmul.f32 %v4814, %v5262
        %v5327 = vmul.f32 %v4815, %v5263
        %v5328 = vmul.f32 %v4816, %v5264
        %v5329 = vmul.f32 %v4817, %v5265
        %v5330 = vmul.f32 %v4818, %v5266
        %v5331 = vmul.f32 %v4819, %v5267
        %v5332 = vmul.f32 %v4820, %v5268
        %v5333 = vmul.f32 %v4821, %v5269
        %v5334 = vmul.f32 %v4822, %v5270
        %v5335 = vmul.f32 %v4823, %v5271
        %v5336 = vmul.f32 %v4824, %v5272
        %v5337 = vmul.f32 %v4825, %v5273
        %v5338 = vmul.f32 %v4826, %v5274
        %v5339 = vmul.f32 %v4827, %v5275
        %v5340 = vmul.f32 %v4828, %v5276
        %v5341 = vmul.f32 %v4829, %v5277
        %v5342 = vmul.f32 %v4830, %v5278
        %v5343 = vmul.f32 %v4831, %v5279
        %v5344 = vmul.f32 %v4832, %v5280
        %v5345 = vmul.f32 %v4833, %v5281
        %v5346 = vmul.f32 %v4834, %v5282
        %v5347 = vmul.f32 %v4835, %v5283
        %v5348 = vmul.f32 %v4836, %v5284
        %v5349 = vmul.f32 %v4837, %v5285
        %v5350 = vmul.f32 %v4838, %v5286
        %v5351 = vmul.f32 %v4839, %v5287
        %v5352 = vmul.f32 %v4840, %v5288
        %v5353 = vmul.f32 %v4841, %v5289
        %v5354 = vmul.f32 %v4842, %v5290
        %v5355 = vmul.f32 %v4843, %v5291
        %v5356 = vmul.f32 %v4844, %v5292
        %v5357 = vmul.f32 %v4845, %v5293
        %v5358 = vmul.f32 %v4846, %v5294
        %v5359 = vmul.f32 %v4847, %v5295
        %v5360 = vmul.f32 %v4848, %v5296
        %v5361 = vmul.f32 %v4849, %v5297
        %v5362 = vmul.f32 %v4850, %v5298
        %v5363 = vmul.f32 %v4851, %v5299
        %v5364 = vmul.f32 %v4852, %v5300
        %v5365 = vmul.f32 %v4853, %v5301
        %v5366 = vmul.f32 %v4854, %v5302
        %v5367 = vmul.f32 %v4855, %v5303
        %v5368 = vmul.f32 %v4856, %v5304
        %v5369 = vmul.f32 %v4857, %v5305
        %v5370 = vmul.f32 %v4858, %v5306
        %v5371 = vmul.f32 %v4859, %v5307
        %v5372 = vmul.f32 %v4860, %v5308
        %v5373 = vmul.f32 %v4861, %v5309
        %v5374 = vmul.f32 %v4862, %v5310
        %v5375 = vmul.f32 %v4863, %v5311
        %v5376 = vmul.f32 %v4864, %v5312
        %v5377 = vmul.f32 %v4865, %v5313
        %v5378 = vmul.f32 %v4866, %v5314
        %v5379 = vmul.f32 %v4867, %v5315
        %v5380 = vmul.f32 %v4868, %v5316
        %v5381 = vpack.c.bf16 %v5321, %v5317
        %v5382 = vpack.c.bf16 %v5322, %v5318
        %v5383 = vpack.c.bf16 %v5323, %v5319
        %v5384 = vpack.c.bf16 %v5324, %v5320
        %v5385 = vpack.c.bf16 %v5329, %v5325
        %v5386 = vpack.c.bf16 %v5330, %v5326
        %v5387 = vpack.c.bf16 %v5331, %v5327
        %v5388 = vpack.c.bf16 %v5332, %v5328
        %v5389 = vpack.c.bf16 %v5337, %v5333
        %v5390 = vpack.c.bf16 %v5338, %v5334
        %v5391 = vpack.c.bf16 %v5339, %v5335
        %v5392 = vpack.c.bf16 %v5340, %v5336
        %v5393 = vpack.c.bf16 %v5345, %v5341
        %v5394 = vpack.c.bf16 %v5346, %v5342
        %v5395 = vpack.c.bf16 %v5347, %v5343
        %v5396 = vpack.c.bf16 %v5348, %v5344
        %v5397 = vpack.c.bf16 %v5353, %v5349
        %v5398 = vpack.c.bf16 %v5354, %v5350
        %v5399 = vpack.c.bf16 %v5355, %v5351
        %v5400 = vpack.c.bf16 %v5356, %v5352
        %v5401 = vpack.c.bf16 %v5361, %v5357
        %v5402 = vpack.c.bf16 %v5362, %v5358
        %v5403 = vpack.c.bf16 %v5363, %v5359
        %v5404 = vpack.c.bf16 %v5364, %v5360
        %v5405 = vpack.c.bf16 %v5369, %v5365
        %v5406 = vpack.c.bf16 %v5370, %v5366
        %v5407 = vpack.c.bf16 %v5371, %v5367
        %v5408 = vpack.c.bf16 %v5372, %v5368
        %v5409 = vpack.c.bf16 %v5377, %v5373
        %v5410 = vpack.c.bf16 %v5378, %v5374
        %v5411 = vpack.c.bf16 %v5379, %v5375
        %v5412 = vpack.c.bf16 %v5380, %v5376
        %v5413 = vld [vmem:[%s766] sm:$0xff]
        %v5414 = vld [vmem:[%s766 + $0x8] sm:$0xff]
        %v5415 = vld [vmem:[%s766 + $0x10] sm:$0xff]
        %v5416 = vld [vmem:[%s766 + $0x18] sm:$0xff]
        %v5417 = vld [vmem:[%s766 + $0x20] sm:$0xff]
        %v5418 = vld [vmem:[%s766 + $0x28] sm:$0xff]
        %v5419 = vld [vmem:[%s766 + $0x30] sm:$0xff]
        %v5420 = vld [vmem:[%s766 + $0x38] sm:$0xff]
        %v5421 = vld [vmem:[%s766 + $0x40] sm:$0xff]
        %v5422 = vld [vmem:[%s766 + $0x48] sm:$0xff]
        %v5423 = vld [vmem:[%s766 + $0x50] sm:$0xff]
        %v5424 = vld [vmem:[%s766 + $0x58] sm:$0xff]
        %v5425 = vld [vmem:[%s766 + $0x60] sm:$0xff]
        %v5426 = vld [vmem:[%s766 + $0x68] sm:$0xff]
        %v5427 = vld [vmem:[%s766 + $0x70] sm:$0xff]
        %v5428 = vld [vmem:[%s766 + $0x78] sm:$0xff]
        %v5429 = vld [vmem:[%s766 + $0x80] sm:$0xff]
        %v5430 = vld [vmem:[%s766 + $0x88] sm:$0xff]
        %v5431 = vld [vmem:[%s766 + $0x90] sm:$0xff]
        %v5432 = vld [vmem:[%s766 + $0x98] sm:$0xff]
        %v5433 = vld [vmem:[%s766 + $0xa0] sm:$0xff]
        %v5434 = vld [vmem:[%s766 + $0xa8] sm:$0xff]
        %v5435 = vld [vmem:[%s766 + $0xb0] sm:$0xff]
        %v5436 = vld [vmem:[%s766 + $0xb8] sm:$0xff]
        %v5437 = vld [vmem:[%s766 + $0xc0] sm:$0xff]
        %v5438 = vld [vmem:[%s766 + $0xc8] sm:$0xff]
        %v5439 = vld [vmem:[%s766 + $0xd0] sm:$0xff]
        %v5440 = vld [vmem:[%s766 + $0xd8] sm:$0xff]
        %v5441 = vld [vmem:[%s766 + $0xe0] sm:$0xff]
        %v5442 = vld [vmem:[%s766 + $0xe8] sm:$0xff]
        %v5443 = vld [vmem:[%s766 + $0xf0] sm:$0xff]
        %v5444 = vld [vmem:[%s766 + $0xf8] sm:$0xff]
        %v5445 = vld [vmem:[%s766 + $0x100] sm:$0xff]
        %v5446 = vld [vmem:[%s766 + $0x108] sm:$0xff]
        %v5447 = vld [vmem:[%s766 + $0x110] sm:$0xff]
        %v5448 = vld [vmem:[%s766 + $0x118] sm:$0xff]
        %v5449 = vld [vmem:[%s766 + $0x120] sm:$0xff]
        %v5450 = vld [vmem:[%s766 + $0x128] sm:$0xff]
        %v5451 = vld [vmem:[%s766 + $0x130] sm:$0xff]
        %v5452 = vld [vmem:[%s766 + $0x138] sm:$0xff]
        %v5453 = vld [vmem:[%s766 + $0x140] sm:$0xff]
        %v5454 = vld [vmem:[%s766 + $0x148] sm:$0xff]
        %v5455 = vld [vmem:[%s766 + $0x150] sm:$0xff]
        %v5456 = vld [vmem:[%s766 + $0x158] sm:$0xff]
        %v5457 = vld [vmem:[%s766 + $0x160] sm:$0xff]
        %v5458 = vld [vmem:[%s766 + $0x168] sm:$0xff]
        %v5459 = vld [vmem:[%s766 + $0x170] sm:$0xff]
        %v5460 = vld [vmem:[%s766 + $0x178] sm:$0xff]
        %v5461 = vld [vmem:[%s766 + $0x180] sm:$0xff]
        %v5462 = vld [vmem:[%s766 + $0x188] sm:$0xff]
        %v5463 = vld [vmem:[%s766 + $0x190] sm:$0xff]
        %v5464 = vld [vmem:[%s766 + $0x198] sm:$0xff]
        %v5465 = vld [vmem:[%s766 + $0x1a0] sm:$0xff]
        %v5466 = vld [vmem:[%s766 + $0x1a8] sm:$0xff]
        %v5467 = vld [vmem:[%s766 + $0x1b0] sm:$0xff]
        %v5468 = vld [vmem:[%s766 + $0x1b8] sm:$0xff]
        %v5469 = vld [vmem:[%s766 + $0x1c0] sm:$0xff]
        %v5470 = vld [vmem:[%s766 + $0x1c8] sm:$0xff]
        %v5471 = vld [vmem:[%s766 + $0x1d0] sm:$0xff]
        %v5472 = vld [vmem:[%s766 + $0x1d8] sm:$0xff]
        %v5473 = vld [vmem:[%s766 + $0x1e0] sm:$0xff]
        %v5474 = vld [vmem:[%s766 + $0x1e8] sm:$0xff]
        %v5475 = vld [vmem:[%s766 + $0x1f0] sm:$0xff]
        %v5476 = vld [vmem:[%s766 + $0x1f8] sm:$0xff]
        %v5477 = vld [vmem:[%s775] sm:$0x3]
        %v5479 = vlaneseq
        %v5480 = vshrl.u32 %v5479, 7
        %v5481 = vsub.s32 0, %v5480
        %v5482 = vrot.slane %v5477, %v5481
        %v5483 = vlaneseq
        %v5484 = vshrl.u32 %v5483, 7
        %v5485 = vsub.s32 1, %v5484
        %v5486 = vrot.slane %v5477, %v5485
        %v5553 = vunpack.c.l.b16 %v5413
        %v5554 = vunpack.c.h.b16 %v5413
        %v5555 = vunpack.c.l.b16 %v5414
        %v5556 = vunpack.c.h.b16 %v5414
        %v5557 = vunpack.c.l.b16 %v5415
        %v5558 = vunpack.c.h.b16 %v5415
        %v5559 = vunpack.c.l.b16 %v5416
        %v5560 = vunpack.c.h.b16 %v5416
        %v5561 = vunpack.c.l.b16 %v5417
        %v5562 = vunpack.c.h.b16 %v5417
        %v5563 = vunpack.c.l.b16 %v5418
        %v5564 = vunpack.c.h.b16 %v5418
        %v5565 = vunpack.c.l.b16 %v5419
        %v5566 = vunpack.c.h.b16 %v5419
        %v5567 = vunpack.c.l.b16 %v5420
        %v5568 = vunpack.c.h.b16 %v5420
        %v5569 = vunpack.c.l.b16 %v5421
        %v5570 = vunpack.c.h.b16 %v5421
        %v5571 = vunpack.c.l.b16 %v5422
        %v5572 = vunpack.c.h.b16 %v5422
        %v5573 = vunpack.c.l.b16 %v5423
        %v5574 = vunpack.c.h.b16 %v5423
        %v5575 = vunpack.c.l.b16 %v5424
        %v5576 = vunpack.c.h.b16 %v5424
        %v5577 = vunpack.c.l.b16 %v5425
        %v5578 = vunpack.c.h.b16 %v5425
        %v5579 = vunpack.c.l.b16 %v5426
        %v5580 = vunpack.c.h.b16 %v5426
        %v5581 = vunpack.c.l.b16 %v5427
        %v5582 = vunpack.c.h.b16 %v5427
        %v5583 = vunpack.c.l.b16 %v5428
        %v5584 = vunpack.c.h.b16 %v5428
        %v5585 = vunpack.c.l.b16 %v5429
        %v5586 = vunpack.c.h.b16 %v5429
        %v5587 = vunpack.c.l.b16 %v5430
        %v5588 = vunpack.c.h.b16 %v5430
        %v5589 = vunpack.c.l.b16 %v5431
        %v5590 = vunpack.c.h.b16 %v5431
        %v5591 = vunpack.c.l.b16 %v5432
        %v5592 = vunpack.c.h.b16 %v5432
        %v5593 = vunpack.c.l.b16 %v5433
        %v5594 = vunpack.c.h.b16 %v5433
        %v5595 = vunpack.c.l.b16 %v5434
        %v5596 = vunpack.c.h.b16 %v5434
        %v5597 = vunpack.c.l.b16 %v5435
        %v5598 = vunpack.c.h.b16 %v5435
        %v5599 = vunpack.c.l.b16 %v5436
        %v5600 = vunpack.c.h.b16 %v5436
        %v5601 = vunpack.c.l.b16 %v5437
        %v5602 = vunpack.c.h.b16 %v5437
        %v5603 = vunpack.c.l.b16 %v5438
        %v5604 = vunpack.c.h.b16 %v5438
        %v5605 = vunpack.c.l.b16 %v5439
        %v5606 = vunpack.c.h.b16 %v5439
        %v5607 = vunpack.c.l.b16 %v5440
        %v5608 = vunpack.c.h.b16 %v5440
        %v5609 = vunpack.c.l.b16 %v5441
        %v5610 = vunpack.c.h.b16 %v5441
        %v5611 = vunpack.c.l.b16 %v5442
        %v5612 = vunpack.c.h.b16 %v5442
        %v5613 = vunpack.c.l.b16 %v5443
        %v5614 = vunpack.c.h.b16 %v5443
        %v5615 = vunpack.c.l.b16 %v5444
        %v5616 = vunpack.c.h.b16 %v5444
        %v5617 = vunpack.c.l.b16 %v5445
        %v5618 = vunpack.c.h.b16 %v5445
        %v5619 = vunpack.c.l.b16 %v5446
        %v5620 = vunpack.c.h.b16 %v5446
        %v5621 = vunpack.c.l.b16 %v5447
        %v5622 = vunpack.c.h.b16 %v5447
        %v5623 = vunpack.c.l.b16 %v5448
        %v5624 = vunpack.c.h.b16 %v5448
        %v5625 = vunpack.c.l.b16 %v5449
        %v5626 = vunpack.c.h.b16 %v5449
        %v5627 = vunpack.c.l.b16 %v5450
        %v5628 = vunpack.c.h.b16 %v5450
        %v5629 = vunpack.c.l.b16 %v5451
        %v5630 = vunpack.c.h.b16 %v5451
        %v5631 = vunpack.c.l.b16 %v5452
        %v5632 = vunpack.c.h.b16 %v5452
        %v5633 = vunpack.c.l.b16 %v5453
        %v5634 = vunpack.c.h.b16 %v5453
        %v5635 = vunpack.c.l.b16 %v5454
        %v5636 = vunpack.c.h.b16 %v5454
        %v5637 = vunpack.c.l.b16 %v5455
        %v5638 = vunpack.c.h.b16 %v5455
        %v5639 = vunpack.c.l.b16 %v5456
        %v5640 = vunpack.c.h.b16 %v5456
        %v5641 = vunpack.c.l.b16 %v5457
        %v5642 = vunpack.c.h.b16 %v5457
        %v5643 = vunpack.c.l.b16 %v5458
        %v5644 = vunpack.c.h.b16 %v5458
        %v5645 = vunpack.c.l.b16 %v5459
        %v5646 = vunpack.c.h.b16 %v5459
        %v5647 = vunpack.c.l.b16 %v5460
        %v5648 = vunpack.c.h.b16 %v5460
        %v5649 = vunpack.c.l.b16 %v5461
        %v5650 = vunpack.c.h.b16 %v5461
        %v5651 = vunpack.c.l.b16 %v5462
        %v5652 = vunpack.c.h.b16 %v5462
        %v5653 = vunpack.c.l.b16 %v5463
        %v5654 = vunpack.c.h.b16 %v5463
        %v5655 = vunpack.c.l.b16 %v5464
        %v5656 = vunpack.c.h.b16 %v5464
        %v5657 = vunpack.c.l.b16 %v5465
        %v5658 = vunpack.c.h.b16 %v5465
        %v5659 = vunpack.c.l.b16 %v5466
        %v5660 = vunpack.c.h.b16 %v5466
        %v5661 = vunpack.c.l.b16 %v5467
        %v5662 = vunpack.c.h.b16 %v5467
        %v5663 = vunpack.c.l.b16 %v5468
        %v5664 = vunpack.c.h.b16 %v5468
        %v5665 = vunpack.c.l.b16 %v5469
        %v5666 = vunpack.c.h.b16 %v5469
        %v5667 = vunpack.c.l.b16 %v5470
        %v5668 = vunpack.c.h.b16 %v5470
        %v5669 = vunpack.c.l.b16 %v5471
        %v5670 = vunpack.c.h.b16 %v5471
        %v5671 = vunpack.c.l.b16 %v5472
        %v5672 = vunpack.c.h.b16 %v5472
        %v5673 = vunpack.c.l.b16 %v5473
        %v5674 = vunpack.c.h.b16 %v5473
        %v5675 = vunpack.c.l.b16 %v5474
        %v5676 = vunpack.c.h.b16 %v5474
        %v5677 = vunpack.c.l.b16 %v5475
        %v5678 = vunpack.c.h.b16 %v5475
        %v5679 = vunpack.c.l.b16 %v5476
        %v5680 = vunpack.c.h.b16 %v5476
        %v5681 = vpack.c.b16 %v5555, %v5553
        %v5682 = vpack.c.b16 %v5556, %v5554
        %v5683 = vpack.c.b16 %v5559, %v5557
        %v5684 = vpack.c.b16 %v5560, %v5558
        %v5685 = vpack.c.b16 %v5563, %v5561
        %v5686 = vpack.c.b16 %v5564, %v5562
        %v5687 = vpack.c.b16 %v5567, %v5565
        %v5688 = vpack.c.b16 %v5568, %v5566
        %v5689 = vpack.c.b16 %v5571, %v5569
        %v5690 = vpack.c.b16 %v5572, %v5570
        %v5691 = vpack.c.b16 %v5575, %v5573
        %v5692 = vpack.c.b16 %v5576, %v5574
        %v5693 = vpack.c.b16 %v5579, %v5577
        %v5694 = vpack.c.b16 %v5580, %v5578
        %v5695 = vpack.c.b16 %v5583, %v5581
        %v5696 = vpack.c.b16 %v5584, %v5582
        %v5697 = vpack.c.b16 %v5587, %v5585
        %v5698 = vpack.c.b16 %v5588, %v5586
        %v5699 = vpack.c.b16 %v5591, %v5589
        %v5700 = vpack.c.b16 %v5592, %v5590
        %v5701 = vpack.c.b16 %v5595, %v5593
        %v5702 = vpack.c.b16 %v5596, %v5594
        %v5703 = vpack.c.b16 %v5599, %v5597
        %v5704 = vpack.c.b16 %v5600, %v5598
        %v5705 = vpack.c.b16 %v5603, %v5601
        %v5706 = vpack.c.b16 %v5604, %v5602
        %v5707 = vpack.c.b16 %v5607, %v5605
        %v5708 = vpack.c.b16 %v5608, %v5606
        %v5709 = vpack.c.b16 %v5611, %v5609
        %v5710 = vpack.c.b16 %v5612, %v5610
        %v5711 = vpack.c.b16 %v5615, %v5613
        %v5712 = vpack.c.b16 %v5616, %v5614
        %v5713 = vpack.c.b16 %v5619, %v5617
        %v5714 = vpack.c.b16 %v5620, %v5618
        %v5715 = vpack.c.b16 %v5623, %v5621
        %v5716 = vpack.c.b16 %v5624, %v5622
        %v5717 = vpack.c.b16 %v5627, %v5625
        %v5718 = vpack.c.b16 %v5628, %v5626
        %v5719 = vpack.c.b16 %v5631, %v5629
        %v5720 = vpack.c.b16 %v5632, %v5630
        %v5721 = vpack.c.b16 %v5635, %v5633
        %v5722 = vpack.c.b16 %v5636, %v5634
        %v5723 = vpack.c.b16 %v5639, %v5637
        %v5724 = vpack.c.b16 %v5640, %v5638
        %v5725 = vpack.c.b16 %v5643, %v5641
        %v5726 = vpack.c.b16 %v5644, %v5642
        %v5727 = vpack.c.b16 %v5647, %v5645
        %v5728 = vpack.c.b16 %v5648, %v5646
        %v5729 = vpack.c.b16 %v5651, %v5649
        %v5730 = vpack.c.b16 %v5652, %v5650
        %v5731 = vpack.c.b16 %v5655, %v5653
        %v5732 = vpack.c.b16 %v5656, %v5654
        %v5733 = vpack.c.b16 %v5659, %v5657
        %v5734 = vpack.c.b16 %v5660, %v5658
        %v5735 = vpack.c.b16 %v5663, %v5661
        %v5736 = vpack.c.b16 %v5664, %v5662
        %v5737 = vpack.c.b16 %v5667, %v5665
        %v5738 = vpack.c.b16 %v5668, %v5666
        %v5739 = vpack.c.b16 %v5671, %v5669
        %v5740 = vpack.c.b16 %v5672, %v5670
        %v5741 = vpack.c.b16 %v5675, %v5673
        %v5742 = vpack.c.b16 %v5676, %v5674
        %v5743 = vpack.c.b16 %v5679, %v5677
        %v5744 = vpack.c.b16 %v5680, %v5678
        %5809 = vmatprep.subr.bf16.mxu0 %v5682
        %5810 = vmatpush1.bf16.msra.mxu0 %v5681
        %5811 = vmatprep.subr.bf16.mxu0 %v5684
        %5812 = vmatpush1.bf16.msra.mxu0 %v5683
        %5813 = vmatprep.subr.bf16.mxu0 %v5686
        %5814 = vmatpush1.bf16.msra.mxu0 %v5685
        %5815 = vmatprep.subr.bf16.mxu0 %v5688
        %5816 = vmatpush1.bf16.msra.mxu0 %v5687
        %5817 = vmatprep.subr.bf16.mxu0 %v5690
        %5818 = vmatpush1.bf16.msra.mxu0 %v5689
        %5819 = vmatprep.subr.bf16.mxu0 %v5692
        %5820 = vmatpush1.bf16.msra.mxu0 %v5691
        %5821 = vmatprep.subr.bf16.mxu0 %v5694
        %5822 = vmatpush1.bf16.msra.mxu0 %v5693
        %5823 = vmatprep.subr.bf16.mxu0 %v5696
        %5824 = vmatpush1.bf16.msra.mxu0 %v5695
        %5825 = vmatprep.subr.bf16.mxu0 %v5698
        %5826 = vmatpush1.bf16.msra.mxu0 %v5697
        %5827 = vmatprep.subr.bf16.mxu0 %v5700
        %5828 = vmatpush1.bf16.msra.mxu0 %v5699
        %5829 = vmatprep.subr.bf16.mxu0 %v5702
        %5830 = vmatpush1.bf16.msra.mxu0 %v5701
        %5831 = vmatprep.subr.bf16.mxu0 %v5704
        %5832 = vmatpush1.bf16.msra.mxu0 %v5703
        %5833 = vmatprep.subr.bf16.mxu0 %v5706
        %5834 = vmatpush1.bf16.msra.mxu0 %v5705
        %5835 = vmatprep.subr.bf16.mxu0 %v5708
        %5836 = vmatpush1.bf16.msra.mxu0 %v5707
        %5837 = vmatprep.subr.bf16.mxu0 %v5710
        %5838 = vmatpush1.bf16.msra.mxu0 %v5709
        %5839 = vmatprep.subr.bf16.mxu0 %v5712
        %5840 = vmatpush1.bf16.msra.mxu0 %v5711
        %5841 = vmatprep.mubr.bf16.mxu0 %v5382
        %5842 = vmatmul.mubr.bf16.gmra.mrb[0].mxu0 %v5381
        %v5843 = vpop.f32.mrb[0].mxu0
        %v5844 = vadd.f32 %v5482, %v5843
        %v5845 = vpop.f32.mrb[0].mxu0
        %v5846 = vadd.f32 %v5486, %v5845
        %v5847 = vpop.f32.mrb[0].mxu0
        %v5848 = vadd.f32 %v5482, %v5847
        %v5849 = vpop.f32.mrb[0].mxu0
        %v5850 = vadd.f32 %v5486, %v5849
        %5851 = vmatprep.mubr.bf16.mxu0 %v5386
        %5852 = vmatmul.mubr.bf16.gmra.mrb[0].mxu0 %v5385
        %v5853 = vpop.f32.mrb[0].mxu0
        %v5854 = vadd.f32 %v5482, %v5853
        %v5855 = vpop.f32.mrb[0].mxu0
        %v5856 = vadd.f32 %v5486, %v5855
        %v5857 = vpop.f32.mrb[0].mxu0
        %v5858 = vadd.f32 %v5482, %v5857
        %v5859 = vpop.f32.mrb[0].mxu0
        %v5860 = vadd.f32 %v5486, %v5859
        %5861 = vmatprep.mubr.bf16.mxu0 %v5390
        %5862 = vmatmul.mubr.bf16.gmra.mrb[0].mxu0 %v5389
        %v5863 = vpop.f32.mrb[0].mxu0
        %v5864 = vadd.f32 %v5482, %v5863
        %v5865 = vpop.f32.mrb[0].mxu0
        %v5866 = vadd.f32 %v5486, %v5865
        %v5867 = vpop.f32.mrb[0].mxu0
        %v5868 = vadd.f32 %v5482, %v5867
        %v5869 = vpop.f32.mrb[0].mxu0
        %v5870 = vadd.f32 %v5486, %v5869
        %5871 = vmatprep.mubr.bf16.mxu0 %v5394
        %5872 = vmatmul.mubr.bf16.gmra.mrb[0].mxu0 %v5393
        %v5873 = vpop.f32.mrb[0].mxu0
        %v5874 = vadd.f32 %v5482, %v5873
        %v5875 = vpop.f32.mrb[0].mxu0
        %v5876 = vadd.f32 %v5486, %v5875
        %v5877 = vpop.f32.mrb[0].mxu0
        %v5878 = vadd.f32 %v5482, %v5877
        %v5879 = vpop.f32.mrb[0].mxu0
        %v5880 = vadd.f32 %v5486, %v5879
        %5881 = vmatprep.mubr.bf16.mxu0 %v5398
        %5882 = vmatmul.mubr.bf16.gmra.mrb[0].mxu0 %v5397
        %v5883 = vpop.f32.mrb[0].mxu0
        %v5884 = vadd.f32 %v5482, %v5883
        %v5885 = vpop.f32.mrb[0].mxu0
        %v5886 = vadd.f32 %v5486, %v5885
        %v5887 = vpop.f32.mrb[0].mxu0
        %v5888 = vadd.f32 %v5482, %v5887
        %v5889 = vpop.f32.mrb[0].mxu0
        %v5890 = vadd.f32 %v5486, %v5889
        %5891 = vmatprep.mubr.bf16.mxu0 %v5402
        %5892 = vmatmul.mubr.bf16.gmra.mrb[0].mxu0 %v5401
        %v5893 = vpop.f32.mrb[0].mxu0
        %v5894 = vadd.f32 %v5482, %v5893
        %v5895 = vpop.f32.mrb[0].mxu0
        %v5896 = vadd.f32 %v5486, %v5895
        %v5897 = vpop.f32.mrb[0].mxu0
        %v5898 = vadd.f32 %v5482, %v5897
        %v5899 = vpop.f32.mrb[0].mxu0
        %v5900 = vadd.f32 %v5486, %v5899
        %5901 = vmatprep.mubr.bf16.mxu0 %v5406
        %5902 = vmatmul.mubr.bf16.gmra.mrb[0].mxu0 %v5405
        %v5903 = vpop.f32.mrb[0].mxu0
        %v5904 = vadd.f32 %v5482, %v5903
        %v5905 = vpop.f32.mrb[0].mxu0
        %v5906 = vadd.f32 %v5486, %v5905
        %v5907 = vpop.f32.mrb[0].mxu0
        %v5908 = vadd.f32 %v5482, %v5907
        %v5909 = vpop.f32.mrb[0].mxu0
        %v5910 = vadd.f32 %v5486, %v5909
        %5911 = vmatprep.mubr.bf16.mxu0 %v5410
        %5912 = vmatmul.mubr.bf16.gmra.mrb[0].mxu0 %v5409
        %v5913 = vpop.f32.mrb[0].mxu0
        %v5914 = vadd.f32 %v5482, %v5913
        %v5915 = vpop.f32.mrb[0].mxu0
        %v5916 = vadd.f32 %v5486, %v5915
        %v5917 = vpop.f32.mrb[0].mxu0
        %v5918 = vadd.f32 %v5482, %v5917
        %v5919 = vpop.f32.mrb[0].mxu0
        %v5920 = vadd.f32 %v5486, %v5919
        %5921 = vdwg.mxu0
        %5922 = vmatprep.subr.bf16.mxu0 %v5714
        %5923 = vmatpush1.bf16.msra.mxu0 %v5713
        %5924 = vmatprep.subr.bf16.mxu0 %v5716
        %5925 = vmatpush1.bf16.msra.mxu0 %v5715
        %5926 = vmatprep.subr.bf16.mxu0 %v5718
        %5927 = vmatpush1.bf16.msra.mxu0 %v5717
        %5928 = vmatprep.subr.bf16.mxu0 %v5720
        %5929 = vmatpush1.bf16.msra.mxu0 %v5719
        %5930 = vmatprep.subr.bf16.mxu0 %v5722
        %5931 = vmatpush1.bf16.msra.mxu0 %v5721
        %5932 = vmatprep.subr.bf16.mxu0 %v5724
        %5933 = vmatpush1.bf16.msra.mxu0 %v5723
        %5934 = vmatprep.subr.bf16.mxu0 %v5726
        %5935 = vmatpush1.bf16.msra.mxu0 %v5725
        %5936 = vmatprep.subr.bf16.mxu0 %v5728
        %5937 = vmatpush1.bf16.msra.mxu0 %v5727
        %5938 = vmatprep.subr.bf16.mxu0 %v5730
        %5939 = vmatpush1.bf16.msra.mxu0 %v5729
        %5940 = vmatprep.subr.bf16.mxu0 %v5732
        %5941 = vmatpush1.bf16.msra.mxu0 %v5731
        %5942 = vmatprep.subr.bf16.mxu0 %v5734
        %5943 = vmatpush1.bf16.msra.mxu0 %v5733
        %5944 = vmatprep.subr.bf16.mxu0 %v5736
        %5945 = vmatpush1.bf16.msra.mxu0 %v5735
        %5946 = vmatprep.subr.bf16.mxu0 %v5738
        %5947 = vmatpush1.bf16.msra.mxu0 %v5737
        %5948 = vmatprep.subr.bf16.mxu0 %v5740
        %5949 = vmatpush1.bf16.msra.mxu0 %v5739
        %5950 = vmatprep.subr.bf16.mxu0 %v5742
        %5951 = vmatpush1.bf16.msra.mxu0 %v5741
        %5952 = vmatprep.subr.bf16.mxu0 %v5744
        %5953 = vmatpush1.bf16.msra.mxu0 %v5743
        %5954 = vmatprep.mubr.bf16.mxu0 %v5384
        %5955 = vmatmul.mubr.bf16.gmra.mrb[0].mxu0 %v5383
        %v5956 = vpop.f32.mrb[0].mxu0
        %v5957 = vadd.f32 %v5844, %v5956
        %v5958 = vpop.f32.mrb[0].mxu0
        %v5959 = vadd.f32 %v5846, %v5958
        %v5960 = vpop.f32.mrb[0].mxu0
        %v5961 = vadd.f32 %v5848, %v5960
        %v5962 = vpop.f32.mrb[0].mxu0
        %v5963 = vadd.f32 %v5850, %v5962
        %5964 = vmatprep.mubr.bf16.mxu0 %v5388
        %5965 = vmatmul.mubr.bf16.gmra.mrb[0].mxu0 %v5387
        %v5966 = vpop.f32.mrb[0].mxu0
        %v5967 = vadd.f32 %v5854, %v5966
        %v5968 = vpop.f32.mrb[0].mxu0
        %v5969 = vadd.f32 %v5856, %v5968
        %v5970 = vpop.f32.mrb[0].mxu0
        %v5971 = vadd.f32 %v5858, %v5970
        %v5972 = vpop.f32.mrb[0].mxu0
        %v5973 = vadd.f32 %v5860, %v5972
        %5974 = vmatprep.mubr.bf16.mxu0 %v5392
        %5975 = vmatmul.mubr.bf16.gmra.mrb[0].mxu0 %v5391
        %v5976 = vpop.f32.mrb[0].mxu0
        %v5977 = vadd.f32 %v5864, %v5976
        %v5978 = vpop.f32.mrb[0].mxu0
        %v5979 = vadd.f32 %v5866, %v5978
        %v5980 = vpop.f32.mrb[0].mxu0
        %v5981 = vadd.f32 %v5868, %v5980
        %v5982 = vpop.f32.mrb[0].mxu0
        %v5983 = vadd.f32 %v5870, %v5982
        %5984 = vmatprep.mubr.bf16.mxu0 %v5396
        %5985 = vmatmul.mubr.bf16.gmra.mrb[0].mxu0 %v5395
        %v5986 = vpop.f32.mrb[0].mxu0
        %v5987 = vadd.f32 %v5874, %v5986
        %v5988 = vpop.f32.mrb[0].mxu0
        %v5989 = vadd.f32 %v5876, %v5988
        %v5990 = vpop.f32.mrb[0].mxu0
        %v5991 = vadd.f32 %v5878, %v5990
        %v5992 = vpop.f32.mrb[0].mxu0
        %v5993 = vadd.f32 %v5880, %v5992
        %5994 = vmatprep.mubr.bf16.mxu0 %v5400
        %5995 = vmatmul.mubr.bf16.gmra.mrb[0].mxu0 %v5399
        %v5996 = vpop.f32.mrb[0].mxu0
        %v5997 = vadd.f32 %v5884, %v5996
        %v5998 = vpop.f32.mrb[0].mxu0
        %v5999 = vadd.f32 %v5886, %v5998
        %v6000 = vpop.f32.mrb[0].mxu0
        %v6001 = vadd.f32 %v5888, %v6000
        %v6002 = vpop.f32.mrb[0].mxu0
        %v6003 = vadd.f32 %v5890, %v6002
        %6004 = vmatprep.mubr.bf16.mxu0 %v5404
        %6005 = vmatmul.mubr.bf16.gmra.mrb[0].mxu0 %v5403
        %v6006 = vpop.f32.mrb[0].mxu0
        %v6007 = vadd.f32 %v5894, %v6006
        %v6008 = vpop.f32.mrb[0].mxu0
        %v6009 = vadd.f32 %v5896, %v6008
        %v6010 = vpop.f32.mrb[0].mxu0
        %v6011 = vadd.f32 %v5898, %v6010
        %v6012 = vpop.f32.mrb[0].mxu0
        %v6013 = vadd.f32 %v5900, %v6012
        %6014 = vmatprep.mubr.bf16.mxu0 %v5408
        %6015 = vmatmul.mubr.bf16.gmra.mrb[0].mxu0 %v5407
        %v6016 = vpop.f32.mrb[0].mxu0
        %v6017 = vadd.f32 %v5904, %v6016
        %v6018 = vpop.f32.mrb[0].mxu0
        %v6019 = vadd.f32 %v5906, %v6018
        %v6020 = vpop.f32.mrb[0].mxu0
        %v6021 = vadd.f32 %v5908, %v6020
        %v6022 = vpop.f32.mrb[0].mxu0
        %v6023 = vadd.f32 %v5910, %v6022
        %6024 = vmatprep.mubr.bf16.mxu0 %v5412
        %6025 = vmatmul.mubr.bf16.gmra.mrb[0].mxu0 %v5411
        %v6026 = vpop.f32.mrb[0].mxu0
        %v6027 = vadd.f32 %v5914, %v6026
        %v6028 = vpop.f32.mrb[0].mxu0
        %v6029 = vadd.f32 %v5916, %v6028
        %v6030 = vpop.f32.mrb[0].mxu0
        %v6031 = vadd.f32 %v5918, %v6030
        %v6032 = vpop.f32.mrb[0].mxu0
        %v6033 = vadd.f32 %v5920, %v6032
        %6034 = vdwg.mxu0
        %v6035 = vadd.f32 %v3749, %v5957
        %v6036 = vadd.f32 %v3750, %v5959
        %v6037 = vadd.f32 %v3751, %v5961
        %v6038 = vadd.f32 %v3752, %v5963
        %v6039 = vadd.f32 %v3753, %v5967
        %v6040 = vadd.f32 %v3754, %v5969
        %v6041 = vadd.f32 %v3755, %v5971
        %v6042 = vadd.f32 %v3756, %v5973
        %v6043 = vadd.f32 %v3757, %v5977
        %v6044 = vadd.f32 %v3758, %v5979
        %v6045 = vadd.f32 %v3759, %v5981
        %v6046 = vadd.f32 %v3760, %v5983
        %v6047 = vadd.f32 %v3761, %v5987
        %v6048 = vadd.f32 %v3762, %v5989
        %v6049 = vadd.f32 %v3763, %v5991
        %v6050 = vadd.f32 %v3764, %v5993
        %v6051 = vadd.f32 %v3765, %v5997
        %v6052 = vadd.f32 %v3766, %v5999
        %v6053 = vadd.f32 %v3767, %v6001
        %v6054 = vadd.f32 %v3768, %v6003
        %v6055 = vadd.f32 %v3769, %v6007
        %v6056 = vadd.f32 %v3770, %v6009
        %v6057 = vadd.f32 %v3771, %v6011
        %v6058 = vadd.f32 %v3772, %v6013
        %v6059 = vadd.f32 %v3773, %v6017
        %v6060 = vadd.f32 %v3774, %v6019
        %v6061 = vadd.f32 %v3775, %v6021
        %v6062 = vadd.f32 %v3776, %v6023
        %v6063 = vadd.f32 %v3777, %v6027
        %v6064 = vadd.f32 %v3778, %v6029
        %v6065 = vadd.f32 %v3779, %v6031
        %v6066 = vadd.f32 %v3780, %v6033
        %6067 = vst [vmem:[#allocation2] sm:$0xff] %v6035
        %6068 = vst [vmem:[#allocation2 + $0x8] sm:$0xff] %v6036
        %6069 = vst [vmem:[#allocation2 + $0x10] sm:$0xff] %v6037
        %6070 = vst [vmem:[#allocation2 + $0x18] sm:$0xff] %v6038
        %6071 = vst [vmem:[#allocation2 + $0x20] sm:$0xff] %v6039
        %6072 = vst [vmem:[#allocation2 + $0x28] sm:$0xff] %v6040
        %6073 = vst [vmem:[#allocation2 + $0x30] sm:$0xff] %v6041
        %6074 = vst [vmem:[#allocation2 + $0x38] sm:$0xff] %v6042
        %6075 = vst [vmem:[#allocation2 + $0x40] sm:$0xff] %v6043
        %6076 = vst [vmem:[#allocation2 + $0x48] sm:$0xff] %v6044
        %6077 = vst [vmem:[#allocation2 + $0x50] sm:$0xff] %v6045
        %6078 = vst [vmem:[#allocation2 + $0x58] sm:$0xff] %v6046
        %6079 = vst [vmem:[#allocation2 + $0x60] sm:$0xff] %v6047
        %6080 = vst [vmem:[#allocation2 + $0x68] sm:$0xff] %v6048
        %6081 = vst [vmem:[#allocation2 + $0x70] sm:$0xff] %v6049
        %6082 = vst [vmem:[#allocation2 + $0x78] sm:$0xff] %v6050
        %6083 = vst [vmem:[#allocation2 + $0x80] sm:$0xff] %v6051
        %6084 = vst [vmem:[#allocation2 + $0x88] sm:$0xff] %v6052
        %6085 = vst [vmem:[#allocation2 + $0x90] sm:$0xff] %v6053
        %6086 = vst [vmem:[#allocation2 + $0x98] sm:$0xff] %v6054
        %6087 = vst [vmem:[#allocation2 + $0xa0] sm:$0xff] %v6055
        %6088 = vst [vmem:[#allocation2 + $0xa8] sm:$0xff] %v6056
        %6089 = vst [vmem:[#allocation2 + $0xb0] sm:$0xff] %v6057
        %6090 = vst [vmem:[#allocation2 + $0xb8] sm:$0xff] %v6058
        %6091 = vst [vmem:[#allocation2 + $0xc0] sm:$0xff] %v6059
        %6092 = vst [vmem:[#allocation2 + $0xc8] sm:$0xff] %v6060
        %6093 = vst [vmem:[#allocation2 + $0xd0] sm:$0xff] %v6061
        %6094 = vst [vmem:[#allocation2 + $0xd8] sm:$0xff] %v6062
        %6095 = vst [vmem:[#allocation2 + $0xe0] sm:$0xff] %v6063
        %6096 = vst [vmem:[#allocation2 + $0xe8] sm:$0xff] %v6064
        %6097 = vst [vmem:[#allocation2 + $0xf0] sm:$0xff] %v6065
        %6098 = vst [vmem:[#allocation2 + $0xf8] sm:$0xff] %v6066
        %p6099 = scmp.eq.s32.totalorder %s46, 1
        // Predicated region
        $region125: #{decoder_forward.1} parent=83 // pred_check
          %p6100 = pneg %p6099
        $region126: #{decoder_forward.1} parent=83 // pred_check_branch
          %6102 = sbr.rel (%p6100) target = $region128
        $region127: #{decoder_forward.1} parent=83 // pred_region
          %v6103 = vpack.c.bf16 %v6037, %v6035
          %v6104 = vpack.c.bf16 %v6038, %v6036
          %v6105 = vpack.c.bf16 %v6041, %v6039
          %v6106 = vpack.c.bf16 %v6042, %v6040
          %v6107 = vpack.c.bf16 %v6045, %v6043
          %v6108 = vpack.c.bf16 %v6046, %v6044
          %v6109 = vpack.c.bf16 %v6049, %v6047
          %v6110 = vpack.c.bf16 %v6050, %v6048
          %v6111 = vpack.c.bf16 %v6053, %v6051
          %v6112 = vpack.c.bf16 %v6054, %v6052
          %v6113 = vpack.c.bf16 %v6057, %v6055
          %v6114 = vpack.c.bf16 %v6058, %v6056
          %v6115 = vpack.c.bf16 %v6061, %v6059
          %v6116 = vpack.c.bf16 %v6062, %v6060
          %v6117 = vpack.c.bf16 %v6065, %v6063
          %v6118 = vpack.c.bf16 %v6066, %v6064
          %v6119 = vld [vmem:[#allocation18] sm:$0xf]
          %v6120 = vld [vmem:[#allocation18 + $0x4] sm:$0xf]
          %v6121 = vld [vmem:[#allocation18 + $0x8] sm:$0xf]
          %v6122 = vld [vmem:[#allocation18 + $0xc] sm:$0xf]
          %v6123 = vld [vmem:[#allocation18 + $0x10] sm:$0xf]
          %v6124 = vld [vmem:[#allocation18 + $0x14] sm:$0xf]
          %v6125 = vld [vmem:[#allocation18 + $0x18] sm:$0xf]
          %v6126 = vld [vmem:[#allocation18 + $0x1c] sm:$0xf]
          %v6127 = vld [vmem:[#allocation18 + $0x20] sm:$0xf]
          %v6128 = vld [vmem:[#allocation18 + $0x24] sm:$0xf]
          %v6129 = vld [vmem:[#allocation18 + $0x28] sm:$0xf]
          %v6130 = vld [vmem:[#allocation18 + $0x2c] sm:$0xf]
          %v6131 = vld [vmem:[#allocation18 + $0x30] sm:$0xf]
          %v6132 = vld [vmem:[#allocation18 + $0x34] sm:$0xf]
          %v6133 = vld [vmem:[#allocation18 + $0x38] sm:$0xf]
          %v6134 = vld [vmem:[#allocation18 + $0x3c] sm:$0xf]
          %v6135 = vld [vmem:[#allocation18 + $0x40] sm:$0xf]
          %v6136 = vld [vmem:[#allocation18 + $0x44] sm:$0xf]
          %v6137 = vld [vmem:[#allocation18 + $0x48] sm:$0xf]
          %v6138 = vld [vmem:[#allocation18 + $0x4c] sm:$0xf]
          %v6139 = vld [vmem:[#allocation18 + $0x50] sm:$0xf]
          %v6140 = vld [vmem:[#allocation18 + $0x54] sm:$0xf]
          %v6141 = vld [vmem:[#allocation18 + $0x58] sm:$0xf]
          %v6142 = vld [vmem:[#allocation18 + $0x5c] sm:$0xf]
          %v6143 = vld [vmem:[#allocation18 + $0x60] sm:$0xf]
          %v6144 = vld [vmem:[#allocation18 + $0x64] sm:$0xf]
          %v6145 = vld [vmem:[#allocation18 + $0x68] sm:$0xf]
          %v6146 = vld [vmem:[#allocation18 + $0x6c] sm:$0xf]
          %v6147 = vld [vmem:[#allocation18 + $0x70] sm:$0xf]
          %v6148 = vld [vmem:[#allocation18 + $0x74] sm:$0xf]
          %v6149 = vld [vmem:[#allocation18 + $0x78] sm:$0xf]
          %v6150 = vld [vmem:[#allocation18 + $0x7c] sm:$0xf]
          %v6183 = vunpack.c.l.b16 %v6119
          %v6184 = vunpack.c.l.b16 %v6120
          %v6185 = vunpack.c.l.b16 %v6121
          %v6186 = vunpack.c.l.b16 %v6122
          %v6187 = vunpack.c.l.b16 %v6123
          %v6188 = vunpack.c.l.b16 %v6124
          %v6189 = vunpack.c.l.b16 %v6125
          %v6190 = vunpack.c.l.b16 %v6126
          %v6191 = vunpack.c.l.b16 %v6127
          %v6192 = vunpack.c.l.b16 %v6128
          %v6193 = vunpack.c.l.b16 %v6129
          %v6194 = vunpack.c.l.b16 %v6130
          %v6195 = vunpack.c.l.b16 %v6131
          %v6196 = vunpack.c.l.b16 %v6132
          %v6197 = vunpack.c.l.b16 %v6133
          %v6198 = vunpack.c.l.b16 %v6134
          %v6199 = vunpack.c.l.b16 %v6135
          %v6200 = vunpack.c.l.b16 %v6136
          %v6201 = vunpack.c.l.b16 %v6137
          %v6202 = vunpack.c.l.b16 %v6138
          %v6203 = vunpack.c.l.b16 %v6139
          %v6204 = vunpack.c.l.b16 %v6140
          %v6205 = vunpack.c.l.b16 %v6141
          %v6206 = vunpack.c.l.b16 %v6142
          %v6207 = vunpack.c.l.b16 %v6143
          %v6208 = vunpack.c.l.b16 %v6144
          %v6209 = vunpack.c.l.b16 %v6145
          %v6210 = vunpack.c.l.b16 %v6146
          %v6211 = vunpack.c.l.b16 %v6147
          %v6212 = vunpack.c.l.b16 %v6148
          %v6213 = vunpack.c.l.b16 %v6149
          %v6214 = vunpack.c.l.b16 %v6150
          %v6215 = vpack.c.b16 %v6184, %v6183
          %v6216 = vpack.c.b16 %v6186, %v6185
          %v6217 = vpack.c.b16 %v6188, %v6187
          %v6218 = vpack.c.b16 %v6190, %v6189
          %v6219 = vpack.c.b16 %v6192, %v6191
          %v6220 = vpack.c.b16 %v6194, %v6193
          %v6221 = vpack.c.b16 %v6196, %v6195
          %v6222 = vpack.c.b16 %v6198, %v6197
          %v6223 = vpack.c.b16 %v6200, %v6199
          %v6224 = vpack.c.b16 %v6202, %v6201
          %v6225 = vpack.c.b16 %v6204, %v6203
          %v6226 = vpack.c.b16 %v6206, %v6205
          %v6227 = vpack.c.b16 %v6208, %v6207
          %v6228 = vpack.c.b16 %v6210, %v6209
          %v6229 = vpack.c.b16 %v6212, %v6211
          %v6230 = vpack.c.b16 %v6214, %v6213
          %6247 = vmatprep.subr.bf16.mxu0 0
          %6248 = vmatpush1.bf16.msra.mxu0 %v6215
          %6249 = vmatprep.subr.bf16.mxu0 0
          %6250 = vmatpush1.bf16.msra.mxu0 %v6216
          %6251 = vmatprep.subr.bf16.mxu0 0
          %6252 = vmatpush1.bf16.msra.mxu0 %v6217
          %6253 = vmatprep.subr.bf16.mxu0 0
          %6254 = vmatpush1.bf16.msra.mxu0 %v6218
          %6255 = vmatprep.subr.bf16.mxu0 0
          %6256 = vmatpush1.bf16.msra.mxu0 %v6219
          %6257 = vmatprep.subr.bf16.mxu0 0
          %6258 = vmatpush1.bf16.msra.mxu0 %v6220
          %6259 = vmatprep.subr.bf16.mxu0 0
          %6260 = vmatpush1.bf16.msra.mxu0 %v6221
          %6261 = vmatprep.subr.bf16.mxu0 0
          %6262 = vmatpush1.bf16.msra.mxu0 %v6222
          %6263 = vmatprep.subr.bf16.mxu0 0
          %6264 = vmatpush1.bf16.msra.mxu0 %v6223
          %6265 = vmatprep.subr.bf16.mxu0 0
          %6266 = vmatpush1.bf16.msra.mxu0 %v6224
          %6267 = vmatprep.subr.bf16.mxu0 0
          %6268 = vmatpush1.bf16.msra.mxu0 %v6225
          %6269 = vmatprep.subr.bf16.mxu0 0
          %6270 = vmatpush1.bf16.msra.mxu0 %v6226
          %6271 = vmatprep.subr.bf16.mxu0 0
          %6272 = vmatpush1.bf16.msra.mxu0 %v6227
          %6273 = vmatprep.subr.bf16.mxu0 0
          %6274 = vmatpush1.bf16.msra.mxu0 %v6228
          %6275 = vmatprep.subr.bf16.mxu0 0
          %6276 = vmatpush1.bf16.msra.mxu0 %v6229
          %6277 = vmatprep.subr.bf16.mxu0 0
          %6278 = vmatpush1.bf16.msra.mxu0 %v6230
          %6279 = vmatprep.mubr.bf16.mxu0 %v6104
          %6280 = vmatmul.mubr.bf16.gmra.mrb[0].mxu0 %v6103
          %v6281 = vpop.f32.mrb[0].mxu0
          %v6282 = vadd.f32 0.0, %v6281
          %v6283 = vpop.f32.mrb[0].mxu0
          %v6284 = vpop.f32.mrb[0].mxu0
          %v6285 = vadd.f32 0.0, %v6284
          %v6286 = vpop.f32.mrb[0].mxu0
          %6287 = vmatprep.mubr.bf16.mxu0 %v6106
          %6288 = vmatmul.mubr.bf16.gmra.mrb[0].mxu0 %v6105
          %v6289 = vpop.f32.mrb[0].mxu0
          %v6290 = vadd.f32 0.0, %v6289
          %v6291 = vpop.f32.mrb[0].mxu0
          %v6292 = vpop.f32.mrb[0].mxu0
          %v6293 = vadd.f32 0.0, %v6292
          %v6294 = vpop.f32.mrb[0].mxu0
          %6295 = vmatprep.mubr.bf16.mxu0 %v6108
          %6296 = vmatmul.mubr.bf16.gmra.mrb[0].mxu0 %v6107
          %v6297 = vpop.f32.mrb[0].mxu0
          %v6298 = vadd.f32 0.0, %v6297
          %v6299 = vpop.f32.mrb[0].mxu0
          %v6300 = vpop.f32.mrb[0].mxu0
          %v6301 = vadd.f32 0.0, %v6300
          %v6302 = vpop.f32.mrb[0].mxu0
          %6303 = vmatprep.mubr.bf16.mxu0 %v6110
          %6304 = vmatmul.mubr.bf16.gmra.mrb[0].mxu0 %v6109
          %v6305 = vpop.f32.mrb[0].mxu0
          %v6306 = vadd.f32 0.0, %v6305
          %v6307 = vpop.f32.mrb[0].mxu0
          %v6308 = vpop.f32.mrb[0].mxu0
          %v6309 = vadd.f32 0.0, %v6308
          %v6310 = vpop.f32.mrb[0].mxu0
          %6311 = vmatprep.mubr.bf16.mxu0 %v6112
          %6312 = vmatmul.mubr.bf16.gmra.mrb[0].mxu0 %v6111
          %v6313 = vpop.f32.mrb[0].mxu0
          %v6314 = vadd.f32 0.0, %v6313
          %v6315 = vpop.f32.mrb[0].mxu0
          %v6316 = vpop.f32.mrb[0].mxu0
          %v6317 = vadd.f32 0.0, %v6316
          %v6318 = vpop.f32.mrb[0].mxu0
          %6319 = vmatprep.mubr.bf16.mxu0 %v6114
          %6320 = vmatmul.mubr.bf16.gmra.mrb[0].mxu0 %v6113
          %v6321 = vpop.f32.mrb[0].mxu0
          %v6322 = vadd.f32 0.0, %v6321
          %v6323 = vpop.f32.mrb[0].mxu0
          %v6324 = vpop.f32.mrb[0].mxu0
          %v6325 = vadd.f32 0.0, %v6324
          %v6326 = vpop.f32.mrb[0].mxu0
          %6327 = vmatprep.mubr.bf16.mxu0 %v6116
          %6328 = vmatmul.mubr.bf16.gmra.mrb[0].mxu0 %v6115
          %v6329 = vpop.f32.mrb[0].mxu0
          %v6330 = vadd.f32 0.0, %v6329
          %v6331 = vpop.f32.mrb[0].mxu0
          %v6332 = vpop.f32.mrb[0].mxu0
          %v6333 = vadd.f32 0.0, %v6332
          %v6334 = vpop.f32.mrb[0].mxu0
          %6335 = vmatprep.mubr.bf16.mxu0 %v6118
          %6336 = vmatmul.mubr.bf16.gmra.mrb[0].mxu0 %v6117
          %v6337 = vpop.f32.mrb[0].mxu0
          %v6338 = vadd.f32 0.0, %v6337
          %v6339 = vpop.f32.mrb[0].mxu0
          %v6340 = vpop.f32.mrb[0].mxu0
          %v6341 = vadd.f32 0.0, %v6340
          %v6342 = vpop.f32.mrb[0].mxu0
          %6343 = vdwg.mxu0
          %v6344 = vld [vmem:[%s14] sm:$0x1]
          %v6345 = vld [vmem:[%s15] sm:$0x1]
          %6346 = vadd.xlane.f32.xlu0 %v6282
          %v6347 = vpop.xlane.xlu0 %6346
          %6348 = vadd.xlane.f32.xlu0 %v6285
          %v6349 = vpop.xlane.xlu0 %6348
          %6350 = vadd.xlane.f32.xlu0 %v6290
          %v6351 = vpop.xlane.xlu0 %6350
          %6352 = vadd.xlane.f32.xlu0 %v6293
          %v6353 = vpop.xlane.xlu0 %6352
          %6354 = vadd.xlane.f32.xlu0 %v6298
          %v6355 = vpop.xlane.xlu0 %6354
          %6356 = vadd.xlane.f32.xlu0 %v6301
          %v6357 = vpop.xlane.xlu0 %6356
          %6358 = vadd.xlane.f32.xlu0 %v6306
          %v6359 = vpop.xlane.xlu0 %6358
          %6360 = vadd.xlane.f32.xlu0 %v6309
          %v6361 = vpop.xlane.xlu0 %6360
          %6362 = vadd.xlane.f32.xlu0 %v6314
          %v6363 = vpop.xlane.xlu0 %6362
          %6364 = vadd.xlane.f32.xlu0 %v6317
          %v6365 = vpop.xlane.xlu0 %6364
          %6366 = vadd.xlane.f32.xlu0 %v6322
          %v6367 = vpop.xlane.xlu0 %6366
          %6368 = vadd.xlane.f32.xlu0 %v6325
          %v6369 = vpop.xlane.xlu0 %6368
          %6370 = vadd.xlane.f32.xlu0 %v6330
          %v6371 = vpop.xlane.xlu0 %6370
          %6372 = vadd.xlane.f32.xlu0 %v6333
          %v6373 = vpop.xlane.xlu0 %6372
          %6374 = vadd.xlane.f32.xlu0 %v6338
          %v6375 = vpop.xlane.xlu0 %6374
          %6376 = vadd.xlane.f32.xlu0 %v6341
          %v6377 = vpop.xlane.xlu0 %6376
          %v6378 = vmul.f32 %v6282, %v6282
          %v6379 = vmul.f32 %v6285, %v6285
          %v6380 = vmul.f32 %v6290, %v6290
          %v6381 = vmul.f32 %v6293, %v6293
          %v6382 = vmul.f32 %v6298, %v6298
          %v6383 = vmul.f32 %v6301, %v6301
          %v6384 = vmul.f32 %v6306, %v6306
          %v6385 = vmul.f32 %v6309, %v6309
          %v6386 = vmul.f32 %v6314, %v6314
          %v6387 = vmul.f32 %v6317, %v6317
          %v6388 = vmul.f32 %v6322, %v6322
          %v6389 = vmul.f32 %v6325, %v6325
          %v6390 = vmul.f32 %v6330, %v6330
          %v6391 = vmul.f32 %v6333, %v6333
          %v6392 = vmul.f32 %v6338, %v6338
          %v6393 = vmul.f32 %v6341, %v6341
          %6394 = vadd.xlane.f32.xlu0 %v6378
          %v6395 = vpop.xlane.xlu0 %6394
          %6396 = vadd.xlane.f32.xlu0 %v6379
          %v6397 = vpop.xlane.xlu0 %6396
          %6398 = vadd.xlane.f32.xlu0 %v6380
          %v6399 = vpop.xlane.xlu0 %6398
          %6400 = vadd.xlane.f32.xlu0 %v6381
          %v6401 = vpop.xlane.xlu0 %6400
          %6402 = vadd.xlane.f32.xlu0 %v6382
          %v6403 = vpop.xlane.xlu0 %6402
          %6404 = vadd.xlane.f32.xlu0 %v6383
          %v6405 = vpop.xlane.xlu0 %6404
          %6406 = vadd.xlane.f32.xlu0 %v6384
          %v6407 = vpop.xlane.xlu0 %6406
          %6408 = vadd.xlane.f32.xlu0 %v6385
          %v6409 = vpop.xlane.xlu0 %6408
          %6410 = vadd.xlane.f32.xlu0 %v6386
          %v6411 = vpop.xlane.xlu0 %6410
          %6412 = vadd.xlane.f32.xlu0 %v6387
          %v6413 = vpop.xlane.xlu0 %6412
          %6414 = vadd.xlane.f32.xlu0 %v6388
          %v6415 = vpop.xlane.xlu0 %6414
          %6416 = vadd.xlane.f32.xlu0 %v6389
          %v6417 = vpop.xlane.xlu0 %6416
          %6418 = vadd.xlane.f32.xlu0 %v6390
          %v6419 = vpop.xlane.xlu0 %6418
          %6420 = vadd.xlane.f32.xlu0 %v6391
          %v6421 = vpop.xlane.xlu0 %6420
          %6422 = vadd.xlane.f32.xlu0 %v6392
          %v6423 = vpop.xlane.xlu0 %6422
          %6424 = vadd.xlane.f32.xlu0 %v6393
          %v6425 = vpop.xlane.xlu0 %6424
          %v6426 = vmul.f32 %v6347, 0.0078125
          %v6427 = vmul.f32 %v6349, 0.0078125
          %v6428 = vmul.f32 %v6351, 0.0078125
          %v6429 = vmul.f32 %v6353, 0.0078125
          %v6430 = vmul.f32 %v6355, 0.0078125
          %v6431 = vmul.f32 %v6357, 0.0078125
          %v6432 = vmul.f32 %v6359, 0.0078125
          %v6433 = vmul.f32 %v6361, 0.0078125
          %v6434 = vmul.f32 %v6363, 0.0078125
          %v6435 = vmul.f32 %v6365, 0.0078125
          %v6436 = vmul.f32 %v6367, 0.0078125
          %v6437 = vmul.f32 %v6369, 0.0078125
          %v6438 = vmul.f32 %v6371, 0.0078125
          %v6439 = vmul.f32 %v6373, 0.0078125
          %v6440 = vmul.f32 %v6375, 0.0078125
          %v6441 = vmul.f32 %v6377, 0.0078125
          %v6442 = vmul.f32 %v6395, 0.0078125
          %v6443 = vmul.f32 %v6397, 0.0078125
          %v6444 = vmul.f32 %v6399, 0.0078125
          %v6445 = vmul.f32 %v6401, 0.0078125
          %v6446 = vmul.f32 %v6403, 0.0078125
          %v6447 = vmul.f32 %v6405, 0.0078125
          %v6448 = vmul.f32 %v6407, 0.0078125
          %v6449 = vmul.f32 %v6409, 0.0078125
          %v6450 = vmul.f32 %v6411, 0.0078125
          %v6451 = vmul.f32 %v6413, 0.0078125
          %v6452 = vmul.f32 %v6415, 0.0078125
          %v6453 = vmul.f32 %v6417, 0.0078125
          %v6454 = vmul.f32 %v6419, 0.0078125
          %v6455 = vmul.f32 %v6421, 0.0078125
          %v6456 = vmul.f32 %v6423, 0.0078125
          %v6457 = vmul.f32 %v6425, 0.0078125
          %v6458 = vmul.f32 %v6426, %v6426
          %v6459 = vmul.f32 %v6427, %v6427
          %v6460 = vmul.f32 %v6428, %v6428
          %v6461 = vmul.f32 %v6429, %v6429
          %v6462 = vmul.f32 %v6430, %v6430
          %v6463 = vmul.f32 %v6431, %v6431
          %v6464 = vmul.f32 %v6432, %v6432
          %v6465 = vmul.f32 %v6433, %v6433
          %v6466 = vmul.f32 %v6434, %v6434
          %v6467 = vmul.f32 %v6435, %v6435
          %v6468 = vmul.f32 %v6436, %v6436
          %v6469 = vmul.f32 %v6437, %v6437
          %v6470 = vmul.f32 %v6438, %v6438
          %v6471 = vmul.f32 %v6439, %v6439
          %v6472 = vmul.f32 %v6440, %v6440
          %v6473 = vmul.f32 %v6441, %v6441
          %v6474 = vsub.f32 %v6442, %v6458
          %v6475 = vsub.f32 %v6443, %v6459
          %v6476 = vsub.f32 %v6444, %v6460
          %v6477 = vsub.f32 %v6445, %v6461
          %v6478 = vsub.f32 %v6446, %v6462
          %v6479 = vsub.f32 %v6447, %v6463
          %v6480 = vsub.f32 %v6448, %v6464
          %v6481 = vsub.f32 %v6449, %v6465
          %v6482 = vsub.f32 %v6450, %v6466
          %v6483 = vsub.f32 %v6451, %v6467
          %v6484 = vsub.f32 %v6452, %v6468
          %v6485 = vsub.f32 %v6453, %v6469
          %v6486 = vsub.f32 %v6454, %v6470
          %v6487 = vsub.f32 %v6455, %v6471
          %v6488 = vsub.f32 %v6456, %v6472
          %v6489 = vsub.f32 %v6457, %v6473
          %v6490 = vsub.f32 %v6282, %v6426
          %v6491 = vsub.f32 %v6285, %v6427
          %v6492 = vsub.f32 %v6290, %v6428
          %v6493 = vsub.f32 %v6293, %v6429
          %v6494 = vsub.f32 %v6298, %v6430
          %v6495 = vsub.f32 %v6301, %v6431
          %v6496 = vsub.f32 %v6306, %v6432
          %v6497 = vsub.f32 %v6309, %v6433
          %v6498 = vsub.f32 %v6314, %v6434
          %v6499 = vsub.f32 %v6317, %v6435
          %v6500 = vsub.f32 %v6322, %v6436
          %v6501 = vsub.f32 %v6325, %v6437
          %v6502 = vsub.f32 %v6330, %v6438
          %v6503 = vsub.f32 %v6333, %v6439
          %v6504 = vsub.f32 %v6338, %v6440
          %v6505 = vsub.f32 %v6341, %v6441
          %v6506 = vadd.f32 %v6474, 1e-05
          %v6507 = vadd.f32 %v6475, 1e-05
          %v6508 = vadd.f32 %v6476, 1e-05
          %v6509 = vadd.f32 %v6477, 1e-05
          %v6510 = vadd.f32 %v6478, 1e-05
          %v6511 = vadd.f32 %v6479, 1e-05
          %v6512 = vadd.f32 %v6480, 1e-05
          %v6513 = vadd.f32 %v6481, 1e-05
          %v6514 = vadd.f32 %v6482, 1e-05
          %v6515 = vadd.f32 %v6483, 1e-05
          %v6516 = vadd.f32 %v6484, 1e-05
          %v6517 = vadd.f32 %v6485, 1e-05
          %v6518 = vadd.f32 %v6486, 1e-05
          %v6519 = vadd.f32 %v6487, 1e-05
          %v6520 = vadd.f32 %v6488, 1e-05
          %v6521 = vadd.f32 %v6489, 1e-05
          %v6522 = vrsqrt.pop %v6506
          %v6523 = vrsqrt.pop %v6507
          %v6524 = vrsqrt.pop %v6508
          %v6525 = vrsqrt.pop %v6509
          %v6526 = vrsqrt.pop %v6510
          %v6527 = vrsqrt.pop %v6511
          %v6528 = vrsqrt.pop %v6512
          %v6529 = vrsqrt.pop %v6513
          %v6530 = vrsqrt.pop %v6514
          %v6531 = vrsqrt.pop %v6515
          %v6532 = vrsqrt.pop %v6516
          %v6533 = vrsqrt.pop %v6517
          %v6534 = vrsqrt.pop %v6518
          %v6535 = vrsqrt.pop %v6519
          %v6536 = vrsqrt.pop %v6520
          %v6537 = vrsqrt.pop %v6521
          %v6538 = vmul.f32 %v6490, %v6522
          %v6539 = vmul.f32 %v6491, %v6523
          %v6540 = vmul.f32 %v6492, %v6524
          %v6541 = vmul.f32 %v6493, %v6525
          %v6542 = vmul.f32 %v6494, %v6526
          %v6543 = vmul.f32 %v6495, %v6527
          %v6544 = vmul.f32 %v6496, %v6528
          %v6545 = vmul.f32 %v6497, %v6529
          %v6546 = vmul.f32 %v6498, %v6530
          %v6547 = vmul.f32 %v6499, %v6531
          %v6548 = vmul.f32 %v6500, %v6532
          %v6549 = vmul.f32 %v6501, %v6533
          %v6550 = vmul.f32 %v6502, %v6534
          %v6551 = vmul.f32 %v6503, %v6535
          %v6552 = vmul.f32 %v6504, %v6536
          %v6553 = vmul.f32 %v6505, %v6537
          %v6555 = vlaneseq
          %v6556 = vshrl.u32 %v6555, 7
          %v6557 = vsub.s32 0, %v6556
          %v6558 = vrot.slane %v6344, %v6557
          %v6560 = vmul.f32 %v6538, %v6558
          %v6561 = vmul.f32 %v6539, %v6558
          %v6562 = vmul.f32 %v6540, %v6558
          %v6563 = vmul.f32 %v6541, %v6558
          %v6564 = vmul.f32 %v6542, %v6558
          %v6565 = vmul.f32 %v6543, %v6558
          %v6566 = vmul.f32 %v6544, %v6558
          %v6567 = vmul.f32 %v6545, %v6558
          %v6568 = vmul.f32 %v6546, %v6558
          %v6569 = vmul.f32 %v6547, %v6558
          %v6570 = vmul.f32 %v6548, %v6558
          %v6571 = vmul.f32 %v6549, %v6558
          %v6572 = vmul.f32 %v6550, %v6558
          %v6573 = vmul.f32 %v6551, %v6558
          %v6574 = vmul.f32 %v6552, %v6558
          %v6575 = vmul.f32 %v6553, %v6558
          %v6577 = vlaneseq
          %v6578 = vshrl.u32 %v6577, 7
          %v6579 = vsub.s32 0, %v6578
          %v6580 = vrot.slane %v6345, %v6579
          %v6582 = vadd.f32 %v6560, %v6580
          %v6583 = vadd.f32 %v6561, %v6580
          %v6584 = vadd.f32 %v6562, %v6580
          %v6585 = vadd.f32 %v6563, %v6580
          %v6586 = vadd.f32 %v6564, %v6580
          %v6587 = vadd.f32 %v6565, %v6580
          %v6588 = vadd.f32 %v6566, %v6580
          %v6589 = vadd.f32 %v6567, %v6580
          %v6590 = vadd.f32 %v6568, %v6580
          %v6591 = vadd.f32 %v6569, %v6580
          %v6592 = vadd.f32 %v6570, %v6580
          %v6593 = vadd.f32 %v6571, %v6580
          %v6594 = vadd.f32 %v6572, %v6580
          %v6595 = vadd.f32 %v6573, %v6580
          %v6596 = vadd.f32 %v6574, %v6580
          %v6597 = vadd.f32 %v6575, %v6580
          %6598 = vst [vmem:[#allocation19] sm:$0xff] %v6582
          %6599 = vst [vmem:[#allocation19 + $0x8] sm:$0xff] %v6583
          %6600 = vst [vmem:[#allocation19 + $0x10] sm:$0xff] %v6584
          %6601 = vst [vmem:[#allocation19 + $0x18] sm:$0xff] %v6585
          %6602 = vst [vmem:[#allocation19 + $0x20] sm:$0xff] %v6586
          %6603 = vst [vmem:[#allocation19 + $0x28] sm:$0xff] %v6587
          %6604 = vst [vmem:[#allocation19 + $0x30] sm:$0xff] %v6588
          %6605 = vst [vmem:[#allocation19 + $0x38] sm:$0xff] %v6589
          %6606 = vst [vmem:[#allocation19 + $0x40] sm:$0xff] %v6590
          %6607 = vst [vmem:[#allocation19 + $0x48] sm:$0xff] %v6591
          %6608 = vst [vmem:[#allocation19 + $0x50] sm:$0xff] %v6592
          %6609 = vst [vmem:[#allocation19 + $0x58] sm:$0xff] %v6593
          %6610 = vst [vmem:[#allocation19 + $0x60] sm:$0xff] %v6594
          %6611 = vst [vmem:[#allocation19 + $0x68] sm:$0xff] %v6595
          %6612 = vst [vmem:[#allocation19 + $0x70] sm:$0xff] %v6596
          %6613 = vst [vmem:[#allocation19 + $0x78] sm:$0xff] %v6597
        $region128: #{decoder_forward.1} parent=83 // pred_fallthru
          _
        // Predicated region
        $region129: #{decoder_forward.1} parent=83 // pred_check
          %p6614 = pneg %p472
        $region130: #{decoder_forward.1} parent=83 // pred_check_branch
          %6616 = sbr.rel (%p6614) target = $region132
        $region131: #{decoder_forward.1} parent=83 // pred_region
          %s6617 = smul.u32 16, %s45
          %s6619 = ssub.s32 2048, 2048
          %6620 = vsyncadd [#allocation6], %s6619
          %s6621 = smul.addr %s6617, 128
          %s6622 = scalar_lea.hbm %s16, %s6621
          %s6623 = sshll.u32 [#allocation19], 4
          %s6624 = int_to_ptr.vmem [resolvable:$true] %s6623
          %6629 = dma.vmem_to_hbm [thread:$0]  %s6624, 2048, %s6622, [#allocation6], 128, 128, 8
        $region132: #{decoder_forward.1} parent=83 // pred_fallthru
          _
        // Predicated region
        $region133: #{decoder_forward.1} parent=83 // pred_check
          %p6630 = pneg %p472
        $region134: #{decoder_forward.1} parent=83 // pred_check_branch
          %6632 = sbr.rel (%p6630) target = $region136
        $region135: #{decoder_forward.1} parent=83 // pred_region
          %6633 = dma.done [#allocation6], 2048
        $region136: #{decoder_forward.1} parent=83 // pred_fallthru
          _
      $region84: #{decoder_forward.1} parent=5 // pred_fallthru
        _
      %p6634 = scmp.le.s32.totalorder 2, %s36
      // Predicated region
      $region137: #{decoder_forward.1} parent=5 // pred_check
        %p6635 = pneg %p6634
      $region138: #{decoder_forward.1} parent=5 // pred_check_branch
        %6637 = sbr.rel (%p6635) target = $region140
      $region139: #{decoder_forward.1} parent=5 // pred_region
        %s6638 = ssub.s32 %s36, 2
      $region140: #{decoder_forward.1} parent=5 // pred_fallthru
        _
    $region6: #{decoder_forward.1} parent=1 // loop_footer
      %s40 = sadd.s32 1, %s36
    $region7: #{decoder_forward.1} parent=1 // loop_footer_branch
      %35 = sbr.rel target = $region3
    $region8: #{decoder_forward.1} parent=1 // loop_exit
      _
    %6639 = vsyncpa [#allocation5], 1
    %s6640 = scalar_lea.sflag [#allocation5], 1
    %6641 = vsyncpa %s6640, 1
    %6642 = vsyncpa [#allocation8], 1
    %s6643 = scalar_lea.sflag [#allocation8], 1
    %6644 = vsyncpa %s6643, 1
    %6645 = vsyncpa [#allocation11], 1
    %s6646 = scalar_lea.sflag [#allocation11], 1
    %6647 = vsyncpa %s6646, 1
    %6648 = vsyncpa [#allocation14], 1
    %s6649 = scalar_lea.sflag [#allocation14], 1
    %6650 = vsyncpa %s6649, 1
    %6651 = vsyncpa [#allocation17], 1
    %s6652 = scalar_lea.sflag [#allocation17], 1
    %6653 = vsyncpa %s6652, 1
    %6654 = vsyncpa [#allocation6], 1
    %s6655 = scalar_lea.sflag [#allocation6], 1
    %6656 = vsyncpa %s6655, 1

</llo_original>
